<compile_context>
chip_gen: v6e
topology: v6e:2x2x1
jax: 0.10.0
libtpu: 0.0.40
codegen_flags: <defaults>
</compile_context>

<pallas_src>
import functools

import jax
import jax.numpy as jnp
from jax import lax
from jax.experimental import pallas as pl
from jax.experimental.pallas import tpu as pltpu

HIDDEN = 128          # LSTM hidden size
NUM_LAYERS = 3        # LSTM layers (bidirectional)
BN_EPS = 1e-5


# ----------------------------------------------------------------------------
# 1) GlobalPointNet kernel: batched per-point MLP (BN folded, ReLU) +
#    per-item attention softmax + weighted pooling. Lane-dense outputs.
# ----------------------------------------------------------------------------
def _pointnet_kernel(x_ref, w1_ref, t1_ref, w2_ref, t2_ref, w3_ref, t3_ref,
                     wa_ref, ba_ref, vec_ref, attn_ref):
    TB, N = attn_ref.shape

    # Batched per-point MLP over all TB*N points in this tile (bf16 MXU, f32 acc).
    x = x_ref[...].astype(jnp.bfloat16)                               # (TB*N, 27)
    h = jnp.dot(x, w1_ref[...], preferred_element_type=jnp.float32) + t1_ref[...]
    h = jnp.maximum(h, 0.0)                                           # (TB*N, 32)
    h = jnp.dot(h.astype(jnp.bfloat16), w2_ref[...],
                preferred_element_type=jnp.float32) + t2_ref[...]
    h = jnp.maximum(h, 0.0)                                           # (TB*N, 48)
    h = jnp.dot(h.astype(jnp.bfloat16), w3_ref[...],
                preferred_element_type=jnp.float32) + t3_ref[...]
    feat = jnp.maximum(h, 0.0)                                        # (TB*N, 64) f32

    wa = wa_ref[...]                                                  # (1, 64)
    # Per-item attention: logits on the lane axis, softmax over points, pooled vec.
    for j in range(TB):                                               # static unroll
        f = feat[j * N:(j + 1) * N, :]                                # (N, 64)
        # (1,64) x (N,64)^T -> (1, N) on the MXU (no XLU cross-lane sum).
        logits = lax.dot_general(wa, f, (((1,), (1,)), ((), ())),
                                 preferred_element_type=jnp.float32) + ba_ref[...]
        m = jnp.max(logits, axis=-1, keepdims=True)
        e = jnp.exp(logits - m)
        w_row = e / jnp.sum(e, axis=-1, keepdims=True)                # (1, N), exact
        attn_ref[j, :] = w_row[0]
        vec_ref[j, :] = jnp.dot(w_row, f, preferred_element_type=jnp.float32)[0]


def pointnet_forward(p, x):
    BL, N, Cin = x.shape
    TB = 8 if BL % 8 == 0 else BL          # items per grid step (block rows mult. of 8)
    x2 = x.reshape(BL * N, Cin)

    def full_spec(a):
        return pl.BlockSpec(a.shape, lambda i: (0,) * a.ndim)

    in_specs = [
        pl.BlockSpec((TB * N, Cin), lambda i: (i, 0)),
        full_spec(p['w1']), full_spec(p['t1']),
        full_spec(p['w2']), full_spec(p['t2']),
        full_spec(p['w3']), full_spec(p['t3']),
        full_spec(p['wa']), full_spec(p['ba']),
    ]
    out_specs = (pl.BlockSpec((TB, 64), lambda i: (i, 0)),
                 pl.BlockSpec((TB, N), lambda i: (i, 0)))
    out_shape = (jax.ShapeDtypeStruct((BL, 64), jnp.float32),
                 jax.ShapeDtypeStruct((BL, N), jnp.float32))

    vec, attn = pl.pallas_call(
        _pointnet_kernel,
        grid=(BL // TB,),
        in_specs=in_specs,
        out_specs=out_specs,
        out_shape=out_shape,
        compiler_params=pltpu.CompilerParams(dimension_semantics=("parallel",)),
    )(x2, p['w1'], p['t1'], p['w2'], p['t2'], p['w3'], p['t3'], p['wa'], p['ba'])
    return vec, attn                                                  # (BL,64), (BL,N)


# ----------------------------------------------------------------------------
# 2) Fused 3-layer bidirectional LSTM + FC head in a single pallas_call.
#    Each layer: hoisted input projection (all timesteps, both directions) then a
#    pl.loop time recurrence. PyTorch gate order: i, f, g, o. Intermediate layer
#    outputs stay resident in the VMEM output buffer (no HBM roundtrips).
# ----------------------------------------------------------------------------
def _bilstm_head_kernel(xs_ref,
                        wih0_ref, b0_ref, whhf0_ref, whhb0_ref,
                        wih1_ref, b1_ref, whhf1_ref, whhb1_ref,
                        wih2_ref, b2_ref, whhf2_ref, whhb2_ref,
                        fc1w_ref, fc1b_ref, fc2w_ref, fc2b_ref,
                        out_ref, head_ref,
                        xp_ref, hf_ref, cf_ref, hb_ref, cb_ref):
    H = whhf0_ref.shape[0]
    BP = hf_ref.shape[0]
    L = out_ref.shape[0] // BP

    def cell(gates, c):
        i = jax.nn.sigmoid(gates[:, 0:H])
        f = jax.nn.sigmoid(gates[:, H:2 * H])
        g = jnp.tanh(gates[:, 2 * H:3 * H])
        o = jax.nn.sigmoid(gates[:, 3 * H:4 * H])
        c_new = f * c + i * g
        return o * jnp.tanh(c_new), c_new

    def run_layer(x_flat, wih_ref, b_ref, whhf_ref, whhb_ref):
        # Hoisted input projection for all timesteps & both directions:
        # (L*BP, Din) @ (Din, 8H) -> [fwd gates | bwd gates], biases folded in.
        xp_ref[...] = (jnp.dot(x_flat.astype(jnp.bfloat16), wih_ref[...],
                               preferred_element_type=jnp.float32) + b_ref[...])

        hf_ref[...] = jnp.zeros_like(hf_ref)
        cf_ref[...] = jnp.zeros_like(cf_ref)
        hb_ref[...] = jnp.zeros_like(hb_ref)
        cb_ref[...] = jnp.zeros_like(cb_ref)

        @pl.loop(0, L)
        def _(t):
            # forward direction processes timestep t
            rf = pl.multiple_of(t * BP, BP)
            gf = xp_ref[pl.ds(rf, BP), 0:4 * H] + jnp.dot(
                hf_ref[...].astype(jnp.bfloat16), whhf_ref[...],
                preferred_element_type=jnp.float32)
            h_new, c_new = cell(gf, cf_ref[...])
            hf_ref[...] = h_new
            cf_ref[...] = c_new
            out_ref[pl.ds(rf, BP), 0:H] = h_new

            # backward direction processes timestep L-1-t
            rb = pl.multiple_of((L - 1 - t) * BP, BP)
            gb = xp_ref[pl.ds(rb, BP), 4 * H:8 * H] + jnp.dot(
                hb_ref[...].astype(jnp.bfloat16), whhb_ref[...],
                preferred_element_type=jnp.float32)
            hb_new, cb_new = cell(gb, cb_ref[...])
            hb_ref[...] = hb_new
            cb_ref[...] = cb_new
            out_ref[pl.ds(rb, BP), H:2 * H] = hb_new

    # Layer 0 consumes the PointNet features; layers 1/2 consume the previous
    # layer's output straight out of the VMEM output buffer.
    run_layer(xs_ref[...], wih0_ref, b0_ref, whhf0_ref, whhb0_ref)
    run_layer(out_ref[...], wih1_ref, b1_ref, whhf1_ref, whhb1_ref)
    run_layer(out_ref[...], wih2_ref, b2_ref, whhf2_ref, whhb2_ref)

    # FC head: Linear(2H,128) + ReLU + Linear(128, out_pad). Padded batch rows are
    # computed too (discarded in the wrapper) — keeps M a multiple of 8.
    seq = out_ref[...]                                                 # (L*BP, 2H)
    h = jnp.dot(seq.astype(jnp.bfloat16), fc1w_ref[...],
                preferred_element_type=jnp.float32) + fc1b_ref[...]
    h = jnp.maximum(h, 0.0)
    head_ref[...] = jnp.dot(h.astype(jnp.bfloat16), fc2w_ref[...],
                            preferred_element_type=jnp.float32) + fc2b_ref[...]


def lstm_head_forward(p, xs_pad2d, L, BP):
    # TODO(synk): nn.LSTM dropout=0.1 between layers applies only in train mode;
    # eval-mode (no-dropout) semantics are implemented here.
    H = HIDDEN
    out_pad = p['fc2_w'].shape[1]
    lp = p['lstm']
    return pl.pallas_call(
        _bilstm_head_kernel,
        out_shape=(jax.ShapeDtypeStruct((L * BP, 2 * H), jnp.float32),
                   jax.ShapeDtypeStruct((L * BP, out_pad), jnp.float32)),
        scratch_shapes=[
            pltpu.VMEM((L * BP, 8 * H), jnp.float32),   # hoisted gate projections
            pltpu.VMEM((BP, H), jnp.float32),           # h fwd
            pltpu.VMEM((BP, H), jnp.float32),           # c fwd
            pltpu.VMEM((BP, H), jnp.float32),           # h bwd
            pltpu.VMEM((BP, H), jnp.float32),           # c bwd
        ],
    )(xs_pad2d,
      lp[0]['wih_cat'], lp[0]['b_cat'], lp[0]['whh_f'], lp[0]['whh_b'],
      lp[1]['wih_cat'], lp[1]['b_cat'], lp[1]['whh_f'], lp[1]['whh_b'],
      lp[2]['wih_cat'], lp[2]['b_cat'], lp[2]['whh_f'], lp[2]['whh_b'],
      p['fc1_w'], p['fc1_b'], p['fc2_w'], p['fc2_b'])


# ----------------------------------------------------------------------------
# Parameter init (deterministic, synthetic). BatchNorm (eval mode) is folded
# into the conv weights (scale) and a per-channel shift. Matmul weights in bf16.
# ----------------------------------------------------------------------------
def init_params(key, M):
    keys = iter(jax.random.split(key, 64))
    nxt = lambda: next(keys)
    nrm = lambda shape, s=0.1: s * jax.random.normal(nxt(), shape, dtype=jnp.float32)

    p = {}
    conv_dims = [(27, 32), (32, 48), (48, 64)]
    for idx, (cin, cout) in enumerate(conv_dims, start=1):
        w = nrm((cin, cout))
        conv_b = nrm((1, cout))
        gamma = 1.0 + nrm((1, cout), 0.05)
        beta = nrm((1, cout), 0.05)
        r_mean = nrm((1, cout), 0.05)
        r_var = 1.0 + jnp.abs(nrm((1, cout), 0.05))
        scale = gamma / jnp.sqrt(r_var + BN_EPS)
        shift = beta + (conv_b - r_mean) * scale
        p[f'w{idx}'] = (w * scale).astype(jnp.bfloat16)   # BN scale folded into weight
        p[f't{idx}'] = shift                              # f32 shift
    p['wa'] = nrm((1, 64))
    p['ba'] = nrm((1, 1))

    p['lstm'] = []
    for l in range(NUM_LAYERS):
        in_dim = 64 if l == 0 else 2 * HIDDEN
        wih_f = nrm((in_dim, 4 * HIDDEN))
        wih_b = nrm((in_dim, 4 * HIDDEN))
        whh_f = nrm((HIDDEN, 4 * HIDDEN))
        whh_b = nrm((HIDDEN, 4 * HIDDEN))
        b_f = nrm((1, 4 * HIDDEN)) + nrm((1, 4 * HIDDEN))             # b_ih + b_hh
        b_b = nrm((1, 4 * HIDDEN)) + nrm((1, 4 * HIDDEN))
        p['lstm'].append(dict(
            wih_cat=jnp.concatenate([wih_f, wih_b], axis=1).astype(jnp.bfloat16),
            b_cat=jnp.concatenate([b_f, b_b], axis=1),
            whh_f=whh_f.astype(jnp.bfloat16),
            whh_b=whh_b.astype(jnp.bfloat16)))

    out_dim = M * 3
    out_pad = ((out_dim + 127) // 128) * 128
    p['fc1_w'] = nrm((2 * HIDDEN, 128)).astype(jnp.bfloat16)
    p['fc1_b'] = nrm((1, 128))
    fc2_w = nrm((128, out_dim))
    fc2_b = nrm((1, out_dim))
    p['fc2_w'] = (jnp.zeros((128, out_pad), jnp.float32)
                  .at[:, :out_dim].set(fc2_w).astype(jnp.bfloat16))
    p['fc2_b'] = jnp.zeros((1, out_pad), jnp.float32).at[:, :out_dim].set(fc2_b)
    return p


# ----------------------------------------------------------------------------
# GlobalModule.forward
# ----------------------------------------------------------------------------
@functools.partial(jax.jit, static_argnums=(2, 3, 4))
def global_module_forward(p, x, batch_size, length_size, M):
    B, L = batch_size, length_size
    vec, attn = pointnet_forward(p, x)                                # (BL,64), (BL,N)

    # batch-major (B, L, 64) -> time-major, batch padded to BP sublanes
    BP = ((B + 7) // 8) * 8
    seq_t = jnp.swapaxes(vec.reshape(B, L, 64), 0, 1)                 # (L, B, 64)
    xs = (jnp.zeros((L, BP, 64), jnp.float32)
          .at[:, :B, :].set(seq_t).reshape(L * BP, 64))

    out2d, head2d = lstm_head_forward(p, xs, L, BP)   # (L*BP, 2H), (L*BP, out_pad)

    out3 = out2d.reshape(L, BP, 2 * HIDDEN)
    g_vec = jnp.swapaxes(out3[:, :B, :], 0, 1)                        # (B, L, 2H)

    head3 = head2d.reshape(L, BP, -1)
    head_bm = jnp.swapaxes(head3[:, :B, :], 0, 1).reshape(B * L, -1)  # (B*L, out_pad)
    g_loc = head_bm[:, :M * 3].reshape(B * L, M, 3)

    attn_weights = attn[..., None]                                    # (BL, N, 1)
    return g_vec, g_loc, attn_weights


if __name__ == "__main__":
    batch_size, length_size, n_points, M = 2, 4, 16, 3
    key = jax.random.PRNGKey(0)
    kx, kp = jax.random.split(key)
    x = jax.random.normal(kx, (batch_size * length_size, n_points, 27),
                          dtype=jnp.float32)
    params = init_params(kp, M)

    g_vec, g_loc, attn_w = global_module_forward(params, x, batch_size, length_size, M)
    jax.block_until_ready((g_vec, g_loc, attn_w))

    assert g_vec.shape == (batch_size, length_size, 2 * HIDDEN)
    assert g_loc.shape == (batch_size * length_size, M, 3)
    assert attn_w.shape == (batch_size * length_size, n_points, 1)
    assert bool(jnp.all(jnp.isfinite(g_vec))) and bool(jnp.all(jnp.isfinite(g_loc)))
    # softmax weights over points sum to 1
    assert bool(jnp.allclose(jnp.sum(attn_w, axis=1), 1.0, atol=1e-5))
    print("KERNEL_OK")
</pallas_src>

<mosaic_0001>
module attributes {stable_mosaic.version = 11 : i64} {
  func.func @_pointnet_kernel(%arg0: i32, %arg1: memref<128x27xf32, #tpu.memory_space<vmem>>, %arg2: memref<27x32xbf16, #tpu.memory_space<vmem>>, %arg3: memref<1x32xf32, #tpu.memory_space<vmem>>, %arg4: memref<32x48xbf16, #tpu.memory_space<vmem>>, %arg5: memref<1x48xf32, #tpu.memory_space<vmem>>, %arg6: memref<48x64xbf16, #tpu.memory_space<vmem>>, %arg7: memref<1x64xf32, #tpu.memory_space<vmem>>, %arg8: memref<1x64xf32, #tpu.memory_space<vmem>>, %arg9: memref<1x1xf32, #tpu.memory_space<vmem>>, %arg10: memref<8x64xf32, #tpu.memory_space<vmem>>, %arg11: memref<8x16xf32, #tpu.memory_space<vmem>>) attributes {dimension_semantics = [#tpu.dimension_semantics<parallel>], iteration_bounds = array<i64: 1>, scalar_prefetch = 0 : i64, scratch_operands = 0 : i64, tpu.core_type = #tpu.core_type<tc>, window_params = [{transform_indices = @transform_0, window_bounds = array<i64: 128, 27>}, {pipeline_mode = #tpu.pipeline_mode<synchronous>, transform_indices = @transform_1, window_bounds = array<i64: 27, 32>}, {pipeline_mode = #tpu.pipeline_mode<synchronous>, transform_indices = @transform_2, window_bounds = array<i64: 1, 32>}, {pipeline_mode = #tpu.pipeline_mode<synchronous>, transform_indices = @transform_3, window_bounds = array<i64: 32, 48>}, {pipeline_mode = #tpu.pipeline_mode<synchronous>, transform_indices = @transform_4, window_bounds = array<i64: 1, 48>}, {pipeline_mode = #tpu.pipeline_mode<synchronous>, transform_indices = @transform_5, window_bounds = array<i64: 48, 64>}, {pipeline_mode = #tpu.pipeline_mode<synchronous>, transform_indices = @transform_6, window_bounds = array<i64: 1, 64>}, {pipeline_mode = #tpu.pipeline_mode<synchronous>, transform_indices = @transform_7, window_bounds = array<i64: 1, 64>}, {pipeline_mode = #tpu.pipeline_mode<synchronous>, transform_indices = @transform_8, window_bounds = array<i64: 1, 1>}, {transform_indices = @transform_9, window_bounds = array<i64: 8, 64>}, {transform_indices = @transform_10, window_bounds = array<i64: 8, 16>}]} {
    %c0 = arith.constant 0 : index
    %c0_0 = arith.constant 0 : index
    %0 = vector.load %arg1[%c0, %c0_0] : memref<128x27xf32, #tpu.memory_space<vmem>>, vector<128x27xf32>
    %1 = arith.truncf %0 : vector<128x27xf32> to vector<128x27xbf16>
    %c0_1 = arith.constant 0 : index
    %c0_2 = arith.constant 0 : index
    %2 = vector.load %arg2[%c0_1, %c0_2] : memref<27x32xbf16, #tpu.memory_space<vmem>>, vector<27x32xbf16>
    %cst = arith.constant dense<0.000000e+00> : vector<128x32xf32>
    %3 = tpu.matmul %1, %2, %cst {dimension_numbers = #tpu.dot_dimension_numbers<[1], [0], [0], [1], [0, 0, 1, 1], [], []>} : vector<128x27xbf16>, vector<27x32xbf16>, vector<128x32xf32> -> vector<128x32xf32>
    %c0_3 = arith.constant 0 : index
    %c0_4 = arith.constant 0 : index
    %4 = vector.load %arg3[%c0_3, %c0_4] : memref<1x32xf32, #tpu.memory_space<vmem>>, vector<1x32xf32>
    %5 = vector.broadcast %4 : vector<1x32xf32> to vector<128x32xf32>
    %6 = arith.addf %3, %5 : vector<128x32xf32>
    %cst_5 = arith.constant 0.000000e+00 : f32
    %7 = vector.broadcast %cst_5 : f32 to vector<128x32xf32>
    %8 = arith.maximumf %6, %7 : vector<128x32xf32>
    %9 = arith.truncf %8 : vector<128x32xf32> to vector<128x32xbf16>
    %c0_6 = arith.constant 0 : index
    %c0_7 = arith.constant 0 : index
    %10 = vector.load %arg4[%c0_6, %c0_7] : memref<32x48xbf16, #tpu.memory_space<vmem>>, vector<32x48xbf16>
    %cst_8 = arith.constant dense<0.000000e+00> : vector<128x48xf32>
    %11 = tpu.matmul %9, %10, %cst_8 {dimension_numbers = #tpu.dot_dimension_numbers<[1], [0], [0], [1], [0, 0, 1, 1], [], []>} : vector<128x32xbf16>, vector<32x48xbf16>, vector<128x48xf32> -> vector<128x48xf32>
    %c0_9 = arith.constant 0 : index
    %c0_10 = arith.constant 0 : index
    %12 = vector.load %arg5[%c0_9, %c0_10] : memref<1x48xf32, #tpu.memory_space<vmem>>, vector<1x48xf32>
    %13 = vector.broadcast %12 : vector<1x48xf32> to vector<128x48xf32>
    %14 = arith.addf %11, %13 : vector<128x48xf32>
    %cst_11 = arith.constant 0.000000e+00 : f32
    %15 = vector.broadcast %cst_11 : f32 to vector<128x48xf32>
    %16 = arith.maximumf %14, %15 : vector<128x48xf32>
    %17 = arith.truncf %16 : vector<128x48xf32> to vector<128x48xbf16>
    %c0_12 = arith.constant 0 : index
    %c0_13 = arith.constant 0 : index
    %18 = vector.load %arg6[%c0_12, %c0_13] : memref<48x64xbf16, #tpu.memory_space<vmem>>, vector<48x64xbf16>
    %cst_14 = arith.constant dense<0.000000e+00> : vector<128x64xf32>
    %19 = tpu.matmul %17, %18, %cst_14 {dimension_numbers = #tpu.dot_dimension_numbers<[1], [0], [0], [1], [0, 0, 1, 1], [], []>} : vector<128x48xbf16>, vector<48x64xbf16>, vector<128x64xf32> -> vector<128x64xf32>
    %c0_15 = arith.constant 0 : index
    %c0_16 = arith.constant 0 : index
    %20 = vector.load %arg7[%c0_15, %c0_16] : memref<1x64xf32, #tpu.memory_space<vmem>>, vector<1x64xf32>
    %21 = vector.broadcast %20 : vector<1x64xf32> to vector<128x64xf32>
    %22 = arith.addf %19, %21 : vector<128x64xf32>
    %cst_17 = arith.constant 0.000000e+00 : f32
    %23 = vector.broadcast %cst_17 : f32 to vector<128x64xf32>
    %24 = arith.maximumf %22, %23 : vector<128x64xf32>
    %c0_18 = arith.constant 0 : index
    %c0_19 = arith.constant 0 : index
    %25 = vector.load %arg8[%c0_18, %c0_19] : memref<1x64xf32, #tpu.memory_space<vmem>>, vector<1x64xf32>
    %26 = vector.extract_strided_slice %24 {offsets = [0, 0], sizes = [16, 64], strides = [1, 1]} : vector<128x64xf32> to vector<16x64xf32>
    %cst_20 = arith.constant dense<0.000000e+00> : vector<1x16xf32>
    %27 = tpu.matmul %25, %26, %cst_20 {dimension_numbers = #tpu.dot_dimension_numbers<[1], [1], [0], [0], [0, 0, 1, 0], [], []>} : vector<1x64xf32>, vector<16x64xf32>, vector<1x16xf32> -> vector<1x16xf32>
    %c0_21 = arith.constant 0 : index
    %c0_22 = arith.constant 0 : index
    %28 = vector.load %arg9[%c0_21, %c0_22] : memref<1x1xf32, #tpu.memory_space<vmem>>, vector<1x1xf32>
    %29 = vector.broadcast %28 : vector<1x1xf32> to vector<1x16xf32>
    %30 = arith.addf %27, %29 : vector<1x16xf32>
    %cst_23 = arith.constant dense<0xFF800000> : vector<1xf32>
    %31 = vector.multi_reduction <maximumf>, %30, %cst_23 [1] : vector<1x16xf32> to vector<1xf32>
    %32 = vector.shape_cast %31 : vector<1xf32> to vector<1x1xf32>
    %33 = vector.broadcast %32 : vector<1x1xf32> to vector<1x16xf32>
    %34 = arith.subf %30, %33 : vector<1x16xf32>
    %35 = math.exp %34 : vector<1x16xf32>
    %cst_24 = arith.constant dense<0.000000e+00> : vector<1xf32>
    %36 = vector.multi_reduction <add>, %35, %cst_24 [1] : vector<1x16xf32> to vector<1xf32>
    %37 = vector.shape_cast %36 : vector<1xf32> to vector<1x1xf32>
    %38 = vector.broadcast %37 : vector<1x1xf32> to vector<1x16xf32>
    %39 = arith.divf %35, %38 : vector<1x16xf32>
    %40 = vector.shape_cast %39 : vector<1x16xf32> to vector<16xf32>
    %c0_25 = arith.constant 0 : index
    %c0_26 = arith.constant 0 : index
    %41 = vector.load %arg11[%c0_25, %c0_26] : memref<8x16xf32, #tpu.memory_space<vmem>>, vector<1x16xf32>
    %42 = vector.shape_cast %41 : vector<1x16xf32> to vector<16xf32>
    %43 = vector.shape_cast %40 : vector<16xf32> to vector<1x16xf32>
    tpu.vector_store %arg11[%c0_25, %c0_26], %43 {strides = array<i32>} : memref<8x16xf32, #tpu.memory_space<vmem>>, vector<1x16xf32>,
    %cst_27 = arith.constant dense<0.000000e+00> : vector<1x64xf32>
    %44 = tpu.matmul %39, %26, %cst_27 {dimension_numbers = #tpu.dot_dimension_numbers<[1], [0], [0], [1], [0, 0, 1, 1], [], []>} : vector<1x16xf32>, vector<16x64xf32>, vector<1x64xf32> -> vector<1x64xf32>
    %45 = vector.shape_cast %44 : vector<1x64xf32> to vector<64xf32>
    %c0_28 = arith.constant 0 : index
    %c0_29 = arith.constant 0 : index
    %46 = vector.load %arg10[%c0_28, %c0_29] : memref<8x64xf32, #tpu.memory_space<vmem>>, vector<1x64xf32>
    %47 = vector.shape_cast %46 : vector<1x64xf32> to vector<64xf32>
    %48 = vector.shape_cast %45 : vector<64xf32> to vector<1x64xf32>
    tpu.vector_store %arg10[%c0_28, %c0_29], %48 {strides = array<i32>} : memref<8x64xf32, #tpu.memory_space<vmem>>, vector<1x64xf32>,
    %49 = vector.extract_strided_slice %24 {offsets = [16, 0], sizes = [16, 64], strides = [1, 1]} : vector<128x64xf32> to vector<16x64xf32>
    %cst_30 = arith.constant dense<0.000000e+00> : vector<1x16xf32>
    %50 = tpu.matmul %25, %49, %cst_30 {dimension_numbers = #tpu.dot_dimension_numbers<[1], [1], [0], [0], [0, 0, 1, 0], [], []>} : vector<1x64xf32>, vector<16x64xf32>, vector<1x16xf32> -> vector<1x16xf32>
    %c0_31 = arith.constant 0 : index
    %c0_32 = arith.constant 0 : index
    %51 = vector.load %arg9[%c0_31, %c0_32] : memref<1x1xf32, #tpu.memory_space<vmem>>, vector<1x1xf32>
    %52 = vector.broadcast %51 : vector<1x1xf32> to vector<1x16xf32>
    %53 = arith.addf %50, %52 : vector<1x16xf32>
    %cst_33 = arith.constant dense<0xFF800000> : vector<1xf32>
    %54 = vector.multi_reduction <maximumf>, %53, %cst_33 [1] : vector<1x16xf32> to vector<1xf32>
    %55 = vector.shape_cast %54 : vector<1xf32> to vector<1x1xf32>
    %56 = vector.broadcast %55 : vector<1x1xf32> to vector<1x16xf32>
    %57 = arith.subf %53, %56 : vector<1x16xf32>
    %58 = math.exp %57 : vector<1x16xf32>
    %cst_34 = arith.constant dense<0.000000e+00> : vector<1xf32>
    %59 = vector.multi_reduction <add>, %58, %cst_34 [1] : vector<1x16xf32> to vector<1xf32>
    %60 = vector.shape_cast %59 : vector<1xf32> to vector<1x1xf32>
    %61 = vector.broadcast %60 : vector<1x1xf32> to vector<1x16xf32>
    %62 = arith.divf %58, %61 : vector<1x16xf32>
    %63 = vector.shape_cast %62 : vector<1x16xf32> to vector<16xf32>
    %c1 = arith.constant 1 : index
    %c0_35 = arith.constant 0 : index
    %64 = vector.load %arg11[%c1, %c0_35] : memref<8x16xf32, #tpu.memory_space<vmem>>, vector<1x16xf32>
    %65 = vector.shape_cast %64 : vector<1x16xf32> to vector<16xf32>
    %66 = vector.shape_cast %63 : vector<16xf32> to vector<1x16xf32>
    tpu.vector_store %arg11[%c1, %c0_35], %66 {strides = array<i32>} : memref<8x16xf32, #tpu.memory_space<vmem>>, vector<1x16xf32>,
    %cst_36 = arith.constant dense<0.000000e+00> : vector<1x64xf32>
    %67 = tpu.matmul %62, %49, %cst_36 {dimension_numbers = #tpu.dot_dimension_numbers<[1], [0], [0], [1], [0, 0, 1, 1], [], []>} : vector<1x16xf32>, vector<16x64xf32>, vector<1x64xf32> -> vector<1x64xf32>
    %68 = vector.shape_cast %67 : vector<1x64xf32> to vector<64xf32>
    %c1_37 = arith.constant 1 : index
    %c0_38 = arith.constant 0 : index
    %69 = vector.load %arg10[%c1_37, %c0_38] : memref<8x64xf32, #tpu.memory_space<vmem>>, vector<1x64xf32>
    %70 = vector.shape_cast %69 : vector<1x64xf32> to vector<64xf32>
    %71 = vector.shape_cast %68 : vector<64xf32> to vector<1x64xf32>
    tpu.vector_store %arg10[%c1_37, %c0_38], %71 {strides = array<i32>} : memref<8x64xf32, #tpu.memory_space<vmem>>, vector<1x64xf32>,
    %72 = vector.extract_strided_slice %24 {offsets = [32, 0], sizes = [16, 64], strides = [1, 1]} : vector<128x64xf32> to vector<16x64xf32>
    %cst_39 = arith.constant dense<0.000000e+00> : vector<1x16xf32>
    %73 = tpu.matmul %25, %72, %cst_39 {dimension_numbers = #tpu.dot_dimension_numbers<[1], [1], [0], [0], [0, 0, 1, 0], [], []>} : vector<1x64xf32>, vector<16x64xf32>, vector<1x16xf32> -> vector<1x16xf32>
    %c0_40 = arith.constant 0 : index
    %c0_41 = arith.constant 0 : index
    %74 = vector.load %arg9[%c0_40, %c0_41] : memref<1x1xf32, #tpu.memory_space<vmem>>, vector<1x1xf32>
    %75 = vector.broadcast %74 : vector<1x1xf32> to vector<1x16xf32>
    %76 = arith.addf %73, %75 : vector<1x16xf32>
    %cst_42 = arith.constant dense<0xFF800000> : vector<1xf32>
    %77 = vector.multi_reduction <maximumf>, %76, %cst_42 [1] : vector<1x16xf32> to vector<1xf32>
    %78 = vector.shape_cast %77 : vector<1xf32> to vector<1x1xf32>
    %79 = vector.broadcast %78 : vector<1x1xf32> to vector<1x16xf32>
    %80 = arith.subf %76, %79 : vector<1x16xf32>
    %81 = math.exp %80 : vector<1x16xf32>
    %cst_43 = arith.constant dense<0.000000e+00> : vector<1xf32>
    %82 = vector.multi_reduction <add>, %81, %cst_43 [1] : vector<1x16xf32> to vector<1xf32>
    %83 = vector.shape_cast %82 : vector<1xf32> to vector<1x1xf32>
    %84 = vector.broadcast %83 : vector<1x1xf32> to vector<1x16xf32>
    %85 = arith.divf %81, %84 : vector<1x16xf32>
    %86 = vector.shape_cast %85 : vector<1x16xf32> to vector<16xf32>
    %c2 = arith.constant 2 : index
    %c0_44 = arith.constant 0 : index
    %87 = vector.load %arg11[%c2, %c0_44] : memref<8x16xf32, #tpu.memory_space<vmem>>, vector<1x16xf32>
    %88 = vector.shape_cast %87 : vector<1x16xf32> to vector<16xf32>
    %89 = vector.shape_cast %86 : vector<16xf32> to vector<1x16xf32>
    tpu.vector_store %arg11[%c2, %c0_44], %89 {strides = array<i32>} : memref<8x16xf32, #tpu.memory_space<vmem>>, vector<1x16xf32>,
    %cst_45 = arith.constant dense<0.000000e+00> : vector<1x64xf32>
    %90 = tpu.matmul %85, %72, %cst_45 {dimension_numbers = #tpu.dot_dimension_numbers<[1], [0], [0], [1], [0, 0, 1, 1], [], []>} : vector<1x16xf32>, vector<16x64xf32>, vector<1x64xf32> -> vector<1x64xf32>
    %91 = vector.shape_cast %90 : vector<1x64xf32> to vector<64xf32>
    %c2_46 = arith.constant 2 : index
    %c0_47 = arith.constant 0 : index
    %92 = vector.load %arg10[%c2_46, %c0_47] : memref<8x64xf32, #tpu.memory_space<vmem>>, vector<1x64xf32>
    %93 = vector.shape_cast %92 : vector<1x64xf32> to vector<64xf32>
    %94 = vector.shape_cast %91 : vector<64xf32> to vector<1x64xf32>
    tpu.vector_store %arg10[%c2_46, %c0_47], %94 {strides = array<i32>} : memref<8x64xf32, #tpu.memory_space<vmem>>, vector<1x64xf32>,
    %95 = vector.extract_strided_slice %24 {offsets = [48, 0], sizes = [16, 64], strides = [1, 1]} : vector<128x64xf32> to vector<16x64xf32>
    %cst_48 = arith.constant dense<0.000000e+00> : vector<1x16xf32>
    %96 = tpu.matmul %25, %95, %cst_48 {dimension_numbers = #tpu.dot_dimension_numbers<[1], [1], [0], [0], [0, 0, 1, 0], [], []>} : vector<1x64xf32>, vector<16x64xf32>, vector<1x16xf32> -> vector<1x16xf32>
    %c0_49 = arith.constant 0 : index
    %c0_50 = arith.constant 0 : index
    %97 = vector.load %arg9[%c0_49, %c0_50] : memref<1x1xf32, #tpu.memory_space<vmem>>, vector<1x1xf32>
    %98 = vector.broadcast %97 : vector<1x1xf32> to vector<1x16xf32>
    %99 = arith.addf %96, %98 : vector<1x16xf32>
    %cst_51 = arith.constant dense<0xFF800000> : vector<1xf32>
    %100 = vector.multi_reduction <maximumf>, %99, %cst_51 [1] : vector<1x16xf32> to vector<1xf32>
    %101 = vector.shape_cast %100 : vector<1xf32> to vector<1x1xf32>
    %102 = vector.broadcast %101 : vector<1x1xf32> to vector<1x16xf32>
    %103 = arith.subf %99, %102 : vector<1x16xf32>
    %104 = math.exp %103 : vector<1x16xf32>
    %cst_52 = arith.constant dense<0.000000e+00> : vector<1xf32>
    %105 = vector.multi_reduction <add>, %104, %cst_52 [1] : vector<1x16xf32> to vector<1xf32>
    %106 = vector.shape_cast %105 : vector<1xf32> to vector<1x1xf32>
    %107 = vector.broadcast %106 : vector<1x1xf32> to vector<1x16xf32>
    %108 = arith.divf %104, %107 : vector<1x16xf32>
    %109 = vector.shape_cast %108 : vector<1x16xf32> to vector<16xf32>
    %c3 = arith.constant 3 : index
    %c0_53 = arith.constant 0 : index
    %110 = vector.load %arg11[%c3, %c0_53] : memref<8x16xf32, #tpu.memory_space<vmem>>, vector<1x16xf32>
    %111 = vector.shape_cast %110 : vector<1x16xf32> to vector<16xf32>
    %112 = vector.shape_cast %109 : vector<16xf32> to vector<1x16xf32>
    tpu.vector_store %arg11[%c3, %c0_53], %112 {strides = array<i32>} : memref<8x16xf32, #tpu.memory_space<vmem>>, vector<1x16xf32>,
    %cst_54 = arith.constant dense<0.000000e+00> : vector<1x64xf32>
    %113 = tpu.matmul %108, %95, %cst_54 {dimension_numbers = #tpu.dot_dimension_numbers<[1], [0], [0], [1], [0, 0, 1, 1], [], []>} : vector<1x16xf32>, vector<16x64xf32>, vector<1x64xf32> -> vector<1x64xf32>
    %114 = vector.shape_cast %113 : vector<1x64xf32> to vector<64xf32>
    %c3_55 = arith.constant 3 : index
    %c0_56 = arith.constant 0 : index
    %115 = vector.load %arg10[%c3_55, %c0_56] : memref<8x64xf32, #tpu.memory_space<vmem>>, vector<1x64xf32>
    %116 = vector.shape_cast %115 : vector<1x64xf32> to vector<64xf32>
    %117 = vector.shape_cast %114 : vector<64xf32> to vector<1x64xf32>
    tpu.vector_store %arg10[%c3_55, %c0_56], %117 {strides = array<i32>} : memref<8x64xf32, #tpu.memory_space<vmem>>, vector<1x64xf32>,
    %118 = vector.extract_strided_slice %24 {offsets = [64, 0], sizes = [16, 64], strides = [1, 1]} : vector<128x64xf32> to vector<16x64xf32>
    %cst_57 = arith.constant dense<0.000000e+00> : vector<1x16xf32>
    %119 = tpu.matmul %25, %118, %cst_57 {dimension_numbers = #tpu.dot_dimension_numbers<[1], [1], [0], [0], [0, 0, 1, 0], [], []>} : vector<1x64xf32>, vector<16x64xf32>, vector<1x16xf32> -> vector<1x16xf32>
    %c0_58 = arith.constant 0 : index
    %c0_59 = arith.constant 0 : index
    %120 = vector.load %arg9[%c0_58, %c0_59] : memref<1x1xf32, #tpu.memory_space<vmem>>, vector<1x1xf32>
    %121 = vector.broadcast %120 : vector<1x1xf32> to vector<1x16xf32>
    %122 = arith.addf %119, %121 : vector<1x16xf32>
    %cst_60 = arith.constant dense<0xFF800000> : vector<1xf32>
    %123 = vector.multi_reduction <maximumf>, %122, %cst_60 [1] : vector<1x16xf32> to vector<1xf32>
    %124 = vector.shape_cast %123 : vector<1xf32> to vector<1x1xf32>
    %125 = vector.broadcast %124 : vector<1x1xf32> to vector<1x16xf32>
    %126 = arith.subf %122, %125 : vector<1x16xf32>
    %127 = math.exp %126 : vector<1x16xf32>
    %cst_61 = arith.constant dense<0.000000e+00> : vector<1xf32>
    %128 = vector.multi_reduction <add>, %127, %cst_61 [1] : vector<1x16xf32> to vector<1xf32>
    %129 = vector.shape_cast %128 : vector<1xf32> to vector<1x1xf32>
    %130 = vector.broadcast %129 : vector<1x1xf32> to vector<1x16xf32>
    %131 = arith.divf %127, %130 : vector<1x16xf32>
    %132 = vector.shape_cast %131 : vector<1x16xf32> to vector<16xf32>
    %c4 = arith.constant 4 : index
    %c0_62 = arith.constant 0 : index
    %133 = vector.load %arg11[%c4, %c0_62] : memref<8x16xf32, #tpu.memory_space<vmem>>, vector<1x16xf32>
    %134 = vector.shape_cast %133 : vector<1x16xf32> to vector<16xf32>
    %135 = vector.shape_cast %132 : vector<16xf32> to vector<1x16xf32>
    tpu.vector_store %arg11[%c4, %c0_62], %135 {strides = array<i32>} : memref<8x16xf32, #tpu.memory_space<vmem>>, vector<1x16xf32>,
    %cst_63 = arith.constant dense<0.000000e+00> : vector<1x64xf32>
    %136 = tpu.matmul %131, %118, %cst_63 {dimension_numbers = #tpu.dot_dimension_numbers<[1], [0], [0], [1], [0, 0, 1, 1], [], []>} : vector<1x16xf32>, vector<16x64xf32>, vector<1x64xf32> -> vector<1x64xf32>
    %137 = vector.shape_cast %136 : vector<1x64xf32> to vector<64xf32>
    %c4_64 = arith.constant 4 : index
    %c0_65 = arith.constant 0 : index
    %138 = vector.load %arg10[%c4_64, %c0_65] : memref<8x64xf32, #tpu.memory_space<vmem>>, vector<1x64xf32>
    %139 = vector.shape_cast %138 : vector<1x64xf32> to vector<64xf32>
    %140 = vector.shape_cast %137 : vector<64xf32> to vector<1x64xf32>
    tpu.vector_store %arg10[%c4_64, %c0_65], %140 {strides = array<i32>} : memref<8x64xf32, #tpu.memory_space<vmem>>, vector<1x64xf32>,
    %141 = vector.extract_strided_slice %24 {offsets = [80, 0], sizes = [16, 64], strides = [1, 1]} : vector<128x64xf32> to vector<16x64xf32>
    %cst_66 = arith.constant dense<0.000000e+00> : vector<1x16xf32>
    %142 = tpu.matmul %25, %141, %cst_66 {dimension_numbers = #tpu.dot_dimension_numbers<[1], [1], [0], [0], [0, 0, 1, 0], [], []>} : vector<1x64xf32>, vector<16x64xf32>, vector<1x16xf32> -> vector<1x16xf32>
    %c0_67 = arith.constant 0 : index
    %c0_68 = arith.constant 0 : index
    %143 = vector.load %arg9[%c0_67, %c0_68] : memref<1x1xf32, #tpu.memory_space<vmem>>, vector<1x1xf32>
    %144 = vector.broadcast %143 : vector<1x1xf32> to vector<1x16xf32>
    %145 = arith.addf %142, %144 : vector<1x16xf32>
    %cst_69 = arith.constant dense<0xFF800000> : vector<1xf32>
    %146 = vector.multi_reduction <maximumf>, %145, %cst_69 [1] : vector<1x16xf32> to vector<1xf32>
    %147 = vector.shape_cast %146 : vector<1xf32> to vector<1x1xf32>
    %148 = vector.broadcast %147 : vector<1x1xf32> to vector<1x16xf32>
    %149 = arith.subf %145, %148 : vector<1x16xf32>
    %150 = math.exp %149 : vector<1x16xf32>
    %cst_70 = arith.constant dense<0.000000e+00> : vector<1xf32>
    %151 = vector.multi_reduction <add>, %150, %cst_70 [1] : vector<1x16xf32> to vector<1xf32>
    %152 = vector.shape_cast %151 : vector<1xf32> to vector<1x1xf32>
    %153 = vector.broadcast %152 : vector<1x1xf32> to vector<1x16xf32>
    %154 = arith.divf %150, %153 : vector<1x16xf32>
    %155 = vector.shape_cast %154 : vector<1x16xf32> to vector<16xf32>
    %c5 = arith.constant 5 : index
    %c0_71 = arith.constant 0 : index
    %156 = vector.load %arg11[%c5, %c0_71] : memref<8x16xf32, #tpu.memory_space<vmem>>, vector<1x16xf32>
    %157 = vector.shape_cast %156 : vector<1x16xf32> to vector<16xf32>
    %158 = vector.shape_cast %155 : vector<16xf32> to vector<1x16xf32>
    tpu.vector_store %arg11[%c5, %c0_71], %158 {strides = array<i32>} : memref<8x16xf32, #tpu.memory_space<vmem>>, vector<1x16xf32>,
    %cst_72 = arith.constant dense<0.000000e+00> : vector<1x64xf32>
    %159 = tpu.matmul %154, %141, %cst_72 {dimension_numbers = #tpu.dot_dimension_numbers<[1], [0], [0], [1], [0, 0, 1, 1], [], []>} : vector<1x16xf32>, vector<16x64xf32>, vector<1x64xf32> -> vector<1x64xf32>
    %160 = vector.shape_cast %159 : vector<1x64xf32> to vector<64xf32>
    %c5_73 = arith.constant 5 : index
    %c0_74 = arith.constant 0 : index
    %161 = vector.load %arg10[%c5_73, %c0_74] : memref<8x64xf32, #tpu.memory_space<vmem>>, vector<1x64xf32>
    %162 = vector.shape_cast %161 : vector<1x64xf32> to vector<64xf32>
    %163 = vector.shape_cast %160 : vector<64xf32> to vector<1x64xf32>
    tpu.vector_store %arg10[%c5_73, %c0_74], %163 {strides = array<i32>} : memref<8x64xf32, #tpu.memory_space<vmem>>, vector<1x64xf32>,
    %164 = vector.extract_strided_slice %24 {offsets = [96, 0], sizes = [16, 64], strides = [1, 1]} : vector<128x64xf32> to vector<16x64xf32>
    %cst_75 = arith.constant dense<0.000000e+00> : vector<1x16xf32>
    %165 = tpu.matmul %25, %164, %cst_75 {dimension_numbers = #tpu.dot_dimension_numbers<[1], [1], [0], [0], [0, 0, 1, 0], [], []>} : vector<1x64xf32>, vector<16x64xf32>, vector<1x16xf32> -> vector<1x16xf32>
    %c0_76 = arith.constant 0 : index
    %c0_77 = arith.constant 0 : index
    %166 = vector.load %arg9[%c0_76, %c0_77] : memref<1x1xf32, #tpu.memory_space<vmem>>, vector<1x1xf32>
    %167 = vector.broadcast %166 : vector<1x1xf32> to vector<1x16xf32>
    %168 = arith.addf %165, %167 : vector<1x16xf32>
    %cst_78 = arith.constant dense<0xFF800000> : vector<1xf32>
    %169 = vector.multi_reduction <maximumf>, %168, %cst_78 [1] : vector<1x16xf32> to vector<1xf32>
    %170 = vector.shape_cast %169 : vector<1xf32> to vector<1x1xf32>
    %171 = vector.broadcast %170 : vector<1x1xf32> to vector<1x16xf32>
    %172 = arith.subf %168, %171 : vector<1x16xf32>
    %173 = math.exp %172 : vector<1x16xf32>
    %cst_79 = arith.constant dense<0.000000e+00> : vector<1xf32>
    %174 = vector.multi_reduction <add>, %173, %cst_79 [1] : vector<1x16xf32> to vector<1xf32>
    %175 = vector.shape_cast %174 : vector<1xf32> to vector<1x1xf32>
    %176 = vector.broadcast %175 : vector<1x1xf32> to vector<1x16xf32>
    %177 = arith.divf %173, %176 : vector<1x16xf32>
    %178 = vector.shape_cast %177 : vector<1x16xf32> to vector<16xf32>
    %c6 = arith.constant 6 : index
    %c0_80 = arith.constant 0 : index
    %179 = vector.load %arg11[%c6, %c0_80] : memref<8x16xf32, #tpu.memory_space<vmem>>, vector<1x16xf32>
    %180 = vector.shape_cast %179 : vector<1x16xf32> to vector<16xf32>
    %181 = vector.shape_cast %178 : vector<16xf32> to vector<1x16xf32>
    tpu.vector_store %arg11[%c6, %c0_80], %181 {strides = array<i32>} : memref<8x16xf32, #tpu.memory_space<vmem>>, vector<1x16xf32>,
    %cst_81 = arith.constant dense<0.000000e+00> : vector<1x64xf32>
    %182 = tpu.matmul %177, %164, %cst_81 {dimension_numbers = #tpu.dot_dimension_numbers<[1], [0], [0], [1], [0, 0, 1, 1], [], []>} : vector<1x16xf32>, vector<16x64xf32>, vector<1x64xf32> -> vector<1x64xf32>
    %183 = vector.shape_cast %182 : vector<1x64xf32> to vector<64xf32>
    %c6_82 = arith.constant 6 : index
    %c0_83 = arith.constant 0 : index
    %184 = vector.load %arg10[%c6_82, %c0_83] : memref<8x64xf32, #tpu.memory_space<vmem>>, vector<1x64xf32>
    %185 = vector.shape_cast %184 : vector<1x64xf32> to vector<64xf32>
    %186 = vector.shape_cast %183 : vector<64xf32> to vector<1x64xf32>
    tpu.vector_store %arg10[%c6_82, %c0_83], %186 {strides = array<i32>} : memref<8x64xf32, #tpu.memory_space<vmem>>, vector<1x64xf32>,
    %187 = vector.extract_strided_slice %24 {offsets = [112, 0], sizes = [16, 64], strides = [1, 1]} : vector<128x64xf32> to vector<16x64xf32>
    %cst_84 = arith.constant dense<0.000000e+00> : vector<1x16xf32>
    %188 = tpu.matmul %25, %187, %cst_84 {dimension_numbers = #tpu.dot_dimension_numbers<[1], [1], [0], [0], [0, 0, 1, 0], [], []>} : vector<1x64xf32>, vector<16x64xf32>, vector<1x16xf32> -> vector<1x16xf32>
    %c0_85 = arith.constant 0 : index
    %c0_86 = arith.constant 0 : index
    %189 = vector.load %arg9[%c0_85, %c0_86] : memref<1x1xf32, #tpu.memory_space<vmem>>, vector<1x1xf32>
    %190 = vector.broadcast %189 : vector<1x1xf32> to vector<1x16xf32>
    %191 = arith.addf %188, %190 : vector<1x16xf32>
    %cst_87 = arith.constant dense<0xFF800000> : vector<1xf32>
    %192 = vector.multi_reduction <maximumf>, %191, %cst_87 [1] : vector<1x16xf32> to vector<1xf32>
    %193 = vector.shape_cast %192 : vector<1xf32> to vector<1x1xf32>
    %194 = vector.broadcast %193 : vector<1x1xf32> to vector<1x16xf32>
    %195 = arith.subf %191, %194 : vector<1x16xf32>
    %196 = math.exp %195 : vector<1x16xf32>
    %cst_88 = arith.constant dense<0.000000e+00> : vector<1xf32>
    %197 = vector.multi_reduction <add>, %196, %cst_88 [1] : vector<1x16xf32> to vector<1xf32>
    %198 = vector.shape_cast %197 : vector<1xf32> to vector<1x1xf32>
    %199 = vector.broadcast %198 : vector<1x1xf32> to vector<1x16xf32>
    %200 = arith.divf %196, %199 : vector<1x16xf32>
    %201 = vector.shape_cast %200 : vector<1x16xf32> to vector<16xf32>
    %c7 = arith.constant 7 : index
    %c0_89 = arith.constant 0 : index
    %202 = vector.load %arg11[%c7, %c0_89] : memref<8x16xf32, #tpu.memory_space<vmem>>, vector<1x16xf32>
    %203 = vector.shape_cast %202 : vector<1x16xf32> to vector<16xf32>
    %204 = vector.shape_cast %201 : vector<16xf32> to vector<1x16xf32>
    tpu.vector_store %arg11[%c7, %c0_89], %204 {strides = array<i32>} : memref<8x16xf32, #tpu.memory_space<vmem>>, vector<1x16xf32>,
    %cst_90 = arith.constant dense<0.000000e+00> : vector<1x64xf32>
    %205 = tpu.matmul %200, %187, %cst_90 {dimension_numbers = #tpu.dot_dimension_numbers<[1], [0], [0], [1], [0, 0, 1, 1], [], []>} : vector<1x16xf32>, vector<16x64xf32>, vector<1x64xf32> -> vector<1x64xf32>
    %206 = vector.shape_cast %205 : vector<1x64xf32> to vector<64xf32>
    %c7_91 = arith.constant 7 : index
    %c0_92 = arith.constant 0 : index
    %207 = vector.load %arg10[%c7_91, %c0_92] : memref<8x64xf32, #tpu.memory_space<vmem>>, vector<1x64xf32>
    %208 = vector.shape_cast %207 : vector<1x64xf32> to vector<64xf32>
    %209 = vector.shape_cast %206 : vector<64xf32> to vector<1x64xf32>
    tpu.vector_store %arg10[%c7_91, %c0_92], %209 {strides = array<i32>} : memref<8x64xf32, #tpu.memory_space<vmem>>, vector<1x64xf32>,
    return
  }
  func.func @transform_0(%arg0: i32) -> (i32, i32) {
    %c0_i32 = arith.constant 0 : i32
    %c0_i32_0 = arith.constant 0 : i32
    return %arg0, %c0_i32 : i32, i32
  }
  func.func @transform_1(%arg0: i32) -> (i32, i32) {
    %c0_i32 = arith.constant 0 : i32
    %c0_i32_0 = arith.constant 0 : i32
    %c0_i32_1 = arith.constant 0 : i32
    return %c0_i32, %c0_i32_0 : i32, i32
  }
  func.func @transform_2(%arg0: i32) -> (i32, i32) {
    %c0_i32 = arith.constant 0 : i32
    %c0_i32_0 = arith.constant 0 : i32
    %c0_i32_1 = arith.constant 0 : i32
    return %c0_i32, %c0_i32_0 : i32, i32
  }
  func.func @transform_3(%arg0: i32) -> (i32, i32) {
    %c0_i32 = arith.constant 0 : i32
    %c0_i32_0 = arith.constant 0 : i32
    %c0_i32_1 = arith.constant 0 : i32
    return %c0_i32, %c0_i32_0 : i32, i32
  }
  func.func @transform_4(%arg0: i32) -> (i32, i32) {
    %c0_i32 = arith.constant 0 : i32
    %c0_i32_0 = arith.constant 0 : i32
    %c0_i32_1 = arith.constant 0 : i32
    return %c0_i32, %c0_i32_0 : i32, i32
  }
  func.func @transform_5(%arg0: i32) -> (i32, i32) {
    %c0_i32 = arith.constant 0 : i32
    %c0_i32_0 = arith.constant 0 : i32
    %c0_i32_1 = arith.constant 0 : i32
    return %c0_i32, %c0_i32_0 : i32, i32
  }
  func.func @transform_6(%arg0: i32) -> (i32, i32) {
    %c0_i32 = arith.constant 0 : i32
    %c0_i32_0 = arith.constant 0 : i32
    %c0_i32_1 = arith.constant 0 : i32
    return %c0_i32, %c0_i32_0 : i32, i32
  }
  func.func @transform_7(%arg0: i32) -> (i32, i32) {
    %c0_i32 = arith.constant 0 : i32
    %c0_i32_0 = arith.constant 0 : i32
    %c0_i32_1 = arith.constant 0 : i32
    return %c0_i32, %c0_i32_0 : i32, i32
  }
  func.func @transform_8(%arg0: i32) -> (i32, i32) {
    %c0_i32 = arith.constant 0 : i32
    %c0_i32_0 = arith.constant 0 : i32
    %c0_i32_1 = arith.constant 0 : i32
    return %c0_i32, %c0_i32_0 : i32, i32
  }
  func.func @transform_9(%arg0: i32) -> (i32, i32) {
    %c0_i32 = arith.constant 0 : i32
    %c0_i32_0 = arith.constant 0 : i32
    return %arg0, %c0_i32 : i32, i32
  }
  func.func @transform_10(%arg0: i32) -> (i32, i32) {
    %c0_i32 = arith.constant 0 : i32
    %c0_i32_0 = arith.constant 0 : i32
    return %arg0, %c0_i32 : i32, i32
  }
}

module attributes {stable_mosaic.version = 11 : i64} {
  func.func @_bilstm_head_kernel(%arg0: memref<32x64xf32, #tpu.memory_space<vmem>>, %arg1: memref<64x1024xbf16, #tpu.memory_space<vmem>>, %arg2: memref<1x1024xf32, #tpu.memory_space<vmem>>, %arg3: memref<128x512xbf16, #tpu.memory_space<vmem>>, %arg4: memref<128x512xbf16, #tpu.memory_space<vmem>>, %arg5: memref<256x1024xbf16, #tpu.memory_space<vmem>>, %arg6: memref<1x1024xf32, #tpu.memory_space<vmem>>, %arg7: memref<128x512xbf16, #tpu.memory_space<vmem>>, %arg8: memref<128x512xbf16, #tpu.memory_space<vmem>>, %arg9: memref<256x1024xbf16, #tpu.memory_space<vmem>>, %arg10: memref<1x1024xf32, #tpu.memory_space<vmem>>, %arg11: memref<128x512xbf16, #tpu.memory_space<vmem>>, %arg12: memref<128x512xbf16, #tpu.memory_space<vmem>>, %arg13: memref<256x128xbf16, #tpu.memory_space<vmem>>, %arg14: memref<1x128xf32, #tpu.memory_space<vmem>>, %arg15: memref<128x128xbf16, #tpu.memory_space<vmem>>, %arg16: memref<1x128xf32, #tpu.memory_space<vmem>>, %arg17: memref<32x256xf32, #tpu.memory_space<vmem>>, %arg18: memref<32x128xf32, #tpu.memory_space<vmem>>, %arg19: memref<32x1024xf32, #tpu.memory_space<vmem>>, %arg20: memref<8x128xf32, #tpu.memory_space<vmem>>, %arg21: memref<8x128xf32, #tpu.memory_space<vmem>>, %arg22: memref<8x128xf32, #tpu.memory_space<vmem>>, %arg23: memref<8x128xf32, #tpu.memory_space<vmem>>) attributes {dimension_semantics = [], scalar_prefetch = 0 : i64, scratch_operands = 5 : i64, tpu.core_type = #tpu.core_type<tc>} {
    %c0 = arith.constant 0 : index
    %c0_0 = arith.constant 0 : index
    %0 = vector.load %arg0[%c0, %c0_0] : memref<32x64xf32, #tpu.memory_space<vmem>>, vector<32x64xf32>
    %1 = arith.truncf %0 : vector<32x64xf32> to vector<32x64xbf16>
    %c0_1 = arith.constant 0 : index
    %c0_2 = arith.constant 0 : index
    %2 = vector.load %arg1[%c0_1, %c0_2] : memref<64x1024xbf16, #tpu.memory_space<vmem>>, vector<64x1024xbf16>
    %cst = arith.constant dense<0.000000e+00> : vector<32x1024xf32>
    %3 = tpu.matmul %1, %2, %cst {dimension_numbers = #tpu.dot_dimension_numbers<[1], [0], [0], [1], [0, 0, 1, 1], [], []>} : vector<32x64xbf16>, vector<64x1024xbf16>, vector<32x1024xf32> -> vector<32x1024xf32>
    %c0_3 = arith.constant 0 : index
    %c0_4 = arith.constant 0 : index
    %4 = vector.load %arg2[%c0_3, %c0_4] : memref<1x1024xf32, #tpu.memory_space<vmem>>, vector<1x1024xf32>
    %5 = vector.broadcast %4 : vector<1x1024xf32> to vector<32x1024xf32>
    %6 = arith.addf %3, %5 : vector<32x1024xf32>
    %c0_5 = arith.constant 0 : index
    %c0_6 = arith.constant 0 : index
    %7 = vector.load %arg19[%c0_5, %c0_6] : memref<32x1024xf32, #tpu.memory_space<vmem>>, vector<32x1024xf32>
    tpu.vector_store %arg19[%c0_5, %c0_6], %6 {strides = array<i32>} : memref<32x1024xf32, #tpu.memory_space<vmem>>, vector<32x1024xf32>,
    %cst_7 = arith.constant 0.000000e+00 : f32
    %8 = vector.broadcast %cst_7 : f32 to vector<8x128xf32>
    %c0_8 = arith.constant 0 : index
    %c0_9 = arith.constant 0 : index
    %9 = vector.load %arg20[%c0_8, %c0_9] : memref<8x128xf32, #tpu.memory_space<vmem>>, vector<8x128xf32>
    tpu.vector_store %arg20[%c0_8, %c0_9], %8 {strides = array<i32>} : memref<8x128xf32, #tpu.memory_space<vmem>>, vector<8x128xf32>,
    %cst_10 = arith.constant 0.000000e+00 : f32
    %10 = vector.broadcast %cst_10 : f32 to vector<8x128xf32>
    %c0_11 = arith.constant 0 : index
    %c0_12 = arith.constant 0 : index
    %11 = vector.load %arg21[%c0_11, %c0_12] : memref<8x128xf32, #tpu.memory_space<vmem>>, vector<8x128xf32>
    tpu.vector_store %arg21[%c0_11, %c0_12], %10 {strides = array<i32>} : memref<8x128xf32, #tpu.memory_space<vmem>>, vector<8x128xf32>,
    %cst_13 = arith.constant 0.000000e+00 : f32
    %12 = vector.broadcast %cst_13 : f32 to vector<8x128xf32>
    %c0_14 = arith.constant 0 : index
    %c0_15 = arith.constant 0 : index
    %13 = vector.load %arg22[%c0_14, %c0_15] : memref<8x128xf32, #tpu.memory_space<vmem>>, vector<8x128xf32>
    tpu.vector_store %arg22[%c0_14, %c0_15], %12 {strides = array<i32>} : memref<8x128xf32, #tpu.memory_space<vmem>>, vector<8x128xf32>,
    %cst_16 = arith.constant 0.000000e+00 : f32
    %14 = vector.broadcast %cst_16 : f32 to vector<8x128xf32>
    %c0_17 = arith.constant 0 : index
    %c0_18 = arith.constant 0 : index
    %15 = vector.load %arg23[%c0_17, %c0_18] : memref<8x128xf32, #tpu.memory_space<vmem>>, vector<8x128xf32>
    tpu.vector_store %arg23[%c0_17, %c0_18], %14 {strides = array<i32>} : memref<8x128xf32, #tpu.memory_space<vmem>>, vector<8x128xf32>,
    %c0_i32 = arith.constant 0 : i32
    %c4_i32 = arith.constant 4 : i32
    %16 = arith.addi %c0_i32, %c4_i32 : i32
    %c1_i32 = arith.constant 1 : i32
    scf.for %arg24 = %c0_i32 to %16 step %c1_i32  : i32 {
      %c1_i32_85 = arith.constant 1 : i32
      %67 = arith.muli %arg24, %c1_i32_85 : i32
      %c0_i32_86 = arith.constant 0 : i32
      %68 = arith.addi %c0_i32_86, %67 : i32
      %c8_i32 = arith.constant 8 : i32
      %69 = arith.muli %68, %c8_i32 : i32
      %70 = tpu.assume_multiple %69, 8 : i32
      %71 = arith.index_cast %70 : i32 to index
      %c0_87 = arith.constant 0 : index
      %72 = vector.load %arg19[%71, %c0_87] : memref<32x1024xf32, #tpu.memory_space<vmem>>, vector<8x512xf32>
      %c0_88 = arith.constant 0 : index
      %c0_89 = arith.constant 0 : index
      %73 = vector.load %arg20[%c0_88, %c0_89] : memref<8x128xf32, #tpu.memory_space<vmem>>, vector<8x128xf32>
      %74 = arith.truncf %73 : vector<8x128xf32> to vector<8x128xbf16>
      %c0_90 = arith.constant 0 : index
      %c0_91 = arith.constant 0 : index
      %75 = vector.load %arg3[%c0_90, %c0_91] : memref<128x512xbf16, #tpu.memory_space<vmem>>, vector<128x512xbf16>
      %cst_92 = arith.constant dense<0.000000e+00> : vector<8x512xf32>
      %76 = tpu.matmul %74, %75, %cst_92 {dimension_numbers = #tpu.dot_dimension_numbers<[1], [0], [0], [1], [0, 0, 1, 1], [], []>} : vector<8x128xbf16>, vector<128x512xbf16>, vector<8x512xf32> -> vector<8x512xf32>
      %77 = arith.addf %72, %76 : vector<8x512xf32>
      %c0_93 = arith.constant 0 : index
      %c0_94 = arith.constant 0 : index
      %78 = vector.load %arg21[%c0_93, %c0_94] : memref<8x128xf32, #tpu.memory_space<vmem>>, vector<8x128xf32>
      %79 = vector.extract_strided_slice %77 {offsets = [0, 0], sizes = [8, 128], strides = [1, 1]} : vector<8x512xf32> to vector<8x128xf32>
      %80 = arith.negf %79 : vector<8x128xf32>
      %81 = math.exp %80 : vector<8x128xf32>
      %cst_95 = arith.constant 1.000000e+00 : f32
      %82 = vector.broadcast %cst_95 : f32 to vector<8x128xf32>
      %83 = arith.addf %82, %81 : vector<8x128xf32>
      %84 = arith.divf %82, %83 : vector<8x128xf32>
      %85 = vector.extract_strided_slice %77 {offsets = [0, 128], sizes = [8, 128], strides = [1, 1]} : vector<8x512xf32> to vector<8x128xf32>
      %86 = arith.negf %85 : vector<8x128xf32>
      %87 = math.exp %86 : vector<8x128xf32>
      %cst_96 = arith.constant 1.000000e+00 : f32
      %88 = vector.broadcast %cst_96 : f32 to vector<8x128xf32>
      %89 = arith.addf %88, %87 : vector<8x128xf32>
      %90 = arith.divf %88, %89 : vector<8x128xf32>
      %91 = vector.extract_strided_slice %77 {offsets = [0, 256], sizes = [8, 128], strides = [1, 1]} : vector<8x512xf32> to vector<8x128xf32>
      %92 = math.tanh %91 : vector<8x128xf32>
      %93 = vector.extract_strided_slice %77 {offsets = [0, 384], sizes = [8, 128], strides = [1, 1]} : vector<8x512xf32> to vector<8x128xf32>
      %94 = arith.negf %93 : vector<8x128xf32>
      %95 = math.exp %94 : vector<8x128xf32>
      %cst_97 = arith.constant 1.000000e+00 : f32
      %96 = vector.broadcast %cst_97 : f32 to vector<8x128xf32>
      %97 = arith.addf %96, %95 : vector<8x128xf32>
      %98 = arith.divf %96, %97 : vector<8x128xf32>
      %99 = arith.mulf %90, %78 : vector<8x128xf32>
      %100 = arith.mulf %84, %92 : vector<8x128xf32>
      %101 = arith.addf %99, %100 : vector<8x128xf32>
      %102 = math.tanh %101 : vector<8x128xf32>
      %103 = arith.mulf %98, %102 : vector<8x128xf32>
      %c0_98 = arith.constant 0 : index
      %c0_99 = arith.constant 0 : index
      %104 = vector.load %arg20[%c0_98, %c0_99] : memref<8x128xf32, #tpu.memory_space<vmem>>, vector<8x128xf32>
      tpu.vector_store %arg20[%c0_98, %c0_99], %103 {strides = array<i32>} : memref<8x128xf32, #tpu.memory_space<vmem>>, vector<8x128xf32>,
      %c0_100 = arith.constant 0 : index
      %c0_101 = arith.constant 0 : index
      %105 = vector.load %arg21[%c0_100, %c0_101] : memref<8x128xf32, #tpu.memory_space<vmem>>, vector<8x128xf32>
      tpu.vector_store %arg21[%c0_100, %c0_101], %101 {strides = array<i32>} : memref<8x128xf32, #tpu.memory_space<vmem>>, vector<8x128xf32>,
      %106 = arith.index_cast %70 : i32 to index
      %c0_102 = arith.constant 0 : index
      %107 = vector.load %arg17[%106, %c0_102] : memref<32x256xf32, #tpu.memory_space<vmem>>, vector<8x128xf32>
      tpu.vector_store %arg17[%106, %c0_102], %103 {strides = array<i32>} : memref<32x256xf32, #tpu.memory_space<vmem>>, vector<8x128xf32>,
      %c3_i32 = arith.constant 3 : i32
      %108 = arith.subi %c3_i32, %68 : i32
      %c8_i32_103 = arith.constant 8 : i32
      %109 = arith.muli %108, %c8_i32_103 : i32
      %110 = tpu.assume_multiple %109, 8 : i32
      %111 = arith.index_cast %110 : i32 to index
      %c512 = arith.constant 512 : index
      %112 = vector.load %arg19[%111, %c512] : memref<32x1024xf32, #tpu.memory_space<vmem>>, vector<8x512xf32>
      %c0_104 = arith.constant 0 : index
      %c0_105 = arith.constant 0 : index
      %113 = vector.load %arg22[%c0_104, %c0_105] : memref<8x128xf32, #tpu.memory_space<vmem>>, vector<8x128xf32>
      %114 = arith.truncf %113 : vector<8x128xf32> to vector<8x128xbf16>
      %c0_106 = arith.constant 0 : index
      %c0_107 = arith.constant 0 : index
      %115 = vector.load %arg4[%c0_106, %c0_107] : memref<128x512xbf16, #tpu.memory_space<vmem>>, vector<128x512xbf16>
      %cst_108 = arith.constant dense<0.000000e+00> : vector<8x512xf32>
      %116 = tpu.matmul %114, %115, %cst_108 {dimension_numbers = #tpu.dot_dimension_numbers<[1], [0], [0], [1], [0, 0, 1, 1], [], []>} : vector<8x128xbf16>, vector<128x512xbf16>, vector<8x512xf32> -> vector<8x512xf32>
      %117 = arith.addf %112, %116 : vector<8x512xf32>
      %c0_109 = arith.constant 0 : index
      %c0_110 = arith.constant 0 : index
      %118 = vector.load %arg23[%c0_109, %c0_110] : memref<8x128xf32, #tpu.memory_space<vmem>>, vector<8x128xf32>
      %119 = vector.extract_strided_slice %117 {offsets = [0, 0], sizes = [8, 128], strides = [1, 1]} : vector<8x512xf32> to vector<8x128xf32>
      %120 = arith.negf %119 : vector<8x128xf32>
      %121 = math.exp %120 : vector<8x128xf32>
      %cst_111 = arith.constant 1.000000e+00 : f32
      %122 = vector.broadcast %cst_111 : f32 to vector<8x128xf32>
      %123 = arith.addf %122, %121 : vector<8x128xf32>
      %124 = arith.divf %122, %123 : vector<8x128xf32>
      %125 = vector.extract_strided_slice %117 {offsets = [0, 128], sizes = [8, 128], strides = [1, 1]} : vector<8x512xf32> to vector<8x128xf32>
      %126 = arith.negf %125 : vector<8x128xf32>
      %127 = math.exp %126 : vector<8x128xf32>
      %cst_112 = arith.constant 1.000000e+00 : f32
      %128 = vector.broadcast %cst_112 : f32 to vector<8x128xf32>
      %129 = arith.addf %128, %127 : vector<8x128xf32>
      %130 = arith.divf %128, %129 : vector<8x128xf32>
      %131 = vector.extract_strided_slice %117 {offsets = [0, 256], sizes = [8, 128], strides = [1, 1]} : vector<8x512xf32> to vector<8x128xf32>
      %132 = math.tanh %131 : vector<8x128xf32>
      %133 = vector.extract_strided_slice %117 {offsets = [0, 384], sizes = [8, 128], strides = [1, 1]} : vector<8x512xf32> to vector<8x128xf32>
      %134 = arith.negf %133 : vector<8x128xf32>
      %135 = math.exp %134 : vector<8x128xf32>
      %cst_113 = arith.constant 1.000000e+00 : f32
      %136 = vector.broadcast %cst_113 : f32 to vector<8x128xf32>
      %137 = arith.addf %136, %135 : vector<8x128xf32>
      %138 = arith.divf %136, %137 : vector<8x128xf32>
      %139 = arith.mulf %130, %118 : vector<8x128xf32>
      %140 = arith.mulf %124, %132 : vector<8x128xf32>
      %141 = arith.addf %139, %140 : vector<8x128xf32>
      %142 = math.tanh %141 : vector<8x128xf32>
      %143 = arith.mulf %138, %142 : vector<8x128xf32>
      %c0_114 = arith.constant 0 : index
      %c0_115 = arith.constant 0 : index
      %144 = vector.load %arg22[%c0_114, %c0_115] : memref<8x128xf32, #tpu.memory_space<vmem>>, vector<8x128xf32>
      tpu.vector_store %arg22[%c0_114, %c0_115], %143 {strides = array<i32>} : memref<8x128xf32, #tpu.memory_space<vmem>>, vector<8x128xf32>,
      %c0_116 = arith.constant 0 : index
      %c0_117 = arith.constant 0 : index
      %145 = vector.load %arg23[%c0_116, %c0_117] : memref<8x128xf32, #tpu.memory_space<vmem>>, vector<8x128xf32>
      tpu.vector_store %arg23[%c0_116, %c0_117], %141 {strides = array<i32>} : memref<8x128xf32, #tpu.memory_space<vmem>>, vector<8x128xf32>,
      %146 = arith.index_cast %110 : i32 to index
      %c128 = arith.constant 128 : index
      %147 = vector.load %arg17[%146, %c128] : memref<32x256xf32, #tpu.memory_space<vmem>>, vector<8x128xf32>
      tpu.vector_store %arg17[%146, %c128], %143 {strides = array<i32>} : memref<32x256xf32, #tpu.memory_space<vmem>>, vector<8x128xf32>,
    }
    %c4_i32_19 = arith.constant 4 : i32
    %c0_20 = arith.constant 0 : index
    %c0_21 = arith.constant 0 : index
    %17 = vector.load %arg17[%c0_20, %c0_21] : memref<32x256xf32, #tpu.memory_space<vmem>>, vector<32x256xf32>
    %18 = arith.truncf %17 : vector<32x256xf32> to vector<32x256xbf16>
    %c0_22 = arith.constant 0 : index
    %c0_23 = arith.constant 0 : index
    %19 = vector.load %arg5[%c0_22, %c0_23] : memref<256x1024xbf16, #tpu.memory_space<vmem>>, vector<256x1024xbf16>
    %cst_24 = arith.constant dense<0.000000e+00> : vector<32x1024xf32>
    %20 = tpu.matmul %18, %19, %cst_24 {dimension_numbers = #tpu.dot_dimension_numbers<[1], [0], [0], [1], [0, 0, 1, 1], [], []>} : vector<32x256xbf16>, vector<256x1024xbf16>, vector<32x1024xf32> -> vector<32x1024xf32>
    %c0_25 = arith.constant 0 : index
    %c0_26 = arith.constant 0 : index
    %21 = vector.load %arg6[%c0_25, %c0_26] : memref<1x1024xf32, #tpu.memory_space<vmem>>, vector<1x1024xf32>
    %22 = vector.broadcast %21 : vector<1x1024xf32> to vector<32x1024xf32>
    %23 = arith.addf %20, %22 : vector<32x1024xf32>
    %c0_27 = arith.constant 0 : index
    %c0_28 = arith.constant 0 : index
    %24 = vector.load %arg19[%c0_27, %c0_28] : memref<32x1024xf32, #tpu.memory_space<vmem>>, vector<32x1024xf32>
    tpu.vector_store %arg19[%c0_27, %c0_28], %23 {strides = array<i32>} : memref<32x1024xf32, #tpu.memory_space<vmem>>, vector<32x1024xf32>,
    %cst_29 = arith.constant 0.000000e+00 : f32
    %25 = vector.broadcast %cst_29 : f32 to vector<8x128xf32>
    %c0_30 = arith.constant 0 : index
    %c0_31 = arith.constant 0 : index
    %26 = vector.load %arg20[%c0_30, %c0_31] : memref<8x128xf32, #tpu.memory_space<vmem>>, vector<8x128xf32>
    tpu.vector_store %arg20[%c0_30, %c0_31], %25 {strides = array<i32>} : memref<8x128xf32, #tpu.memory_space<vmem>>, vector<8x128xf32>,
    %cst_32 = arith.constant 0.000000e+00 : f32
    %27 = vector.broadcast %cst_32 : f32 to vector<8x128xf32>
    %c0_33 = arith.constant 0 : index
    %c0_34 = arith.constant 0 : index
    %28 = vector.load %arg21[%c0_33, %c0_34] : memref<8x128xf32, #tpu.memory_space<vmem>>, vector<8x128xf32>
    tpu.vector_store %arg21[%c0_33, %c0_34], %27 {strides = array<i32>} : memref<8x128xf32, #tpu.memory_space<vmem>>, vector<8x128xf32>,
    %cst_35 = arith.constant 0.000000e+00 : f32
    %29 = vector.broadcast %cst_35 : f32 to vector<8x128xf32>
    %c0_36 = arith.constant 0 : index
    %c0_37 = arith.constant 0 : index
    %30 = vector.load %arg22[%c0_36, %c0_37] : memref<8x128xf32, #tpu.memory_space<vmem>>, vector<8x128xf32>
    tpu.vector_store %arg22[%c0_36, %c0_37], %29 {strides = array<i32>} : memref<8x128xf32, #tpu.memory_space<vmem>>, vector<8x128xf32>,
    %cst_38 = arith.constant 0.000000e+00 : f32
    %31 = vector.broadcast %cst_38 : f32 to vector<8x128xf32>
    %c0_39 = arith.constant 0 : index
    %c0_40 = arith.constant 0 : index
    %32 = vector.load %arg23[%c0_39, %c0_40] : memref<8x128xf32, #tpu.memory_space<vmem>>, vector<8x128xf32>
    tpu.vector_store %arg23[%c0_39, %c0_40], %31 {strides = array<i32>} : memref<8x128xf32, #tpu.memory_space<vmem>>, vector<8x128xf32>,
    %c0_i32_41 = arith.constant 0 : i32
    %c4_i32_42 = arith.constant 4 : i32
    %33 = arith.addi %c0_i32_41, %c4_i32_42 : i32
    %c1_i32_43 = arith.constant 1 : i32
    scf.for %arg24 = %c0_i32_41 to %33 step %c1_i32_43  : i32 {
      %c1_i32_85 = arith.constant 1 : i32
      %67 = arith.muli %arg24, %c1_i32_85 : i32
      %c0_i32_86 = arith.constant 0 : i32
      %68 = arith.addi %c0_i32_86, %67 : i32
      %c8_i32 = arith.constant 8 : i32
      %69 = arith.muli %68, %c8_i32 : i32
      %70 = tpu.assume_multiple %69, 8 : i32
      %71 = arith.index_cast %70 : i32 to index
      %c0_87 = arith.constant 0 : index
      %72 = vector.load %arg19[%71, %c0_87] : memref<32x1024xf32, #tpu.memory_space<vmem>>, vector<8x512xf32>
      %c0_88 = arith.constant 0 : index
      %c0_89 = arith.constant 0 : index
      %73 = vector.load %arg20[%c0_88, %c0_89] : memref<8x128xf32, #tpu.memory_space<vmem>>, vector<8x128xf32>
      %74 = arith.truncf %73 : vector<8x128xf32> to vector<8x128xbf16>
      %c0_90 = arith.constant 0 : index
      %c0_91 = arith.constant 0 : index
      %75 = vector.load %arg7[%c0_90, %c0_91] : memref<128x512xbf16, #tpu.memory_space<vmem>>, vector<128x512xbf16>
      %cst_92 = arith.constant dense<0.000000e+00> : vector<8x512xf32>
      %76 = tpu.matmul %74, %75, %cst_92 {dimension_numbers = #tpu.dot_dimension_numbers<[1], [0], [0], [1], [0, 0, 1, 1], [], []>} : vector<8x128xbf16>, vector<128x512xbf16>, vector<8x512xf32> -> vector<8x512xf32>
      %77 = arith.addf %72, %76 : vector<8x512xf32>
      %c0_93 = arith.constant 0 : index
      %c0_94 = arith.constant 0 : index
      %78 = vector.load %arg21[%c0_93, %c0_94] : memref<8x128xf32, #tpu.memory_space<vmem>>, vector<8x128xf32>
      %79 = vector.extract_strided_slice %77 {offsets = [0, 0], sizes = [8, 128], strides = [1, 1]} : vector<8x512xf32> to vector<8x128xf32>
      %80 = arith.negf %79 : vector<8x128xf32>
      %81 = math.exp %80 : vector<8x128xf32>
      %cst_95 = arith.constant 1.000000e+00 : f32
      %82 = vector.broadcast %cst_95 : f32 to vector<8x128xf32>
      %83 = arith.addf %82, %81 : vector<8x128xf32>
      %84 = arith.divf %82, %83 : vector<8x128xf32>
      %85 = vector.extract_strided_slice %77 {offsets = [0, 128], sizes = [8, 128], strides = [1, 1]} : vector<8x512xf32> to vector<8x128xf32>
      %86 = arith.negf %85 : vector<8x128xf32>
      %87 = math.exp %86 : vector<8x128xf32>
      %cst_96 = arith.constant 1.000000e+00 : f32
      %88 = vector.broadcast %cst_96 : f32 to vector<8x128xf32>
      %89 = arith.addf %88, %87 : vector<8x128xf32>
      %90 = arith.divf %88, %89 : vector<8x128xf32>
      %91 = vector.extract_strided_slice %77 {offsets = [0, 256], sizes = [8, 128], strides = [1, 1]} : vector<8x512xf32> to vector<8x128xf32>
      %92 = math.tanh %91 : vector<8x128xf32>
      %93 = vector.extract_strided_slice %77 {offsets = [0, 384], sizes = [8, 128], strides = [1, 1]} : vector<8x512xf32> to vector<8x128xf32>
      %94 = arith.negf %93 : vector<8x128xf32>
      %95 = math.exp %94 : vector<8x128xf32>
      %cst_97 = arith.constant 1.000000e+00 : f32
      %96 = vector.broadcast %cst_97 : f32 to vector<8x128xf32>
      %97 = arith.addf %96, %95 : vector<8x128xf32>
      %98 = arith.divf %96, %97 : vector<8x128xf32>
      %99 = arith.mulf %90, %78 : vector<8x128xf32>
      %100 = arith.mulf %84, %92 : vector<8x128xf32>
      %101 = arith.addf %99, %100 : vector<8x128xf32>
      %102 = math.tanh %101 : vector<8x128xf32>
      %103 = arith.mulf %98, %102 : vector<8x128xf32>
      %c0_98 = arith.constant 0 : index
      %c0_99 = arith.constant 0 : index
      %104 = vector.load %arg20[%c0_98, %c0_99] : memref<8x128xf32, #tpu.memory_space<vmem>>, vector<8x128xf32>
      tpu.vector_store %arg20[%c0_98, %c0_99], %103 {strides = array<i32>} : memref<8x128xf32, #tpu.memory_space<vmem>>, vector<8x128xf32>,
      %c0_100 = arith.constant 0 : index
      %c0_101 = arith.constant 0 : index
      %105 = vector.load %arg21[%c0_100, %c0_101] : memref<8x128xf32, #tpu.memory_space<vmem>>, vector<8x128xf32>
      tpu.vector_store %arg21[%c0_100, %c0_101], %101 {strides = array<i32>} : memref<8x128xf32, #tpu.memory_space<vmem>>, vector<8x128xf32>,
      %106 = arith.index_cast %70 : i32 to index
      %c0_102 = arith.constant 0 : index
      %107 = vector.load %arg17[%106, %c0_102] : memref<32x256xf32, #tpu.memory_space<vmem>>, vector<8x128xf32>
      tpu.vector_store %arg17[%106, %c0_102], %103 {strides = array<i32>} : memref<32x256xf32, #tpu.memory_space<vmem>>, vector<8x128xf32>,
      %c3_i32 = arith.constant 3 : i32
      %108 = arith.subi %c3_i32, %68 : i32
      %c8_i32_103 = arith.constant 8 : i32
      %109 = arith.muli %108, %c8_i32_103 : i32
      %110 = tpu.assume_multiple %109, 8 : i32
      %111 = arith.index_cast %110 : i32 to index
      %c512 = arith.constant 512 : index
      %112 = vector.load %arg19[%111, %c512] : memref<32x1024xf32, #tpu.memory_space<vmem>>, vector<8x512xf32>
      %c0_104 = arith.constant 0 : index
      %c0_105 = arith.constant 0 : index
      %113 = vector.load %arg22[%c0_104, %c0_105] : memref<8x128xf32, #tpu.memory_space<vmem>>, vector<8x128xf32>
      %114 = arith.truncf %113 : vector<8x128xf32> to vector<8x128xbf16>
      %c0_106 = arith.constant 0 : index
      %c0_107 = arith.constant 0 : index
      %115 = vector.load %arg8[%c0_106, %c0_107] : memref<128x512xbf16, #tpu.memory_space<vmem>>, vector<128x512xbf16>
      %cst_108 = arith.constant dense<0.000000e+00> : vector<8x512xf32>
      %116 = tpu.matmul %114, %115, %cst_108 {dimension_numbers = #tpu.dot_dimension_numbers<[1], [0], [0], [1], [0, 0, 1, 1], [], []>} : vector<8x128xbf16>, vector<128x512xbf16>, vector<8x512xf32> -> vector<8x512xf32>
      %117 = arith.addf %112, %116 : vector<8x512xf32>
      %c0_109 = arith.constant 0 : index
      %c0_110 = arith.constant 0 : index
      %118 = vector.load %arg23[%c0_109, %c0_110] : memref<8x128xf32, #tpu.memory_space<vmem>>, vector<8x128xf32>
      %119 = vector.extract_strided_slice %117 {offsets = [0, 0], sizes = [8, 128], strides = [1, 1]} : vector<8x512xf32> to vector<8x128xf32>
      %120 = arith.negf %119 : vector<8x128xf32>
      %121 = math.exp %120 : vector<8x128xf32>
      %cst_111 = arith.constant 1.000000e+00 : f32
      %122 = vector.broadcast %cst_111 : f32 to vector<8x128xf32>
      %123 = arith.addf %122, %121 : vector<8x128xf32>
      %124 = arith.divf %122, %123 : vector<8x128xf32>
      %125 = vector.extract_strided_slice %117 {offsets = [0, 128], sizes = [8, 128], strides = [1, 1]} : vector<8x512xf32> to vector<8x128xf32>
      %126 = arith.negf %125 : vector<8x128xf32>
      %127 = math.exp %126 : vector<8x128xf32>
      %cst_112 = arith.constant 1.000000e+00 : f32
      %128 = vector.broadcast %cst_112 : f32 to vector<8x128xf32>
      %129 = arith.addf %128, %127 : vector<8x128xf32>
      %130 = arith.divf %128, %129 : vector<8x128xf32>
      %131 = vector.extract_strided_slice %117 {offsets = [0, 256], sizes = [8, 128], strides = [1, 1]} : vector<8x512xf32> to vector<8x128xf32>
      %132 = math.tanh %131 : vector<8x128xf32>
      %133 = vector.extract_strided_slice %117 {offsets = [0, 384], sizes = [8, 128], strides = [1, 1]} : vector<8x512xf32> to vector<8x128xf32>
      %134 = arith.negf %133 : vector<8x128xf32>
      %135 = math.exp %134 : vector<8x128xf32>
      %cst_113 = arith.constant 1.000000e+00 : f32
      %136 = vector.broadcast %cst_113 : f32 to vector<8x128xf32>
      %137 = arith.addf %136, %135 : vector<8x128xf32>
      %138 = arith.divf %136, %137 : vector<8x128xf32>
      %139 = arith.mulf %130, %118 : vector<8x128xf32>
      %140 = arith.mulf %124, %132 : vector<8x128xf32>
      %141 = arith.addf %139, %140 : vector<8x128xf32>
      %142 = math.tanh %141 : vector<8x128xf32>
      %143 = arith.mulf %138, %142 : vector<8x128xf32>
      %c0_114 = arith.constant 0 : index
      %c0_115 = arith.constant 0 : index
      %144 = vector.load %arg22[%c0_114, %c0_115] : memref<8x128xf32, #tpu.memory_space<vmem>>, vector<8x128xf32>
      tpu.vector_store %arg22[%c0_114, %c0_115], %143 {strides = array<i32>} : memref<8x128xf32, #tpu.memory_space<vmem>>, vector<8x128xf32>,
      %c0_116 = arith.constant 0 : index
      %c0_117 = arith.constant 0 : index
      %145 = vector.load %arg23[%c0_116, %c0_117] : memref<8x128xf32, #tpu.memory_space<vmem>>, vector<8x128xf32>
      tpu.vector_store %arg23[%c0_116, %c0_117], %141 {strides = array<i32>} : memref<8x128xf32, #tpu.memory_space<vmem>>, vector<8x128xf32>,
      %146 = arith.index_cast %110 : i32 to index
      %c128 = arith.constant 128 : index
      %147 = vector.load %arg17[%146, %c128] : memref<32x256xf32, #tpu.memory_space<vmem>>, vector<8x128xf32>
      tpu.vector_store %arg17[%146, %c128], %143 {strides = array<i32>} : memref<32x256xf32, #tpu.memory_space<vmem>>, vector<8x128xf32>,
    }
    %c4_i32_44 = arith.constant 4 : i32
    %c0_45 = arith.constant 0 : index
    %c0_46 = arith.constant 0 : index
    %34 = vector.load %arg17[%c0_45, %c0_46] : memref<32x256xf32, #tpu.memory_space<vmem>>, vector<32x256xf32>
    %35 = arith.truncf %34 : vector<32x256xf32> to vector<32x256xbf16>
    %c0_47 = arith.constant 0 : index
    %c0_48 = arith.constant 0 : index
    %36 = vector.load %arg9[%c0_47, %c0_48] : memref<256x1024xbf16, #tpu.memory_space<vmem>>, vector<256x1024xbf16>
    %cst_49 = arith.constant dense<0.000000e+00> : vector<32x1024xf32>
    %37 = tpu.matmul %35, %36, %cst_49 {dimension_numbers = #tpu.dot_dimension_numbers<[1], [0], [0], [1], [0, 0, 1, 1], [], []>} : vector<32x256xbf16>, vector<256x1024xbf16>, vector<32x1024xf32> -> vector<32x1024xf32>
    %c0_50 = arith.constant 0 : index
    %c0_51 = arith.constant 0 : index
    %38 = vector.load %arg10[%c0_50, %c0_51] : memref<1x1024xf32, #tpu.memory_space<vmem>>, vector<1x1024xf32>
    %39 = vector.broadcast %38 : vector<1x1024xf32> to vector<32x1024xf32>
    %40 = arith.addf %37, %39 : vector<32x1024xf32>
    %c0_52 = arith.constant 0 : index
    %c0_53 = arith.constant 0 : index
    %41 = vector.load %arg19[%c0_52, %c0_53] : memref<32x1024xf32, #tpu.memory_space<vmem>>, vector<32x1024xf32>
    tpu.vector_store %arg19[%c0_52, %c0_53], %40 {strides = array<i32>} : memref<32x1024xf32, #tpu.memory_space<vmem>>, vector<32x1024xf32>,
    %cst_54 = arith.constant 0.000000e+00 : f32
    %42 = vector.broadcast %cst_54 : f32 to vector<8x128xf32>
    %c0_55 = arith.constant 0 : index
    %c0_56 = arith.constant 0 : index
    %43 = vector.load %arg20[%c0_55, %c0_56] : memref<8x128xf32, #tpu.memory_space<vmem>>, vector<8x128xf32>
    tpu.vector_store %arg20[%c0_55, %c0_56], %42 {strides = array<i32>} : memref<8x128xf32, #tpu.memory_space<vmem>>, vector<8x128xf32>,
    %cst_57 = arith.constant 0.000000e+00 : f32
    %44 = vector.broadcast %cst_57 : f32 to vector<8x128xf32>
    %c0_58 = arith.constant 0 : index
    %c0_59 = arith.constant 0 : index
    %45 = vector.load %arg21[%c0_58, %c0_59] : memref<8x128xf32, #tpu.memory_space<vmem>>, vector<8x128xf32>
    tpu.vector_store %arg21[%c0_58, %c0_59], %44 {strides = array<i32>} : memref<8x128xf32, #tpu.memory_space<vmem>>, vector<8x128xf32>,
    %cst_60 = arith.constant 0.000000e+00 : f32
    %46 = vector.broadcast %cst_60 : f32 to vector<8x128xf32>
    %c0_61 = arith.constant 0 : index
    %c0_62 = arith.constant 0 : index
    %47 = vector.load %arg22[%c0_61, %c0_62] : memref<8x128xf32, #tpu.memory_space<vmem>>, vector<8x128xf32>
    tpu.vector_store %arg22[%c0_61, %c0_62], %46 {strides = array<i32>} : memref<8x128xf32, #tpu.memory_space<vmem>>, vector<8x128xf32>,
    %cst_63 = arith.constant 0.000000e+00 : f32
    %48 = vector.broadcast %cst_63 : f32 to vector<8x128xf32>
    %c0_64 = arith.constant 0 : index
    %c0_65 = arith.constant 0 : index
    %49 = vector.load %arg23[%c0_64, %c0_65] : memref<8x128xf32, #tpu.memory_space<vmem>>, vector<8x128xf32>
    tpu.vector_store %arg23[%c0_64, %c0_65], %48 {strides = array<i32>} : memref<8x128xf32, #tpu.memory_space<vmem>>, vector<8x128xf32>,
    %c0_i32_66 = arith.constant 0 : i32
    %c4_i32_67 = arith.constant 4 : i32
    %50 = arith.addi %c0_i32_66, %c4_i32_67 : i32
    %c1_i32_68 = arith.constant 1 : i32
    scf.for %arg24 = %c0_i32_66 to %50 step %c1_i32_68  : i32 {
      %c1_i32_85 = arith.constant 1 : i32
      %67 = arith.muli %arg24, %c1_i32_85 : i32
      %c0_i32_86 = arith.constant 0 : i32
      %68 = arith.addi %c0_i32_86, %67 : i32
      %c8_i32 = arith.constant 8 : i32
      %69 = arith.muli %68, %c8_i32 : i32
      %70 = tpu.assume_multiple %69, 8 : i32
      %71 = arith.index_cast %70 : i32 to index
      %c0_87 = arith.constant 0 : index
      %72 = vector.load %arg19[%71, %c0_87] : memref<32x1024xf32, #tpu.memory_space<vmem>>, vector<8x512xf32>
      %c0_88 = arith.constant 0 : index
      %c0_89 = arith.constant 0 : index
      %73 = vector.load %arg20[%c0_88, %c0_89] : memref<8x128xf32, #tpu.memory_space<vmem>>, vector<8x128xf32>
      %74 = arith.truncf %73 : vector<8x128xf32> to vector<8x128xbf16>
      %c0_90 = arith.constant 0 : index
      %c0_91 = arith.constant 0 : index
      %75 = vector.load %arg11[%c0_90, %c0_91] : memref<128x512xbf16, #tpu.memory_space<vmem>>, vector<128x512xbf16>
      %cst_92 = arith.constant dense<0.000000e+00> : vector<8x512xf32>
      %76 = tpu.matmul %74, %75, %cst_92 {dimension_numbers = #tpu.dot_dimension_numbers<[1], [0], [0], [1], [0, 0, 1, 1], [], []>} : vector<8x128xbf16>, vector<128x512xbf16>, vector<8x512xf32> -> vector<8x512xf32>
      %77 = arith.addf %72, %76 : vector<8x512xf32>
      %c0_93 = arith.constant 0 : index
      %c0_94 = arith.constant 0 : index
      %78 = vector.load %arg21[%c0_93, %c0_94] : memref<8x128xf32, #tpu.memory_space<vmem>>, vector<8x128xf32>
      %79 = vector.extract_strided_slice %77 {offsets = [0, 0], sizes = [8, 128], strides = [1, 1]} : vector<8x512xf32> to vector<8x128xf32>
      %80 = arith.negf %79 : vector<8x128xf32>
      %81 = math.exp %80 : vector<8x128xf32>
      %cst_95 = arith.constant 1.000000e+00 : f32
      %82 = vector.broadcast %cst_95 : f32 to vector<8x128xf32>
      %83 = arith.addf %82, %81 : vector<8x128xf32>
      %84 = arith.divf %82, %83 : vector<8x128xf32>
      %85 = vector.extract_strided_slice %77 {offsets = [0, 128], sizes = [8, 128], strides = [1, 1]} : vector<8x512xf32> to vector<8x128xf32>
      %86 = arith.negf %85 : vector<8x128xf32>
      %87 = math.exp %86 : vector<8x128xf32>
      %cst_96 = arith.constant 1.000000e+00 : f32
      %88 = vector.broadcast %cst_96 : f32 to vector<8x128xf32>
      %89 = arith.addf %88, %87 : vector<8x128xf32>
      %90 = arith.divf %88, %89 : vector<8x128xf32>
      %91 = vector.extract_strided_slice %77 {offsets = [0, 256], sizes = [8, 128], strides = [1, 1]} : vector<8x512xf32> to vector<8x128xf32>
      %92 = math.tanh %91 : vector<8x128xf32>
      %93 = vector.extract_strided_slice %77 {offsets = [0, 384], sizes = [8, 128], strides = [1, 1]} : vector<8x512xf32> to vector<8x128xf32>
      %94 = arith.negf %93 : vector<8x128xf32>
      %95 = math.exp %94 : vector<8x128xf32>
      %cst_97 = arith.constant 1.000000e+00 : f32
      %96 = vector.broadcast %cst_97 : f32 to vector<8x128xf32>
      %97 = arith.addf %96, %95 : vector<8x128xf32>
      %98 = arith.divf %96, %97 : vector<8x128xf32>
      %99 = arith.mulf %90, %78 : vector<8x128xf32>
      %100 = arith.mulf %84, %92 : vector<8x128xf32>
      %101 = arith.addf %99, %100 : vector<8x128xf32>
      %102 = math.tanh %101 : vector<8x128xf32>
      %103 = arith.mulf %98, %102 : vector<8x128xf32>
      %c0_98 = arith.constant 0 : index
      %c0_99 = arith.constant 0 : index
      %104 = vector.load %arg20[%c0_98, %c0_99] : memref<8x128xf32, #tpu.memory_space<vmem>>, vector<8x128xf32>
      tpu.vector_store %arg20[%c0_98, %c0_99], %103 {strides = array<i32>} : memref<8x128xf32, #tpu.memory_space<vmem>>, vector<8x128xf32>,
      %c0_100 = arith.constant 0 : index
      %c0_101 = arith.constant 0 : index
      %105 = vector.load %arg21[%c0_100, %c0_101] : memref<8x128xf32, #tpu.memory_space<vmem>>, vector<8x128xf32>
      tpu.vector_store %arg21[%c0_100, %c0_101], %101 {strides = array<i32>} : memref<8x128xf32, #tpu.memory_space<vmem>>, vector<8x128xf32>,
      %106 = arith.index_cast %70 : i32 to index
      %c0_102 = arith.constant 0 : index
      %107 = vector.load %arg17[%106, %c0_102] : memref<32x256xf32, #tpu.memory_space<vmem>>, vector<8x128xf32>
      tpu.vector_store %arg17[%106, %c0_102], %103 {strides = array<i32>} : memref<32x256xf32, #tpu.memory_space<vmem>>, vector<8x128xf32>,
      %c3_i32 = arith.constant 3 : i32
      %108 = arith.subi %c3_i32, %68 : i32
      %c8_i32_103 = arith.constant 8 : i32
      %109 = arith.muli %108, %c8_i32_103 : i32
      %110 = tpu.assume_multiple %109, 8 : i32
      %111 = arith.index_cast %110 : i32 to index
      %c512 = arith.constant 512 : index
      %112 = vector.load %arg19[%111, %c512] : memref<32x1024xf32, #tpu.memory_space<vmem>>, vector<8x512xf32>
      %c0_104 = arith.constant 0 : index
      %c0_105 = arith.constant 0 : index
      %113 = vector.load %arg22[%c0_104, %c0_105] : memref<8x128xf32, #tpu.memory_space<vmem>>, vector<8x128xf32>
      %114 = arith.truncf %113 : vector<8x128xf32> to vector<8x128xbf16>
      %c0_106 = arith.constant 0 : index
      %c0_107 = arith.constant 0 : index
      %115 = vector.load %arg12[%c0_106, %c0_107] : memref<128x512xbf16, #tpu.memory_space<vmem>>, vector<128x512xbf16>
      %cst_108 = arith.constant dense<0.000000e+00> : vector<8x512xf32>
      %116 = tpu.matmul %114, %115, %cst_108 {dimension_numbers = #tpu.dot_dimension_numbers<[1], [0], [0], [1], [0, 0, 1, 1], [], []>} : vector<8x128xbf16>, vector<128x512xbf16>, vector<8x512xf32> -> vector<8x512xf32>
      %117 = arith.addf %112, %116 : vector<8x512xf32>
      %c0_109 = arith.constant 0 : index
      %c0_110 = arith.constant 0 : index
      %118 = vector.load %arg23[%c0_109, %c0_110] : memref<8x128xf32, #tpu.memory_space<vmem>>, vector<8x128xf32>
      %119 = vector.extract_strided_slice %117 {offsets = [0, 0], sizes = [8, 128], strides = [1, 1]} : vector<8x512xf32> to vector<8x128xf32>
      %120 = arith.negf %119 : vector<8x128xf32>
      %121 = math.exp %120 : vector<8x128xf32>
      %cst_111 = arith.constant 1.000000e+00 : f32
      %122 = vector.broadcast %cst_111 : f32 to vector<8x128xf32>
      %123 = arith.addf %122, %121 : vector<8x128xf32>
      %124 = arith.divf %122, %123 : vector<8x128xf32>
      %125 = vector.extract_strided_slice %117 {offsets = [0, 128], sizes = [8, 128], strides = [1, 1]} : vector<8x512xf32> to vector<8x128xf32>
      %126 = arith.negf %125 : vector<8x128xf32>
      %127 = math.exp %126 : vector<8x128xf32>
      %cst_112 = arith.constant 1.000000e+00 : f32
      %128 = vector.broadcast %cst_112 : f32 to vector<8x128xf32>
      %129 = arith.addf %128, %127 : vector<8x128xf32>
      %130 = arith.divf %128, %129 : vector<8x128xf32>
      %131 = vector.extract_strided_slice %117 {offsets = [0, 256], sizes = [8, 128], strides = [1, 1]} : vector<8x512xf32> to vector<8x128xf32>
      %132 = math.tanh %131 : vector<8x128xf32>
      %133 = vector.extract_strided_slice %117 {offsets = [0, 384], sizes = [8, 128], strides = [1, 1]} : vector<8x512xf32> to vector<8x128xf32>
      %134 = arith.negf %133 : vector<8x128xf32>
      %135 = math.exp %134 : vector<8x128xf32>
      %cst_113 = arith.constant 1.000000e+00 : f32
      %136 = vector.broadcast %cst_113 : f32 to vector<8x128xf32>
      %137 = arith.addf %136, %135 : vector<8x128xf32>
      %138 = arith.divf %136, %137 : vector<8x128xf32>
      %139 = arith.mulf %130, %118 : vector<8x128xf32>
      %140 = arith.mulf %124, %132 : vector<8x128xf32>
      %141 = arith.addf %139, %140 : vector<8x128xf32>
      %142 = math.tanh %141 : vector<8x128xf32>
      %143 = arith.mulf %138, %142 : vector<8x128xf32>
      %c0_114 = arith.constant 0 : index
      %c0_115 = arith.constant 0 : index
      %144 = vector.load %arg22[%c0_114, %c0_115] : memref<8x128xf32, #tpu.memory_space<vmem>>, vector<8x128xf32>
      tpu.vector_store %arg22[%c0_114, %c0_115], %143 {strides = array<i32>} : memref<8x128xf32, #tpu.memory_space<vmem>>, vector<8x128xf32>,
      %c0_116 = arith.constant 0 : index
      %c0_117 = arith.constant 0 : index
      %145 = vector.load %arg23[%c0_116, %c0_117] : memref<8x128xf32, #tpu.memory_space<vmem>>, vector<8x128xf32>
      tpu.vector_store %arg23[%c0_116, %c0_117], %141 {strides = array<i32>} : memref<8x128xf32, #tpu.memory_space<vmem>>, vector<8x128xf32>,
      %146 = arith.index_cast %110 : i32 to index
      %c128 = arith.constant 128 : index
      %147 = vector.load %arg17[%146, %c128] : memref<32x256xf32, #tpu.memory_space<vmem>>, vector<8x128xf32>
      tpu.vector_store %arg17[%146, %c128], %143 {strides = array<i32>} : memref<32x256xf32, #tpu.memory_space<vmem>>, vector<8x128xf32>,
    }
    %c4_i32_69 = arith.constant 4 : i32
    %c0_70 = arith.constant 0 : index
    %c0_71 = arith.constant 0 : index
    %51 = vector.load %arg17[%c0_70, %c0_71] : memref<32x256xf32, #tpu.memory_space<vmem>>, vector<32x256xf32>
    %52 = arith.truncf %51 : vector<32x256xf32> to vector<32x256xbf16>
    %c0_72 = arith.constant 0 : index
    %c0_73 = arith.constant 0 : index
    %53 = vector.load %arg13[%c0_72, %c0_73] : memref<256x128xbf16, #tpu.memory_space<vmem>>, vector<256x128xbf16>
    %cst_74 = arith.constant dense<0.000000e+00> : vector<32x128xf32>
    %54 = tpu.matmul %52, %53, %cst_74 {dimension_numbers = #tpu.dot_dimension_numbers<[1], [0], [0], [1], [0, 0, 1, 1], [], []>} : vector<32x256xbf16>, vector<256x128xbf16>, vector<32x128xf32> -> vector<32x128xf32>
    %c0_75 = arith.constant 0 : index
    %c0_76 = arith.constant 0 : index
    %55 = vector.load %arg14[%c0_75, %c0_76] : memref<1x128xf32, #tpu.memory_space<vmem>>, vector<1x128xf32>
    %56 = vector.broadcast %55 : vector<1x128xf32> to vector<32x128xf32>
    %57 = arith.addf %54, %56 : vector<32x128xf32>
    %cst_77 = arith.constant 0.000000e+00 : f32
    %58 = vector.broadcast %cst_77 : f32 to vector<32x128xf32>
    %59 = arith.maximumf %57, %58 : vector<32x128xf32>
    %60 = arith.truncf %59 : vector<32x128xf32> to vector<32x128xbf16>
    %c0_78 = arith.constant 0 : index
    %c0_79 = arith.constant 0 : index
    %61 = vector.load %arg15[%c0_78, %c0_79] : memref<128x128xbf16, #tpu.memory_space<vmem>>, vector<128x128xbf16>
    %cst_80 = arith.constant dense<0.000000e+00> : vector<32x128xf32>
    %62 = tpu.matmul %60, %61, %cst_80 {dimension_numbers = #tpu.dot_dimension_numbers<[1], [0], [0], [1], [0, 0, 1, 1], [], []>} : vector<32x128xbf16>, vector<128x128xbf16>, vector<32x128xf32> -> vector<32x128xf32>
    %c0_81 = arith.constant 0 : index
    %c0_82 = arith.constant 0 : index
    %63 = vector.load %arg16[%c0_81, %c0_82] : memref<1x128xf32, #tpu.memory_space<vmem>>, vector<1x128xf32>
    %64 = vector.broadcast %63 : vector<1x128xf32> to vector<32x128xf32>
    %65 = arith.addf %62, %64 : vector<32x128xf32>
    %c0_83 = arith.constant 0 : index
    %c0_84 = arith.constant 0 : index
    %66 = vector.load %arg18[%c0_83, %c0_84] : memref<32x128xf32, #tpu.memory_space<vmem>>, vector<32x128xf32>
    tpu.vector_store %arg18[%c0_83, %c0_84], %65 {strides = array<i32>} : memref<32x128xf32, #tpu.memory_space<vmem>>, vector<32x128xf32>,
    return
  }
}

</mosaic_0001>

<llo_original>
// kernel: global_module_forward.2
$region0: #{global_module_forward.2}
  #allocation0 [shape = 'u32[]', space=smem, size = 0x4, offset = 0x4, fixed_abs, tag = 'smem constant byte address 0x4 - core index']
  #allocation1 [shape = 'u32[144,128]{1,0:T(1,128)}', space=vmem, size = 0x12000, scoped, tag = 'internal scratch']
  #allocation2 [shape = 'f32[1,1]{1,0:T(1,128)S(1)}', space=vmem, size = 0x200, scoped, tag = 'scoped memory for global_module_forward.2']
  %s0 = inlined_call_operand.hbm [shape: f32[128,27], index: 0, kind: input, shape index: {}]
  %s1 = inlined_call_operand.hbm [shape: bf16[27,32], index: 1, kind: input, shape index: {}]
  %s2 = inlined_call_operand.vmem [shape: f32[1,32], index: 2, kind: input, shape index: {}]
  %s3 = inlined_call_operand.hbm [shape: bf16[32,48], index: 3, kind: input, shape index: {}]
  %s4 = inlined_call_operand.vmem [shape: f32[1,48], index: 4, kind: input, shape index: {}]
  %s5 = inlined_call_operand.vmem [shape: bf16[48,64], index: 5, kind: input, shape index: {}]
  %s6 = inlined_call_operand.vmem [shape: f32[1,64], index: 6, kind: input, shape index: {}]
  %s7 = inlined_call_operand.vmem [shape: f32[1,64], index: 7, kind: input, shape index: {}]
  %s8 = inlined_call_operand.<no memory space> [shape: f32[1,1], index: 8, kind: input, shape index: {}]
  %s9 = inlined_call_operand.vmem [shape: f32[8,64], index: 9, kind: output, shape index: {0}]
  %s10 = inlined_call_operand.hbm [shape: f32[8,16], index: 10, kind: output, shape index: {1}]
  %11 = xla_tuple %s9, %s10
  %s12 = sld [smem:[#allocation0]]
  $region66: #{global_module_forward.2} parent=0
    _
  %s14 = ssub.s32 1, %s12
  %s15 = scalar_select 0, %s14, %s12
  %v16 = vstv %s8
  %17 = vst [vmem:[#allocation2] sm:$0x1] %v16
  $region1: #{global_module_forward.2} parent=0
    #allocation3 [shape = 'u8[65536]{0}', space=vmem, size = 0x10000, scoped, tag = 'input window, operand 0, single buffered']
    #allocation4 [shape = 's32[1]{0}', space=sflag, size = 0x4, scoped, tag = 'scoped memory for global_module_forward.2']
    #allocation5 [shape = 's32[1]{0}', space=sflag, size = 0x4, scoped, tag = 'scoped memory for global_module_forward.2']
    #allocation6 [shape = 'u8[8192]{0}', space=vmem, size = 0x2000, scoped, tag = 'input window, operand 1, single buffered']
    #allocation7 [shape = 's32[1]{0}', space=sflag, size = 0x4, scoped, tag = 'scoped memory for global_module_forward.2']
    #allocation8 [shape = 'u8[8192]{0}', space=vmem, size = 0x2000, scoped, tag = 'input window, operand 3, single buffered']
    #allocation9 [shape = 'u8[4096]{0}', space=vmem, size = 0x1000, scoped, tag = 'output window, operand 1, single buffered']
    %18 = vsyncpa [#allocation4], 0
    %19 = vsyncpa [#allocation7], 0
    %20 = vsyncpa [#allocation5], 0
    // Predicated region
    $region2: #{global_module_forward.2} parent=1 // pred_check
      _
    $region3: #{global_module_forward.2} parent=1 // pred_check_branch
      %22 = sbr.rel (0) target = $region5
    $region4: #{global_module_forward.2} parent=1 // pred_region
      %s24 = ssub.s32 2048, 2048
      %25 = vsyncadd [#allocation4], %s24
      %s26 = sshll.u32 [#allocation3], 4
      %s27 = int_to_ptr.vmem [resolvable:$true] %s26
      %32 = dma.hbm_to_vmem [thread:$0]  %s0, 2048, %s27, [#allocation4], 128, 128, 8
    $region5: #{global_module_forward.2} parent=1 // pred_fallthru
      _
    // Predicated region
    $region6: #{global_module_forward.2} parent=1 // pred_check
      _
    $region7: #{global_module_forward.2} parent=1 // pred_check_branch
      %34 = sbr.rel (0) target = $region9
    $region8: #{global_module_forward.2} parent=1 // pred_region
      %s36 = ssub.s32 256, 256
      %37 = vsyncadd [#allocation7], %s36
      %s38 = sshll.u32 [#allocation6], 4
      %s39 = int_to_ptr.vmem [resolvable:$true] %s38
      %44 = dma.hbm_to_vmem [thread:$0]  %s1, 256, %s39, [#allocation7], 64, 64, 4
    $region9: #{global_module_forward.2} parent=1 // pred_fallthru
      _
    // Predicated region
    $region10: #{global_module_forward.2} parent=1 // pred_check
      _
    $region11: #{global_module_forward.2} parent=1 // pred_check_branch
      %46 = sbr.rel (0) target = $region13
    $region12: #{global_module_forward.2} parent=1 // pred_region
      _
    $region13: #{global_module_forward.2} parent=1 // pred_fallthru
      _
    // Predicated region
    $region14: #{global_module_forward.2} parent=1 // pred_check
      _
    $region15: #{global_module_forward.2} parent=1 // pred_check_branch
      %48 = sbr.rel (0) target = $region17
    $region16: #{global_module_forward.2} parent=1 // pred_region
      %s50 = ssub.s32 256, 256
      %51 = vsyncadd [#allocation7], %s50
      %s52 = sshll.u32 [#allocation8], 4
      %s53 = int_to_ptr.vmem [resolvable:$true] %s52
      %58 = dma.hbm_to_vmem [thread:$0]  %s3, 256, %s53, [#allocation7], 64, 64, 4
    $region17: #{global_module_forward.2} parent=1 // pred_fallthru
      _
    // Predicated region
    $region18: #{global_module_forward.2} parent=1 // pred_check
      _
    $region19: #{global_module_forward.2} parent=1 // pred_check_branch
      %60 = sbr.rel (0) target = $region21
    $region20: #{global_module_forward.2} parent=1 // pred_region
      _
    $region21: #{global_module_forward.2} parent=1 // pred_fallthru
      _
    // Predicated region
    $region22: #{global_module_forward.2} parent=1 // pred_check
      _
    $region23: #{global_module_forward.2} parent=1 // pred_check_branch
      %62 = sbr.rel (0) target = $region25
    $region24: #{global_module_forward.2} parent=1 // pred_region
      _
    $region25: #{global_module_forward.2} parent=1 // pred_fallthru
      _
    // Predicated region
    $region26: #{global_module_forward.2} parent=1 // pred_check
      _
    $region27: #{global_module_forward.2} parent=1 // pred_check_branch
      %64 = sbr.rel (0) target = $region29
    $region28: #{global_module_forward.2} parent=1 // pred_region
      _
    $region29: #{global_module_forward.2} parent=1 // pred_fallthru
      _
    // Predicated region
    $region30: #{global_module_forward.2} parent=1 // pred_check
      _
    $region31: #{global_module_forward.2} parent=1 // pred_check_branch
      %66 = sbr.rel (0) target = $region33
    $region32: #{global_module_forward.2} parent=1 // pred_region
      _
    $region33: #{global_module_forward.2} parent=1 // pred_fallthru
      _
    // Predicated region
    $region34: #{global_module_forward.2} parent=1 // pred_check
      _
    $region35: #{global_module_forward.2} parent=1 // pred_check_branch
      %68 = sbr.rel (0) target = $region37
    $region36: #{global_module_forward.2} parent=1 // pred_region
      _
    $region37: #{global_module_forward.2} parent=1 // pred_fallthru
      _
    // Predicated region
    $region38: #{global_module_forward.2} parent=1 // pred_check
      _
    $region39: #{global_module_forward.2} parent=1 // pred_check_branch
      %70 = sbr.rel (0) target = $region41
    $region40: #{global_module_forward.2} parent=1 // pred_region
      %71 = dma.done [#allocation4], 2048
    $region41: #{global_module_forward.2} parent=1 // pred_fallthru
      _
    // Predicated region
    $region42: #{global_module_forward.2} parent=1 // pred_check
      _
    $region43: #{global_module_forward.2} parent=1 // pred_check_branch
      %73 = sbr.rel (0) target = $region45
    $region44: #{global_module_forward.2} parent=1 // pred_region
      %74 = dma.done [#allocation7], 256
    $region45: #{global_module_forward.2} parent=1 // pred_fallthru
      _
    // Predicated region
    $region46: #{global_module_forward.2} parent=1 // pred_check
      _
    $region47: #{global_module_forward.2} parent=1 // pred_check_branch
      %76 = sbr.rel (0) target = $region49
    $region48: #{global_module_forward.2} parent=1 // pred_region
      %77 = dma.done [#allocation7], 256
    $region49: #{global_module_forward.2} parent=1 // pred_fallthru
      _
    %v79 = vld [vmem:[#allocation3] sm:$0xff]
    %v80 = vld [vmem:[#allocation3 + $0x8] sm:$0xff]
    %v81 = vld [vmem:[#allocation3 + $0x10] sm:$0xff]
    %v82 = vld [vmem:[#allocation3 + $0x18] sm:$0xff]
    %v83 = vld [vmem:[#allocation3 + $0x20] sm:$0xff]
    %v84 = vld [vmem:[#allocation3 + $0x28] sm:$0xff]
    %v85 = vld [vmem:[#allocation3 + $0x30] sm:$0xff]
    %v86 = vld [vmem:[#allocation3 + $0x38] sm:$0xff]
    %v87 = vld [vmem:[#allocation3 + $0x40] sm:$0xff]
    %v88 = vld [vmem:[#allocation3 + $0x48] sm:$0xff]
    %v89 = vld [vmem:[#allocation3 + $0x50] sm:$0xff]
    %v90 = vld [vmem:[#allocation3 + $0x58] sm:$0xff]
    %v91 = vld [vmem:[#allocation3 + $0x60] sm:$0xff]
    %v92 = vld [vmem:[#allocation3 + $0x68] sm:$0xff]
    %v93 = vld [vmem:[#allocation3 + $0x70] sm:$0xff]
    %v94 = vld [vmem:[#allocation3 + $0x78] sm:$0xff]
    %v95 = vpack.c.bf16 %v80, %v79
    %v96 = vpack.c.bf16 %v82, %v81
    %v97 = vpack.c.bf16 %v84, %v83
    %v98 = vpack.c.bf16 %v86, %v85
    %v99 = vpack.c.bf16 %v88, %v87
    %v100 = vpack.c.bf16 %v90, %v89
    %v101 = vpack.c.bf16 %v92, %v91
    %v102 = vpack.c.bf16 %v94, %v93
    %v103 = vld [vmem:[#allocation6] sm:$0xf]
    %v104 = vld [vmem:[#allocation6 + $0x4] sm:$0xf]
    %v105 = vld [vmem:[#allocation6 + $0x8] sm:$0xf]
    %v106 = vld [vmem:[#allocation6 + $0xc] sm:$0x3]
    %v107 = vld [vmem:[%s2] sm:$0x1]
    %v109 = vlaneseq
    %v110 = vshrl.u32 %v109, 7
    %v111 = vsub.s32 0, %v110
    %v112 = vrot.slane %v107, %v111
    %v118 = vunpack.c.l.b16 %v103
    %v119 = vunpack.c.l.b16 %v104
    %v120 = vunpack.c.l.b16 %v105
    %v121 = vunpack.c.l.b16 %v106
    %v122 = vpack.c.b16 %v119, %v118
    %v123 = vpack.c.b16 %v121, %v120
    %vm125 = vcmask 220160
    %v127 = vsel %vm125, %v95, 0
    %v130 = vsel %vm125, %v96, 0
    %v133 = vsel %vm125, %v97, 0
    %v136 = vsel %vm125, %v98, 0
    %v139 = vsel %vm125, %v99, 0
    %v142 = vsel %vm125, %v100, 0
    %v145 = vsel %vm125, %v101, 0
    %v148 = vsel %vm125, %v102, 0
    %vm150 = vcmask 1044480
    %vm151 = vcmask 1045504
    %v152 = vsel %vm150, 4294967295, 65535
    %v153 = vsel %vm151, %v152, 0
    %v155 = vand.u32 %v123, %v153
    %157 = vmatprep.subr.bf16.mxu0 0
    %158 = vmatpush1.bf16.msra.mxu0 0
    %159 = vmatprep.subr.bf16.mxu0 0
    %160 = vmatpush1.bf16.msra.mxu0 0
    %161 = vmatprep.subr.bf16.mxu0 0
    %162 = vmatpush1.bf16.msra.mxu0 0
    %163 = vmatprep.subr.bf16.mxu0 0
    %164 = vmatpush1.bf16.msra.mxu0 0
    %165 = vmatprep.subr.bf16.mxu0 0
    %166 = vmatpush1.bf16.msra.mxu0 0
    %167 = vmatprep.subr.bf16.mxu0 0
    %168 = vmatpush1.bf16.msra.mxu0 0
    %169 = vmatprep.subr.bf16.mxu0 0
    %170 = vmatpush1.bf16.msra.mxu0 %v155
    %171 = vmatprep.subr.bf16.mxu0 0
    %172 = vmatpush1.bf16.msra.mxu0 %v122
    %173 = vmatprep.subr.bf16.mxu0 0
    %174 = vmatpush2.bf16.msra.mxu0 0
    %175 = vmatprep.subr.bf16.mxu0 0
    %176 = vmatpush2.bf16.msra.mxu0 0
    %177 = vmatprep.subr.bf16.mxu0 0
    %178 = vmatpush2.bf16.msra.mxu0 0
    %179 = vmatprep.subr.bf16.mxu0 0
    %180 = vmatpush2.bf16.msra.mxu0 0
    %181 = vmatprep.subr.bf16.mxu0 0
    %182 = vmatpush2.bf16.msra.mxu0 0
    %183 = vmatprep.subr.bf16.mxu0 0
    %184 = vmatpush2.bf16.msra.mxu0 0
    %185 = vmatprep.subr.bf16.mxu0 0
    %186 = vmatpush2.bf16.msra.mxu0 0
    %187 = vmatprep.subr.bf16.mxu0 0
    %188 = vmatpush2.bf16.msra.mxu0 0
    %189 = vmatprep.mubr.bf16.mxu0 0
    %190 = vmatmul.mubr.bf16.gmra.mxu0 %v127
    %v191 = vpop.f32.mrf.mxu0
    %v192 = vadd.f32 %v112, %v191
    %v193 = vpop.f32.mrf.mxu0
    %v194 = vpop.f32.mrf.mxu0
    %v195 = vadd.f32 %v112, %v194
    %v196 = vpop.f32.mrf.mxu0
    %197 = vmatprep.mubr.bf16.mxu0 0
    %198 = vmatmul.mubr.bf16.gmra.mxu0 %v130
    %v199 = vpop.f32.mrf.mxu0
    %v200 = vadd.f32 %v112, %v199
    %v201 = vpop.f32.mrf.mxu0
    %v202 = vpop.f32.mrf.mxu0
    %v203 = vadd.f32 %v112, %v202
    %v204 = vpop.f32.mrf.mxu0
    %205 = vmatprep.mubr.bf16.mxu0 0
    %206 = vmatmul.mubr.bf16.gmra.mxu0 %v133
    %v207 = vpop.f32.mrf.mxu0
    %v208 = vadd.f32 %v112, %v207
    %v209 = vpop.f32.mrf.mxu0
    %v210 = vpop.f32.mrf.mxu0
    %v211 = vadd.f32 %v112, %v210
    %v212 = vpop.f32.mrf.mxu0
    %213 = vmatprep.mubr.bf16.mxu0 0
    %214 = vmatmul.mubr.bf16.gmra.mxu0 %v136
    %v215 = vpop.f32.mrf.mxu0
    %v216 = vadd.f32 %v112, %v215
    %v217 = vpop.f32.mrf.mxu0
    %v218 = vpop.f32.mrf.mxu0
    %v219 = vadd.f32 %v112, %v218
    %v220 = vpop.f32.mrf.mxu0
    %221 = vmatprep.mubr.bf16.mxu0 0
    %222 = vmatmul.mubr.bf16.gmra.mxu0 %v139
    %v223 = vpop.f32.mrf.mxu0
    %v224 = vadd.f32 %v112, %v223
    %v225 = vpop.f32.mrf.mxu0
    %v226 = vpop.f32.mrf.mxu0
    %v227 = vadd.f32 %v112, %v226
    %v228 = vpop.f32.mrf.mxu0
    %229 = vmatprep.mubr.bf16.mxu0 0
    %230 = vmatmul.mubr.bf16.gmra.mxu0 %v142
    %v231 = vpop.f32.mrf.mxu0
    %v232 = vadd.f32 %v112, %v231
    %v233 = vpop.f32.mrf.mxu0
    %v234 = vpop.f32.mrf.mxu0
    %v235 = vadd.f32 %v112, %v234
    %v236 = vpop.f32.mrf.mxu0
    %237 = vmatprep.mubr.bf16.mxu0 0
    %238 = vmatmul.mubr.bf16.gmra.mxu0 %v145
    %v239 = vpop.f32.mrf.mxu0
    %v240 = vadd.f32 %v112, %v239
    %v241 = vpop.f32.mrf.mxu0
    %v242 = vpop.f32.mrf.mxu0
    %v243 = vadd.f32 %v112, %v242
    %v244 = vpop.f32.mrf.mxu0
    %245 = vmatprep.mubr.bf16.mxu0 0
    %246 = vmatmul.mubr.bf16.gmra.mxu0 %v148
    %v247 = vpop.f32.mrf.mxu0
    %v248 = vadd.f32 %v112, %v247
    %v249 = vpop.f32.mrf.mxu0
    %v250 = vpop.f32.mrf.mxu0
    %v251 = vadd.f32 %v112, %v250
    %v252 = vpop.f32.mrf.mxu0
    %253 = vdwg.mxu0
    %v254 = vmax.f32 %v192, 0.0
    %v255 = vmax.f32 %v195, 0.0
    %v256 = vmax.f32 %v200, 0.0
    %v257 = vmax.f32 %v203, 0.0
    %v258 = vmax.f32 %v208, 0.0
    %v259 = vmax.f32 %v211, 0.0
    %v260 = vmax.f32 %v216, 0.0
    %v261 = vmax.f32 %v219, 0.0
    %v262 = vmax.f32 %v224, 0.0
    %v263 = vmax.f32 %v227, 0.0
    %v264 = vmax.f32 %v232, 0.0
    %v265 = vmax.f32 %v235, 0.0
    %v266 = vmax.f32 %v240, 0.0
    %v267 = vmax.f32 %v243, 0.0
    %v268 = vmax.f32 %v248, 0.0
    %v269 = vmax.f32 %v251, 0.0
    %v270 = vpack.c.bf16 %v255, %v254
    %v271 = vpack.c.bf16 %v257, %v256
    %v272 = vpack.c.bf16 %v259, %v258
    %v273 = vpack.c.bf16 %v261, %v260
    %v274 = vpack.c.bf16 %v263, %v262
    %v275 = vpack.c.bf16 %v265, %v264
    %v276 = vpack.c.bf16 %v267, %v266
    %v277 = vpack.c.bf16 %v269, %v268
    %v278 = vld [vmem:[#allocation8] sm:$0xf]
    %v279 = vld [vmem:[#allocation8 + $0x4] sm:$0xf]
    %v280 = vld [vmem:[#allocation8 + $0x8] sm:$0xf]
    %v281 = vld [vmem:[#allocation8 + $0xc] sm:$0xf]
    %v282 = vld [vmem:[%s4] sm:$0x1]
    %v284 = vlaneseq
    %v285 = vshrl.u32 %v284, 7
    %v286 = vsub.s32 0, %v285
    %v287 = vrot.slane %v282, %v286
    %v293 = vunpack.c.l.b16 %v278
    %v294 = vunpack.c.l.b16 %v279
    %v295 = vunpack.c.l.b16 %v280
    %v296 = vunpack.c.l.b16 %v281
    %v297 = vpack.c.b16 %v294, %v293
    %v298 = vpack.c.b16 %v296, %v295
    %vm301 = vcmask 261120
    %v303 = vsel %vm301, %v270, 0
    %v306 = vsel %vm301, %v271, 0
    %v309 = vsel %vm301, %v272, 0
    %v312 = vsel %vm301, %v273, 0
    %v315 = vsel %vm301, %v274, 0
    %v318 = vsel %vm301, %v275, 0
    %v321 = vsel %vm301, %v276, 0
    %v324 = vsel %vm301, %v277, 0
    %326 = vmatprep.subr.bf16.mxu0 0
    %327 = vmatpush1.bf16.msra.mxu0 0
    %328 = vmatprep.subr.bf16.mxu0 0
    %329 = vmatpush1.bf16.msra.mxu0 0
    %330 = vmatprep.subr.bf16.mxu0 0
    %331 = vmatpush1.bf16.msra.mxu0 0
    %332 = vmatprep.subr.bf16.mxu0 0
    %333 = vmatpush1.bf16.msra.mxu0 0
    %334 = vmatprep.subr.bf16.mxu0 0
    %335 = vmatpush1.bf16.msra.mxu0 0
    %336 = vmatprep.subr.bf16.mxu0 0
    %337 = vmatpush1.bf16.msra.mxu0 0
    %338 = vmatprep.subr.bf16.mxu0 0
    %339 = vmatpush1.bf16.msra.mxu0 %v298
    %340 = vmatprep.subr.bf16.mxu0 0
    %341 = vmatpush1.bf16.msra.mxu0 %v297
    %342 = vmatprep.subr.bf16.mxu0 0
    %343 = vmatpush2.bf16.msra.mxu0 0
    %344 = vmatprep.subr.bf16.mxu0 0
    %345 = vmatpush2.bf16.msra.mxu0 0
    %346 = vmatprep.subr.bf16.mxu0 0
    %347 = vmatpush2.bf16.msra.mxu0 0
    %348 = vmatprep.subr.bf16.mxu0 0
    %349 = vmatpush2.bf16.msra.mxu0 0
    %350 = vmatprep.subr.bf16.mxu0 0
    %351 = vmatpush2.bf16.msra.mxu0 0
    %352 = vmatprep.subr.bf16.mxu0 0
    %353 = vmatpush2.bf16.msra.mxu0 0
    %354 = vmatprep.subr.bf16.mxu0 0
    %355 = vmatpush2.bf16.msra.mxu0 0
    %356 = vmatprep.subr.bf16.mxu0 0
    %357 = vmatpush2.bf16.msra.mxu0 0
    %358 = vmatprep.mubr.bf16.mxu0 0
    %359 = vmatmul.mubr.bf16.gmra.mxu0 %v303
    %v360 = vpop.f32.mrf.mxu0
    %v361 = vadd.f32 %v287, %v360
    %v362 = vpop.f32.mrf.mxu0
    %v363 = vpop.f32.mrf.mxu0
    %v364 = vadd.f32 %v287, %v363
    %v365 = vpop.f32.mrf.mxu0
    %366 = vmatprep.mubr.bf16.mxu0 0
    %367 = vmatmul.mubr.bf16.gmra.mxu0 %v306
    %v368 = vpop.f32.mrf.mxu0
    %v369 = vadd.f32 %v287, %v368
    %v370 = vpop.f32.mrf.mxu0
    %v371 = vpop.f32.mrf.mxu0
    %v372 = vadd.f32 %v287, %v371
    %v373 = vpop.f32.mrf.mxu0
    %374 = vmatprep.mubr.bf16.mxu0 0
    %375 = vmatmul.mubr.bf16.gmra.mxu0 %v309
    %v376 = vpop.f32.mrf.mxu0
    %v377 = vadd.f32 %v287, %v376
    %v378 = vpop.f32.mrf.mxu0
    %v379 = vpop.f32.mrf.mxu0
    %v380 = vadd.f32 %v287, %v379
    %v381 = vpop.f32.mrf.mxu0
    %382 = vmatprep.mubr.bf16.mxu0 0
    %383 = vmatmul.mubr.bf16.gmra.mxu0 %v312
    %v384 = vpop.f32.mrf.mxu0
    %v385 = vadd.f32 %v287, %v384
    %v386 = vpop.f32.mrf.mxu0
    %v387 = vpop.f32.mrf.mxu0
    %v388 = vadd.f32 %v287, %v387
    %v389 = vpop.f32.mrf.mxu0
    %390 = vmatprep.mubr.bf16.mxu0 0
    %391 = vmatmul.mubr.bf16.gmra.mxu0 %v315
    %v392 = vpop.f32.mrf.mxu0
    %v393 = vadd.f32 %v287, %v392
    %v394 = vpop.f32.mrf.mxu0
    %v395 = vpop.f32.mrf.mxu0
    %v396 = vadd.f32 %v287, %v395
    %v397 = vpop.f32.mrf.mxu0
    %398 = vmatprep.mubr.bf16.mxu0 0
    %399 = vmatmul.mubr.bf16.gmra.mxu0 %v318
    %v400 = vpop.f32.mrf.mxu0
    %v401 = vadd.f32 %v287, %v400
    %v402 = vpop.f32.mrf.mxu0
    %v403 = vpop.f32.mrf.mxu0
    %v404 = vadd.f32 %v287, %v403
    %v405 = vpop.f32.mrf.mxu0
    %406 = vmatprep.mubr.bf16.mxu0 0
    %407 = vmatmul.mubr.bf16.gmra.mxu0 %v321
    %v408 = vpop.f32.mrf.mxu0
    %v409 = vadd.f32 %v287, %v408
    %v410 = vpop.f32.mrf.mxu0
    %v411 = vpop.f32.mrf.mxu0
    %v412 = vadd.f32 %v287, %v411
    %v413 = vpop.f32.mrf.mxu0
    %414 = vmatprep.mubr.bf16.mxu0 0
    %415 = vmatmul.mubr.bf16.gmra.mxu0 %v324
    %v416 = vpop.f32.mrf.mxu0
    %v417 = vadd.f32 %v287, %v416
    %v418 = vpop.f32.mrf.mxu0
    %v419 = vpop.f32.mrf.mxu0
    %v420 = vadd.f32 %v287, %v419
    %v421 = vpop.f32.mrf.mxu0
    %422 = vdwg.mxu0
    %v423 = vmax.f32 %v361, 0.0
    %v424 = vmax.f32 %v364, 0.0
    %v425 = vmax.f32 %v369, 0.0
    %v426 = vmax.f32 %v372, 0.0
    %v427 = vmax.f32 %v377, 0.0
    %v428 = vmax.f32 %v380, 0.0
    %v429 = vmax.f32 %v385, 0.0
    %v430 = vmax.f32 %v388, 0.0
    %v431 = vmax.f32 %v393, 0.0
    %v432 = vmax.f32 %v396, 0.0
    %v433 = vmax.f32 %v401, 0.0
    %v434 = vmax.f32 %v404, 0.0
    %v435 = vmax.f32 %v409, 0.0
    %v436 = vmax.f32 %v412, 0.0
    %v437 = vmax.f32 %v417, 0.0
    %v438 = vmax.f32 %v420, 0.0
    %v439 = vpack.c.bf16 %v424, %v423
    %v440 = vpack.c.bf16 %v426, %v425
    %v441 = vpack.c.bf16 %v428, %v427
    %v442 = vpack.c.bf16 %v430, %v429
    %v443 = vpack.c.bf16 %v432, %v431
    %v444 = vpack.c.bf16 %v434, %v433
    %v445 = vpack.c.bf16 %v436, %v435
    %v446 = vpack.c.bf16 %v438, %v437
    %v447 = vld [vmem:[%s5] sm:$0xf]
    %v448 = vld [vmem:[%s5 + $0x4] sm:$0xf]
    %v449 = vld [vmem:[%s5 + $0x8] sm:$0xf]
    %v450 = vld [vmem:[%s5 + $0xc] sm:$0xf]
    %v451 = vld [vmem:[%s5 + $0x10] sm:$0xf]
    %v452 = vld [vmem:[%s5 + $0x14] sm:$0xf]
    %v453 = vld [vmem:[%s6] sm:$0x1]
    %v455 = vlaneseq
    %v456 = vshrl.u32 %v455, 7
    %v457 = vsub.s32 0, %v456
    %v458 = vrot.slane %v453, %v457
    %v466 = vunpack.c.l.b16 %v447
    %v467 = vunpack.c.l.b16 %v448
    %v468 = vunpack.c.l.b16 %v449
    %v469 = vunpack.c.l.b16 %v450
    %v470 = vunpack.c.l.b16 %v451
    %v471 = vunpack.c.l.b16 %v452
    %v472 = vpack.c.b16 %v467, %v466
    %v473 = vpack.c.b16 %v469, %v468
    %v474 = vpack.c.b16 %v471, %v470
    %vm478 = vcmask 392192
    %v480 = vsel %vm478, %v439, 0
    %v483 = vsel %vm478, %v440, 0
    %v486 = vsel %vm478, %v441, 0
    %v489 = vsel %vm478, %v442, 0
    %v492 = vsel %vm478, %v443, 0
    %v495 = vsel %vm478, %v444, 0
    %v498 = vsel %vm478, %v445, 0
    %v501 = vsel %vm478, %v446, 0
    %503 = vmatprep.subr.bf16.mxu0 0
    %504 = vmatpush1.bf16.msra.mxu0 0
    %505 = vmatprep.subr.bf16.mxu0 0
    %506 = vmatpush1.bf16.msra.mxu0 0
    %507 = vmatprep.subr.bf16.mxu0 0
    %508 = vmatpush1.bf16.msra.mxu0 0
    %509 = vmatprep.subr.bf16.mxu0 0
    %510 = vmatpush1.bf16.msra.mxu0 0
    %511 = vmatprep.subr.bf16.mxu0 0
    %512 = vmatpush1.bf16.msra.mxu0 0
    %513 = vmatprep.subr.bf16.mxu0 0
    %514 = vmatpush1.bf16.msra.mxu0 %v474
    %515 = vmatprep.subr.bf16.mxu0 0
    %516 = vmatpush1.bf16.msra.mxu0 %v473
    %517 = vmatprep.subr.bf16.mxu0 0
    %518 = vmatpush1.bf16.msra.mxu0 %v472
    %519 = vmatprep.subr.bf16.mxu0 0
    %520 = vmatpush2.bf16.msra.mxu0 0
    %521 = vmatprep.subr.bf16.mxu0 0
    %522 = vmatpush2.bf16.msra.mxu0 0
    %523 = vmatprep.subr.bf16.mxu0 0
    %524 = vmatpush2.bf16.msra.mxu0 0
    %525 = vmatprep.subr.bf16.mxu0 0
    %526 = vmatpush2.bf16.msra.mxu0 0
    %527 = vmatprep.subr.bf16.mxu0 0
    %528 = vmatpush2.bf16.msra.mxu0 0
    %529 = vmatprep.subr.bf16.mxu0 0
    %530 = vmatpush2.bf16.msra.mxu0 0
    %531 = vmatprep.subr.bf16.mxu0 0
    %532 = vmatpush2.bf16.msra.mxu0 0
    %533 = vmatprep.subr.bf16.mxu0 0
    %534 = vmatpush2.bf16.msra.mxu0 0
    %535 = vmatprep.mubr.bf16.mxu0 0
    %536 = vmatmul.mubr.bf16.gmra.mxu0 %v480
    %v537 = vpop.f32.mrf.mxu0
    %v538 = vadd.f32 %v458, %v537
    %v539 = vpop.f32.mrf.mxu0
    %v540 = vpop.f32.mrf.mxu0
    %v541 = vadd.f32 %v458, %v540
    %v542 = vpop.f32.mrf.mxu0
    %543 = vmatprep.mubr.bf16.mxu0 0
    %544 = vmatmul.mubr.bf16.gmra.mxu0 %v483
    %v545 = vpop.f32.mrf.mxu0
    %v546 = vadd.f32 %v458, %v545
    %v547 = vpop.f32.mrf.mxu0
    %v548 = vpop.f32.mrf.mxu0
    %v549 = vadd.f32 %v458, %v548
    %v550 = vpop.f32.mrf.mxu0
    %551 = vmatprep.mubr.bf16.mxu0 0
    %552 = vmatmul.mubr.bf16.gmra.mxu0 %v486
    %v553 = vpop.f32.mrf.mxu0
    %v554 = vadd.f32 %v458, %v553
    %v555 = vpop.f32.mrf.mxu0
    %v556 = vpop.f32.mrf.mxu0
    %v557 = vadd.f32 %v458, %v556
    %v558 = vpop.f32.mrf.mxu0
    %559 = vmatprep.mubr.bf16.mxu0 0
    %560 = vmatmul.mubr.bf16.gmra.mxu0 %v489
    %v561 = vpop.f32.mrf.mxu0
    %v562 = vadd.f32 %v458, %v561
    %v563 = vpop.f32.mrf.mxu0
    %v564 = vpop.f32.mrf.mxu0
    %v565 = vadd.f32 %v458, %v564
    %v566 = vpop.f32.mrf.mxu0
    %567 = vmatprep.mubr.bf16.mxu0 0
    %568 = vmatmul.mubr.bf16.gmra.mxu0 %v492
    %v569 = vpop.f32.mrf.mxu0
    %v570 = vadd.f32 %v458, %v569
    %v571 = vpop.f32.mrf.mxu0
    %v572 = vpop.f32.mrf.mxu0
    %v573 = vadd.f32 %v458, %v572
    %v574 = vpop.f32.mrf.mxu0
    %575 = vmatprep.mubr.bf16.mxu0 0
    %576 = vmatmul.mubr.bf16.gmra.mxu0 %v495
    %v577 = vpop.f32.mrf.mxu0
    %v578 = vadd.f32 %v458, %v577
    %v579 = vpop.f32.mrf.mxu0
    %v580 = vpop.f32.mrf.mxu0
    %v581 = vadd.f32 %v458, %v580
    %v582 = vpop.f32.mrf.mxu0
    %583 = vmatprep.mubr.bf16.mxu0 0
    %584 = vmatmul.mubr.bf16.gmra.mxu0 %v498
    %v585 = vpop.f32.mrf.mxu0
    %v586 = vadd.f32 %v458, %v585
    %v587 = vpop.f32.mrf.mxu0
    %v588 = vpop.f32.mrf.mxu0
    %v589 = vadd.f32 %v458, %v588
    %v590 = vpop.f32.mrf.mxu0
    %591 = vmatprep.mubr.bf16.mxu0 0
    %592 = vmatmul.mubr.bf16.gmra.mxu0 %v501
    %v593 = vpop.f32.mrf.mxu0
    %v594 = vadd.f32 %v458, %v593
    %v595 = vpop.f32.mrf.mxu0
    %v596 = vpop.f32.mrf.mxu0
    %v597 = vadd.f32 %v458, %v596
    %v598 = vpop.f32.mrf.mxu0
    %599 = vdwg.mxu0
    %v600 = vmax.f32 %v538, 0.0
    %v601 = vmax.f32 %v541, 0.0
    %v602 = vmax.f32 %v546, 0.0
    %v603 = vmax.f32 %v549, 0.0
    %v604 = vmax.f32 %v554, 0.0
    %v605 = vmax.f32 %v557, 0.0
    %v606 = vmax.f32 %v562, 0.0
    %v607 = vmax.f32 %v565, 0.0
    %v608 = vmax.f32 %v570, 0.0
    %v609 = vmax.f32 %v573, 0.0
    %v610 = vmax.f32 %v578, 0.0
    %v611 = vmax.f32 %v581, 0.0
    %v612 = vmax.f32 %v586, 0.0
    %v613 = vmax.f32 %v589, 0.0
    %v614 = vmax.f32 %v594, 0.0
    %v615 = vmax.f32 %v597, 0.0
    %v616 = vld [vmem:[%s7] sm:$0x1]
    %v617 = vld [vmem:[#allocation2] sm:$0x1]
    %619 = vset.pattern.permute.xlu0 0
    %620 = vperm.xlu0 %619, %v617
    %v621 = vpop.permute.xlu0 %620
    %v623 = vlaneseq
    %v624 = vshrl.u32 %v623, 7
    %v625 = vsub.s32 0, %v624
    %v626 = vrot.slane %v621, %v625
    %vm627 = vcmask 523264
    %v629 = vsel %vm627, %v616, 0
    %v632 = vsel %vm627, %v600, 0
    %v635 = vsel %vm627, %v601, 0
    %637 = vmatprep.subr.mxu0 0.0
    %638 = vmatpush1.xpose.msra.mxu0 0.0
    %639 = vmatprep.subr.mxu0 0.0
    %640 = vmatpush1.xpose.msra.mxu0 0.0
    %641 = vmatprep.subr.mxu0 0.0
    %642 = vmatpush1.xpose.msra.mxu0 0.0
    %643 = vmatprep.subr.mxu0 0.0
    %644 = vmatpush1.xpose.msra.mxu0 0.0
    %645 = vmatprep.subr.mxu0 0.0
    %646 = vmatpush1.xpose.msra.mxu0 0.0
    %647 = vmatprep.subr.mxu0 0.0
    %648 = vmatpush1.xpose.msra.mxu0 0.0
    %649 = vmatprep.subr.mxu0 0.0
    %650 = vmatpush1.xpose.msra.mxu0 0.0
    %651 = vmatprep.subr.mxu0 0.0
    %652 = vmatpush1.xpose.msra.mxu0 0.0
    %653 = vmatprep.subr.mxu0 0.0
    %654 = vmatpush1.xpose.msra.mxu0 0.0
    %655 = vmatprep.subr.mxu0 0.0
    %656 = vmatpush1.xpose.msra.mxu0 0.0
    %657 = vmatprep.subr.mxu0 0.0
    %658 = vmatpush1.xpose.msra.mxu0 0.0
    %659 = vmatprep.subr.mxu0 0.0
    %660 = vmatpush1.xpose.msra.mxu0 0.0
    %661 = vmatprep.subr.mxu0 0.0
    %662 = vmatpush1.xpose.msra.mxu0 0.0
    %663 = vmatprep.subr.mxu0 0.0
    %664 = vmatpush1.xpose.msra.mxu0 0.0
    %665 = vmatprep.subr.mxu0 0.0
    %666 = vmatpush1.xpose.msra.mxu0 %v635
    %667 = vmatprep.subr.mxu0 0.0
    %668 = vmatpush1.xpose.msra.mxu0 %v632
    %669 = vmatprep.subr.mxu0 0.0
    %670 = vmatpush2.xpose.msra.mxu0 0.0
    %671 = vmatprep.subr.mxu0 0.0
    %672 = vmatpush2.xpose.msra.mxu0 0.0
    %673 = vmatprep.subr.mxu0 0.0
    %674 = vmatpush2.xpose.msra.mxu0 0.0
    %675 = vmatprep.subr.mxu0 0.0
    %676 = vmatpush2.xpose.msra.mxu0 0.0
    %677 = vmatprep.subr.mxu0 0.0
    %678 = vmatpush2.xpose.msra.mxu0 0.0
    %679 = vmatprep.subr.mxu0 0.0
    %680 = vmatpush2.xpose.msra.mxu0 0.0
    %681 = vmatprep.subr.mxu0 0.0
    %682 = vmatpush2.xpose.msra.mxu0 0.0
    %683 = vmatprep.subr.mxu0 0.0
    %684 = vmatpush2.xpose.msra.mxu0 0.0
    %685 = vmatprep.subr.mxu0 0.0
    %686 = vmatpush2.xpose.msra.mxu0 0.0
    %687 = vmatprep.subr.mxu0 0.0
    %688 = vmatpush2.xpose.msra.mxu0 0.0
    %689 = vmatprep.subr.mxu0 0.0
    %690 = vmatpush2.xpose.msra.mxu0 0.0
    %691 = vmatprep.subr.mxu0 0.0
    %692 = vmatpush2.xpose.msra.mxu0 0.0
    %693 = vmatprep.subr.mxu0 0.0
    %694 = vmatpush2.xpose.msra.mxu0 0.0
    %695 = vmatprep.subr.mxu0 0.0
    %696 = vmatpush2.xpose.msra.mxu0 0.0
    %697 = vmatprep.subr.mxu0 0.0
    %698 = vmatpush2.xpose.msra.mxu0 0.0
    %699 = vmatprep.subr.mxu0 0.0
    %700 = vmatpush2.xpose.msra.mxu0 0.0
    %701 = vmatprep.mubr.f32.mxu0 0.0
    %702 = vmatmul.mubr.f32.gmra.mxu0 %v629
    %v703 = vpop.f32.mrf.mxu0
    %v704 = vadd.f32 %v626, %v703
    %v705 = vpop.f32.mrf.mxu0
    %706 = vdwg.mxu0
    %vm707 = vcmask 122880
    %v708 = vsel %vm707, %v704, -inf
    %709 = vmax.xlane.f32.xlu0 %v708
    %v710 = vpop.xlane.xlu0 %709
    %v711 = vsub.f32 %v704, %v710
    %v712 = vmul.f32 %v711, 1.442695
    %v713 = vpow.pop %v712
    %v714 = vsel %vm707, %v713, 0.0
    %715 = vadd.xlane.f32.xlu0 %v714
    %v716 = vpop.xlane.xlu0 %715
    %v717 = vrcp.pop %v716
    %v718 = vmul.f32 %v713, %v717
    %719 = vst.msk [vmem:[#allocation9] sm:$0x1] %vm707, %v718
    %vm720 = vcmask 130048
    %v722 = vsel %vm720, %v718, 0
    %724 = vmatprep.subr.mxu0 0.0
    %725 = vmatpush1.msra.mxu0 0.0
    %726 = vmatprep.subr.mxu0 0.0
    %727 = vmatpush1.msra.mxu0 0.0
    %728 = vmatprep.subr.mxu0 0.0
    %729 = vmatpush1.msra.mxu0 0.0
    %730 = vmatprep.subr.mxu0 0.0
    %731 = vmatpush1.msra.mxu0 0.0
    %732 = vmatprep.subr.mxu0 0.0
    %733 = vmatpush1.msra.mxu0 0.0
    %734 = vmatprep.subr.mxu0 0.0
    %735 = vmatpush1.msra.mxu0 0.0
    %736 = vmatprep.subr.mxu0 0.0
    %737 = vmatpush1.msra.mxu0 0.0
    %738 = vmatprep.subr.mxu0 0.0
    %739 = vmatpush1.msra.mxu0 0.0
    %740 = vmatprep.subr.mxu0 0.0
    %741 = vmatpush1.msra.mxu0 0.0
    %742 = vmatprep.subr.mxu0 0.0
    %743 = vmatpush1.msra.mxu0 0.0
    %744 = vmatprep.subr.mxu0 0.0
    %745 = vmatpush1.msra.mxu0 0.0
    %746 = vmatprep.subr.mxu0 0.0
    %747 = vmatpush1.msra.mxu0 0.0
    %748 = vmatprep.subr.mxu0 0.0
    %749 = vmatpush1.msra.mxu0 0.0
    %750 = vmatprep.subr.mxu0 0.0
    %751 = vmatpush1.msra.mxu0 0.0
    %752 = vmatprep.subr.mxu0 0.0
    %753 = vmatpush1.msra.mxu0 %v601
    %754 = vmatprep.subr.mxu0 0.0
    %755 = vmatpush1.msra.mxu0 %v600
    %756 = vmatprep.subr.mxu0 0.0
    %757 = vmatpush2.msra.mxu0 0.0
    %758 = vmatprep.subr.mxu0 0.0
    %759 = vmatpush2.msra.mxu0 0.0
    %760 = vmatprep.subr.mxu0 0.0
    %761 = vmatpush2.msra.mxu0 0.0
    %762 = vmatprep.subr.mxu0 0.0
    %763 = vmatpush2.msra.mxu0 0.0
    %764 = vmatprep.subr.mxu0 0.0
    %765 = vmatpush2.msra.mxu0 0.0
    %766 = vmatprep.subr.mxu0 0.0
    %767 = vmatpush2.msra.mxu0 0.0
    %768 = vmatprep.subr.mxu0 0.0
    %769 = vmatpush2.msra.mxu0 0.0
    %770 = vmatprep.subr.mxu0 0.0
    %771 = vmatpush2.msra.mxu0 0.0
    %772 = vmatprep.subr.mxu0 0.0
    %773 = vmatpush2.msra.mxu0 0.0
    %774 = vmatprep.subr.mxu0 0.0
    %775 = vmatpush2.msra.mxu0 0.0
    %776 = vmatprep.subr.mxu0 0.0
    %777 = vmatpush2.msra.mxu0 0.0
    %778 = vmatprep.subr.mxu0 0.0
    %779 = vmatpush2.msra.mxu0 0.0
    %780 = vmatprep.subr.mxu0 0.0
    %781 = vmatpush2.msra.mxu0 0.0
    %782 = vmatprep.subr.mxu0 0.0
    %783 = vmatpush2.msra.mxu0 0.0
    %784 = vmatprep.subr.mxu0 0.0
    %785 = vmatpush2.msra.mxu0 0.0
    %786 = vmatprep.subr.mxu0 0.0
    %787 = vmatpush2.msra.mxu0 0.0
    %788 = vmatprep.mubr.f32.mxu0 0.0
    %789 = vmatmul.mubr.f32.gmra.mxu0 %v722
    %v790 = vpop.f32.mrf.mxu0
    %v791 = vadd.f32 0.0, %v790
    %v792 = vpop.f32.mrf.mxu0
    %793 = vdwg.mxu0
    %vm794 = vcmask 516096
    %795 = vst.msk [vmem:[%s9] sm:$0x1] %vm794, %v791
    %v796 = vld [vmem:[#allocation2] sm:$0x1]
    %798 = vset.pattern.permute.xlu0 0
    %799 = vperm.xlu0 %798, %v796
    %v800 = vpop.permute.xlu0 %799
    %v802 = vlaneseq
    %v803 = vshrl.u32 %v802, 7
    %v804 = vsub.s32 0, %v803
    %v805 = vrot.slane %v800, %v804
    %v807 = vsel %vm627, %v602, 0
    %v810 = vsel %vm627, %v603, 0
    %812 = vmatprep.subr.mxu0 0.0
    %813 = vmatpush1.xpose.msra.mxu0 0.0
    %814 = vmatprep.subr.mxu0 0.0
    %815 = vmatpush1.xpose.msra.mxu0 0.0
    %816 = vmatprep.subr.mxu0 0.0
    %817 = vmatpush1.xpose.msra.mxu0 0.0
    %818 = vmatprep.subr.mxu0 0.0
    %819 = vmatpush1.xpose.msra.mxu0 0.0
    %820 = vmatprep.subr.mxu0 0.0
    %821 = vmatpush1.xpose.msra.mxu0 0.0
    %822 = vmatprep.subr.mxu0 0.0
    %823 = vmatpush1.xpose.msra.mxu0 0.0
    %824 = vmatprep.subr.mxu0 0.0
    %825 = vmatpush1.xpose.msra.mxu0 0.0
    %826 = vmatprep.subr.mxu0 0.0
    %827 = vmatpush1.xpose.msra.mxu0 0.0
    %828 = vmatprep.subr.mxu0 0.0
    %829 = vmatpush1.xpose.msra.mxu0 0.0
    %830 = vmatprep.subr.mxu0 0.0
    %831 = vmatpush1.xpose.msra.mxu0 0.0
    %832 = vmatprep.subr.mxu0 0.0
    %833 = vmatpush1.xpose.msra.mxu0 0.0
    %834 = vmatprep.subr.mxu0 0.0
    %835 = vmatpush1.xpose.msra.mxu0 0.0
    %836 = vmatprep.subr.mxu0 0.0
    %837 = vmatpush1.xpose.msra.mxu0 0.0
    %838 = vmatprep.subr.mxu0 0.0
    %839 = vmatpush1.xpose.msra.mxu0 0.0
    %840 = vmatprep.subr.mxu0 0.0
    %841 = vmatpush1.xpose.msra.mxu0 %v810
    %842 = vmatprep.subr.mxu0 0.0
    %843 = vmatpush1.xpose.msra.mxu0 %v807
    %844 = vmatprep.subr.mxu0 0.0
    %845 = vmatpush2.xpose.msra.mxu0 0.0
    %846 = vmatprep.subr.mxu0 0.0
    %847 = vmatpush2.xpose.msra.mxu0 0.0
    %848 = vmatprep.subr.mxu0 0.0
    %849 = vmatpush2.xpose.msra.mxu0 0.0
    %850 = vmatprep.subr.mxu0 0.0
    %851 = vmatpush2.xpose.msra.mxu0 0.0
    %852 = vmatprep.subr.mxu0 0.0
    %853 = vmatpush2.xpose.msra.mxu0 0.0
    %854 = vmatprep.subr.mxu0 0.0
    %855 = vmatpush2.xpose.msra.mxu0 0.0
    %856 = vmatprep.subr.mxu0 0.0
    %857 = vmatpush2.xpose.msra.mxu0 0.0
    %858 = vmatprep.subr.mxu0 0.0
    %859 = vmatpush2.xpose.msra.mxu0 0.0
    %860 = vmatprep.subr.mxu0 0.0
    %861 = vmatpush2.xpose.msra.mxu0 0.0
    %862 = vmatprep.subr.mxu0 0.0
    %863 = vmatpush2.xpose.msra.mxu0 0.0
    %864 = vmatprep.subr.mxu0 0.0
    %865 = vmatpush2.xpose.msra.mxu0 0.0
    %866 = vmatprep.subr.mxu0 0.0
    %867 = vmatpush2.xpose.msra.mxu0 0.0
    %868 = vmatprep.subr.mxu0 0.0
    %869 = vmatpush2.xpose.msra.mxu0 0.0
    %870 = vmatprep.subr.mxu0 0.0
    %871 = vmatpush2.xpose.msra.mxu0 0.0
    %872 = vmatprep.subr.mxu0 0.0
    %873 = vmatpush2.xpose.msra.mxu0 0.0
    %874 = vmatprep.subr.mxu0 0.0
    %875 = vmatpush2.xpose.msra.mxu0 0.0
    %876 = vmatprep.mubr.f32.mxu0 0.0
    %877 = vmatmul.mubr.f32.gmra.mxu0 %v629
    %v878 = vpop.f32.mrf.mxu0
    %v879 = vadd.f32 %v805, %v878
    %v880 = vpop.f32.mrf.mxu0
    %881 = vdwg.mxu0
    %v882 = vsel %vm707, %v879, -inf
    %883 = vmax.xlane.f32.xlu0 %v882
    %v884 = vpop.xlane.xlu0 %883
    %v885 = vsub.f32 %v879, %v884
    %v886 = vmul.f32 %v885, 1.442695
    %v887 = vpow.pop %v886
    %v888 = vsel %vm707, %v887, 0.0
    %889 = vadd.xlane.f32.xlu0 %v888
    %v890 = vpop.xlane.xlu0 %889
    %v891 = vrcp.pop %v890
    %v892 = vmul.f32 %v887, %v891
    %893 = vst.msk [vmem:[#allocation9 + $0x1] sm:$0x1] %vm707, %v892
    %v895 = vsel %vm720, %v892, 0
    %897 = vmatprep.subr.mxu0 0.0
    %898 = vmatpush1.msra.mxu0 0.0
    %899 = vmatprep.subr.mxu0 0.0
    %900 = vmatpush1.msra.mxu0 0.0
    %901 = vmatprep.subr.mxu0 0.0
    %902 = vmatpush1.msra.mxu0 0.0
    %903 = vmatprep.subr.mxu0 0.0
    %904 = vmatpush1.msra.mxu0 0.0
    %905 = vmatprep.subr.mxu0 0.0
    %906 = vmatpush1.msra.mxu0 0.0
    %907 = vmatprep.subr.mxu0 0.0
    %908 = vmatpush1.msra.mxu0 0.0
    %909 = vmatprep.subr.mxu0 0.0
    %910 = vmatpush1.msra.mxu0 0.0
    %911 = vmatprep.subr.mxu0 0.0
    %912 = vmatpush1.msra.mxu0 0.0
    %913 = vmatprep.subr.mxu0 0.0
    %914 = vmatpush1.msra.mxu0 0.0
    %915 = vmatprep.subr.mxu0 0.0
    %916 = vmatpush1.msra.mxu0 0.0
    %917 = vmatprep.subr.mxu0 0.0
    %918 = vmatpush1.msra.mxu0 0.0
    %919 = vmatprep.subr.mxu0 0.0
    %920 = vmatpush1.msra.mxu0 0.0
    %921 = vmatprep.subr.mxu0 0.0
    %922 = vmatpush1.msra.mxu0 0.0
    %923 = vmatprep.subr.mxu0 0.0
    %924 = vmatpush1.msra.mxu0 0.0
    %925 = vmatprep.subr.mxu0 0.0
    %926 = vmatpush1.msra.mxu0 %v603
    %927 = vmatprep.subr.mxu0 0.0
    %928 = vmatpush1.msra.mxu0 %v602
    %929 = vmatprep.subr.mxu0 0.0
    %930 = vmatpush2.msra.mxu0 0.0
    %931 = vmatprep.subr.mxu0 0.0
    %932 = vmatpush2.msra.mxu0 0.0
    %933 = vmatprep.subr.mxu0 0.0
    %934 = vmatpush2.msra.mxu0 0.0
    %935 = vmatprep.subr.mxu0 0.0
    %936 = vmatpush2.msra.mxu0 0.0
    %937 = vmatprep.subr.mxu0 0.0
    %938 = vmatpush2.msra.mxu0 0.0
    %939 = vmatprep.subr.mxu0 0.0
    %940 = vmatpush2.msra.mxu0 0.0
    %941 = vmatprep.subr.mxu0 0.0
    %942 = vmatpush2.msra.mxu0 0.0
    %943 = vmatprep.subr.mxu0 0.0
    %944 = vmatpush2.msra.mxu0 0.0
    %945 = vmatprep.subr.mxu0 0.0
    %946 = vmatpush2.msra.mxu0 0.0
    %947 = vmatprep.subr.mxu0 0.0
    %948 = vmatpush2.msra.mxu0 0.0
    %949 = vmatprep.subr.mxu0 0.0
    %950 = vmatpush2.msra.mxu0 0.0
    %951 = vmatprep.subr.mxu0 0.0
    %952 = vmatpush2.msra.mxu0 0.0
    %953 = vmatprep.subr.mxu0 0.0
    %954 = vmatpush2.msra.mxu0 0.0
    %955 = vmatprep.subr.mxu0 0.0
    %956 = vmatpush2.msra.mxu0 0.0
    %957 = vmatprep.subr.mxu0 0.0
    %958 = vmatpush2.msra.mxu0 0.0
    %959 = vmatprep.subr.mxu0 0.0
    %960 = vmatpush2.msra.mxu0 0.0
    %961 = vmatprep.mubr.f32.mxu0 0.0
    %962 = vmatmul.mubr.f32.gmra.mxu0 %v895
    %v963 = vpop.f32.mrf.mxu0
    %v964 = vadd.f32 0.0, %v963
    %v965 = vpop.f32.mrf.mxu0
    %966 = vdwg.mxu0
    %967 = vst.msk [vmem:[%s9 + $0x1] sm:$0x1] %vm794, %v964
    %v968 = vld [vmem:[#allocation2] sm:$0x1]
    %970 = vset.pattern.permute.xlu0 0
    %971 = vperm.xlu0 %970, %v968
    %v972 = vpop.permute.xlu0 %971
    %v974 = vlaneseq
    %v975 = vshrl.u32 %v974, 7
    %v976 = vsub.s32 0, %v975
    %v977 = vrot.slane %v972, %v976
    %v979 = vsel %vm627, %v604, 0
    %v982 = vsel %vm627, %v605, 0
    %984 = vmatprep.subr.mxu0 0.0
    %985 = vmatpush1.xpose.msra.mxu0 0.0
    %986 = vmatprep.subr.mxu0 0.0
    %987 = vmatpush1.xpose.msra.mxu0 0.0
    %988 = vmatprep.subr.mxu0 0.0
    %989 = vmatpush1.xpose.msra.mxu0 0.0
    %990 = vmatprep.subr.mxu0 0.0
    %991 = vmatpush1.xpose.msra.mxu0 0.0
    %992 = vmatprep.subr.mxu0 0.0
    %993 = vmatpush1.xpose.msra.mxu0 0.0
    %994 = vmatprep.subr.mxu0 0.0
    %995 = vmatpush1.xpose.msra.mxu0 0.0
    %996 = vmatprep.subr.mxu0 0.0
    %997 = vmatpush1.xpose.msra.mxu0 0.0
    %998 = vmatprep.subr.mxu0 0.0
    %999 = vmatpush1.xpose.msra.mxu0 0.0
    %1000 = vmatprep.subr.mxu0 0.0
    %1001 = vmatpush1.xpose.msra.mxu0 0.0
    %1002 = vmatprep.subr.mxu0 0.0
    %1003 = vmatpush1.xpose.msra.mxu0 0.0
    %1004 = vmatprep.subr.mxu0 0.0
    %1005 = vmatpush1.xpose.msra.mxu0 0.0
    %1006 = vmatprep.subr.mxu0 0.0
    %1007 = vmatpush1.xpose.msra.mxu0 0.0
    %1008 = vmatprep.subr.mxu0 0.0
    %1009 = vmatpush1.xpose.msra.mxu0 0.0
    %1010 = vmatprep.subr.mxu0 0.0
    %1011 = vmatpush1.xpose.msra.mxu0 0.0
    %1012 = vmatprep.subr.mxu0 0.0
    %1013 = vmatpush1.xpose.msra.mxu0 %v982
    %1014 = vmatprep.subr.mxu0 0.0
    %1015 = vmatpush1.xpose.msra.mxu0 %v979
    %1016 = vmatprep.subr.mxu0 0.0
    %1017 = vmatpush2.xpose.msra.mxu0 0.0
    %1018 = vmatprep.subr.mxu0 0.0
    %1019 = vmatpush2.xpose.msra.mxu0 0.0
    %1020 = vmatprep.subr.mxu0 0.0
    %1021 = vmatpush2.xpose.msra.mxu0 0.0
    %1022 = vmatprep.subr.mxu0 0.0
    %1023 = vmatpush2.xpose.msra.mxu0 0.0
    %1024 = vmatprep.subr.mxu0 0.0
    %1025 = vmatpush2.xpose.msra.mxu0 0.0
    %1026 = vmatprep.subr.mxu0 0.0
    %1027 = vmatpush2.xpose.msra.mxu0 0.0
    %1028 = vmatprep.subr.mxu0 0.0
    %1029 = vmatpush2.xpose.msra.mxu0 0.0
    %1030 = vmatprep.subr.mxu0 0.0
    %1031 = vmatpush2.xpose.msra.mxu0 0.0
    %1032 = vmatprep.subr.mxu0 0.0
    %1033 = vmatpush2.xpose.msra.mxu0 0.0
    %1034 = vmatprep.subr.mxu0 0.0
    %1035 = vmatpush2.xpose.msra.mxu0 0.0
    %1036 = vmatprep.subr.mxu0 0.0
    %1037 = vmatpush2.xpose.msra.mxu0 0.0
    %1038 = vmatprep.subr.mxu0 0.0
    %1039 = vmatpush2.xpose.msra.mxu0 0.0
    %1040 = vmatprep.subr.mxu0 0.0
    %1041 = vmatpush2.xpose.msra.mxu0 0.0
    %1042 = vmatprep.subr.mxu0 0.0
    %1043 = vmatpush2.xpose.msra.mxu0 0.0
    %1044 = vmatprep.subr.mxu0 0.0
    %1045 = vmatpush2.xpose.msra.mxu0 0.0
    %1046 = vmatprep.subr.mxu0 0.0
    %1047 = vmatpush2.xpose.msra.mxu0 0.0
    %1048 = vmatprep.mubr.f32.mxu0 0.0
    %1049 = vmatmul.mubr.f32.gmra.mxu0 %v629
    %v1050 = vpop.f32.mrf.mxu0
    %v1051 = vadd.f32 %v977, %v1050
    %v1052 = vpop.f32.mrf.mxu0
    %1053 = vdwg.mxu0
    %v1054 = vsel %vm707, %v1051, -inf
    %1055 = vmax.xlane.f32.xlu0 %v1054
    %v1056 = vpop.xlane.xlu0 %1055
    %v1057 = vsub.f32 %v1051, %v1056
    %v1058 = vmul.f32 %v1057, 1.442695
    %v1059 = vpow.pop %v1058
    %v1060 = vsel %vm707, %v1059, 0.0
    %1061 = vadd.xlane.f32.xlu0 %v1060
    %v1062 = vpop.xlane.xlu0 %1061
    %v1063 = vrcp.pop %v1062
    %v1064 = vmul.f32 %v1059, %v1063
    %1065 = vst.msk [vmem:[#allocation9 + $0x2] sm:$0x1] %vm707, %v1064
    %v1067 = vsel %vm720, %v1064, 0
    %1069 = vmatprep.subr.mxu0 0.0
    %1070 = vmatpush1.msra.mxu0 0.0
    %1071 = vmatprep.subr.mxu0 0.0
    %1072 = vmatpush1.msra.mxu0 0.0
    %1073 = vmatprep.subr.mxu0 0.0
    %1074 = vmatpush1.msra.mxu0 0.0
    %1075 = vmatprep.subr.mxu0 0.0
    %1076 = vmatpush1.msra.mxu0 0.0
    %1077 = vmatprep.subr.mxu0 0.0
    %1078 = vmatpush1.msra.mxu0 0.0
    %1079 = vmatprep.subr.mxu0 0.0
    %1080 = vmatpush1.msra.mxu0 0.0
    %1081 = vmatprep.subr.mxu0 0.0
    %1082 = vmatpush1.msra.mxu0 0.0
    %1083 = vmatprep.subr.mxu0 0.0
    %1084 = vmatpush1.msra.mxu0 0.0
    %1085 = vmatprep.subr.mxu0 0.0
    %1086 = vmatpush1.msra.mxu0 0.0
    %1087 = vmatprep.subr.mxu0 0.0
    %1088 = vmatpush1.msra.mxu0 0.0
    %1089 = vmatprep.subr.mxu0 0.0
    %1090 = vmatpush1.msra.mxu0 0.0
    %1091 = vmatprep.subr.mxu0 0.0
    %1092 = vmatpush1.msra.mxu0 0.0
    %1093 = vmatprep.subr.mxu0 0.0
    %1094 = vmatpush1.msra.mxu0 0.0
    %1095 = vmatprep.subr.mxu0 0.0
    %1096 = vmatpush1.msra.mxu0 0.0
    %1097 = vmatprep.subr.mxu0 0.0
    %1098 = vmatpush1.msra.mxu0 %v605
    %1099 = vmatprep.subr.mxu0 0.0
    %1100 = vmatpush1.msra.mxu0 %v604
    %1101 = vmatprep.subr.mxu0 0.0
    %1102 = vmatpush2.msra.mxu0 0.0
    %1103 = vmatprep.subr.mxu0 0.0
    %1104 = vmatpush2.msra.mxu0 0.0
    %1105 = vmatprep.subr.mxu0 0.0
    %1106 = vmatpush2.msra.mxu0 0.0
    %1107 = vmatprep.subr.mxu0 0.0
    %1108 = vmatpush2.msra.mxu0 0.0
    %1109 = vmatprep.subr.mxu0 0.0
    %1110 = vmatpush2.msra.mxu0 0.0
    %1111 = vmatprep.subr.mxu0 0.0
    %1112 = vmatpush2.msra.mxu0 0.0
    %1113 = vmatprep.subr.mxu0 0.0
    %1114 = vmatpush2.msra.mxu0 0.0
    %1115 = vmatprep.subr.mxu0 0.0
    %1116 = vmatpush2.msra.mxu0 0.0
    %1117 = vmatprep.subr.mxu0 0.0
    %1118 = vmatpush2.msra.mxu0 0.0
    %1119 = vmatprep.subr.mxu0 0.0
    %1120 = vmatpush2.msra.mxu0 0.0
    %1121 = vmatprep.subr.mxu0 0.0
    %1122 = vmatpush2.msra.mxu0 0.0
    %1123 = vmatprep.subr.mxu0 0.0
    %1124 = vmatpush2.msra.mxu0 0.0
    %1125 = vmatprep.subr.mxu0 0.0
    %1126 = vmatpush2.msra.mxu0 0.0
    %1127 = vmatprep.subr.mxu0 0.0
    %1128 = vmatpush2.msra.mxu0 0.0
    %1129 = vmatprep.subr.mxu0 0.0
    %1130 = vmatpush2.msra.mxu0 0.0
    %1131 = vmatprep.subr.mxu0 0.0
    %1132 = vmatpush2.msra.mxu0 0.0
    %1133 = vmatprep.mubr.f32.mxu0 0.0
    %1134 = vmatmul.mubr.f32.gmra.mxu0 %v1067
    %v1135 = vpop.f32.mrf.mxu0
    %v1136 = vadd.f32 0.0, %v1135
    %v1137 = vpop.f32.mrf.mxu0
    %1138 = vdwg.mxu0
    %1139 = vst.msk [vmem:[%s9 + $0x2] sm:$0x1] %vm794, %v1136
    %v1140 = vld [vmem:[#allocation2] sm:$0x1]
    %1142 = vset.pattern.permute.xlu0 0
    %1143 = vperm.xlu0 %1142, %v1140
    %v1144 = vpop.permute.xlu0 %1143
    %v1146 = vlaneseq
    %v1147 = vshrl.u32 %v1146, 7
    %v1148 = vsub.s32 0, %v1147
    %v1149 = vrot.slane %v1144, %v1148
    %v1151 = vsel %vm627, %v606, 0
    %v1154 = vsel %vm627, %v607, 0
    %1156 = vmatprep.subr.mxu0 0.0
    %1157 = vmatpush1.xpose.msra.mxu0 0.0
    %1158 = vmatprep.subr.mxu0 0.0
    %1159 = vmatpush1.xpose.msra.mxu0 0.0
    %1160 = vmatprep.subr.mxu0 0.0
    %1161 = vmatpush1.xpose.msra.mxu0 0.0
    %1162 = vmatprep.subr.mxu0 0.0
    %1163 = vmatpush1.xpose.msra.mxu0 0.0
    %1164 = vmatprep.subr.mxu0 0.0
    %1165 = vmatpush1.xpose.msra.mxu0 0.0
    %1166 = vmatprep.subr.mxu0 0.0
    %1167 = vmatpush1.xpose.msra.mxu0 0.0
    %1168 = vmatprep.subr.mxu0 0.0
    %1169 = vmatpush1.xpose.msra.mxu0 0.0
    %1170 = vmatprep.subr.mxu0 0.0
    %1171 = vmatpush1.xpose.msra.mxu0 0.0
    %1172 = vmatprep.subr.mxu0 0.0
    %1173 = vmatpush1.xpose.msra.mxu0 0.0
    %1174 = vmatprep.subr.mxu0 0.0
    %1175 = vmatpush1.xpose.msra.mxu0 0.0
    %1176 = vmatprep.subr.mxu0 0.0
    %1177 = vmatpush1.xpose.msra.mxu0 0.0
    %1178 = vmatprep.subr.mxu0 0.0
    %1179 = vmatpush1.xpose.msra.mxu0 0.0
    %1180 = vmatprep.subr.mxu0 0.0
    %1181 = vmatpush1.xpose.msra.mxu0 0.0
    %1182 = vmatprep.subr.mxu0 0.0
    %1183 = vmatpush1.xpose.msra.mxu0 0.0
    %1184 = vmatprep.subr.mxu0 0.0
    %1185 = vmatpush1.xpose.msra.mxu0 %v1154
    %1186 = vmatprep.subr.mxu0 0.0
    %1187 = vmatpush1.xpose.msra.mxu0 %v1151
    %1188 = vmatprep.subr.mxu0 0.0
    %1189 = vmatpush2.xpose.msra.mxu0 0.0
    %1190 = vmatprep.subr.mxu0 0.0
    %1191 = vmatpush2.xpose.msra.mxu0 0.0
    %1192 = vmatprep.subr.mxu0 0.0
    %1193 = vmatpush2.xpose.msra.mxu0 0.0
    %1194 = vmatprep.subr.mxu0 0.0
    %1195 = vmatpush2.xpose.msra.mxu0 0.0
    %1196 = vmatprep.subr.mxu0 0.0
    %1197 = vmatpush2.xpose.msra.mxu0 0.0
    %1198 = vmatprep.subr.mxu0 0.0
    %1199 = vmatpush2.xpose.msra.mxu0 0.0
    %1200 = vmatprep.subr.mxu0 0.0
    %1201 = vmatpush2.xpose.msra.mxu0 0.0
    %1202 = vmatprep.subr.mxu0 0.0
    %1203 = vmatpush2.xpose.msra.mxu0 0.0
    %1204 = vmatprep.subr.mxu0 0.0
    %1205 = vmatpush2.xpose.msra.mxu0 0.0
    %1206 = vmatprep.subr.mxu0 0.0
    %1207 = vmatpush2.xpose.msra.mxu0 0.0
    %1208 = vmatprep.subr.mxu0 0.0
    %1209 = vmatpush2.xpose.msra.mxu0 0.0
    %1210 = vmatprep.subr.mxu0 0.0
    %1211 = vmatpush2.xpose.msra.mxu0 0.0
    %1212 = vmatprep.subr.mxu0 0.0
    %1213 = vmatpush2.xpose.msra.mxu0 0.0
    %1214 = vmatprep.subr.mxu0 0.0
    %1215 = vmatpush2.xpose.msra.mxu0 0.0
    %1216 = vmatprep.subr.mxu0 0.0
    %1217 = vmatpush2.xpose.msra.mxu0 0.0
    %1218 = vmatprep.subr.mxu0 0.0
    %1219 = vmatpush2.xpose.msra.mxu0 0.0
    %1220 = vmatprep.mubr.f32.mxu0 0.0
    %1221 = vmatmul.mubr.f32.gmra.mxu0 %v629
    %v1222 = vpop.f32.mrf.mxu0
    %v1223 = vadd.f32 %v1149, %v1222
    %v1224 = vpop.f32.mrf.mxu0
    %1225 = vdwg.mxu0
    %v1226 = vsel %vm707, %v1223, -inf
    %1227 = vmax.xlane.f32.xlu0 %v1226
    %v1228 = vpop.xlane.xlu0 %1227
    %v1229 = vsub.f32 %v1223, %v1228
    %v1230 = vmul.f32 %v1229, 1.442695
    %v1231 = vpow.pop %v1230
    %v1232 = vsel %vm707, %v1231, 0.0
    %1233 = vadd.xlane.f32.xlu0 %v1232
    %v1234 = vpop.xlane.xlu0 %1233
    %v1235 = vrcp.pop %v1234
    %v1236 = vmul.f32 %v1231, %v1235
    %1237 = vst.msk [vmem:[#allocation9 + $0x3] sm:$0x1] %vm707, %v1236
    %v1239 = vsel %vm720, %v1236, 0
    %1241 = vmatprep.subr.mxu0 0.0
    %1242 = vmatpush1.msra.mxu0 0.0
    %1243 = vmatprep.subr.mxu0 0.0
    %1244 = vmatpush1.msra.mxu0 0.0
    %1245 = vmatprep.subr.mxu0 0.0
    %1246 = vmatpush1.msra.mxu0 0.0
    %1247 = vmatprep.subr.mxu0 0.0
    %1248 = vmatpush1.msra.mxu0 0.0
    %1249 = vmatprep.subr.mxu0 0.0
    %1250 = vmatpush1.msra.mxu0 0.0
    %1251 = vmatprep.subr.mxu0 0.0
    %1252 = vmatpush1.msra.mxu0 0.0
    %1253 = vmatprep.subr.mxu0 0.0
    %1254 = vmatpush1.msra.mxu0 0.0
    %1255 = vmatprep.subr.mxu0 0.0
    %1256 = vmatpush1.msra.mxu0 0.0
    %1257 = vmatprep.subr.mxu0 0.0
    %1258 = vmatpush1.msra.mxu0 0.0
    %1259 = vmatprep.subr.mxu0 0.0
    %1260 = vmatpush1.msra.mxu0 0.0
    %1261 = vmatprep.subr.mxu0 0.0
    %1262 = vmatpush1.msra.mxu0 0.0
    %1263 = vmatprep.subr.mxu0 0.0
    %1264 = vmatpush1.msra.mxu0 0.0
    %1265 = vmatprep.subr.mxu0 0.0
    %1266 = vmatpush1.msra.mxu0 0.0
    %1267 = vmatprep.subr.mxu0 0.0
    %1268 = vmatpush1.msra.mxu0 0.0
    %1269 = vmatprep.subr.mxu0 0.0
    %1270 = vmatpush1.msra.mxu0 %v607
    %1271 = vmatprep.subr.mxu0 0.0
    %1272 = vmatpush1.msra.mxu0 %v606
    %1273 = vmatprep.subr.mxu0 0.0
    %1274 = vmatpush2.msra.mxu0 0.0
    %1275 = vmatprep.subr.mxu0 0.0
    %1276 = vmatpush2.msra.mxu0 0.0
    %1277 = vmatprep.subr.mxu0 0.0
    %1278 = vmatpush2.msra.mxu0 0.0
    %1279 = vmatprep.subr.mxu0 0.0
    %1280 = vmatpush2.msra.mxu0 0.0
    %1281 = vmatprep.subr.mxu0 0.0
    %1282 = vmatpush2.msra.mxu0 0.0
    %1283 = vmatprep.subr.mxu0 0.0
    %1284 = vmatpush2.msra.mxu0 0.0
    %1285 = vmatprep.subr.mxu0 0.0
    %1286 = vmatpush2.msra.mxu0 0.0
    %1287 = vmatprep.subr.mxu0 0.0
    %1288 = vmatpush2.msra.mxu0 0.0
    %1289 = vmatprep.subr.mxu0 0.0
    %1290 = vmatpush2.msra.mxu0 0.0
    %1291 = vmatprep.subr.mxu0 0.0
    %1292 = vmatpush2.msra.mxu0 0.0
    %1293 = vmatprep.subr.mxu0 0.0
    %1294 = vmatpush2.msra.mxu0 0.0
    %1295 = vmatprep.subr.mxu0 0.0
    %1296 = vmatpush2.msra.mxu0 0.0
    %1297 = vmatprep.subr.mxu0 0.0
    %1298 = vmatpush2.msra.mxu0 0.0
    %1299 = vmatprep.subr.mxu0 0.0
    %1300 = vmatpush2.msra.mxu0 0.0
    %1301 = vmatprep.subr.mxu0 0.0
    %1302 = vmatpush2.msra.mxu0 0.0
    %1303 = vmatprep.subr.mxu0 0.0
    %1304 = vmatpush2.msra.mxu0 0.0
    %1305 = vmatprep.mubr.f32.mxu0 0.0
    %1306 = vmatmul.mubr.f32.gmra.mxu0 %v1239
    %v1307 = vpop.f32.mrf.mxu0
    %v1308 = vadd.f32 0.0, %v1307
    %v1309 = vpop.f32.mrf.mxu0
    %1310 = vdwg.mxu0
    %1311 = vst.msk [vmem:[%s9 + $0x3] sm:$0x1] %vm794, %v1308
    %v1312 = vld [vmem:[#allocation2] sm:$0x1]
    %1314 = vset.pattern.permute.xlu0 0
    %1315 = vperm.xlu0 %1314, %v1312
    %v1316 = vpop.permute.xlu0 %1315
    %v1318 = vlaneseq
    %v1319 = vshrl.u32 %v1318, 7
    %v1320 = vsub.s32 0, %v1319
    %v1321 = vrot.slane %v1316, %v1320
    %v1323 = vsel %vm627, %v608, 0
    %v1326 = vsel %vm627, %v609, 0
    %1328 = vmatprep.subr.mxu0 0.0
    %1329 = vmatpush1.xpose.msra.mxu0 0.0
    %1330 = vmatprep.subr.mxu0 0.0
    %1331 = vmatpush1.xpose.msra.mxu0 0.0
    %1332 = vmatprep.subr.mxu0 0.0
    %1333 = vmatpush1.xpose.msra.mxu0 0.0
    %1334 = vmatprep.subr.mxu0 0.0
    %1335 = vmatpush1.xpose.msra.mxu0 0.0
    %1336 = vmatprep.subr.mxu0 0.0
    %1337 = vmatpush1.xpose.msra.mxu0 0.0
    %1338 = vmatprep.subr.mxu0 0.0
    %1339 = vmatpush1.xpose.msra.mxu0 0.0
    %1340 = vmatprep.subr.mxu0 0.0
    %1341 = vmatpush1.xpose.msra.mxu0 0.0
    %1342 = vmatprep.subr.mxu0 0.0
    %1343 = vmatpush1.xpose.msra.mxu0 0.0
    %1344 = vmatprep.subr.mxu0 0.0
    %1345 = vmatpush1.xpose.msra.mxu0 0.0
    %1346 = vmatprep.subr.mxu0 0.0
    %1347 = vmatpush1.xpose.msra.mxu0 0.0
    %1348 = vmatprep.subr.mxu0 0.0
    %1349 = vmatpush1.xpose.msra.mxu0 0.0
    %1350 = vmatprep.subr.mxu0 0.0
    %1351 = vmatpush1.xpose.msra.mxu0 0.0
    %1352 = vmatprep.subr.mxu0 0.0
    %1353 = vmatpush1.xpose.msra.mxu0 0.0
    %1354 = vmatprep.subr.mxu0 0.0
    %1355 = vmatpush1.xpose.msra.mxu0 0.0
    %1356 = vmatprep.subr.mxu0 0.0
    %1357 = vmatpush1.xpose.msra.mxu0 %v1326
    %1358 = vmatprep.subr.mxu0 0.0
    %1359 = vmatpush1.xpose.msra.mxu0 %v1323
    %1360 = vmatprep.subr.mxu0 0.0
    %1361 = vmatpush2.xpose.msra.mxu0 0.0
    %1362 = vmatprep.subr.mxu0 0.0
    %1363 = vmatpush2.xpose.msra.mxu0 0.0
    %1364 = vmatprep.subr.mxu0 0.0
    %1365 = vmatpush2.xpose.msra.mxu0 0.0
    %1366 = vmatprep.subr.mxu0 0.0
    %1367 = vmatpush2.xpose.msra.mxu0 0.0
    %1368 = vmatprep.subr.mxu0 0.0
    %1369 = vmatpush2.xpose.msra.mxu0 0.0
    %1370 = vmatprep.subr.mxu0 0.0
    %1371 = vmatpush2.xpose.msra.mxu0 0.0
    %1372 = vmatprep.subr.mxu0 0.0
    %1373 = vmatpush2.xpose.msra.mxu0 0.0
    %1374 = vmatprep.subr.mxu0 0.0
    %1375 = vmatpush2.xpose.msra.mxu0 0.0
    %1376 = vmatprep.subr.mxu0 0.0
    %1377 = vmatpush2.xpose.msra.mxu0 0.0
    %1378 = vmatprep.subr.mxu0 0.0
    %1379 = vmatpush2.xpose.msra.mxu0 0.0
    %1380 = vmatprep.subr.mxu0 0.0
    %1381 = vmatpush2.xpose.msra.mxu0 0.0
    %1382 = vmatprep.subr.mxu0 0.0
    %1383 = vmatpush2.xpose.msra.mxu0 0.0
    %1384 = vmatprep.subr.mxu0 0.0
    %1385 = vmatpush2.xpose.msra.mxu0 0.0
    %1386 = vmatprep.subr.mxu0 0.0
    %1387 = vmatpush2.xpose.msra.mxu0 0.0
    %1388 = vmatprep.subr.mxu0 0.0
    %1389 = vmatpush2.xpose.msra.mxu0 0.0
    %1390 = vmatprep.subr.mxu0 0.0
    %1391 = vmatpush2.xpose.msra.mxu0 0.0
    %1392 = vmatprep.mubr.f32.mxu0 0.0
    %1393 = vmatmul.mubr.f32.gmra.mxu0 %v629
    %v1394 = vpop.f32.mrf.mxu0
    %v1395 = vadd.f32 %v1321, %v1394
    %v1396 = vpop.f32.mrf.mxu0
    %1397 = vdwg.mxu0
    %v1398 = vsel %vm707, %v1395, -inf
    %1399 = vmax.xlane.f32.xlu0 %v1398
    %v1400 = vpop.xlane.xlu0 %1399
    %v1401 = vsub.f32 %v1395, %v1400
    %v1402 = vmul.f32 %v1401, 1.442695
    %v1403 = vpow.pop %v1402
    %v1404 = vsel %vm707, %v1403, 0.0
    %1405 = vadd.xlane.f32.xlu0 %v1404
    %v1406 = vpop.xlane.xlu0 %1405
    %v1407 = vrcp.pop %v1406
    %v1408 = vmul.f32 %v1403, %v1407
    %1409 = vst.msk [vmem:[#allocation9 + $0x4] sm:$0x1] %vm707, %v1408
    %v1411 = vsel %vm720, %v1408, 0
    %1413 = vmatprep.subr.mxu0 0.0
    %1414 = vmatpush1.msra.mxu0 0.0
    %1415 = vmatprep.subr.mxu0 0.0
    %1416 = vmatpush1.msra.mxu0 0.0
    %1417 = vmatprep.subr.mxu0 0.0
    %1418 = vmatpush1.msra.mxu0 0.0
    %1419 = vmatprep.subr.mxu0 0.0
    %1420 = vmatpush1.msra.mxu0 0.0
    %1421 = vmatprep.subr.mxu0 0.0
    %1422 = vmatpush1.msra.mxu0 0.0
    %1423 = vmatprep.subr.mxu0 0.0
    %1424 = vmatpush1.msra.mxu0 0.0
    %1425 = vmatprep.subr.mxu0 0.0
    %1426 = vmatpush1.msra.mxu0 0.0
    %1427 = vmatprep.subr.mxu0 0.0
    %1428 = vmatpush1.msra.mxu0 0.0
    %1429 = vmatprep.subr.mxu0 0.0
    %1430 = vmatpush1.msra.mxu0 0.0
    %1431 = vmatprep.subr.mxu0 0.0
    %1432 = vmatpush1.msra.mxu0 0.0
    %1433 = vmatprep.subr.mxu0 0.0
    %1434 = vmatpush1.msra.mxu0 0.0
    %1435 = vmatprep.subr.mxu0 0.0
    %1436 = vmatpush1.msra.mxu0 0.0
    %1437 = vmatprep.subr.mxu0 0.0
    %1438 = vmatpush1.msra.mxu0 0.0
    %1439 = vmatprep.subr.mxu0 0.0
    %1440 = vmatpush1.msra.mxu0 0.0
    %1441 = vmatprep.subr.mxu0 0.0
    %1442 = vmatpush1.msra.mxu0 %v609
    %1443 = vmatprep.subr.mxu0 0.0
    %1444 = vmatpush1.msra.mxu0 %v608
    %1445 = vmatprep.subr.mxu0 0.0
    %1446 = vmatpush2.msra.mxu0 0.0
    %1447 = vmatprep.subr.mxu0 0.0
    %1448 = vmatpush2.msra.mxu0 0.0
    %1449 = vmatprep.subr.mxu0 0.0
    %1450 = vmatpush2.msra.mxu0 0.0
    %1451 = vmatprep.subr.mxu0 0.0
    %1452 = vmatpush2.msra.mxu0 0.0
    %1453 = vmatprep.subr.mxu0 0.0
    %1454 = vmatpush2.msra.mxu0 0.0
    %1455 = vmatprep.subr.mxu0 0.0
    %1456 = vmatpush2.msra.mxu0 0.0
    %1457 = vmatprep.subr.mxu0 0.0
    %1458 = vmatpush2.msra.mxu0 0.0
    %1459 = vmatprep.subr.mxu0 0.0
    %1460 = vmatpush2.msra.mxu0 0.0
    %1461 = vmatprep.subr.mxu0 0.0
    %1462 = vmatpush2.msra.mxu0 0.0
    %1463 = vmatprep.subr.mxu0 0.0
    %1464 = vmatpush2.msra.mxu0 0.0
    %1465 = vmatprep.subr.mxu0 0.0
    %1466 = vmatpush2.msra.mxu0 0.0
    %1467 = vmatprep.subr.mxu0 0.0
    %1468 = vmatpush2.msra.mxu0 0.0
    %1469 = vmatprep.subr.mxu0 0.0
    %1470 = vmatpush2.msra.mxu0 0.0
    %1471 = vmatprep.subr.mxu0 0.0
    %1472 = vmatpush2.msra.mxu0 0.0
    %1473 = vmatprep.subr.mxu0 0.0
    %1474 = vmatpush2.msra.mxu0 0.0
    %1475 = vmatprep.subr.mxu0 0.0
    %1476 = vmatpush2.msra.mxu0 0.0
    %1477 = vmatprep.mubr.f32.mxu0 0.0
    %1478 = vmatmul.mubr.f32.gmra.mxu0 %v1411
    %v1479 = vpop.f32.mrf.mxu0
    %v1480 = vadd.f32 0.0, %v1479
    %v1481 = vpop.f32.mrf.mxu0
    %1482 = vdwg.mxu0
    %1483 = vst.msk [vmem:[%s9 + $0x4] sm:$0x1] %vm794, %v1480
    %v1484 = vld [vmem:[#allocation2] sm:$0x1]
    %1486 = vset.pattern.permute.xlu0 0
    %1487 = vperm.xlu0 %1486, %v1484
    %v1488 = vpop.permute.xlu0 %1487
    %v1490 = vlaneseq
    %v1491 = vshrl.u32 %v1490, 7
    %v1492 = vsub.s32 0, %v1491
    %v1493 = vrot.slane %v1488, %v1492
    %v1495 = vsel %vm627, %v610, 0
    %v1498 = vsel %vm627, %v611, 0
    %1500 = vmatprep.subr.mxu0 0.0
    %1501 = vmatpush1.xpose.msra.mxu0 0.0
    %1502 = vmatprep.subr.mxu0 0.0
    %1503 = vmatpush1.xpose.msra.mxu0 0.0
    %1504 = vmatprep.subr.mxu0 0.0
    %1505 = vmatpush1.xpose.msra.mxu0 0.0
    %1506 = vmatprep.subr.mxu0 0.0
    %1507 = vmatpush1.xpose.msra.mxu0 0.0
    %1508 = vmatprep.subr.mxu0 0.0
    %1509 = vmatpush1.xpose.msra.mxu0 0.0
    %1510 = vmatprep.subr.mxu0 0.0
    %1511 = vmatpush1.xpose.msra.mxu0 0.0
    %1512 = vmatprep.subr.mxu0 0.0
    %1513 = vmatpush1.xpose.msra.mxu0 0.0
    %1514 = vmatprep.subr.mxu0 0.0
    %1515 = vmatpush1.xpose.msra.mxu0 0.0
    %1516 = vmatprep.subr.mxu0 0.0
    %1517 = vmatpush1.xpose.msra.mxu0 0.0
    %1518 = vmatprep.subr.mxu0 0.0
    %1519 = vmatpush1.xpose.msra.mxu0 0.0
    %1520 = vmatprep.subr.mxu0 0.0
    %1521 = vmatpush1.xpose.msra.mxu0 0.0
    %1522 = vmatprep.subr.mxu0 0.0
    %1523 = vmatpush1.xpose.msra.mxu0 0.0
    %1524 = vmatprep.subr.mxu0 0.0
    %1525 = vmatpush1.xpose.msra.mxu0 0.0
    %1526 = vmatprep.subr.mxu0 0.0
    %1527 = vmatpush1.xpose.msra.mxu0 0.0
    %1528 = vmatprep.subr.mxu0 0.0
    %1529 = vmatpush1.xpose.msra.mxu0 %v1498
    %1530 = vmatprep.subr.mxu0 0.0
    %1531 = vmatpush1.xpose.msra.mxu0 %v1495
    %1532 = vmatprep.subr.mxu0 0.0
    %1533 = vmatpush2.xpose.msra.mxu0 0.0
    %1534 = vmatprep.subr.mxu0 0.0
    %1535 = vmatpush2.xpose.msra.mxu0 0.0
    %1536 = vmatprep.subr.mxu0 0.0
    %1537 = vmatpush2.xpose.msra.mxu0 0.0
    %1538 = vmatprep.subr.mxu0 0.0
    %1539 = vmatpush2.xpose.msra.mxu0 0.0
    %1540 = vmatprep.subr.mxu0 0.0
    %1541 = vmatpush2.xpose.msra.mxu0 0.0
    %1542 = vmatprep.subr.mxu0 0.0
    %1543 = vmatpush2.xpose.msra.mxu0 0.0
    %1544 = vmatprep.subr.mxu0 0.0
    %1545 = vmatpush2.xpose.msra.mxu0 0.0
    %1546 = vmatprep.subr.mxu0 0.0
    %1547 = vmatpush2.xpose.msra.mxu0 0.0
    %1548 = vmatprep.subr.mxu0 0.0
    %1549 = vmatpush2.xpose.msra.mxu0 0.0
    %1550 = vmatprep.subr.mxu0 0.0
    %1551 = vmatpush2.xpose.msra.mxu0 0.0
    %1552 = vmatprep.subr.mxu0 0.0
    %1553 = vmatpush2.xpose.msra.mxu0 0.0
    %1554 = vmatprep.subr.mxu0 0.0
    %1555 = vmatpush2.xpose.msra.mxu0 0.0
    %1556 = vmatprep.subr.mxu0 0.0
    %1557 = vmatpush2.xpose.msra.mxu0 0.0
    %1558 = vmatprep.subr.mxu0 0.0
    %1559 = vmatpush2.xpose.msra.mxu0 0.0
    %1560 = vmatprep.subr.mxu0 0.0
    %1561 = vmatpush2.xpose.msra.mxu0 0.0
    %1562 = vmatprep.subr.mxu0 0.0
    %1563 = vmatpush2.xpose.msra.mxu0 0.0
    %1564 = vmatprep.mubr.f32.mxu0 0.0
    %1565 = vmatmul.mubr.f32.gmra.mxu0 %v629
    %v1566 = vpop.f32.mrf.mxu0
    %v1567 = vadd.f32 %v1493, %v1566
    %v1568 = vpop.f32.mrf.mxu0
    %1569 = vdwg.mxu0
    %v1570 = vsel %vm707, %v1567, -inf
    %1571 = vmax.xlane.f32.xlu0 %v1570
    %v1572 = vpop.xlane.xlu0 %1571
    %v1573 = vsub.f32 %v1567, %v1572
    %v1574 = vmul.f32 %v1573, 1.442695
    %v1575 = vpow.pop %v1574
    %v1576 = vsel %vm707, %v1575, 0.0
    %1577 = vadd.xlane.f32.xlu0 %v1576
    %v1578 = vpop.xlane.xlu0 %1577
    %v1579 = vrcp.pop %v1578
    %v1580 = vmul.f32 %v1575, %v1579
    %1581 = vst.msk [vmem:[#allocation9 + $0x5] sm:$0x1] %vm707, %v1580
    %v1583 = vsel %vm720, %v1580, 0
    %1585 = vmatprep.subr.mxu0 0.0
    %1586 = vmatpush1.msra.mxu0 0.0
    %1587 = vmatprep.subr.mxu0 0.0
    %1588 = vmatpush1.msra.mxu0 0.0
    %1589 = vmatprep.subr.mxu0 0.0
    %1590 = vmatpush1.msra.mxu0 0.0
    %1591 = vmatprep.subr.mxu0 0.0
    %1592 = vmatpush1.msra.mxu0 0.0
    %1593 = vmatprep.subr.mxu0 0.0
    %1594 = vmatpush1.msra.mxu0 0.0
    %1595 = vmatprep.subr.mxu0 0.0
    %1596 = vmatpush1.msra.mxu0 0.0
    %1597 = vmatprep.subr.mxu0 0.0
    %1598 = vmatpush1.msra.mxu0 0.0
    %1599 = vmatprep.subr.mxu0 0.0
    %1600 = vmatpush1.msra.mxu0 0.0
    %1601 = vmatprep.subr.mxu0 0.0
    %1602 = vmatpush1.msra.mxu0 0.0
    %1603 = vmatprep.subr.mxu0 0.0
    %1604 = vmatpush1.msra.mxu0 0.0
    %1605 = vmatprep.subr.mxu0 0.0
    %1606 = vmatpush1.msra.mxu0 0.0
    %1607 = vmatprep.subr.mxu0 0.0
    %1608 = vmatpush1.msra.mxu0 0.0
    %1609 = vmatprep.subr.mxu0 0.0
    %1610 = vmatpush1.msra.mxu0 0.0
    %1611 = vmatprep.subr.mxu0 0.0
    %1612 = vmatpush1.msra.mxu0 0.0
    %1613 = vmatprep.subr.mxu0 0.0
    %1614 = vmatpush1.msra.mxu0 %v611
    %1615 = vmatprep.subr.mxu0 0.0
    %1616 = vmatpush1.msra.mxu0 %v610
    %1617 = vmatprep.subr.mxu0 0.0
    %1618 = vmatpush2.msra.mxu0 0.0
    %1619 = vmatprep.subr.mxu0 0.0
    %1620 = vmatpush2.msra.mxu0 0.0
    %1621 = vmatprep.subr.mxu0 0.0
    %1622 = vmatpush2.msra.mxu0 0.0
    %1623 = vmatprep.subr.mxu0 0.0
    %1624 = vmatpush2.msra.mxu0 0.0
    %1625 = vmatprep.subr.mxu0 0.0
    %1626 = vmatpush2.msra.mxu0 0.0
    %1627 = vmatprep.subr.mxu0 0.0
    %1628 = vmatpush2.msra.mxu0 0.0
    %1629 = vmatprep.subr.mxu0 0.0
    %1630 = vmatpush2.msra.mxu0 0.0
    %1631 = vmatprep.subr.mxu0 0.0
    %1632 = vmatpush2.msra.mxu0 0.0
    %1633 = vmatprep.subr.mxu0 0.0
    %1634 = vmatpush2.msra.mxu0 0.0
    %1635 = vmatprep.subr.mxu0 0.0
    %1636 = vmatpush2.msra.mxu0 0.0
    %1637 = vmatprep.subr.mxu0 0.0
    %1638 = vmatpush2.msra.mxu0 0.0
    %1639 = vmatprep.subr.mxu0 0.0
    %1640 = vmatpush2.msra.mxu0 0.0
    %1641 = vmatprep.subr.mxu0 0.0
    %1642 = vmatpush2.msra.mxu0 0.0
    %1643 = vmatprep.subr.mxu0 0.0
    %1644 = vmatpush2.msra.mxu0 0.0
    %1645 = vmatprep.subr.mxu0 0.0
    %1646 = vmatpush2.msra.mxu0 0.0
    %1647 = vmatprep.subr.mxu0 0.0
    %1648 = vmatpush2.msra.mxu0 0.0
    %1649 = vmatprep.mubr.f32.mxu0 0.0
    %1650 = vmatmul.mubr.f32.gmra.mxu0 %v1583
    %v1651 = vpop.f32.mrf.mxu0
    %v1652 = vadd.f32 0.0, %v1651
    %v1653 = vpop.f32.mrf.mxu0
    %1654 = vdwg.mxu0
    %1655 = vst.msk [vmem:[%s9 + $0x5] sm:$0x1] %vm794, %v1652
    %v1656 = vld [vmem:[#allocation2] sm:$0x1]
    %1658 = vset.pattern.permute.xlu0 0
    %1659 = vperm.xlu0 %1658, %v1656
    %v1660 = vpop.permute.xlu0 %1659
    %v1662 = vlaneseq
    %v1663 = vshrl.u32 %v1662, 7
    %v1664 = vsub.s32 0, %v1663
    %v1665 = vrot.slane %v1660, %v1664
    %v1667 = vsel %vm627, %v612, 0
    %v1670 = vsel %vm627, %v613, 0
    %1672 = vmatprep.subr.mxu0 0.0
    %1673 = vmatpush1.xpose.msra.mxu0 0.0
    %1674 = vmatprep.subr.mxu0 0.0
    %1675 = vmatpush1.xpose.msra.mxu0 0.0
    %1676 = vmatprep.subr.mxu0 0.0
    %1677 = vmatpush1.xpose.msra.mxu0 0.0
    %1678 = vmatprep.subr.mxu0 0.0
    %1679 = vmatpush1.xpose.msra.mxu0 0.0
    %1680 = vmatprep.subr.mxu0 0.0
    %1681 = vmatpush1.xpose.msra.mxu0 0.0
    %1682 = vmatprep.subr.mxu0 0.0
    %1683 = vmatpush1.xpose.msra.mxu0 0.0
    %1684 = vmatprep.subr.mxu0 0.0
    %1685 = vmatpush1.xpose.msra.mxu0 0.0
    %1686 = vmatprep.subr.mxu0 0.0
    %1687 = vmatpush1.xpose.msra.mxu0 0.0
    %1688 = vmatprep.subr.mxu0 0.0
    %1689 = vmatpush1.xpose.msra.mxu0 0.0
    %1690 = vmatprep.subr.mxu0 0.0
    %1691 = vmatpush1.xpose.msra.mxu0 0.0
    %1692 = vmatprep.subr.mxu0 0.0
    %1693 = vmatpush1.xpose.msra.mxu0 0.0
    %1694 = vmatprep.subr.mxu0 0.0
    %1695 = vmatpush1.xpose.msra.mxu0 0.0
    %1696 = vmatprep.subr.mxu0 0.0
    %1697 = vmatpush1.xpose.msra.mxu0 0.0
    %1698 = vmatprep.subr.mxu0 0.0
    %1699 = vmatpush1.xpose.msra.mxu0 0.0
    %1700 = vmatprep.subr.mxu0 0.0
    %1701 = vmatpush1.xpose.msra.mxu0 %v1670
    %1702 = vmatprep.subr.mxu0 0.0
    %1703 = vmatpush1.xpose.msra.mxu0 %v1667
    %1704 = vmatprep.subr.mxu0 0.0
    %1705 = vmatpush2.xpose.msra.mxu0 0.0
    %1706 = vmatprep.subr.mxu0 0.0
    %1707 = vmatpush2.xpose.msra.mxu0 0.0
    %1708 = vmatprep.subr.mxu0 0.0
    %1709 = vmatpush2.xpose.msra.mxu0 0.0
    %1710 = vmatprep.subr.mxu0 0.0
    %1711 = vmatpush2.xpose.msra.mxu0 0.0
    %1712 = vmatprep.subr.mxu0 0.0
    %1713 = vmatpush2.xpose.msra.mxu0 0.0
    %1714 = vmatprep.subr.mxu0 0.0
    %1715 = vmatpush2.xpose.msra.mxu0 0.0
    %1716 = vmatprep.subr.mxu0 0.0
    %1717 = vmatpush2.xpose.msra.mxu0 0.0
    %1718 = vmatprep.subr.mxu0 0.0
    %1719 = vmatpush2.xpose.msra.mxu0 0.0
    %1720 = vmatprep.subr.mxu0 0.0
    %1721 = vmatpush2.xpose.msra.mxu0 0.0
    %1722 = vmatprep.subr.mxu0 0.0
    %1723 = vmatpush2.xpose.msra.mxu0 0.0
    %1724 = vmatprep.subr.mxu0 0.0
    %1725 = vmatpush2.xpose.msra.mxu0 0.0
    %1726 = vmatprep.subr.mxu0 0.0
    %1727 = vmatpush2.xpose.msra.mxu0 0.0
    %1728 = vmatprep.subr.mxu0 0.0
    %1729 = vmatpush2.xpose.msra.mxu0 0.0
    %1730 = vmatprep.subr.mxu0 0.0
    %1731 = vmatpush2.xpose.msra.mxu0 0.0
    %1732 = vmatprep.subr.mxu0 0.0
    %1733 = vmatpush2.xpose.msra.mxu0 0.0
    %1734 = vmatprep.subr.mxu0 0.0
    %1735 = vmatpush2.xpose.msra.mxu0 0.0
    %1736 = vmatprep.mubr.f32.mxu0 0.0
    %1737 = vmatmul.mubr.f32.gmra.mxu0 %v629
    %v1738 = vpop.f32.mrf.mxu0
    %v1739 = vadd.f32 %v1665, %v1738
    %v1740 = vpop.f32.mrf.mxu0
    %1741 = vdwg.mxu0
    %v1742 = vsel %vm707, %v1739, -inf
    %1743 = vmax.xlane.f32.xlu0 %v1742
    %v1744 = vpop.xlane.xlu0 %1743
    %v1745 = vsub.f32 %v1739, %v1744
    %v1746 = vmul.f32 %v1745, 1.442695
    %v1747 = vpow.pop %v1746
    %v1748 = vsel %vm707, %v1747, 0.0
    %1749 = vadd.xlane.f32.xlu0 %v1748
    %v1750 = vpop.xlane.xlu0 %1749
    %v1751 = vrcp.pop %v1750
    %v1752 = vmul.f32 %v1747, %v1751
    %1753 = vst.msk [vmem:[#allocation9 + $0x6] sm:$0x1] %vm707, %v1752
    %v1755 = vsel %vm720, %v1752, 0
    %1757 = vmatprep.subr.mxu0 0.0
    %1758 = vmatpush1.msra.mxu0 0.0
    %1759 = vmatprep.subr.mxu0 0.0
    %1760 = vmatpush1.msra.mxu0 0.0
    %1761 = vmatprep.subr.mxu0 0.0
    %1762 = vmatpush1.msra.mxu0 0.0
    %1763 = vmatprep.subr.mxu0 0.0
    %1764 = vmatpush1.msra.mxu0 0.0
    %1765 = vmatprep.subr.mxu0 0.0
    %1766 = vmatpush1.msra.mxu0 0.0
    %1767 = vmatprep.subr.mxu0 0.0
    %1768 = vmatpush1.msra.mxu0 0.0
    %1769 = vmatprep.subr.mxu0 0.0
    %1770 = vmatpush1.msra.mxu0 0.0
    %1771 = vmatprep.subr.mxu0 0.0
    %1772 = vmatpush1.msra.mxu0 0.0
    %1773 = vmatprep.subr.mxu0 0.0
    %1774 = vmatpush1.msra.mxu0 0.0
    %1775 = vmatprep.subr.mxu0 0.0
    %1776 = vmatpush1.msra.mxu0 0.0
    %1777 = vmatprep.subr.mxu0 0.0
    %1778 = vmatpush1.msra.mxu0 0.0
    %1779 = vmatprep.subr.mxu0 0.0
    %1780 = vmatpush1.msra.mxu0 0.0
    %1781 = vmatprep.subr.mxu0 0.0
    %1782 = vmatpush1.msra.mxu0 0.0
    %1783 = vmatprep.subr.mxu0 0.0
    %1784 = vmatpush1.msra.mxu0 0.0
    %1785 = vmatprep.subr.mxu0 0.0
    %1786 = vmatpush1.msra.mxu0 %v613
    %1787 = vmatprep.subr.mxu0 0.0
    %1788 = vmatpush1.msra.mxu0 %v612
    %1789 = vmatprep.subr.mxu0 0.0
    %1790 = vmatpush2.msra.mxu0 0.0
    %1791 = vmatprep.subr.mxu0 0.0
    %1792 = vmatpush2.msra.mxu0 0.0
    %1793 = vmatprep.subr.mxu0 0.0
    %1794 = vmatpush2.msra.mxu0 0.0
    %1795 = vmatprep.subr.mxu0 0.0
    %1796 = vmatpush2.msra.mxu0 0.0
    %1797 = vmatprep.subr.mxu0 0.0
    %1798 = vmatpush2.msra.mxu0 0.0
    %1799 = vmatprep.subr.mxu0 0.0
    %1800 = vmatpush2.msra.mxu0 0.0
    %1801 = vmatprep.subr.mxu0 0.0
    %1802 = vmatpush2.msra.mxu0 0.0
    %1803 = vmatprep.subr.mxu0 0.0
    %1804 = vmatpush2.msra.mxu0 0.0
    %1805 = vmatprep.subr.mxu0 0.0
    %1806 = vmatpush2.msra.mxu0 0.0
    %1807 = vmatprep.subr.mxu0 0.0
    %1808 = vmatpush2.msra.mxu0 0.0
    %1809 = vmatprep.subr.mxu0 0.0
    %1810 = vmatpush2.msra.mxu0 0.0
    %1811 = vmatprep.subr.mxu0 0.0
    %1812 = vmatpush2.msra.mxu0 0.0
    %1813 = vmatprep.subr.mxu0 0.0
    %1814 = vmatpush2.msra.mxu0 0.0
    %1815 = vmatprep.subr.mxu0 0.0
    %1816 = vmatpush2.msra.mxu0 0.0
    %1817 = vmatprep.subr.mxu0 0.0
    %1818 = vmatpush2.msra.mxu0 0.0
    %1819 = vmatprep.subr.mxu0 0.0
    %1820 = vmatpush2.msra.mxu0 0.0
    %1821 = vmatprep.mubr.f32.mxu0 0.0
    %1822 = vmatmul.mubr.f32.gmra.mxu0 %v1755
    %v1823 = vpop.f32.mrf.mxu0
    %v1824 = vadd.f32 0.0, %v1823
    %v1825 = vpop.f32.mrf.mxu0
    %1826 = vdwg.mxu0
    %1827 = vst.msk [vmem:[%s9 + $0x6] sm:$0x1] %vm794, %v1824
    %v1828 = vld [vmem:[#allocation2] sm:$0x1]
    %1830 = vset.pattern.permute.xlu0 0
    %1831 = vperm.xlu0 %1830, %v1828
    %v1832 = vpop.permute.xlu0 %1831
    %v1834 = vlaneseq
    %v1835 = vshrl.u32 %v1834, 7
    %v1836 = vsub.s32 0, %v1835
    %v1837 = vrot.slane %v1832, %v1836
    %v1839 = vsel %vm627, %v614, 0
    %v1842 = vsel %vm627, %v615, 0
    %1844 = vmatprep.subr.mxu0 0.0
    %1845 = vmatpush1.xpose.msra.mxu0 0.0
    %1846 = vmatprep.subr.mxu0 0.0
    %1847 = vmatpush1.xpose.msra.mxu0 0.0
    %1848 = vmatprep.subr.mxu0 0.0
    %1849 = vmatpush1.xpose.msra.mxu0 0.0
    %1850 = vmatprep.subr.mxu0 0.0
    %1851 = vmatpush1.xpose.msra.mxu0 0.0
    %1852 = vmatprep.subr.mxu0 0.0
    %1853 = vmatpush1.xpose.msra.mxu0 0.0
    %1854 = vmatprep.subr.mxu0 0.0
    %1855 = vmatpush1.xpose.msra.mxu0 0.0
    %1856 = vmatprep.subr.mxu0 0.0
    %1857 = vmatpush1.xpose.msra.mxu0 0.0
    %1858 = vmatprep.subr.mxu0 0.0
    %1859 = vmatpush1.xpose.msra.mxu0 0.0
    %1860 = vmatprep.subr.mxu0 0.0
    %1861 = vmatpush1.xpose.msra.mxu0 0.0
    %1862 = vmatprep.subr.mxu0 0.0
    %1863 = vmatpush1.xpose.msra.mxu0 0.0
    %1864 = vmatprep.subr.mxu0 0.0
    %1865 = vmatpush1.xpose.msra.mxu0 0.0
    %1866 = vmatprep.subr.mxu0 0.0
    %1867 = vmatpush1.xpose.msra.mxu0 0.0
    %1868 = vmatprep.subr.mxu0 0.0
    %1869 = vmatpush1.xpose.msra.mxu0 0.0
    %1870 = vmatprep.subr.mxu0 0.0
    %1871 = vmatpush1.xpose.msra.mxu0 0.0
    %1872 = vmatprep.subr.mxu0 0.0
    %1873 = vmatpush1.xpose.msra.mxu0 %v1842
    %1874 = vmatprep.subr.mxu0 0.0
    %1875 = vmatpush1.xpose.msra.mxu0 %v1839
    %1876 = vmatprep.subr.mxu0 0.0
    %1877 = vmatpush2.xpose.msra.mxu0 0.0
    %1878 = vmatprep.subr.mxu0 0.0
    %1879 = vmatpush2.xpose.msra.mxu0 0.0
    %1880 = vmatprep.subr.mxu0 0.0
    %1881 = vmatpush2.xpose.msra.mxu0 0.0
    %1882 = vmatprep.subr.mxu0 0.0
    %1883 = vmatpush2.xpose.msra.mxu0 0.0
    %1884 = vmatprep.subr.mxu0 0.0
    %1885 = vmatpush2.xpose.msra.mxu0 0.0
    %1886 = vmatprep.subr.mxu0 0.0
    %1887 = vmatpush2.xpose.msra.mxu0 0.0
    %1888 = vmatprep.subr.mxu0 0.0
    %1889 = vmatpush2.xpose.msra.mxu0 0.0
    %1890 = vmatprep.subr.mxu0 0.0
    %1891 = vmatpush2.xpose.msra.mxu0 0.0
    %1892 = vmatprep.subr.mxu0 0.0
    %1893 = vmatpush2.xpose.msra.mxu0 0.0
    %1894 = vmatprep.subr.mxu0 0.0
    %1895 = vmatpush2.xpose.msra.mxu0 0.0
    %1896 = vmatprep.subr.mxu0 0.0
    %1897 = vmatpush2.xpose.msra.mxu0 0.0
    %1898 = vmatprep.subr.mxu0 0.0
    %1899 = vmatpush2.xpose.msra.mxu0 0.0
    %1900 = vmatprep.subr.mxu0 0.0
    %1901 = vmatpush2.xpose.msra.mxu0 0.0
    %1902 = vmatprep.subr.mxu0 0.0
    %1903 = vmatpush2.xpose.msra.mxu0 0.0
    %1904 = vmatprep.subr.mxu0 0.0
    %1905 = vmatpush2.xpose.msra.mxu0 0.0
    %1906 = vmatprep.subr.mxu0 0.0
    %1907 = vmatpush2.xpose.msra.mxu0 0.0
    %1908 = vmatprep.mubr.f32.mxu0 0.0
    %1909 = vmatmul.mubr.f32.gmra.mxu0 %v629
    %v1910 = vpop.f32.mrf.mxu0
    %v1911 = vadd.f32 %v1837, %v1910
    %v1912 = vpop.f32.mrf.mxu0
    %1913 = vdwg.mxu0
    %v1914 = vsel %vm707, %v1911, -inf
    %1915 = vmax.xlane.f32.xlu0 %v1914
    %v1916 = vpop.xlane.xlu0 %1915
    %v1917 = vsub.f32 %v1911, %v1916
    %v1918 = vmul.f32 %v1917, 1.442695
    %v1919 = vpow.pop %v1918
    %v1920 = vsel %vm707, %v1919, 0.0
    %1921 = vadd.xlane.f32.xlu0 %v1920
    %v1922 = vpop.xlane.xlu0 %1921
    %v1923 = vrcp.pop %v1922
    %v1924 = vmul.f32 %v1919, %v1923
    %1925 = vst.msk [vmem:[#allocation9 + $0x7] sm:$0x1] %vm707, %v1924
    %v1927 = vsel %vm720, %v1924, 0
    %1929 = vmatprep.subr.mxu0 0.0
    %1930 = vmatpush1.msra.mxu0 0.0
    %1931 = vmatprep.subr.mxu0 0.0
    %1932 = vmatpush1.msra.mxu0 0.0
    %1933 = vmatprep.subr.mxu0 0.0
    %1934 = vmatpush1.msra.mxu0 0.0
    %1935 = vmatprep.subr.mxu0 0.0
    %1936 = vmatpush1.msra.mxu0 0.0
    %1937 = vmatprep.subr.mxu0 0.0
    %1938 = vmatpush1.msra.mxu0 0.0
    %1939 = vmatprep.subr.mxu0 0.0
    %1940 = vmatpush1.msra.mxu0 0.0
    %1941 = vmatprep.subr.mxu0 0.0
    %1942 = vmatpush1.msra.mxu0 0.0
    %1943 = vmatprep.subr.mxu0 0.0
    %1944 = vmatpush1.msra.mxu0 0.0
    %1945 = vmatprep.subr.mxu0 0.0
    %1946 = vmatpush1.msra.mxu0 0.0
    %1947 = vmatprep.subr.mxu0 0.0
    %1948 = vmatpush1.msra.mxu0 0.0
    %1949 = vmatprep.subr.mxu0 0.0
    %1950 = vmatpush1.msra.mxu0 0.0
    %1951 = vmatprep.subr.mxu0 0.0
    %1952 = vmatpush1.msra.mxu0 0.0
    %1953 = vmatprep.subr.mxu0 0.0
    %1954 = vmatpush1.msra.mxu0 0.0
    %1955 = vmatprep.subr.mxu0 0.0
    %1956 = vmatpush1.msra.mxu0 0.0
    %1957 = vmatprep.subr.mxu0 0.0
    %1958 = vmatpush1.msra.mxu0 %v615
    %1959 = vmatprep.subr.mxu0 0.0
    %1960 = vmatpush1.msra.mxu0 %v614
    %1961 = vmatprep.subr.mxu0 0.0
    %1962 = vmatpush2.msra.mxu0 0.0
    %1963 = vmatprep.subr.mxu0 0.0
    %1964 = vmatpush2.msra.mxu0 0.0
    %1965 = vmatprep.subr.mxu0 0.0
    %1966 = vmatpush2.msra.mxu0 0.0
    %1967 = vmatprep.subr.mxu0 0.0
    %1968 = vmatpush2.msra.mxu0 0.0
    %1969 = vmatprep.subr.mxu0 0.0
    %1970 = vmatpush2.msra.mxu0 0.0
    %1971 = vmatprep.subr.mxu0 0.0
    %1972 = vmatpush2.msra.mxu0 0.0
    %1973 = vmatprep.subr.mxu0 0.0
    %1974 = vmatpush2.msra.mxu0 0.0
    %1975 = vmatprep.subr.mxu0 0.0
    %1976 = vmatpush2.msra.mxu0 0.0
    %1977 = vmatprep.subr.mxu0 0.0
    %1978 = vmatpush2.msra.mxu0 0.0
    %1979 = vmatprep.subr.mxu0 0.0
    %1980 = vmatpush2.msra.mxu0 0.0
    %1981 = vmatprep.subr.mxu0 0.0
    %1982 = vmatpush2.msra.mxu0 0.0
    %1983 = vmatprep.subr.mxu0 0.0
    %1984 = vmatpush2.msra.mxu0 0.0
    %1985 = vmatprep.subr.mxu0 0.0
    %1986 = vmatpush2.msra.mxu0 0.0
    %1987 = vmatprep.subr.mxu0 0.0
    %1988 = vmatpush2.msra.mxu0 0.0
    %1989 = vmatprep.subr.mxu0 0.0
    %1990 = vmatpush2.msra.mxu0 0.0
    %1991 = vmatprep.subr.mxu0 0.0
    %1992 = vmatpush2.msra.mxu0 0.0
    %1993 = vmatprep.mubr.f32.mxu0 0.0
    %1994 = vmatmul.mubr.f32.gmra.mxu0 %v1927
    %v1995 = vpop.f32.mrf.mxu0
    %v1996 = vadd.f32 0.0, %v1995
    %v1997 = vpop.f32.mrf.mxu0
    %1998 = vdwg.mxu0
    %1999 = vst.msk [vmem:[%s9 + $0x7] sm:$0x1] %vm794, %v1996
    // Predicated region
    $region50: #{global_module_forward.2} parent=1 // pred_check
      _
    $region51: #{global_module_forward.2} parent=1 // pred_check_branch
      %2001 = sbr.rel (0) target = $region53
    $region52: #{global_module_forward.2} parent=1 // pred_region
      _
    $region53: #{global_module_forward.2} parent=1 // pred_fallthru
      _
    // Predicated region
    $region54: #{global_module_forward.2} parent=1 // pred_check
      _
    $region55: #{global_module_forward.2} parent=1 // pred_check_branch
      %2003 = sbr.rel (0) target = $region57
    $region56: #{global_module_forward.2} parent=1 // pred_region
      %s2005 = ssub.s32 128, 128
      %2006 = vsyncadd [#allocation5], %s2005
      %s2008 = sshll.u32 [#allocation9], 4
      %s2009 = int_to_ptr.vmem [resolvable:$true] %s2008
      %2011 = dma.vmem_to_hbm [thread:$0]  %s2009, 128, %s10, [#allocation5]
    $region57: #{global_module_forward.2} parent=1 // pred_fallthru
      _
    // Predicated region
    $region58: #{global_module_forward.2} parent=1 // pred_check
      _
    $region59: #{global_module_forward.2} parent=1 // pred_check_branch
      %2013 = sbr.rel (0) target = $region61
    $region60: #{global_module_forward.2} parent=1 // pred_region
      _
    $region61: #{global_module_forward.2} parent=1 // pred_fallthru
      _
    // Predicated region
    $region62: #{global_module_forward.2} parent=1 // pred_check
      _
    $region63: #{global_module_forward.2} parent=1 // pred_check_branch
      %2015 = sbr.rel (0) target = $region65
    $region64: #{global_module_forward.2} parent=1 // pred_region
      %2016 = dma.done [#allocation5], 128
    $region65: #{global_module_forward.2} parent=1 // pred_fallthru
      _
    %2017 = vsyncpa [#allocation4], 1
    %2018 = vsyncpa [#allocation7], 1
    %2019 = vsyncpa [#allocation5], 1

// kernel: global_module_forward.3
$region0: #{global_module_forward.3}
  #allocation0 [shape = 'u32[]', space=smem, size = 0x4, offset = 0x4, fixed_abs, tag = 'smem constant byte address 0x4 - core index']
  #allocation1 [shape = 'u32[144,128]{1,0:T(1,128)}', space=vmem, size = 0x12000, scoped, tag = 'internal scratch']
  #allocation2 [shape = 'f32[32,1024]{1,0:T(8,128)}', space=vmem, size = 0x20000, scoped, tag = 'scratch operand']
  #allocation3 [shape = 'f32[8,128]{1,0:T(8,128)}', space=vmem, size = 0x1000, scoped, tag = 'scratch operand']
  #allocation4 [shape = 'f32[8,128]{1,0:T(8,128)}', space=vmem, size = 0x1000, scoped, tag = 'scratch operand']
  #allocation5 [shape = 'f32[8,128]{1,0:T(8,128)}', space=vmem, size = 0x1000, scoped, tag = 'scratch operand']
  #allocation6 [shape = 'f32[8,128]{1,0:T(8,128)}', space=vmem, size = 0x1000, scoped, tag = 'scratch operand']
  %s0 = inlined_call_operand.vmem [shape: f32[32,64], index: 0, kind: input, shape index: {}]
  %s1 = inlined_call_operand.vmem [shape: bf16[64,1024], index: 1, kind: input, shape index: {}]
  %s2 = inlined_call_operand.vmem [shape: f32[1,1024], index: 2, kind: input, shape index: {}]
  %s3 = inlined_call_operand.hbm [shape: bf16[128,512], index: 3, kind: input, shape index: {}]
  %s4 = inlined_call_operand.hbm [shape: bf16[128,512], index: 4, kind: input, shape index: {}]
  %s5 = inlined_call_operand.hbm [shape: bf16[256,1024], index: 5, kind: input, shape index: {}]
  %s6 = inlined_call_operand.hbm [shape: f32[1,1024], index: 6, kind: input, shape index: {}]
  %s7 = inlined_call_operand.hbm [shape: bf16[128,512], index: 7, kind: input, shape index: {}]
  %s8 = inlined_call_operand.hbm [shape: bf16[128,512], index: 8, kind: input, shape index: {}]
  %s9 = inlined_call_operand.hbm [shape: bf16[256,1024], index: 9, kind: input, shape index: {}]
  %s10 = inlined_call_operand.hbm [shape: f32[1,1024], index: 10, kind: input, shape index: {}]
  %s11 = inlined_call_operand.hbm [shape: bf16[128,512], index: 11, kind: input, shape index: {}]
  %s12 = inlined_call_operand.hbm [shape: bf16[128,512], index: 12, kind: input, shape index: {}]
  %s13 = inlined_call_operand.hbm [shape: bf16[256,128], index: 13, kind: input, shape index: {}]
  %s14 = inlined_call_operand.vmem [shape: f32[1,128], index: 14, kind: input, shape index: {}]
  %s15 = inlined_call_operand.hbm [shape: bf16[128,128], index: 15, kind: input, shape index: {}]
  %s16 = inlined_call_operand.vmem [shape: f32[1,128], index: 16, kind: input, shape index: {}]
  %s17 = inlined_call_operand.vmem [shape: f32[32,256], index: 17, kind: output, shape index: {0}]
  %s18 = inlined_call_operand.vmem [shape: f32[32,128], index: 18, kind: output, shape index: {1}]
  %19 = xla_tuple %s17, %s18
  %s20 = sld [smem:[#allocation0]]
  $region155: #{global_module_forward.3} parent=0
    _
  %s22 = ssub.s32 1, %s20
  %s23 = scalar_select 0, %s22, %s20
  $region1: #{global_module_forward.3} parent=0
    #allocation7 [shape = 'u8[131072]{0}', space=vmem, size = 0x20000, scoped, tag = 'input window, operand 3, single buffered']
    #allocation8 [shape = 's32[1]{0}', space=sflag, size = 0x4, scoped, tag = 'scoped memory for global_module_forward.3']
    #allocation9 [shape = 'u8[131072]{0}', space=vmem, size = 0x20000, scoped, tag = 'input window, operand 4, single buffered']
    #allocation10 [shape = 's32[1]{0}', space=sflag, size = 0x4, scoped, tag = 'scoped memory for global_module_forward.3']
    #allocation11 [shape = 'u8[524288]{0}', space=vmem, size = 0x80000, scoped, tag = 'input window, operand 5, single buffered']
    #allocation12 [shape = 'u8[4096]{0}', space=vmem, size = 0x1000, scoped, tag = 'input window, operand 6, single buffered']
    #allocation13 [shape = 's32[1]{0}', space=sflag, size = 0x4, scoped, tag = 'scoped memory for global_module_forward.3']
    #allocation14 [shape = 'u8[131072]{0}', space=vmem, size = 0x20000, scoped, tag = 'input window, operand 7, single buffered']
    #allocation15 [shape = 'u8[131072]{0}', space=vmem, size = 0x20000, scoped, tag = 'input window, operand 8, single buffered']
    #allocation16 [shape = 's32[1]{0}', space=sflag, size = 0x4, scoped, tag = 'scoped memory for global_module_forward.3']
    #allocation17 [shape = 'u8[524288]{0}', space=vmem, size = 0x80000, scoped, tag = 'input window, operand 9, single buffered']
    #allocation18 [shape = 'u8[4096]{0}', space=vmem, size = 0x1000, scoped, tag = 'input window, operand 10, single buffered']
    #allocation19 [shape = 's32[1]{0}', space=sflag, size = 0x4, scoped, tag = 'scoped memory for global_module_forward.3']
    #allocation20 [shape = 'u8[131072]{0}', space=vmem, size = 0x20000, scoped, tag = 'input window, operand 11, single buffered']
    #allocation21 [shape = 'u8[131072]{0}', space=vmem, size = 0x20000, scoped, tag = 'input window, operand 12, single buffered']
    #allocation22 [shape = 's32[1]{0}', space=sflag, size = 0x4, scoped, tag = 'scoped memory for global_module_forward.3']
    #allocation23 [shape = 'u8[65536]{0}', space=vmem, size = 0x10000, scoped, tag = 'input window, operand 13, single buffered']
    #allocation24 [shape = 'u8[32768]{0}', space=vmem, size = 0x8000, scoped, tag = 'input window, operand 15, single buffered']
    #allocation25 [shape = 's32[1]{0}', space=sflag, size = 0x4, scoped, tag = 'scoped memory for global_module_forward.3']
    %24 = vsyncpa [#allocation8], 0
    %25 = vsyncpa [#allocation10], 0
    %26 = vsyncpa [#allocation13], 0
    %27 = vsyncpa [#allocation16], 0
    %28 = vsyncpa [#allocation19], 0
    %29 = vsyncpa [#allocation22], 0
    %30 = vsyncpa [#allocation25], 0
    // Predicated region
    $region2: #{global_module_forward.3} parent=1 // pred_check
      _
    $region3: #{global_module_forward.3} parent=1 // pred_check_branch
      %32 = sbr.rel (0) target = $region5
    $region4: #{global_module_forward.3} parent=1 // pred_region
      _
    $region5: #{global_module_forward.3} parent=1 // pred_fallthru
      _
    // Predicated region
    $region6: #{global_module_forward.3} parent=1 // pred_check
      _
    $region7: #{global_module_forward.3} parent=1 // pred_check_branch
      %34 = sbr.rel (0) target = $region9
    $region8: #{global_module_forward.3} parent=1 // pred_region
      _
    $region9: #{global_module_forward.3} parent=1 // pred_fallthru
      _
    // Predicated region
    $region10: #{global_module_forward.3} parent=1 // pred_check
      _
    $region11: #{global_module_forward.3} parent=1 // pred_check_branch
      %36 = sbr.rel (0) target = $region13
    $region12: #{global_module_forward.3} parent=1 // pred_region
      _
    $region13: #{global_module_forward.3} parent=1 // pred_fallthru
      _
    // Predicated region
    $region14: #{global_module_forward.3} parent=1 // pred_check
      _
    $region15: #{global_module_forward.3} parent=1 // pred_check_branch
      %38 = sbr.rel (0) target = $region17
    $region16: #{global_module_forward.3} parent=1 // pred_region
      %s40 = ssub.s32 4096, 4096
      %41 = vsyncadd [#allocation8], %s40
      %s42 = sshll.u32 [#allocation7], 4
      %s43 = int_to_ptr.vmem [resolvable:$true] %s42
      %48 = dma.hbm_to_vmem [thread:$0]  %s3, 4096, %s43, [#allocation8], 256, 256, 16
    $region17: #{global_module_forward.3} parent=1 // pred_fallthru
      _
    // Predicated region
    $region18: #{global_module_forward.3} parent=1 // pred_check
      _
    $region19: #{global_module_forward.3} parent=1 // pred_check_branch
      %50 = sbr.rel (0) target = $region21
    $region20: #{global_module_forward.3} parent=1 // pred_region
      %s52 = ssub.s32 4096, 4096
      %53 = vsyncadd [#allocation10], %s52
      %s54 = sshll.u32 [#allocation9], 4
      %s55 = int_to_ptr.vmem [resolvable:$true] %s54
      %60 = dma.hbm_to_vmem [thread:$0]  %s4, 4096, %s55, [#allocation10], 256, 256, 16
    $region21: #{global_module_forward.3} parent=1 // pred_fallthru
      _
    // Predicated region
    $region22: #{global_module_forward.3} parent=1 // pred_check
      _
    $region23: #{global_module_forward.3} parent=1 // pred_check_branch
      %62 = sbr.rel (0) target = $region25
    $region24: #{global_module_forward.3} parent=1 // pred_region
      %s64 = ssub.s32 16384, 16384
      %65 = vsyncadd [#allocation10], %s64
      %s66 = sshll.u32 [#allocation11], 4
      %s67 = int_to_ptr.vmem [resolvable:$true] %s66
      %72 = dma.hbm_to_vmem [thread:$0]  %s5, 16384, %s67, [#allocation10], 512, 512, 32
    $region25: #{global_module_forward.3} parent=1 // pred_fallthru
      _
    // Predicated region
    $region26: #{global_module_forward.3} parent=1 // pred_check
      _
    $region27: #{global_module_forward.3} parent=1 // pred_check_branch
      %74 = sbr.rel (0) target = $region29
    $region28: #{global_module_forward.3} parent=1 // pred_region
      %s76 = ssub.s32 128, 128
      %77 = vsyncadd [#allocation13], %s76
      %s79 = sshll.u32 [#allocation12], 4
      %s80 = int_to_ptr.vmem [resolvable:$true] %s79
      %82 = dma.hbm_to_vmem [thread:$0]  %s6, 128, %s80, [#allocation13]
    $region29: #{global_module_forward.3} parent=1 // pred_fallthru
      _
    // Predicated region
    $region30: #{global_module_forward.3} parent=1 // pred_check
      _
    $region31: #{global_module_forward.3} parent=1 // pred_check_branch
      %84 = sbr.rel (0) target = $region33
    $region32: #{global_module_forward.3} parent=1 // pred_region
      %s86 = ssub.s32 4096, 4096
      %87 = vsyncadd [#allocation13], %s86
      %s88 = sshll.u32 [#allocation14], 4
      %s89 = int_to_ptr.vmem [resolvable:$true] %s88
      %94 = dma.hbm_to_vmem [thread:$0]  %s7, 4096, %s89, [#allocation13], 256, 256, 16
    $region33: #{global_module_forward.3} parent=1 // pred_fallthru
      _
    // Predicated region
    $region34: #{global_module_forward.3} parent=1 // pred_check
      _
    $region35: #{global_module_forward.3} parent=1 // pred_check_branch
      %96 = sbr.rel (0) target = $region37
    $region36: #{global_module_forward.3} parent=1 // pred_region
      %s98 = ssub.s32 4096, 4096
      %99 = vsyncadd [#allocation16], %s98
      %s100 = sshll.u32 [#allocation15], 4
      %s101 = int_to_ptr.vmem [resolvable:$true] %s100
      %106 = dma.hbm_to_vmem [thread:$0]  %s8, 4096, %s101, [#allocation16], 256, 256, 16
    $region37: #{global_module_forward.3} parent=1 // pred_fallthru
      _
    // Predicated region
    $region38: #{global_module_forward.3} parent=1 // pred_check
      _
    $region39: #{global_module_forward.3} parent=1 // pred_check_branch
      %108 = sbr.rel (0) target = $region41
    $region40: #{global_module_forward.3} parent=1 // pred_region
      %s110 = ssub.s32 16384, 16384
      %111 = vsyncadd [#allocation16], %s110
      %s112 = sshll.u32 [#allocation17], 4
      %s113 = int_to_ptr.vmem [resolvable:$true] %s112
      %118 = dma.hbm_to_vmem [thread:$0]  %s9, 16384, %s113, [#allocation16], 512, 512, 32
    $region41: #{global_module_forward.3} parent=1 // pred_fallthru
      _
    // Predicated region
    $region42: #{global_module_forward.3} parent=1 // pred_check
      _
    $region43: #{global_module_forward.3} parent=1 // pred_check_branch
      %120 = sbr.rel (0) target = $region45
    $region44: #{global_module_forward.3} parent=1 // pred_region
      %s122 = ssub.s32 128, 128
      %123 = vsyncadd [#allocation19], %s122
      %s125 = sshll.u32 [#allocation18], 4
      %s126 = int_to_ptr.vmem [resolvable:$true] %s125
      %128 = dma.hbm_to_vmem [thread:$0]  %s10, 128, %s126, [#allocation19]
    $region45: #{global_module_forward.3} parent=1 // pred_fallthru
      _
    // Predicated region
    $region46: #{global_module_forward.3} parent=1 // pred_check
      _
    $region47: #{global_module_forward.3} parent=1 // pred_check_branch
      %130 = sbr.rel (0) target = $region49
    $region48: #{global_module_forward.3} parent=1 // pred_region
      %s132 = ssub.s32 4096, 4096
      %133 = vsyncadd [#allocation19], %s132
      %s134 = sshll.u32 [#allocation20], 4
      %s135 = int_to_ptr.vmem [resolvable:$true] %s134
      %140 = dma.hbm_to_vmem [thread:$0]  %s11, 4096, %s135, [#allocation19], 256, 256, 16
    $region49: #{global_module_forward.3} parent=1 // pred_fallthru
      _
    // Predicated region
    $region50: #{global_module_forward.3} parent=1 // pred_check
      _
    $region51: #{global_module_forward.3} parent=1 // pred_check_branch
      %142 = sbr.rel (0) target = $region53
    $region52: #{global_module_forward.3} parent=1 // pred_region
      %s144 = ssub.s32 4096, 4096
      %145 = vsyncadd [#allocation22], %s144
      %s146 = sshll.u32 [#allocation21], 4
      %s147 = int_to_ptr.vmem [resolvable:$true] %s146
      %152 = dma.hbm_to_vmem [thread:$0]  %s12, 4096, %s147, [#allocation22], 256, 256, 16
    $region53: #{global_module_forward.3} parent=1 // pred_fallthru
      _
    // Predicated region
    $region54: #{global_module_forward.3} parent=1 // pred_check
      _
    $region55: #{global_module_forward.3} parent=1 // pred_check_branch
      %154 = sbr.rel (0) target = $region57
    $region56: #{global_module_forward.3} parent=1 // pred_region
      %s156 = ssub.s32 2048, 2048
      %157 = vsyncadd [#allocation22], %s156
      %s158 = sshll.u32 [#allocation23], 4
      %s159 = int_to_ptr.vmem [resolvable:$true] %s158
      %164 = dma.hbm_to_vmem [thread:$0]  %s13, 2048, %s159, [#allocation22], 64, 64, 4
    $region57: #{global_module_forward.3} parent=1 // pred_fallthru
      _
    // Predicated region
    $region58: #{global_module_forward.3} parent=1 // pred_check
      _
    $region59: #{global_module_forward.3} parent=1 // pred_check_branch
      %166 = sbr.rel (0) target = $region61
    $region60: #{global_module_forward.3} parent=1 // pred_region
      _
    $region61: #{global_module_forward.3} parent=1 // pred_fallthru
      _
    // Predicated region
    $region62: #{global_module_forward.3} parent=1 // pred_check
      _
    $region63: #{global_module_forward.3} parent=1 // pred_check_branch
      %168 = sbr.rel (0) target = $region65
    $region64: #{global_module_forward.3} parent=1 // pred_region
      %s170 = ssub.s32 1024, 1024
      %171 = vsyncadd [#allocation25], %s170
      %s172 = sshll.u32 [#allocation24], 4
      %s173 = int_to_ptr.vmem [resolvable:$true] %s172
      %178 = dma.hbm_to_vmem [thread:$0]  %s15, 1024, %s173, [#allocation25], 64, 64, 4
    $region65: #{global_module_forward.3} parent=1 // pred_fallthru
      _
    // Predicated region
    $region66: #{global_module_forward.3} parent=1 // pred_check
      _
    $region67: #{global_module_forward.3} parent=1 // pred_check_branch
      %180 = sbr.rel (0) target = $region69
    $region68: #{global_module_forward.3} parent=1 // pred_region
      _
    $region69: #{global_module_forward.3} parent=1 // pred_fallthru
      _
    // Predicated region
    $region70: #{global_module_forward.3} parent=1 // pred_check
      _
    $region71: #{global_module_forward.3} parent=1 // pred_check_branch
      %182 = sbr.rel (0) target = $region73
    $region72: #{global_module_forward.3} parent=1 // pred_region
      %183 = dma.done [#allocation8], 4096
    $region73: #{global_module_forward.3} parent=1 // pred_fallthru
      _
    // Predicated region
    $region74: #{global_module_forward.3} parent=1 // pred_check
      _
    $region75: #{global_module_forward.3} parent=1 // pred_check_branch
      %185 = sbr.rel (0) target = $region77
    $region76: #{global_module_forward.3} parent=1 // pred_region
      %186 = dma.done [#allocation10], 4096
    $region77: #{global_module_forward.3} parent=1 // pred_fallthru
      _
    // Predicated region
    $region78: #{global_module_forward.3} parent=1 // pred_check
      _
    $region79: #{global_module_forward.3} parent=1 // pred_check_branch
      %188 = sbr.rel (0) target = $region81
    $region80: #{global_module_forward.3} parent=1 // pred_region
      %189 = dma.done [#allocation10], 16384
    $region81: #{global_module_forward.3} parent=1 // pred_fallthru
      _
    // Predicated region
    $region82: #{global_module_forward.3} parent=1 // pred_check
      _
    $region83: #{global_module_forward.3} parent=1 // pred_check_branch
      %191 = sbr.rel (0) target = $region85
    $region84: #{global_module_forward.3} parent=1 // pred_region
      %192 = dma.done [#allocation13], 128
    $region85: #{global_module_forward.3} parent=1 // pred_fallthru
      _
    // Predicated region
    $region86: #{global_module_forward.3} parent=1 // pred_check
      _
    $region87: #{global_module_forward.3} parent=1 // pred_check_branch
      %194 = sbr.rel (0) target = $region89
    $region88: #{global_module_forward.3} parent=1 // pred_region
      %195 = dma.done [#allocation13], 4096
    $region89: #{global_module_forward.3} parent=1 // pred_fallthru
      _
    // Predicated region
    $region90: #{global_module_forward.3} parent=1 // pred_check
      _
    $region91: #{global_module_forward.3} parent=1 // pred_check_branch
      %197 = sbr.rel (0) target = $region93
    $region92: #{global_module_forward.3} parent=1 // pred_region
      %198 = dma.done [#allocation16], 4096
    $region93: #{global_module_forward.3} parent=1 // pred_fallthru
      _
    // Predicated region
    $region94: #{global_module_forward.3} parent=1 // pred_check
      _
    $region95: #{global_module_forward.3} parent=1 // pred_check_branch
      %200 = sbr.rel (0) target = $region97
    $region96: #{global_module_forward.3} parent=1 // pred_region
      %201 = dma.done [#allocation16], 16384
    $region97: #{global_module_forward.3} parent=1 // pred_fallthru
      _
    // Predicated region
    $region98: #{global_module_forward.3} parent=1 // pred_check
      _
    $region99: #{global_module_forward.3} parent=1 // pred_check_branch
      %203 = sbr.rel (0) target = $region101
    $region100: #{global_module_forward.3} parent=1 // pred_region
      %204 = dma.done [#allocation19], 128
    $region101: #{global_module_forward.3} parent=1 // pred_fallthru
      _
    // Predicated region
    $region102: #{global_module_forward.3} parent=1 // pred_check
      _
    $region103: #{global_module_forward.3} parent=1 // pred_check_branch
      %206 = sbr.rel (0) target = $region105
    $region104: #{global_module_forward.3} parent=1 // pred_region
      %207 = dma.done [#allocation19], 4096
    $region105: #{global_module_forward.3} parent=1 // pred_fallthru
      _
    // Predicated region
    $region106: #{global_module_forward.3} parent=1 // pred_check
      _
    $region107: #{global_module_forward.3} parent=1 // pred_check_branch
      %209 = sbr.rel (0) target = $region109
    $region108: #{global_module_forward.3} parent=1 // pred_region
      %210 = dma.done [#allocation22], 4096
    $region109: #{global_module_forward.3} parent=1 // pred_fallthru
      _
    // Predicated region
    $region110: #{global_module_forward.3} parent=1 // pred_check
      _
    $region111: #{global_module_forward.3} parent=1 // pred_check_branch
      %212 = sbr.rel (0) target = $region113
    $region112: #{global_module_forward.3} parent=1 // pred_region
      %213 = dma.done [#allocation22], 2048
    $region113: #{global_module_forward.3} parent=1 // pred_fallthru
      _
    // Predicated region
    $region114: #{global_module_forward.3} parent=1 // pred_check
      _
    $region115: #{global_module_forward.3} parent=1 // pred_check_branch
      %215 = sbr.rel (0) target = $region117
    $region116: #{global_module_forward.3} parent=1 // pred_region
      %216 = dma.done [#allocation25], 1024
    $region117: #{global_module_forward.3} parent=1 // pred_fallthru
      _
    %v218 = vld [vmem:[%s0] sm:$0xff]
    %v219 = vld [vmem:[%s0 + $0x8] sm:$0xff]
    %v220 = vld [vmem:[%s0 + $0x10] sm:$0xff]
    %v221 = vld [vmem:[%s0 + $0x18] sm:$0xff]
    %v222 = vpack.c.bf16 %v219, %v218
    %v223 = vpack.c.bf16 %v221, %v220
    %v224 = vld [vmem:[%s1] sm:$0xff]
    %v225 = vld [vmem:[%s1 + $0x8] sm:$0xff]
    %v226 = vld [vmem:[%s1 + $0x10] sm:$0xff]
    %v227 = vld [vmem:[%s1 + $0x18] sm:$0xff]
    %v228 = vld [vmem:[%s1 + $0x20] sm:$0xff]
    %v229 = vld [vmem:[%s1 + $0x28] sm:$0xff]
    %v230 = vld [vmem:[%s1 + $0x30] sm:$0xff]
    %v231 = vld [vmem:[%s1 + $0x38] sm:$0xff]
    %v232 = vld [vmem:[%s1 + $0x40] sm:$0xff]
    %v233 = vld [vmem:[%s1 + $0x48] sm:$0xff]
    %v234 = vld [vmem:[%s1 + $0x50] sm:$0xff]
    %v235 = vld [vmem:[%s1 + $0x58] sm:$0xff]
    %v236 = vld [vmem:[%s1 + $0x60] sm:$0xff]
    %v237 = vld [vmem:[%s1 + $0x68] sm:$0xff]
    %v238 = vld [vmem:[%s1 + $0x70] sm:$0xff]
    %v239 = vld [vmem:[%s1 + $0x78] sm:$0xff]
    %v240 = vld [vmem:[%s1 + $0x80] sm:$0xff]
    %v241 = vld [vmem:[%s1 + $0x88] sm:$0xff]
    %v242 = vld [vmem:[%s1 + $0x90] sm:$0xff]
    %v243 = vld [vmem:[%s1 + $0x98] sm:$0xff]
    %v244 = vld [vmem:[%s1 + $0xa0] sm:$0xff]
    %v245 = vld [vmem:[%s1 + $0xa8] sm:$0xff]
    %v246 = vld [vmem:[%s1 + $0xb0] sm:$0xff]
    %v247 = vld [vmem:[%s1 + $0xb8] sm:$0xff]
    %v248 = vld [vmem:[%s1 + $0xc0] sm:$0xff]
    %v249 = vld [vmem:[%s1 + $0xc8] sm:$0xff]
    %v250 = vld [vmem:[%s1 + $0xd0] sm:$0xff]
    %v251 = vld [vmem:[%s1 + $0xd8] sm:$0xff]
    %v252 = vld [vmem:[%s1 + $0xe0] sm:$0xff]
    %v253 = vld [vmem:[%s1 + $0xe8] sm:$0xff]
    %v254 = vld [vmem:[%s1 + $0xf0] sm:$0xff]
    %v255 = vld [vmem:[%s1 + $0xf8] sm:$0xff]
    %v256 = vld [vmem:[%s2] sm:$0xff]
    %v258 = vlaneseq
    %v259 = vshrl.u32 %v258, 7
    %v260 = vsub.s32 0, %v259
    %v261 = vrot.slane %v256, %v260
    %v262 = vlaneseq
    %v263 = vshrl.u32 %v262, 7
    %v264 = vsub.s32 1, %v263
    %v265 = vrot.slane %v256, %v264
    %v266 = vlaneseq
    %v267 = vshrl.u32 %v266, 7
    %v268 = vsub.s32 2, %v267
    %v269 = vrot.slane %v256, %v268
    %v270 = vlaneseq
    %v271 = vshrl.u32 %v270, 7
    %v272 = vsub.s32 3, %v271
    %v273 = vrot.slane %v256, %v272
    %v274 = vlaneseq
    %v275 = vshrl.u32 %v274, 7
    %v276 = vsub.s32 4, %v275
    %v277 = vrot.slane %v256, %v276
    %v278 = vlaneseq
    %v279 = vshrl.u32 %v278, 7
    %v280 = vsub.s32 5, %v279
    %v281 = vrot.slane %v256, %v280
    %v282 = vlaneseq
    %v283 = vshrl.u32 %v282, 7
    %v284 = vsub.s32 6, %v283
    %v285 = vrot.slane %v256, %v284
    %v286 = vlaneseq
    %v287 = vshrl.u32 %v286, 7
    %v288 = vsub.s32 7, %v287
    %v289 = vrot.slane %v256, %v288
    %v330 = vunpack.c.l.b16 %v224
    %v331 = vunpack.c.h.b16 %v224
    %v332 = vunpack.c.l.b16 %v225
    %v333 = vunpack.c.h.b16 %v225
    %v334 = vunpack.c.l.b16 %v226
    %v335 = vunpack.c.h.b16 %v226
    %v336 = vunpack.c.l.b16 %v227
    %v337 = vunpack.c.h.b16 %v227
    %v338 = vunpack.c.l.b16 %v228
    %v339 = vunpack.c.h.b16 %v228
    %v340 = vunpack.c.l.b16 %v229
    %v341 = vunpack.c.h.b16 %v229
    %v342 = vunpack.c.l.b16 %v230
    %v343 = vunpack.c.h.b16 %v230
    %v344 = vunpack.c.l.b16 %v231
    %v345 = vunpack.c.h.b16 %v231
    %v346 = vunpack.c.l.b16 %v232
    %v347 = vunpack.c.h.b16 %v232
    %v348 = vunpack.c.l.b16 %v233
    %v349 = vunpack.c.h.b16 %v233
    %v350 = vunpack.c.l.b16 %v234
    %v351 = vunpack.c.h.b16 %v234
    %v352 = vunpack.c.l.b16 %v235
    %v353 = vunpack.c.h.b16 %v235
    %v354 = vunpack.c.l.b16 %v236
    %v355 = vunpack.c.h.b16 %v236
    %v356 = vunpack.c.l.b16 %v237
    %v357 = vunpack.c.h.b16 %v237
    %v358 = vunpack.c.l.b16 %v238
    %v359 = vunpack.c.h.b16 %v238
    %v360 = vunpack.c.l.b16 %v239
    %v361 = vunpack.c.h.b16 %v239
    %v362 = vunpack.c.l.b16 %v240
    %v363 = vunpack.c.h.b16 %v240
    %v364 = vunpack.c.l.b16 %v241
    %v365 = vunpack.c.h.b16 %v241
    %v366 = vunpack.c.l.b16 %v242
    %v367 = vunpack.c.h.b16 %v242
    %v368 = vunpack.c.l.b16 %v243
    %v369 = vunpack.c.h.b16 %v243
    %v370 = vunpack.c.l.b16 %v244
    %v371 = vunpack.c.h.b16 %v244
    %v372 = vunpack.c.l.b16 %v245
    %v373 = vunpack.c.h.b16 %v245
    %v374 = vunpack.c.l.b16 %v246
    %v375 = vunpack.c.h.b16 %v246
    %v376 = vunpack.c.l.b16 %v247
    %v377 = vunpack.c.h.b16 %v247
    %v378 = vunpack.c.l.b16 %v248
    %v379 = vunpack.c.h.b16 %v248
    %v380 = vunpack.c.l.b16 %v249
    %v381 = vunpack.c.h.b16 %v249
    %v382 = vunpack.c.l.b16 %v250
    %v383 = vunpack.c.h.b16 %v250
    %v384 = vunpack.c.l.b16 %v251
    %v385 = vunpack.c.h.b16 %v251
    %v386 = vunpack.c.l.b16 %v252
    %v387 = vunpack.c.h.b16 %v252
    %v388 = vunpack.c.l.b16 %v253
    %v389 = vunpack.c.h.b16 %v253
    %v390 = vunpack.c.l.b16 %v254
    %v391 = vunpack.c.h.b16 %v254
    %v392 = vunpack.c.l.b16 %v255
    %v393 = vunpack.c.h.b16 %v255
    %v394 = vpack.c.b16 %v338, %v330
    %v395 = vpack.c.b16 %v339, %v331
    %v396 = vpack.c.b16 %v340, %v332
    %v397 = vpack.c.b16 %v341, %v333
    %v398 = vpack.c.b16 %v342, %v334
    %v399 = vpack.c.b16 %v343, %v335
    %v400 = vpack.c.b16 %v344, %v336
    %v401 = vpack.c.b16 %v345, %v337
    %v402 = vpack.c.b16 %v354, %v346
    %v403 = vpack.c.b16 %v355, %v347
    %v404 = vpack.c.b16 %v356, %v348
    %v405 = vpack.c.b16 %v357, %v349
    %v406 = vpack.c.b16 %v358, %v350
    %v407 = vpack.c.b16 %v359, %v351
    %v408 = vpack.c.b16 %v360, %v352
    %v409 = vpack.c.b16 %v361, %v353
    %v410 = vpack.c.b16 %v370, %v362
    %v411 = vpack.c.b16 %v371, %v363
    %v412 = vpack.c.b16 %v372, %v364
    %v413 = vpack.c.b16 %v373, %v365
    %v414 = vpack.c.b16 %v374, %v366
    %v415 = vpack.c.b16 %v375, %v367
    %v416 = vpack.c.b16 %v376, %v368
    %v417 = vpack.c.b16 %v377, %v369
    %v418 = vpack.c.b16 %v386, %v378
    %v419 = vpack.c.b16 %v387, %v379
    %v420 = vpack.c.b16 %v388, %v380
    %v421 = vpack.c.b16 %v389, %v381
    %v422 = vpack.c.b16 %v390, %v382
    %v423 = vpack.c.b16 %v391, %v383
    %v424 = vpack.c.b16 %v392, %v384
    %v425 = vpack.c.b16 %v393, %v385
    %vm458 = vcmask 523264
    %v460 = vsel %vm458, %v222, 0
    %v463 = vsel %vm458, %v223, 0
    %465 = vmatprep.subr.bf16.mxu0 0
    %466 = vmatpush1.bf16.msra.mxu0 0
    %467 = vmatprep.subr.bf16.mxu0 0
    %468 = vmatpush1.bf16.msra.mxu0 0
    %469 = vmatprep.subr.bf16.mxu0 0
    %470 = vmatpush1.bf16.msra.mxu0 0
    %471 = vmatprep.subr.bf16.mxu0 0
    %472 = vmatpush1.bf16.msra.mxu0 0
    %473 = vmatprep.subr.bf16.mxu0 %v419
    %474 = vmatpush1.bf16.msra.mxu0 %v418
    %475 = vmatprep.subr.bf16.mxu0 %v411
    %476 = vmatpush1.bf16.msra.mxu0 %v410
    %477 = vmatprep.subr.bf16.mxu0 %v403
    %478 = vmatpush1.bf16.msra.mxu0 %v402
    %479 = vmatprep.subr.bf16.mxu0 %v395
    %480 = vmatpush1.bf16.msra.mxu0 %v394
    %481 = vmatprep.subr.bf16.mxu0 0
    %482 = vmatpush2.bf16.msra.mxu0 0
    %483 = vmatprep.subr.bf16.mxu0 0
    %484 = vmatpush2.bf16.msra.mxu0 0
    %485 = vmatprep.subr.bf16.mxu0 0
    %486 = vmatpush2.bf16.msra.mxu0 0
    %487 = vmatprep.subr.bf16.mxu0 0
    %488 = vmatpush2.bf16.msra.mxu0 0
    %489 = vmatprep.subr.bf16.mxu0 0
    %490 = vmatpush2.bf16.msra.mxu0 0
    %491 = vmatprep.subr.bf16.mxu0 0
    %492 = vmatpush2.bf16.msra.mxu0 0
    %493 = vmatprep.subr.bf16.mxu0 0
    %494 = vmatpush2.bf16.msra.mxu0 0
    %495 = vmatprep.subr.bf16.mxu0 0
    %496 = vmatpush2.bf16.msra.mxu0 0
    %497 = vmatprep.mubr.bf16.mxu0 0
    %498 = vmatmul.mubr.bf16.gmra.mxu0 %v460
    %v499 = vpop.f32.mrf.mxu0
    %v500 = vadd.f32 %v261, %v499
    %v501 = vpop.f32.mrf.mxu0
    %v502 = vadd.f32 %v265, %v501
    %v503 = vpop.f32.mrf.mxu0
    %v504 = vadd.f32 %v261, %v503
    %v505 = vpop.f32.mrf.mxu0
    %v506 = vadd.f32 %v265, %v505
    %507 = vmatprep.mubr.bf16.mxu0 0
    %508 = vmatmul.mubr.bf16.gmra.mxu0 %v463
    %v509 = vpop.f32.mrf.mxu0
    %v510 = vadd.f32 %v261, %v509
    %v511 = vpop.f32.mrf.mxu0
    %v512 = vadd.f32 %v265, %v511
    %v513 = vpop.f32.mrf.mxu0
    %v514 = vadd.f32 %v261, %v513
    %v515 = vpop.f32.mrf.mxu0
    %v516 = vadd.f32 %v265, %v515
    %517 = vdwg.mxu0
    %518 = vmatprep.subr.bf16.mxu0 0
    %519 = vmatpush1.bf16.msra.mxu0 0
    %520 = vmatprep.subr.bf16.mxu0 0
    %521 = vmatpush1.bf16.msra.mxu0 0
    %522 = vmatprep.subr.bf16.mxu0 0
    %523 = vmatpush1.bf16.msra.mxu0 0
    %524 = vmatprep.subr.bf16.mxu0 0
    %525 = vmatpush1.bf16.msra.mxu0 0
    %526 = vmatprep.subr.bf16.mxu0 %v421
    %527 = vmatpush1.bf16.msra.mxu0 %v420
    %528 = vmatprep.subr.bf16.mxu0 %v413
    %529 = vmatpush1.bf16.msra.mxu0 %v412
    %530 = vmatprep.subr.bf16.mxu0 %v405
    %531 = vmatpush1.bf16.msra.mxu0 %v404
    %532 = vmatprep.subr.bf16.mxu0 %v397
    %533 = vmatpush1.bf16.msra.mxu0 %v396
    %534 = vmatprep.subr.bf16.mxu0 0
    %535 = vmatpush2.bf16.msra.mxu0 0
    %536 = vmatprep.subr.bf16.mxu0 0
    %537 = vmatpush2.bf16.msra.mxu0 0
    %538 = vmatprep.subr.bf16.mxu0 0
    %539 = vmatpush2.bf16.msra.mxu0 0
    %540 = vmatprep.subr.bf16.mxu0 0
    %541 = vmatpush2.bf16.msra.mxu0 0
    %542 = vmatprep.subr.bf16.mxu0 0
    %543 = vmatpush2.bf16.msra.mxu0 0
    %544 = vmatprep.subr.bf16.mxu0 0
    %545 = vmatpush2.bf16.msra.mxu0 0
    %546 = vmatprep.subr.bf16.mxu0 0
    %547 = vmatpush2.bf16.msra.mxu0 0
    %548 = vmatprep.subr.bf16.mxu0 0
    %549 = vmatpush2.bf16.msra.mxu0 0
    %550 = vmatprep.mubr.bf16.mxu0 0
    %551 = vmatmul.mubr.bf16.gmra.mxu0 %v460
    %v552 = vpop.f32.mrf.mxu0
    %v553 = vadd.f32 %v269, %v552
    %v554 = vpop.f32.mrf.mxu0
    %v555 = vadd.f32 %v273, %v554
    %v556 = vpop.f32.mrf.mxu0
    %v557 = vadd.f32 %v269, %v556
    %v558 = vpop.f32.mrf.mxu0
    %v559 = vadd.f32 %v273, %v558
    %560 = vmatprep.mubr.bf16.mxu0 0
    %561 = vmatmul.mubr.bf16.gmra.mxu0 %v463
    %v562 = vpop.f32.mrf.mxu0
    %v563 = vadd.f32 %v269, %v562
    %v564 = vpop.f32.mrf.mxu0
    %v565 = vadd.f32 %v273, %v564
    %v566 = vpop.f32.mrf.mxu0
    %v567 = vadd.f32 %v269, %v566
    %v568 = vpop.f32.mrf.mxu0
    %v569 = vadd.f32 %v273, %v568
    %570 = vdwg.mxu0
    %571 = vmatprep.subr.bf16.mxu0 0
    %572 = vmatpush1.bf16.msra.mxu0 0
    %573 = vmatprep.subr.bf16.mxu0 0
    %574 = vmatpush1.bf16.msra.mxu0 0
    %575 = vmatprep.subr.bf16.mxu0 0
    %576 = vmatpush1.bf16.msra.mxu0 0
    %577 = vmatprep.subr.bf16.mxu0 0
    %578 = vmatpush1.bf16.msra.mxu0 0
    %579 = vmatprep.subr.bf16.mxu0 %v423
    %580 = vmatpush1.bf16.msra.mxu0 %v422
    %581 = vmatprep.subr.bf16.mxu0 %v415
    %582 = vmatpush1.bf16.msra.mxu0 %v414
    %583 = vmatprep.subr.bf16.mxu0 %v407
    %584 = vmatpush1.bf16.msra.mxu0 %v406
    %585 = vmatprep.subr.bf16.mxu0 %v399
    %586 = vmatpush1.bf16.msra.mxu0 %v398
    %587 = vmatprep.subr.bf16.mxu0 0
    %588 = vmatpush2.bf16.msra.mxu0 0
    %589 = vmatprep.subr.bf16.mxu0 0
    %590 = vmatpush2.bf16.msra.mxu0 0
    %591 = vmatprep.subr.bf16.mxu0 0
    %592 = vmatpush2.bf16.msra.mxu0 0
    %593 = vmatprep.subr.bf16.mxu0 0
    %594 = vmatpush2.bf16.msra.mxu0 0
    %595 = vmatprep.subr.bf16.mxu0 0
    %596 = vmatpush2.bf16.msra.mxu0 0
    %597 = vmatprep.subr.bf16.mxu0 0
    %598 = vmatpush2.bf16.msra.mxu0 0
    %599 = vmatprep.subr.bf16.mxu0 0
    %600 = vmatpush2.bf16.msra.mxu0 0
    %601 = vmatprep.subr.bf16.mxu0 0
    %602 = vmatpush2.bf16.msra.mxu0 0
    %603 = vmatprep.mubr.bf16.mxu0 0
    %604 = vmatmul.mubr.bf16.gmra.mxu0 %v460
    %v605 = vpop.f32.mrf.mxu0
    %v606 = vadd.f32 %v277, %v605
    %v607 = vpop.f32.mrf.mxu0
    %v608 = vadd.f32 %v281, %v607
    %v609 = vpop.f32.mrf.mxu0
    %v610 = vadd.f32 %v277, %v609
    %v611 = vpop.f32.mrf.mxu0
    %v612 = vadd.f32 %v281, %v611
    %613 = vmatprep.mubr.bf16.mxu0 0
    %614 = vmatmul.mubr.bf16.gmra.mxu0 %v463
    %v615 = vpop.f32.mrf.mxu0
    %v616 = vadd.f32 %v277, %v615
    %v617 = vpop.f32.mrf.mxu0
    %v618 = vadd.f32 %v281, %v617
    %v619 = vpop.f32.mrf.mxu0
    %v620 = vadd.f32 %v277, %v619
    %v621 = vpop.f32.mrf.mxu0
    %v622 = vadd.f32 %v281, %v621
    %623 = vdwg.mxu0
    %624 = vmatprep.subr.bf16.mxu0 0
    %625 = vmatpush1.bf16.msra.mxu0 0
    %626 = vmatprep.subr.bf16.mxu0 0
    %627 = vmatpush1.bf16.msra.mxu0 0
    %628 = vmatprep.subr.bf16.mxu0 0
    %629 = vmatpush1.bf16.msra.mxu0 0
    %630 = vmatprep.subr.bf16.mxu0 0
    %631 = vmatpush1.bf16.msra.mxu0 0
    %632 = vmatprep.subr.bf16.mxu0 %v425
    %633 = vmatpush1.bf16.msra.mxu0 %v424
    %634 = vmatprep.subr.bf16.mxu0 %v417
    %635 = vmatpush1.bf16.msra.mxu0 %v416
    %636 = vmatprep.subr.bf16.mxu0 %v409
    %637 = vmatpush1.bf16.msra.mxu0 %v408
    %638 = vmatprep.subr.bf16.mxu0 %v401
    %639 = vmatpush1.bf16.msra.mxu0 %v400
    %640 = vmatprep.subr.bf16.mxu0 0
    %641 = vmatpush2.bf16.msra.mxu0 0
    %642 = vmatprep.subr.bf16.mxu0 0
    %643 = vmatpush2.bf16.msra.mxu0 0
    %644 = vmatprep.subr.bf16.mxu0 0
    %645 = vmatpush2.bf16.msra.mxu0 0
    %646 = vmatprep.subr.bf16.mxu0 0
    %647 = vmatpush2.bf16.msra.mxu0 0
    %648 = vmatprep.subr.bf16.mxu0 0
    %649 = vmatpush2.bf16.msra.mxu0 0
    %650 = vmatprep.subr.bf16.mxu0 0
    %651 = vmatpush2.bf16.msra.mxu0 0
    %652 = vmatprep.subr.bf16.mxu0 0
    %653 = vmatpush2.bf16.msra.mxu0 0
    %654 = vmatprep.subr.bf16.mxu0 0
    %655 = vmatpush2.bf16.msra.mxu0 0
    %656 = vmatprep.mubr.bf16.mxu0 0
    %657 = vmatmul.mubr.bf16.gmra.mxu0 %v460
    %v658 = vpop.f32.mrf.mxu0
    %v659 = vadd.f32 %v285, %v658
    %v660 = vpop.f32.mrf.mxu0
    %v661 = vadd.f32 %v289, %v660
    %v662 = vpop.f32.mrf.mxu0
    %v663 = vadd.f32 %v285, %v662
    %v664 = vpop.f32.mrf.mxu0
    %v665 = vadd.f32 %v289, %v664
    %666 = vmatprep.mubr.bf16.mxu0 0
    %667 = vmatmul.mubr.bf16.gmra.mxu0 %v463
    %v668 = vpop.f32.mrf.mxu0
    %v669 = vadd.f32 %v285, %v668
    %v670 = vpop.f32.mrf.mxu0
    %v671 = vadd.f32 %v289, %v670
    %v672 = vpop.f32.mrf.mxu0
    %v673 = vadd.f32 %v285, %v672
    %v674 = vpop.f32.mrf.mxu0
    %v675 = vadd.f32 %v289, %v674
    %676 = vdwg.mxu0
    %677 = vst [vmem:[#allocation2] sm:$0xff] %v500
    %678 = vst [vmem:[#allocation2 + $0x8] sm:$0xff] %v502
    %679 = vst [vmem:[#allocation2 + $0x10] sm:$0xff] %v553
    %680 = vst [vmem:[#allocation2 + $0x18] sm:$0xff] %v555
    %681 = vst [vmem:[#allocation2 + $0x20] sm:$0xff] %v606
    %682 = vst [vmem:[#allocation2 + $0x28] sm:$0xff] %v608
    %683 = vst [vmem:[#allocation2 + $0x30] sm:$0xff] %v659
    %684 = vst [vmem:[#allocation2 + $0x38] sm:$0xff] %v661
    %685 = vst [vmem:[#allocation2 + $0x40] sm:$0xff] %v504
    %686 = vst [vmem:[#allocation2 + $0x48] sm:$0xff] %v506
    %687 = vst [vmem:[#allocation2 + $0x50] sm:$0xff] %v557
    %688 = vst [vmem:[#allocation2 + $0x58] sm:$0xff] %v559
    %689 = vst [vmem:[#allocation2 + $0x60] sm:$0xff] %v610
    %690 = vst [vmem:[#allocation2 + $0x68] sm:$0xff] %v612
    %691 = vst [vmem:[#allocation2 + $0x70] sm:$0xff] %v663
    %692 = vst [vmem:[#allocation2 + $0x78] sm:$0xff] %v665
    %693 = vst [vmem:[#allocation2 + $0x80] sm:$0xff] %v510
    %694 = vst [vmem:[#allocation2 + $0x88] sm:$0xff] %v512
    %695 = vst [vmem:[#allocation2 + $0x90] sm:$0xff] %v563
    %696 = vst [vmem:[#allocation2 + $0x98] sm:$0xff] %v565
    %697 = vst [vmem:[#allocation2 + $0xa0] sm:$0xff] %v616
    %698 = vst [vmem:[#allocation2 + $0xa8] sm:$0xff] %v618
    %699 = vst [vmem:[#allocation2 + $0xb0] sm:$0xff] %v669
    %700 = vst [vmem:[#allocation2 + $0xb8] sm:$0xff] %v671
    %701 = vst [vmem:[#allocation2 + $0xc0] sm:$0xff] %v514
    %702 = vst [vmem:[#allocation2 + $0xc8] sm:$0xff] %v516
    %703 = vst [vmem:[#allocation2 + $0xd0] sm:$0xff] %v567
    %704 = vst [vmem:[#allocation2 + $0xd8] sm:$0xff] %v569
    %705 = vst [vmem:[#allocation2 + $0xe0] sm:$0xff] %v620
    %706 = vst [vmem:[#allocation2 + $0xe8] sm:$0xff] %v622
    %707 = vst [vmem:[#allocation2 + $0xf0] sm:$0xff] %v673
    %708 = vst [vmem:[#allocation2 + $0xf8] sm:$0xff] %v675
    %709 = vst [vmem:[#allocation3] sm:$0xff] 0.0
    %710 = vst [vmem:[#allocation4] sm:$0xff] 0.0
    %711 = vst [vmem:[#allocation5] sm:$0xff] 0.0
    %712 = vst [vmem:[#allocation6] sm:$0xff] 0.0
    loop: start=0, step=1, limit=4
    $region118: #{global_module_forward.3} parent=1 // loop_pre_header
      _
    $region119: #{global_module_forward.3} parent=1 // loop_header
      %s714 = sphi 0, %s718
      %p715 = scmp.ge.s32.totalorder %s714, 4
    $region120: #{global_module_forward.3} parent=1 // loop_header_branch
      %717 = sbr.rel (%p715) target = $region124
    $region121: #{global_module_forward.3} parent=1 // loop_body
      %s719 = smul.u32 %s714, 8
      %s720 = sshra.s32 %s719, 3
      %s721 = sand.u32 %s719, 7
      %s722 = smul.u32 %s720, 8
      %s723 = smul.addr %s722, 8
      %s724 = scalar_lea.vmem [#allocation2], %s723
      %v725 = vld [vmem:[%s724] sm:$0xff]
      %v726 = vld [vmem:[%s724 + $0x8] sm:$0xff]
      %v727 = vld [vmem:[%s724 + $0x10] sm:$0xff]
      %v728 = vld [vmem:[%s724 + $0x18] sm:$0xff]
      %v729 = vld [vmem:[#allocation3] sm:$0xff]
      %v730 = vpack.c.bf16 %v729, %v729
      %v731 = vld [vmem:[#allocation7] sm:$0xff]
      %v732 = vld [vmem:[#allocation7 + $0x8] sm:$0xff]
      %v733 = vld [vmem:[#allocation7 + $0x10] sm:$0xff]
      %v734 = vld [vmem:[#allocation7 + $0x18] sm:$0xff]
      %v735 = vld [vmem:[#allocation7 + $0x20] sm:$0xff]
      %v736 = vld [vmem:[#allocation7 + $0x28] sm:$0xff]
      %v737 = vld [vmem:[#allocation7 + $0x30] sm:$0xff]
      %v738 = vld [vmem:[#allocation7 + $0x38] sm:$0xff]
      %v739 = vld [vmem:[#allocation7 + $0x40] sm:$0xff]
      %v740 = vld [vmem:[#allocation7 + $0x48] sm:$0xff]
      %v741 = vld [vmem:[#allocation7 + $0x50] sm:$0xff]
      %v742 = vld [vmem:[#allocation7 + $0x58] sm:$0xff]
      %v743 = vld [vmem:[#allocation7 + $0x60] sm:$0xff]
      %v744 = vld [vmem:[#allocation7 + $0x68] sm:$0xff]
      %v745 = vld [vmem:[#allocation7 + $0x70] sm:$0xff]
      %v746 = vld [vmem:[#allocation7 + $0x78] sm:$0xff]
      %v747 = vld [vmem:[#allocation7 + $0x80] sm:$0xff]
      %v748 = vld [vmem:[#allocation7 + $0x88] sm:$0xff]
      %v749 = vld [vmem:[#allocation7 + $0x90] sm:$0xff]
      %v750 = vld [vmem:[#allocation7 + $0x98] sm:$0xff]
      %v751 = vld [vmem:[#allocation7 + $0xa0] sm:$0xff]
      %v752 = vld [vmem:[#allocation7 + $0xa8] sm:$0xff]
      %v753 = vld [vmem:[#allocation7 + $0xb0] sm:$0xff]
      %v754 = vld [vmem:[#allocation7 + $0xb8] sm:$0xff]
      %v755 = vld [vmem:[#allocation7 + $0xc0] sm:$0xff]
      %v756 = vld [vmem:[#allocation7 + $0xc8] sm:$0xff]
      %v757 = vld [vmem:[#allocation7 + $0xd0] sm:$0xff]
      %v758 = vld [vmem:[#allocation7 + $0xd8] sm:$0xff]
      %v759 = vld [vmem:[#allocation7 + $0xe0] sm:$0xff]
      %v760 = vld [vmem:[#allocation7 + $0xe8] sm:$0xff]
      %v761 = vld [vmem:[#allocation7 + $0xf0] sm:$0xff]
      %v762 = vld [vmem:[#allocation7 + $0xf8] sm:$0xff]
      %v795 = vunpack.c.l.b16 %v731
      %v796 = vunpack.c.h.b16 %v731
      %v797 = vunpack.c.l.b16 %v732
      %v798 = vunpack.c.h.b16 %v732
      %v799 = vunpack.c.l.b16 %v733
      %v800 = vunpack.c.h.b16 %v733
      %v801 = vunpack.c.l.b16 %v734
      %v802 = vunpack.c.h.b16 %v734
      %v803 = vunpack.c.l.b16 %v735
      %v804 = vunpack.c.h.b16 %v735
      %v805 = vunpack.c.l.b16 %v736
      %v806 = vunpack.c.h.b16 %v736
      %v807 = vunpack.c.l.b16 %v737
      %v808 = vunpack.c.h.b16 %v737
      %v809 = vunpack.c.l.b16 %v738
      %v810 = vunpack.c.h.b16 %v738
      %v811 = vunpack.c.l.b16 %v739
      %v812 = vunpack.c.h.b16 %v739
      %v813 = vunpack.c.l.b16 %v740
      %v814 = vunpack.c.h.b16 %v740
      %v815 = vunpack.c.l.b16 %v741
      %v816 = vunpack.c.h.b16 %v741
      %v817 = vunpack.c.l.b16 %v742
      %v818 = vunpack.c.h.b16 %v742
      %v819 = vunpack.c.l.b16 %v743
      %v820 = vunpack.c.h.b16 %v743
      %v821 = vunpack.c.l.b16 %v744
      %v822 = vunpack.c.h.b16 %v744
      %v823 = vunpack.c.l.b16 %v745
      %v824 = vunpack.c.h.b16 %v745
      %v825 = vunpack.c.l.b16 %v746
      %v826 = vunpack.c.h.b16 %v746
      %v827 = vunpack.c.l.b16 %v747
      %v828 = vunpack.c.h.b16 %v747
      %v829 = vunpack.c.l.b16 %v748
      %v830 = vunpack.c.h.b16 %v748
      %v831 = vunpack.c.l.b16 %v749
      %v832 = vunpack.c.h.b16 %v749
      %v833 = vunpack.c.l.b16 %v750
      %v834 = vunpack.c.h.b16 %v750
      %v835 = vunpack.c.l.b16 %v751
      %v836 = vunpack.c.h.b16 %v751
      %v837 = vunpack.c.l.b16 %v752
      %v838 = vunpack.c.h.b16 %v752
      %v839 = vunpack.c.l.b16 %v753
      %v840 = vunpack.c.h.b16 %v753
      %v841 = vunpack.c.l.b16 %v754
      %v842 = vunpack.c.h.b16 %v754
      %v843 = vunpack.c.l.b16 %v755
      %v844 = vunpack.c.h.b16 %v755
      %v845 = vunpack.c.l.b16 %v756
      %v846 = vunpack.c.h.b16 %v756
      %v847 = vunpack.c.l.b16 %v757
      %v848 = vunpack.c.h.b16 %v757
      %v849 = vunpack.c.l.b16 %v758
      %v850 = vunpack.c.h.b16 %v758
      %v851 = vunpack.c.l.b16 %v759
      %v852 = vunpack.c.h.b16 %v759
      %v853 = vunpack.c.l.b16 %v760
      %v854 = vunpack.c.h.b16 %v760
      %v855 = vunpack.c.l.b16 %v761
      %v856 = vunpack.c.h.b16 %v761
      %v857 = vunpack.c.l.b16 %v762
      %v858 = vunpack.c.h.b16 %v762
      %v859 = vpack.c.b16 %v799, %v795
      %v860 = vpack.c.b16 %v800, %v796
      %v861 = vpack.c.b16 %v801, %v797
      %v862 = vpack.c.b16 %v802, %v798
      %v863 = vpack.c.b16 %v807, %v803
      %v864 = vpack.c.b16 %v808, %v804
      %v865 = vpack.c.b16 %v809, %v805
      %v866 = vpack.c.b16 %v810, %v806
      %v867 = vpack.c.b16 %v815, %v811
      %v868 = vpack.c.b16 %v816, %v812
      %v869 = vpack.c.b16 %v817, %v813
      %v870 = vpack.c.b16 %v818, %v814
      %v871 = vpack.c.b16 %v823, %v819
      %v872 = vpack.c.b16 %v824, %v820
      %v873 = vpack.c.b16 %v825, %v821
      %v874 = vpack.c.b16 %v826, %v822
      %v875 = vpack.c.b16 %v831, %v827
      %v876 = vpack.c.b16 %v832, %v828
      %v877 = vpack.c.b16 %v833, %v829
      %v878 = vpack.c.b16 %v834, %v830
      %v879 = vpack.c.b16 %v839, %v835
      %v880 = vpack.c.b16 %v840, %v836
      %v881 = vpack.c.b16 %v841, %v837
      %v882 = vpack.c.b16 %v842, %v838
      %v883 = vpack.c.b16 %v847, %v843
      %v884 = vpack.c.b16 %v848, %v844
      %v885 = vpack.c.b16 %v849, %v845
      %v886 = vpack.c.b16 %v850, %v846
      %v887 = vpack.c.b16 %v855, %v851
      %v888 = vpack.c.b16 %v856, %v852
      %v889 = vpack.c.b16 %v857, %v853
      %v890 = vpack.c.b16 %v858, %v854
      %923 = vmatprep.subr.bf16.mxu0 %v888
      %924 = vmatpush1.bf16.msra.mxu0 %v887
      %925 = vmatprep.subr.bf16.mxu0 %v884
      %926 = vmatpush1.bf16.msra.mxu0 %v883
      %927 = vmatprep.subr.bf16.mxu0 %v880
      %928 = vmatpush1.bf16.msra.mxu0 %v879
      %929 = vmatprep.subr.bf16.mxu0 %v876
      %930 = vmatpush1.bf16.msra.mxu0 %v875
      %931 = vmatprep.subr.bf16.mxu0 %v872
      %932 = vmatpush1.bf16.msra.mxu0 %v871
      %933 = vmatprep.subr.bf16.mxu0 %v868
      %934 = vmatpush1.bf16.msra.mxu0 %v867
      %935 = vmatprep.subr.bf16.mxu0 %v864
      %936 = vmatpush1.bf16.msra.mxu0 %v863
      %937 = vmatprep.subr.bf16.mxu0 %v860
      %938 = vmatpush1.bf16.msra.mxu0 %v859
      %939 = vmatprep.subr.bf16.mxu0 0
      %940 = vmatpush2.bf16.msra.mxu0 0
      %941 = vmatprep.subr.bf16.mxu0 0
      %942 = vmatpush2.bf16.msra.mxu0 0
      %943 = vmatprep.subr.bf16.mxu0 0
      %944 = vmatpush2.bf16.msra.mxu0 0
      %945 = vmatprep.subr.bf16.mxu0 0
      %946 = vmatpush2.bf16.msra.mxu0 0
      %947 = vmatprep.subr.bf16.mxu0 0
      %948 = vmatpush2.bf16.msra.mxu0 0
      %949 = vmatprep.subr.bf16.mxu0 0
      %950 = vmatpush2.bf16.msra.mxu0 0
      %951 = vmatprep.subr.bf16.mxu0 0
      %952 = vmatpush2.bf16.msra.mxu0 0
      %953 = vmatprep.subr.bf16.mxu0 0
      %954 = vmatpush2.bf16.msra.mxu0 0
      %955 = vmatprep.mubr.bf16.mxu0 0
      %956 = vmatmul.mubr.bf16.gmra.mxu0 %v730
      %v957 = vpop.f32.mrf.mxu0
      %v958 = vadd.f32 0.0, %v957
      %v959 = vpop.f32.mrf.mxu0
      %v960 = vadd.f32 0.0, %v959
      %v961 = vpop.f32.mrf.mxu0
      %v962 = vpop.f32.mrf.mxu0
      %963 = vdwg.mxu0
      %964 = vmatprep.subr.bf16.mxu0 %v890
      %965 = vmatpush1.bf16.msra.mxu0 %v889
      %966 = vmatprep.subr.bf16.mxu0 %v886
      %967 = vmatpush1.bf16.msra.mxu0 %v885
      %968 = vmatprep.subr.bf16.mxu0 %v882
      %969 = vmatpush1.bf16.msra.mxu0 %v881
      %970 = vmatprep.subr.bf16.mxu0 %v878
      %971 = vmatpush1.bf16.msra.mxu0 %v877
      %972 = vmatprep.subr.bf16.mxu0 %v874
      %973 = vmatpush1.bf16.msra.mxu0 %v873
      %974 = vmatprep.subr.bf16.mxu0 %v870
      %975 = vmatpush1.bf16.msra.mxu0 %v869
      %976 = vmatprep.subr.bf16.mxu0 %v866
      %977 = vmatpush1.bf16.msra.mxu0 %v865
      %978 = vmatprep.subr.bf16.mxu0 %v862
      %979 = vmatpush1.bf16.msra.mxu0 %v861
      %980 = vmatprep.subr.bf16.mxu0 0
      %981 = vmatpush2.bf16.msra.mxu0 0
      %982 = vmatprep.subr.bf16.mxu0 0
      %983 = vmatpush2.bf16.msra.mxu0 0
      %984 = vmatprep.subr.bf16.mxu0 0
      %985 = vmatpush2.bf16.msra.mxu0 0
      %986 = vmatprep.subr.bf16.mxu0 0
      %987 = vmatpush2.bf16.msra.mxu0 0
      %988 = vmatprep.subr.bf16.mxu0 0
      %989 = vmatpush2.bf16.msra.mxu0 0
      %990 = vmatprep.subr.bf16.mxu0 0
      %991 = vmatpush2.bf16.msra.mxu0 0
      %992 = vmatprep.subr.bf16.mxu0 0
      %993 = vmatpush2.bf16.msra.mxu0 0
      %994 = vmatprep.subr.bf16.mxu0 0
      %995 = vmatpush2.bf16.msra.mxu0 0
      %996 = vmatprep.mubr.bf16.mxu0 0
      %997 = vmatmul.mubr.bf16.gmra.mxu0 %v730
      %v998 = vpop.f32.mrf.mxu0
      %v999 = vadd.f32 0.0, %v998
      %v1000 = vpop.f32.mrf.mxu0
      %v1001 = vadd.f32 0.0, %v1000
      %v1002 = vpop.f32.mrf.mxu0
      %v1003 = vpop.f32.mrf.mxu0
      %1004 = vdwg.mxu0
      %v1005 = vadd.f32 %v725, %v958
      %v1006 = vadd.f32 %v726, %v960
      %v1007 = vadd.f32 %v727, %v999
      %v1008 = vadd.f32 %v728, %v1001
      %v1009 = vld [vmem:[#allocation4] sm:$0xff]
      %v1010 = vxor.u32 %v1005, 2147483648
      %v1011 = vmul.f32 %v1010, 1.442695
      %v1012 = vpow.pop %v1011
      %v1013 = vadd.f32 %v1012, 1.0
      %v1014 = vrcp.pop %v1013
      %v1015 = vmul.f32 1.0, %v1014
      %v1016 = vxor.u32 %v1006, 2147483648
      %v1017 = vmul.f32 %v1016, 1.442695
      %v1018 = vpow.pop %v1017
      %v1019 = vadd.f32 %v1018, 1.0
      %v1020 = vrcp.pop %v1019
      %v1021 = vmul.f32 1.0, %v1020
      %v1022 = vtanh.pop %v1007
      %v1023 = vxor.u32 %v1008, 2147483648
      %v1024 = vmul.f32 %v1023, 1.442695
      %v1025 = vpow.pop %v1024
      %v1026 = vadd.f32 %v1025, 1.0
      %v1027 = vrcp.pop %v1026
      %v1028 = vmul.f32 1.0, %v1027
      %v1029 = vmul.f32 %v1021, %v1009
      %v1030 = vmul.f32 %v1015, %v1022
      %v1031 = vadd.f32 %v1029, %v1030
      %v1032 = vtanh.pop %v1031
      %v1033 = vmul.f32 %v1028, %v1032
      %1034 = vst [vmem:[#allocation3] sm:$0xff] %v1033
      %1035 = vst [vmem:[#allocation4] sm:$0xff] %v1031
      %s1036 = smul.u32 %s720, 2
      %s1037 = smul.addr %s1036, 8
      %s1038 = scalar_lea.vmem %s17, %s1037
      %1039 = vst [vmem:[%s1038] sm:$0xff] %v1033
      %s1040 = ssub.s32 3, %s714
      %s1041 = smul.u32 %s1040, 8
      %s1042 = sshra.s32 %s1041, 3
      %s1043 = sand.u32 %s1041, 7
      %s1044 = smul.u32 %s1042, 8
      %s1045 = smul.addr %s1044, 8
      %s1046 = scalar_lea.vmem [#allocation2], %s1045
      %v1047 = vld [vmem:[%s1046 + $0x20] sm:$0xff]
      %v1048 = vld [vmem:[%s1046 + $0x28] sm:$0xff]
      %v1049 = vld [vmem:[%s1046 + $0x30] sm:$0xff]
      %v1050 = vld [vmem:[%s1046 + $0x38] sm:$0xff]
      %v1051 = vld [vmem:[#allocation5] sm:$0xff]
      %v1052 = vpack.c.bf16 %v1051, %v1051
      %v1053 = vld [vmem:[#allocation9] sm:$0xff]
      %v1054 = vld [vmem:[#allocation9 + $0x8] sm:$0xff]
      %v1055 = vld [vmem:[#allocation9 + $0x10] sm:$0xff]
      %v1056 = vld [vmem:[#allocation9 + $0x18] sm:$0xff]
      %v1057 = vld [vmem:[#allocation9 + $0x20] sm:$0xff]
      %v1058 = vld [vmem:[#allocation9 + $0x28] sm:$0xff]
      %v1059 = vld [vmem:[#allocation9 + $0x30] sm:$0xff]
      %v1060 = vld [vmem:[#allocation9 + $0x38] sm:$0xff]
      %v1061 = vld [vmem:[#allocation9 + $0x40] sm:$0xff]
      %v1062 = vld [vmem:[#allocation9 + $0x48] sm:$0xff]
      %v1063 = vld [vmem:[#allocation9 + $0x50] sm:$0xff]
      %v1064 = vld [vmem:[#allocation9 + $0x58] sm:$0xff]
      %v1065 = vld [vmem:[#allocation9 + $0x60] sm:$0xff]
      %v1066 = vld [vmem:[#allocation9 + $0x68] sm:$0xff]
      %v1067 = vld [vmem:[#allocation9 + $0x70] sm:$0xff]
      %v1068 = vld [vmem:[#allocation9 + $0x78] sm:$0xff]
      %v1069 = vld [vmem:[#allocation9 + $0x80] sm:$0xff]
      %v1070 = vld [vmem:[#allocation9 + $0x88] sm:$0xff]
      %v1071 = vld [vmem:[#allocation9 + $0x90] sm:$0xff]
      %v1072 = vld [vmem:[#allocation9 + $0x98] sm:$0xff]
      %v1073 = vld [vmem:[#allocation9 + $0xa0] sm:$0xff]
      %v1074 = vld [vmem:[#allocation9 + $0xa8] sm:$0xff]
      %v1075 = vld [vmem:[#allocation9 + $0xb0] sm:$0xff]
      %v1076 = vld [vmem:[#allocation9 + $0xb8] sm:$0xff]
      %v1077 = vld [vmem:[#allocation9 + $0xc0] sm:$0xff]
      %v1078 = vld [vmem:[#allocation9 + $0xc8] sm:$0xff]
      %v1079 = vld [vmem:[#allocation9 + $0xd0] sm:$0xff]
      %v1080 = vld [vmem:[#allocation9 + $0xd8] sm:$0xff]
      %v1081 = vld [vmem:[#allocation9 + $0xe0] sm:$0xff]
      %v1082 = vld [vmem:[#allocation9 + $0xe8] sm:$0xff]
      %v1083 = vld [vmem:[#allocation9 + $0xf0] sm:$0xff]
      %v1084 = vld [vmem:[#allocation9 + $0xf8] sm:$0xff]
      %v1117 = vunpack.c.l.b16 %v1053
      %v1118 = vunpack.c.h.b16 %v1053
      %v1119 = vunpack.c.l.b16 %v1054
      %v1120 = vunpack.c.h.b16 %v1054
      %v1121 = vunpack.c.l.b16 %v1055
      %v1122 = vunpack.c.h.b16 %v1055
      %v1123 = vunpack.c.l.b16 %v1056
      %v1124 = vunpack.c.h.b16 %v1056
      %v1125 = vunpack.c.l.b16 %v1057
      %v1126 = vunpack.c.h.b16 %v1057
      %v1127 = vunpack.c.l.b16 %v1058
      %v1128 = vunpack.c.h.b16 %v1058
      %v1129 = vunpack.c.l.b16 %v1059
      %v1130 = vunpack.c.h.b16 %v1059
      %v1131 = vunpack.c.l.b16 %v1060
      %v1132 = vunpack.c.h.b16 %v1060
      %v1133 = vunpack.c.l.b16 %v1061
      %v1134 = vunpack.c.h.b16 %v1061
      %v1135 = vunpack.c.l.b16 %v1062
      %v1136 = vunpack.c.h.b16 %v1062
      %v1137 = vunpack.c.l.b16 %v1063
      %v1138 = vunpack.c.h.b16 %v1063
      %v1139 = vunpack.c.l.b16 %v1064
      %v1140 = vunpack.c.h.b16 %v1064
      %v1141 = vunpack.c.l.b16 %v1065
      %v1142 = vunpack.c.h.b16 %v1065
      %v1143 = vunpack.c.l.b16 %v1066
      %v1144 = vunpack.c.h.b16 %v1066
      %v1145 = vunpack.c.l.b16 %v1067
      %v1146 = vunpack.c.h.b16 %v1067
      %v1147 = vunpack.c.l.b16 %v1068
      %v1148 = vunpack.c.h.b16 %v1068
      %v1149 = vunpack.c.l.b16 %v1069
      %v1150 = vunpack.c.h.b16 %v1069
      %v1151 = vunpack.c.l.b16 %v1070
      %v1152 = vunpack.c.h.b16 %v1070
      %v1153 = vunpack.c.l.b16 %v1071
      %v1154 = vunpack.c.h.b16 %v1071
      %v1155 = vunpack.c.l.b16 %v1072
      %v1156 = vunpack.c.h.b16 %v1072
      %v1157 = vunpack.c.l.b16 %v1073
      %v1158 = vunpack.c.h.b16 %v1073
      %v1159 = vunpack.c.l.b16 %v1074
      %v1160 = vunpack.c.h.b16 %v1074
      %v1161 = vunpack.c.l.b16 %v1075
      %v1162 = vunpack.c.h.b16 %v1075
      %v1163 = vunpack.c.l.b16 %v1076
      %v1164 = vunpack.c.h.b16 %v1076
      %v1165 = vunpack.c.l.b16 %v1077
      %v1166 = vunpack.c.h.b16 %v1077
      %v1167 = vunpack.c.l.b16 %v1078
      %v1168 = vunpack.c.h.b16 %v1078
      %v1169 = vunpack.c.l.b16 %v1079
      %v1170 = vunpack.c.h.b16 %v1079
      %v1171 = vunpack.c.l.b16 %v1080
      %v1172 = vunpack.c.h.b16 %v1080
      %v1173 = vunpack.c.l.b16 %v1081
      %v1174 = vunpack.c.h.b16 %v1081
      %v1175 = vunpack.c.l.b16 %v1082
      %v1176 = vunpack.c.h.b16 %v1082
      %v1177 = vunpack.c.l.b16 %v1083
      %v1178 = vunpack.c.h.b16 %v1083
      %v1179 = vunpack.c.l.b16 %v1084
      %v1180 = vunpack.c.h.b16 %v1084
      %v1181 = vpack.c.b16 %v1121, %v1117
      %v1182 = vpack.c.b16 %v1122, %v1118
      %v1183 = vpack.c.b16 %v1123, %v1119
      %v1184 = vpack.c.b16 %v1124, %v1120
      %v1185 = vpack.c.b16 %v1129, %v1125
      %v1186 = vpack.c.b16 %v1130, %v1126
      %v1187 = vpack.c.b16 %v1131, %v1127
      %v1188 = vpack.c.b16 %v1132, %v1128
      %v1189 = vpack.c.b16 %v1137, %v1133
      %v1190 = vpack.c.b16 %v1138, %v1134
      %v1191 = vpack.c.b16 %v1139, %v1135
      %v1192 = vpack.c.b16 %v1140, %v1136
      %v1193 = vpack.c.b16 %v1145, %v1141
      %v1194 = vpack.c.b16 %v1146, %v1142
      %v1195 = vpack.c.b16 %v1147, %v1143
      %v1196 = vpack.c.b16 %v1148, %v1144
      %v1197 = vpack.c.b16 %v1153, %v1149
      %v1198 = vpack.c.b16 %v1154, %v1150
      %v1199 = vpack.c.b16 %v1155, %v1151
      %v1200 = vpack.c.b16 %v1156, %v1152
      %v1201 = vpack.c.b16 %v1161, %v1157
      %v1202 = vpack.c.b16 %v1162, %v1158
      %v1203 = vpack.c.b16 %v1163, %v1159
      %v1204 = vpack.c.b16 %v1164, %v1160
      %v1205 = vpack.c.b16 %v1169, %v1165
      %v1206 = vpack.c.b16 %v1170, %v1166
      %v1207 = vpack.c.b16 %v1171, %v1167
      %v1208 = vpack.c.b16 %v1172, %v1168
      %v1209 = vpack.c.b16 %v1177, %v1173
      %v1210 = vpack.c.b16 %v1178, %v1174
      %v1211 = vpack.c.b16 %v1179, %v1175
      %v1212 = vpack.c.b16 %v1180, %v1176
      %1245 = vmatprep.subr.bf16.mxu0 %v1210
      %1246 = vmatpush1.bf16.msra.mxu0 %v1209
      %1247 = vmatprep.subr.bf16.mxu0 %v1206
      %1248 = vmatpush1.bf16.msra.mxu0 %v1205
      %1249 = vmatprep.subr.bf16.mxu0 %v1202
      %1250 = vmatpush1.bf16.msra.mxu0 %v1201
      %1251 = vmatprep.subr.bf16.mxu0 %v1198
      %1252 = vmatpush1.bf16.msra.mxu0 %v1197
      %1253 = vmatprep.subr.bf16.mxu0 %v1194
      %1254 = vmatpush1.bf16.msra.mxu0 %v1193
      %1255 = vmatprep.subr.bf16.mxu0 %v1190
      %1256 = vmatpush1.bf16.msra.mxu0 %v1189
      %1257 = vmatprep.subr.bf16.mxu0 %v1186
      %1258 = vmatpush1.bf16.msra.mxu0 %v1185
      %1259 = vmatprep.subr.bf16.mxu0 %v1182
      %1260 = vmatpush1.bf16.msra.mxu0 %v1181
      %1261 = vmatprep.subr.bf16.mxu0 0
      %1262 = vmatpush2.bf16.msra.mxu0 0
      %1263 = vmatprep.subr.bf16.mxu0 0
      %1264 = vmatpush2.bf16.msra.mxu0 0
      %1265 = vmatprep.subr.bf16.mxu0 0
      %1266 = vmatpush2.bf16.msra.mxu0 0
      %1267 = vmatprep.subr.bf16.mxu0 0
      %1268 = vmatpush2.bf16.msra.mxu0 0
      %1269 = vmatprep.subr.bf16.mxu0 0
      %1270 = vmatpush2.bf16.msra.mxu0 0
      %1271 = vmatprep.subr.bf16.mxu0 0
      %1272 = vmatpush2.bf16.msra.mxu0 0
      %1273 = vmatprep.subr.bf16.mxu0 0
      %1274 = vmatpush2.bf16.msra.mxu0 0
      %1275 = vmatprep.subr.bf16.mxu0 0
      %1276 = vmatpush2.bf16.msra.mxu0 0
      %1277 = vmatprep.mubr.bf16.mxu0 0
      %1278 = vmatmul.mubr.bf16.gmra.mxu0 %v1052
      %v1279 = vpop.f32.mrf.mxu0
      %v1280 = vadd.f32 0.0, %v1279
      %v1281 = vpop.f32.mrf.mxu0
      %v1282 = vadd.f32 0.0, %v1281
      %v1283 = vpop.f32.mrf.mxu0
      %v1284 = vpop.f32.mrf.mxu0
      %1285 = vdwg.mxu0
      %1286 = vmatprep.subr.bf16.mxu0 %v1212
      %1287 = vmatpush1.bf16.msra.mxu0 %v1211
      %1288 = vmatprep.subr.bf16.mxu0 %v1208
      %1289 = vmatpush1.bf16.msra.mxu0 %v1207
      %1290 = vmatprep.subr.bf16.mxu0 %v1204
      %1291 = vmatpush1.bf16.msra.mxu0 %v1203
      %1292 = vmatprep.subr.bf16.mxu0 %v1200
      %1293 = vmatpush1.bf16.msra.mxu0 %v1199
      %1294 = vmatprep.subr.bf16.mxu0 %v1196
      %1295 = vmatpush1.bf16.msra.mxu0 %v1195
      %1296 = vmatprep.subr.bf16.mxu0 %v1192
      %1297 = vmatpush1.bf16.msra.mxu0 %v1191
      %1298 = vmatprep.subr.bf16.mxu0 %v1188
      %1299 = vmatpush1.bf16.msra.mxu0 %v1187
      %1300 = vmatprep.subr.bf16.mxu0 %v1184
      %1301 = vmatpush1.bf16.msra.mxu0 %v1183
      %1302 = vmatprep.subr.bf16.mxu0 0
      %1303 = vmatpush2.bf16.msra.mxu0 0
      %1304 = vmatprep.subr.bf16.mxu0 0
      %1305 = vmatpush2.bf16.msra.mxu0 0
      %1306 = vmatprep.subr.bf16.mxu0 0
      %1307 = vmatpush2.bf16.msra.mxu0 0
      %1308 = vmatprep.subr.bf16.mxu0 0
      %1309 = vmatpush2.bf16.msra.mxu0 0
      %1310 = vmatprep.subr.bf16.mxu0 0
      %1311 = vmatpush2.bf16.msra.mxu0 0
      %1312 = vmatprep.subr.bf16.mxu0 0
      %1313 = vmatpush2.bf16.msra.mxu0 0
      %1314 = vmatprep.subr.bf16.mxu0 0
      %1315 = vmatpush2.bf16.msra.mxu0 0
      %1316 = vmatprep.subr.bf16.mxu0 0
      %1317 = vmatpush2.bf16.msra.mxu0 0
      %1318 = vmatprep.mubr.bf16.mxu0 0
      %1319 = vmatmul.mubr.bf16.gmra.mxu0 %v1052
      %v1320 = vpop.f32.mrf.mxu0
      %v1321 = vadd.f32 0.0, %v1320
      %v1322 = vpop.f32.mrf.mxu0
      %v1323 = vadd.f32 0.0, %v1322
      %v1324 = vpop.f32.mrf.mxu0
      %v1325 = vpop.f32.mrf.mxu0
      %1326 = vdwg.mxu0
      %v1327 = vadd.f32 %v1047, %v1280
      %v1328 = vadd.f32 %v1048, %v1282
      %v1329 = vadd.f32 %v1049, %v1321
      %v1330 = vadd.f32 %v1050, %v1323
      %v1331 = vld [vmem:[#allocation6] sm:$0xff]
      %v1332 = vxor.u32 %v1327, 2147483648
      %v1333 = vmul.f32 %v1332, 1.442695
      %v1334 = vpow.pop %v1333
      %v1335 = vadd.f32 %v1334, 1.0
      %v1336 = vrcp.pop %v1335
      %v1337 = vmul.f32 1.0, %v1336
      %v1338 = vxor.u32 %v1328, 2147483648
      %v1339 = vmul.f32 %v1338, 1.442695
      %v1340 = vpow.pop %v1339
      %v1341 = vadd.f32 %v1340, 1.0
      %v1342 = vrcp.pop %v1341
      %v1343 = vmul.f32 1.0, %v1342
      %v1344 = vtanh.pop %v1329
      %v1345 = vxor.u32 %v1330, 2147483648
      %v1346 = vmul.f32 %v1345, 1.442695
      %v1347 = vpow.pop %v1346
      %v1348 = vadd.f32 %v1347, 1.0
      %v1349 = vrcp.pop %v1348
      %v1350 = vmul.f32 1.0, %v1349
      %v1351 = vmul.f32 %v1343, %v1331
      %v1352 = vmul.f32 %v1337, %v1344
      %v1353 = vadd.f32 %v1351, %v1352
      %v1354 = vtanh.pop %v1353
      %v1355 = vmul.f32 %v1350, %v1354
      %1356 = vst [vmem:[#allocation5] sm:$0xff] %v1355
      %1357 = vst [vmem:[#allocation6] sm:$0xff] %v1353
      %s1358 = smul.u32 %s1042, 2
      %s1359 = smul.addr %s1358, 8
      %s1360 = scalar_lea.vmem %s17, %s1359
      %1361 = vst [vmem:[%s1360 + $0x8] sm:$0xff] %v1355
    $region122: #{global_module_forward.3} parent=1 // loop_footer
      %s718 = sadd.s32 1, %s714
    $region123: #{global_module_forward.3} parent=1 // loop_footer_branch
      %713 = sbr.rel target = $region119
    $region124: #{global_module_forward.3} parent=1 // loop_exit
      _
    %v1362 = vld [vmem:[%s17] sm:$0xff]
    %v1363 = vld [vmem:[%s17 + $0x8] sm:$0xff]
    %v1364 = vld [vmem:[%s17 + $0x10] sm:$0xff]
    %v1365 = vld [vmem:[%s17 + $0x18] sm:$0xff]
    %v1366 = vld [vmem:[%s17 + $0x20] sm:$0xff]
    %v1367 = vld [vmem:[%s17 + $0x28] sm:$0xff]
    %v1368 = vld [vmem:[%s17 + $0x30] sm:$0xff]
    %v1369 = vld [vmem:[%s17 + $0x38] sm:$0xff]
    %v1370 = vpack.c.bf16 %v1364, %v1362
    %v1371 = vpack.c.bf16 %v1365, %v1363
    %v1372 = vpack.c.bf16 %v1368, %v1366
    %v1373 = vpack.c.bf16 %v1369, %v1367
    %v1374 = vld [vmem:[#allocation11] sm:$0xff]
    %v1375 = vld [vmem:[#allocation11 + $0x8] sm:$0xff]
    %v1376 = vld [vmem:[#allocation11 + $0x10] sm:$0xff]
    %v1377 = vld [vmem:[#allocation11 + $0x18] sm:$0xff]
    %v1378 = vld [vmem:[#allocation11 + $0x20] sm:$0xff]
    %v1379 = vld [vmem:[#allocation11 + $0x28] sm:$0xff]
    %v1380 = vld [vmem:[#allocation11 + $0x30] sm:$0xff]
    %v1381 = vld [vmem:[#allocation11 + $0x38] sm:$0xff]
    %v1382 = vld [vmem:[#allocation11 + $0x40] sm:$0xff]
    %v1383 = vld [vmem:[#allocation11 + $0x48] sm:$0xff]
    %v1384 = vld [vmem:[#allocation11 + $0x50] sm:$0xff]
    %v1385 = vld [vmem:[#allocation11 + $0x58] sm:$0xff]
    %v1386 = vld [vmem:[#allocation11 + $0x60] sm:$0xff]
    %v1387 = vld [vmem:[#allocation11 + $0x68] sm:$0xff]
    %v1388 = vld [vmem:[#allocation11 + $0x70] sm:$0xff]
    %v1389 = vld [vmem:[#allocation11 + $0x78] sm:$0xff]
    %v1390 = vld [vmem:[#allocation11 + $0x80] sm:$0xff]
    %v1391 = vld [vmem:[#allocation11 + $0x88] sm:$0xff]
    %v1392 = vld [vmem:[#allocation11 + $0x90] sm:$0xff]
    %v1393 = vld [vmem:[#allocation11 + $0x98] sm:$0xff]
    %v1394 = vld [vmem:[#allocation11 + $0xa0] sm:$0xff]
    %v1395 = vld [vmem:[#allocation11 + $0xa8] sm:$0xff]
    %v1396 = vld [vmem:[#allocation11 + $0xb0] sm:$0xff]
    %v1397 = vld [vmem:[#allocation11 + $0xb8] sm:$0xff]
    %v1398 = vld [vmem:[#allocation11 + $0xc0] sm:$0xff]
    %v1399 = vld [vmem:[#allocation11 + $0xc8] sm:$0xff]
    %v1400 = vld [vmem:[#allocation11 + $0xd0] sm:$0xff]
    %v1401 = vld [vmem:[#allocation11 + $0xd8] sm:$0xff]
    %v1402 = vld [vmem:[#allocation11 + $0xe0] sm:$0xff]
    %v1403 = vld [vmem:[#allocation11 + $0xe8] sm:$0xff]
    %v1404 = vld [vmem:[#allocation11 + $0xf0] sm:$0xff]
    %v1405 = vld [vmem:[#allocation11 + $0xf8] sm:$0xff]
    %v1406 = vld [vmem:[#allocation11 + $0x100] sm:$0xff]
    %v1407 = vld [vmem:[#allocation11 + $0x108] sm:$0xff]
    %v1408 = vld [vmem:[#allocation11 + $0x110] sm:$0xff]
    %v1409 = vld [vmem:[#allocation11 + $0x118] sm:$0xff]
    %v1410 = vld [vmem:[#allocation11 + $0x120] sm:$0xff]
    %v1411 = vld [vmem:[#allocation11 + $0x128] sm:$0xff]
    %v1412 = vld [vmem:[#allocation11 + $0x130] sm:$0xff]
    %v1413 = vld [vmem:[#allocation11 + $0x138] sm:$0xff]
    %v1414 = vld [vmem:[#allocation11 + $0x140] sm:$0xff]
    %v1415 = vld [vmem:[#allocation11 + $0x148] sm:$0xff]
    %v1416 = vld [vmem:[#allocation11 + $0x150] sm:$0xff]
    %v1417 = vld [vmem:[#allocation11 + $0x158] sm:$0xff]
    %v1418 = vld [vmem:[#allocation11 + $0x160] sm:$0xff]
    %v1419 = vld [vmem:[#allocation11 + $0x168] sm:$0xff]
    %v1420 = vld [vmem:[#allocation11 + $0x170] sm:$0xff]
    %v1421 = vld [vmem:[#allocation11 + $0x178] sm:$0xff]
    %v1422 = vld [vmem:[#allocation11 + $0x180] sm:$0xff]
    %v1423 = vld [vmem:[#allocation11 + $0x188] sm:$0xff]
    %v1424 = vld [vmem:[#allocation11 + $0x190] sm:$0xff]
    %v1425 = vld [vmem:[#allocation11 + $0x198] sm:$0xff]
    %v1426 = vld [vmem:[#allocation11 + $0x1a0] sm:$0xff]
    %v1427 = vld [vmem:[#allocation11 + $0x1a8] sm:$0xff]
    %v1428 = vld [vmem:[#allocation11 + $0x1b0] sm:$0xff]
    %v1429 = vld [vmem:[#allocation11 + $0x1b8] sm:$0xff]
    %v1430 = vld [vmem:[#allocation11 + $0x1c0] sm:$0xff]
    %v1431 = vld [vmem:[#allocation11 + $0x1c8] sm:$0xff]
    %v1432 = vld [vmem:[#allocation11 + $0x1d0] sm:$0xff]
    %v1433 = vld [vmem:[#allocation11 + $0x1d8] sm:$0xff]
    %v1434 = vld [vmem:[#allocation11 + $0x1e0] sm:$0xff]
    %v1435 = vld [vmem:[#allocation11 + $0x1e8] sm:$0xff]
    %v1436 = vld [vmem:[#allocation11 + $0x1f0] sm:$0xff]
    %v1437 = vld [vmem:[#allocation11 + $0x1f8] sm:$0xff]
    %v1438 = vld [vmem:[#allocation11 + $0x200] sm:$0xff]
    %v1439 = vld [vmem:[#allocation11 + $0x208] sm:$0xff]
    %v1440 = vld [vmem:[#allocation11 + $0x210] sm:$0xff]
    %v1441 = vld [vmem:[#allocation11 + $0x218] sm:$0xff]
    %v1442 = vld [vmem:[#allocation11 + $0x220] sm:$0xff]
    %v1443 = vld [vmem:[#allocation11 + $0x228] sm:$0xff]
    %v1444 = vld [vmem:[#allocation11 + $0x230] sm:$0xff]
    %v1445 = vld [vmem:[#allocation11 + $0x238] sm:$0xff]
    %v1446 = vld [vmem:[#allocation11 + $0x240] sm:$0xff]
    %v1447 = vld [vmem:[#allocation11 + $0x248] sm:$0xff]
    %v1448 = vld [vmem:[#allocation11 + $0x250] sm:$0xff]
    %v1449 = vld [vmem:[#allocation11 + $0x258] sm:$0xff]
    %v1450 = vld [vmem:[#allocation11 + $0x260] sm:$0xff]
    %v1451 = vld [vmem:[#allocation11 + $0x268] sm:$0xff]
    %v1452 = vld [vmem:[#allocation11 + $0x270] sm:$0xff]
    %v1453 = vld [vmem:[#allocation11 + $0x278] sm:$0xff]
    %v1454 = vld [vmem:[#allocation11 + $0x280] sm:$0xff]
    %v1455 = vld [vmem:[#allocation11 + $0x288] sm:$0xff]
    %v1456 = vld [vmem:[#allocation11 + $0x290] sm:$0xff]
    %v1457 = vld [vmem:[#allocation11 + $0x298] sm:$0xff]
    %v1458 = vld [vmem:[#allocation11 + $0x2a0] sm:$0xff]
    %v1459 = vld [vmem:[#allocation11 + $0x2a8] sm:$0xff]
    %v1460 = vld [vmem:[#allocation11 + $0x2b0] sm:$0xff]
    %v1461 = vld [vmem:[#allocation11 + $0x2b8] sm:$0xff]
    %v1462 = vld [vmem:[#allocation11 + $0x2c0] sm:$0xff]
    %v1463 = vld [vmem:[#allocation11 + $0x2c8] sm:$0xff]
    %v1464 = vld [vmem:[#allocation11 + $0x2d0] sm:$0xff]
    %v1465 = vld [vmem:[#allocation11 + $0x2d8] sm:$0xff]
    %v1466 = vld [vmem:[#allocation11 + $0x2e0] sm:$0xff]
    %v1467 = vld [vmem:[#allocation11 + $0x2e8] sm:$0xff]
    %v1468 = vld [vmem:[#allocation11 + $0x2f0] sm:$0xff]
    %v1469 = vld [vmem:[#allocation11 + $0x2f8] sm:$0xff]
    %v1470 = vld [vmem:[#allocation11 + $0x300] sm:$0xff]
    %v1471 = vld [vmem:[#allocation11 + $0x308] sm:$0xff]
    %v1472 = vld [vmem:[#allocation11 + $0x310] sm:$0xff]
    %v1473 = vld [vmem:[#allocation11 + $0x318] sm:$0xff]
    %v1474 = vld [vmem:[#allocation11 + $0x320] sm:$0xff]
    %v1475 = vld [vmem:[#allocation11 + $0x328] sm:$0xff]
    %v1476 = vld [vmem:[#allocation11 + $0x330] sm:$0xff]
    %v1477 = vld [vmem:[#allocation11 + $0x338] sm:$0xff]
    %v1478 = vld [vmem:[#allocation11 + $0x340] sm:$0xff]
    %v1479 = vld [vmem:[#allocation11 + $0x348] sm:$0xff]
    %v1480 = vld [vmem:[#allocation11 + $0x350] sm:$0xff]
    %v1481 = vld [vmem:[#allocation11 + $0x358] sm:$0xff]
    %v1482 = vld [vmem:[#allocation11 + $0x360] sm:$0xff]
    %v1483 = vld [vmem:[#allocation11 + $0x368] sm:$0xff]
    %v1484 = vld [vmem:[#allocation11 + $0x370] sm:$0xff]
    %v1485 = vld [vmem:[#allocation11 + $0x378] sm:$0xff]
    %v1486 = vld [vmem:[#allocation11 + $0x380] sm:$0xff]
    %v1487 = vld [vmem:[#allocation11 + $0x388] sm:$0xff]
    %v1488 = vld [vmem:[#allocation11 + $0x390] sm:$0xff]
    %v1489 = vld [vmem:[#allocation11 + $0x398] sm:$0xff]
    %v1490 = vld [vmem:[#allocation11 + $0x3a0] sm:$0xff]
    %v1491 = vld [vmem:[#allocation11 + $0x3a8] sm:$0xff]
    %v1492 = vld [vmem:[#allocation11 + $0x3b0] sm:$0xff]
    %v1493 = vld [vmem:[#allocation11 + $0x3b8] sm:$0xff]
    %v1494 = vld [vmem:[#allocation11 + $0x3c0] sm:$0xff]
    %v1495 = vld [vmem:[#allocation11 + $0x3c8] sm:$0xff]
    %v1496 = vld [vmem:[#allocation11 + $0x3d0] sm:$0xff]
    %v1497 = vld [vmem:[#allocation11 + $0x3d8] sm:$0xff]
    %v1498 = vld [vmem:[#allocation11 + $0x3e0] sm:$0xff]
    %v1499 = vld [vmem:[#allocation11 + $0x3e8] sm:$0xff]
    %v1500 = vld [vmem:[#allocation11 + $0x3f0] sm:$0xff]
    %v1501 = vld [vmem:[#allocation11 + $0x3f8] sm:$0xff]
    %v1502 = vld [vmem:[#allocation12] sm:$0xff]
    %v1504 = vlaneseq
    %v1505 = vshrl.u32 %v1504, 7
    %v1506 = vsub.s32 0, %v1505
    %v1507 = vrot.slane %v1502, %v1506
    %v1508 = vlaneseq
    %v1509 = vshrl.u32 %v1508, 7
    %v1510 = vsub.s32 1, %v1509
    %v1511 = vrot.slane %v1502, %v1510
    %v1512 = vlaneseq
    %v1513 = vshrl.u32 %v1512, 7
    %v1514 = vsub.s32 2, %v1513
    %v1515 = vrot.slane %v1502, %v1514
    %v1516 = vlaneseq
    %v1517 = vshrl.u32 %v1516, 7
    %v1518 = vsub.s32 3, %v1517
    %v1519 = vrot.slane %v1502, %v1518
    %v1520 = vlaneseq
    %v1521 = vshrl.u32 %v1520, 7
    %v1522 = vsub.s32 4, %v1521
    %v1523 = vrot.slane %v1502, %v1522
    %v1524 = vlaneseq
    %v1525 = vshrl.u32 %v1524, 7
    %v1526 = vsub.s32 5, %v1525
    %v1527 = vrot.slane %v1502, %v1526
    %v1528 = vlaneseq
    %v1529 = vshrl.u32 %v1528, 7
    %v1530 = vsub.s32 6, %v1529
    %v1531 = vrot.slane %v1502, %v1530
    %v1532 = vlaneseq
    %v1533 = vshrl.u32 %v1532, 7
    %v1534 = vsub.s32 7, %v1533
    %v1535 = vrot.slane %v1502, %v1534
    %v1672 = vunpack.c.l.b16 %v1374
    %v1673 = vunpack.c.h.b16 %v1374
    %v1674 = vunpack.c.l.b16 %v1375
    %v1675 = vunpack.c.h.b16 %v1375
    %v1676 = vunpack.c.l.b16 %v1376
    %v1677 = vunpack.c.h.b16 %v1376
    %v1678 = vunpack.c.l.b16 %v1377
    %v1679 = vunpack.c.h.b16 %v1377
    %v1680 = vunpack.c.l.b16 %v1378
    %v1681 = vunpack.c.h.b16 %v1378
    %v1682 = vunpack.c.l.b16 %v1379
    %v1683 = vunpack.c.h.b16 %v1379
    %v1684 = vunpack.c.l.b16 %v1380
    %v1685 = vunpack.c.h.b16 %v1380
    %v1686 = vunpack.c.l.b16 %v1381
    %v1687 = vunpack.c.h.b16 %v1381
    %v1688 = vunpack.c.l.b16 %v1382
    %v1689 = vunpack.c.h.b16 %v1382
    %v1690 = vunpack.c.l.b16 %v1383
    %v1691 = vunpack.c.h.b16 %v1383
    %v1692 = vunpack.c.l.b16 %v1384
    %v1693 = vunpack.c.h.b16 %v1384
    %v1694 = vunpack.c.l.b16 %v1385
    %v1695 = vunpack.c.h.b16 %v1385
    %v1696 = vunpack.c.l.b16 %v1386
    %v1697 = vunpack.c.h.b16 %v1386
    %v1698 = vunpack.c.l.b16 %v1387
    %v1699 = vunpack.c.h.b16 %v1387
    %v1700 = vunpack.c.l.b16 %v1388
    %v1701 = vunpack.c.h.b16 %v1388
    %v1702 = vunpack.c.l.b16 %v1389
    %v1703 = vunpack.c.h.b16 %v1389
    %v1704 = vunpack.c.l.b16 %v1390
    %v1705 = vunpack.c.h.b16 %v1390
    %v1706 = vunpack.c.l.b16 %v1391
    %v1707 = vunpack.c.h.b16 %v1391
    %v1708 = vunpack.c.l.b16 %v1392
    %v1709 = vunpack.c.h.b16 %v1392
    %v1710 = vunpack.c.l.b16 %v1393
    %v1711 = vunpack.c.h.b16 %v1393
    %v1712 = vunpack.c.l.b16 %v1394
    %v1713 = vunpack.c.h.b16 %v1394
    %v1714 = vunpack.c.l.b16 %v1395
    %v1715 = vunpack.c.h.b16 %v1395
    %v1716 = vunpack.c.l.b16 %v1396
    %v1717 = vunpack.c.h.b16 %v1396
    %v1718 = vunpack.c.l.b16 %v1397
    %v1719 = vunpack.c.h.b16 %v1397
    %v1720 = vunpack.c.l.b16 %v1398
    %v1721 = vunpack.c.h.b16 %v1398
    %v1722 = vunpack.c.l.b16 %v1399
    %v1723 = vunpack.c.h.b16 %v1399
    %v1724 = vunpack.c.l.b16 %v1400
    %v1725 = vunpack.c.h.b16 %v1400
    %v1726 = vunpack.c.l.b16 %v1401
    %v1727 = vunpack.c.h.b16 %v1401
    %v1728 = vunpack.c.l.b16 %v1402
    %v1729 = vunpack.c.h.b16 %v1402
    %v1730 = vunpack.c.l.b16 %v1403
    %v1731 = vunpack.c.h.b16 %v1403
    %v1732 = vunpack.c.l.b16 %v1404
    %v1733 = vunpack.c.h.b16 %v1404
    %v1734 = vunpack.c.l.b16 %v1405
    %v1735 = vunpack.c.h.b16 %v1405
    %v1736 = vunpack.c.l.b16 %v1406
    %v1737 = vunpack.c.h.b16 %v1406
    %v1738 = vunpack.c.l.b16 %v1407
    %v1739 = vunpack.c.h.b16 %v1407
    %v1740 = vunpack.c.l.b16 %v1408
    %v1741 = vunpack.c.h.b16 %v1408
    %v1742 = vunpack.c.l.b16 %v1409
    %v1743 = vunpack.c.h.b16 %v1409
    %v1744 = vunpack.c.l.b16 %v1410
    %v1745 = vunpack.c.h.b16 %v1410
    %v1746 = vunpack.c.l.b16 %v1411
    %v1747 = vunpack.c.h.b16 %v1411
    %v1748 = vunpack.c.l.b16 %v1412
    %v1749 = vunpack.c.h.b16 %v1412
    %v1750 = vunpack.c.l.b16 %v1413
    %v1751 = vunpack.c.h.b16 %v1413
    %v1752 = vunpack.c.l.b16 %v1414
    %v1753 = vunpack.c.h.b16 %v1414
    %v1754 = vunpack.c.l.b16 %v1415
    %v1755 = vunpack.c.h.b16 %v1415
    %v1756 = vunpack.c.l.b16 %v1416
    %v1757 = vunpack.c.h.b16 %v1416
    %v1758 = vunpack.c.l.b16 %v1417
    %v1759 = vunpack.c.h.b16 %v1417
    %v1760 = vunpack.c.l.b16 %v1418
    %v1761 = vunpack.c.h.b16 %v1418
    %v1762 = vunpack.c.l.b16 %v1419
    %v1763 = vunpack.c.h.b16 %v1419
    %v1764 = vunpack.c.l.b16 %v1420
    %v1765 = vunpack.c.h.b16 %v1420
    %v1766 = vunpack.c.l.b16 %v1421
    %v1767 = vunpack.c.h.b16 %v1421
    %v1768 = vunpack.c.l.b16 %v1422
    %v1769 = vunpack.c.h.b16 %v1422
    %v1770 = vunpack.c.l.b16 %v1423
    %v1771 = vunpack.c.h.b16 %v1423
    %v1772 = vunpack.c.l.b16 %v1424
    %v1773 = vunpack.c.h.b16 %v1424
    %v1774 = vunpack.c.l.b16 %v1425
    %v1775 = vunpack.c.h.b16 %v1425
    %v1776 = vunpack.c.l.b16 %v1426
    %v1777 = vunpack.c.h.b16 %v1426
    %v1778 = vunpack.c.l.b16 %v1427
    %v1779 = vunpack.c.h.b16 %v1427
    %v1780 = vunpack.c.l.b16 %v1428
    %v1781 = vunpack.c.h.b16 %v1428
    %v1782 = vunpack.c.l.b16 %v1429
    %v1783 = vunpack.c.h.b16 %v1429
    %v1784 = vunpack.c.l.b16 %v1430
    %v1785 = vunpack.c.h.b16 %v1430
    %v1786 = vunpack.c.l.b16 %v1431
    %v1787 = vunpack.c.h.b16 %v1431
    %v1788 = vunpack.c.l.b16 %v1432
    %v1789 = vunpack.c.h.b16 %v1432
    %v1790 = vunpack.c.l.b16 %v1433
    %v1791 = vunpack.c.h.b16 %v1433
    %v1792 = vunpack.c.l.b16 %v1434
    %v1793 = vunpack.c.h.b16 %v1434
    %v1794 = vunpack.c.l.b16 %v1435
    %v1795 = vunpack.c.h.b16 %v1435
    %v1796 = vunpack.c.l.b16 %v1436
    %v1797 = vunpack.c.h.b16 %v1436
    %v1798 = vunpack.c.l.b16 %v1437
    %v1799 = vunpack.c.h.b16 %v1437
    %v1800 = vunpack.c.l.b16 %v1438
    %v1801 = vunpack.c.h.b16 %v1438
    %v1802 = vunpack.c.l.b16 %v1439
    %v1803 = vunpack.c.h.b16 %v1439
    %v1804 = vunpack.c.l.b16 %v1440
    %v1805 = vunpack.c.h.b16 %v1440
    %v1806 = vunpack.c.l.b16 %v1441
    %v1807 = vunpack.c.h.b16 %v1441
    %v1808 = vunpack.c.l.b16 %v1442
    %v1809 = vunpack.c.h.b16 %v1442
    %v1810 = vunpack.c.l.b16 %v1443
    %v1811 = vunpack.c.h.b16 %v1443
    %v1812 = vunpack.c.l.b16 %v1444
    %v1813 = vunpack.c.h.b16 %v1444
    %v1814 = vunpack.c.l.b16 %v1445
    %v1815 = vunpack.c.h.b16 %v1445
    %v1816 = vunpack.c.l.b16 %v1446
    %v1817 = vunpack.c.h.b16 %v1446
    %v1818 = vunpack.c.l.b16 %v1447
    %v1819 = vunpack.c.h.b16 %v1447
    %v1820 = vunpack.c.l.b16 %v1448
    %v1821 = vunpack.c.h.b16 %v1448
    %v1822 = vunpack.c.l.b16 %v1449
    %v1823 = vunpack.c.h.b16 %v1449
    %v1824 = vunpack.c.l.b16 %v1450
    %v1825 = vunpack.c.h.b16 %v1450
    %v1826 = vunpack.c.l.b16 %v1451
    %v1827 = vunpack.c.h.b16 %v1451
    %v1828 = vunpack.c.l.b16 %v1452
    %v1829 = vunpack.c.h.b16 %v1452
    %v1830 = vunpack.c.l.b16 %v1453
    %v1831 = vunpack.c.h.b16 %v1453
    %v1832 = vunpack.c.l.b16 %v1454
    %v1833 = vunpack.c.h.b16 %v1454
    %v1834 = vunpack.c.l.b16 %v1455
    %v1835 = vunpack.c.h.b16 %v1455
    %v1836 = vunpack.c.l.b16 %v1456
    %v1837 = vunpack.c.h.b16 %v1456
    %v1838 = vunpack.c.l.b16 %v1457
    %v1839 = vunpack.c.h.b16 %v1457
    %v1840 = vunpack.c.l.b16 %v1458
    %v1841 = vunpack.c.h.b16 %v1458
    %v1842 = vunpack.c.l.b16 %v1459
    %v1843 = vunpack.c.h.b16 %v1459
    %v1844 = vunpack.c.l.b16 %v1460
    %v1845 = vunpack.c.h.b16 %v1460
    %v1846 = vunpack.c.l.b16 %v1461
    %v1847 = vunpack.c.h.b16 %v1461
    %v1848 = vunpack.c.l.b16 %v1462
    %v1849 = vunpack.c.h.b16 %v1462
    %v1850 = vunpack.c.l.b16 %v1463
    %v1851 = vunpack.c.h.b16 %v1463
    %v1852 = vunpack.c.l.b16 %v1464
    %v1853 = vunpack.c.h.b16 %v1464
    %v1854 = vunpack.c.l.b16 %v1465
    %v1855 = vunpack.c.h.b16 %v1465
    %v1856 = vunpack.c.l.b16 %v1466
    %v1857 = vunpack.c.h.b16 %v1466
    %v1858 = vunpack.c.l.b16 %v1467
    %v1859 = vunpack.c.h.b16 %v1467
    %v1860 = vunpack.c.l.b16 %v1468
    %v1861 = vunpack.c.h.b16 %v1468
    %v1862 = vunpack.c.l.b16 %v1469
    %v1863 = vunpack.c.h.b16 %v1469
    %v1864 = vunpack.c.l.b16 %v1470
    %v1865 = vunpack.c.h.b16 %v1470
    %v1866 = vunpack.c.l.b16 %v1471
    %v1867 = vunpack.c.h.b16 %v1471
    %v1868 = vunpack.c.l.b16 %v1472
    %v1869 = vunpack.c.h.b16 %v1472
    %v1870 = vunpack.c.l.b16 %v1473
    %v1871 = vunpack.c.h.b16 %v1473
    %v1872 = vunpack.c.l.b16 %v1474
    %v1873 = vunpack.c.h.b16 %v1474
    %v1874 = vunpack.c.l.b16 %v1475
    %v1875 = vunpack.c.h.b16 %v1475
    %v1876 = vunpack.c.l.b16 %v1476
    %v1877 = vunpack.c.h.b16 %v1476
    %v1878 = vunpack.c.l.b16 %v1477
    %v1879 = vunpack.c.h.b16 %v1477
    %v1880 = vunpack.c.l.b16 %v1478
    %v1881 = vunpack.c.h.b16 %v1478
    %v1882 = vunpack.c.l.b16 %v1479
    %v1883 = vunpack.c.h.b16 %v1479
    %v1884 = vunpack.c.l.b16 %v1480
    %v1885 = vunpack.c.h.b16 %v1480
    %v1886 = vunpack.c.l.b16 %v1481
    %v1887 = vunpack.c.h.b16 %v1481
    %v1888 = vunpack.c.l.b16 %v1482
    %v1889 = vunpack.c.h.b16 %v1482
    %v1890 = vunpack.c.l.b16 %v1483
    %v1891 = vunpack.c.h.b16 %v1483
    %v1892 = vunpack.c.l.b16 %v1484
    %v1893 = vunpack.c.h.b16 %v1484
    %v1894 = vunpack.c.l.b16 %v1485
    %v1895 = vunpack.c.h.b16 %v1485
    %v1896 = vunpack.c.l.b16 %v1486
    %v1897 = vunpack.c.h.b16 %v1486
    %v1898 = vunpack.c.l.b16 %v1487
    %v1899 = vunpack.c.h.b16 %v1487
    %v1900 = vunpack.c.l.b16 %v1488
    %v1901 = vunpack.c.h.b16 %v1488
    %v1902 = vunpack.c.l.b16 %v1489
    %v1903 = vunpack.c.h.b16 %v1489
    %v1904 = vunpack.c.l.b16 %v1490
    %v1905 = vunpack.c.h.b16 %v1490
    %v1906 = vunpack.c.l.b16 %v1491
    %v1907 = vunpack.c.h.b16 %v1491
    %v1908 = vunpack.c.l.b16 %v1492
    %v1909 = vunpack.c.h.b16 %v1492
    %v1910 = vunpack.c.l.b16 %v1493
    %v1911 = vunpack.c.h.b16 %v1493
    %v1912 = vunpack.c.l.b16 %v1494
    %v1913 = vunpack.c.h.b16 %v1494
    %v1914 = vunpack.c.l.b16 %v1495
    %v1915 = vunpack.c.h.b16 %v1495
    %v1916 = vunpack.c.l.b16 %v1496
    %v1917 = vunpack.c.h.b16 %v1496
    %v1918 = vunpack.c.l.b16 %v1497
    %v1919 = vunpack.c.h.b16 %v1497
    %v1920 = vunpack.c.l.b16 %v1498
    %v1921 = vunpack.c.h.b16 %v1498
    %v1922 = vunpack.c.l.b16 %v1499
    %v1923 = vunpack.c.h.b16 %v1499
    %v1924 = vunpack.c.l.b16 %v1500
    %v1925 = vunpack.c.h.b16 %v1500
    %v1926 = vunpack.c.l.b16 %v1501
    %v1927 = vunpack.c.h.b16 %v1501
    %v1928 = vpack.c.b16 %v1680, %v1672
    %v1929 = vpack.c.b16 %v1681, %v1673
    %v1930 = vpack.c.b16 %v1682, %v1674
    %v1931 = vpack.c.b16 %v1683, %v1675
    %v1932 = vpack.c.b16 %v1684, %v1676
    %v1933 = vpack.c.b16 %v1685, %v1677
    %v1934 = vpack.c.b16 %v1686, %v1678
    %v1935 = vpack.c.b16 %v1687, %v1679
    %v1936 = vpack.c.b16 %v1696, %v1688
    %v1937 = vpack.c.b16 %v1697, %v1689
    %v1938 = vpack.c.b16 %v1698, %v1690
    %v1939 = vpack.c.b16 %v1699, %v1691
    %v1940 = vpack.c.b16 %v1700, %v1692
    %v1941 = vpack.c.b16 %v1701, %v1693
    %v1942 = vpack.c.b16 %v1702, %v1694
    %v1943 = vpack.c.b16 %v1703, %v1695
    %v1944 = vpack.c.b16 %v1712, %v1704
    %v1945 = vpack.c.b16 %v1713, %v1705
    %v1946 = vpack.c.b16 %v1714, %v1706
    %v1947 = vpack.c.b16 %v1715, %v1707
    %v1948 = vpack.c.b16 %v1716, %v1708
    %v1949 = vpack.c.b16 %v1717, %v1709
    %v1950 = vpack.c.b16 %v1718, %v1710
    %v1951 = vpack.c.b16 %v1719, %v1711
    %v1952 = vpack.c.b16 %v1728, %v1720
    %v1953 = vpack.c.b16 %v1729, %v1721
    %v1954 = vpack.c.b16 %v1730, %v1722
    %v1955 = vpack.c.b16 %v1731, %v1723
    %v1956 = vpack.c.b16 %v1732, %v1724
    %v1957 = vpack.c.b16 %v1733, %v1725
    %v1958 = vpack.c.b16 %v1734, %v1726
    %v1959 = vpack.c.b16 %v1735, %v1727
    %v1960 = vpack.c.b16 %v1744, %v1736
    %v1961 = vpack.c.b16 %v1745, %v1737
    %v1962 = vpack.c.b16 %v1746, %v1738
    %v1963 = vpack.c.b16 %v1747, %v1739
    %v1964 = vpack.c.b16 %v1748, %v1740
    %v1965 = vpack.c.b16 %v1749, %v1741
    %v1966 = vpack.c.b16 %v1750, %v1742
    %v1967 = vpack.c.b16 %v1751, %v1743
    %v1968 = vpack.c.b16 %v1760, %v1752
    %v1969 = vpack.c.b16 %v1761, %v1753
    %v1970 = vpack.c.b16 %v1762, %v1754
    %v1971 = vpack.c.b16 %v1763, %v1755
    %v1972 = vpack.c.b16 %v1764, %v1756
    %v1973 = vpack.c.b16 %v1765, %v1757
    %v1974 = vpack.c.b16 %v1766, %v1758
    %v1975 = vpack.c.b16 %v1767, %v1759
    %v1976 = vpack.c.b16 %v1776, %v1768
    %v1977 = vpack.c.b16 %v1777, %v1769
    %v1978 = vpack.c.b16 %v1778, %v1770
    %v1979 = vpack.c.b16 %v1779, %v1771
    %v1980 = vpack.c.b16 %v1780, %v1772
    %v1981 = vpack.c.b16 %v1781, %v1773
    %v1982 = vpack.c.b16 %v1782, %v1774
    %v1983 = vpack.c.b16 %v1783, %v1775
    %v1984 = vpack.c.b16 %v1792, %v1784
    %v1985 = vpack.c.b16 %v1793, %v1785
    %v1986 = vpack.c.b16 %v1794, %v1786
    %v1987 = vpack.c.b16 %v1795, %v1787
    %v1988 = vpack.c.b16 %v1796, %v1788
    %v1989 = vpack.c.b16 %v1797, %v1789
    %v1990 = vpack.c.b16 %v1798, %v1790
    %v1991 = vpack.c.b16 %v1799, %v1791
    %v1992 = vpack.c.b16 %v1808, %v1800
    %v1993 = vpack.c.b16 %v1809, %v1801
    %v1994 = vpack.c.b16 %v1810, %v1802
    %v1995 = vpack.c.b16 %v1811, %v1803
    %v1996 = vpack.c.b16 %v1812, %v1804
    %v1997 = vpack.c.b16 %v1813, %v1805
    %v1998 = vpack.c.b16 %v1814, %v1806
    %v1999 = vpack.c.b16 %v1815, %v1807
    %v2000 = vpack.c.b16 %v1824, %v1816
    %v2001 = vpack.c.b16 %v1825, %v1817
    %v2002 = vpack.c.b16 %v1826, %v1818
    %v2003 = vpack.c.b16 %v1827, %v1819
    %v2004 = vpack.c.b16 %v1828, %v1820
    %v2005 = vpack.c.b16 %v1829, %v1821
    %v2006 = vpack.c.b16 %v1830, %v1822
    %v2007 = vpack.c.b16 %v1831, %v1823
    %v2008 = vpack.c.b16 %v1840, %v1832
    %v2009 = vpack.c.b16 %v1841, %v1833
    %v2010 = vpack.c.b16 %v1842, %v1834
    %v2011 = vpack.c.b16 %v1843, %v1835
    %v2012 = vpack.c.b16 %v1844, %v1836
    %v2013 = vpack.c.b16 %v1845, %v1837
    %v2014 = vpack.c.b16 %v1846, %v1838
    %v2015 = vpack.c.b16 %v1847, %v1839
    %v2016 = vpack.c.b16 %v1856, %v1848
    %v2017 = vpack.c.b16 %v1857, %v1849
    %v2018 = vpack.c.b16 %v1858, %v1850
    %v2019 = vpack.c.b16 %v1859, %v1851
    %v2020 = vpack.c.b16 %v1860, %v1852
    %v2021 = vpack.c.b16 %v1861, %v1853
    %v2022 = vpack.c.b16 %v1862, %v1854
    %v2023 = vpack.c.b16 %v1863, %v1855
    %v2024 = vpack.c.b16 %v1872, %v1864
    %v2025 = vpack.c.b16 %v1873, %v1865
    %v2026 = vpack.c.b16 %v1874, %v1866
    %v2027 = vpack.c.b16 %v1875, %v1867
    %v2028 = vpack.c.b16 %v1876, %v1868
    %v2029 = vpack.c.b16 %v1877, %v1869
    %v2030 = vpack.c.b16 %v1878, %v1870
    %v2031 = vpack.c.b16 %v1879, %v1871
    %v2032 = vpack.c.b16 %v1888, %v1880
    %v2033 = vpack.c.b16 %v1889, %v1881
    %v2034 = vpack.c.b16 %v1890, %v1882
    %v2035 = vpack.c.b16 %v1891, %v1883
    %v2036 = vpack.c.b16 %v1892, %v1884
    %v2037 = vpack.c.b16 %v1893, %v1885
    %v2038 = vpack.c.b16 %v1894, %v1886
    %v2039 = vpack.c.b16 %v1895, %v1887
    %v2040 = vpack.c.b16 %v1904, %v1896
    %v2041 = vpack.c.b16 %v1905, %v1897
    %v2042 = vpack.c.b16 %v1906, %v1898
    %v2043 = vpack.c.b16 %v1907, %v1899
    %v2044 = vpack.c.b16 %v1908, %v1900
    %v2045 = vpack.c.b16 %v1909, %v1901
    %v2046 = vpack.c.b16 %v1910, %v1902
    %v2047 = vpack.c.b16 %v1911, %v1903
    %v2048 = vpack.c.b16 %v1920, %v1912
    %v2049 = vpack.c.b16 %v1921, %v1913
    %v2050 = vpack.c.b16 %v1922, %v1914
    %v2051 = vpack.c.b16 %v1923, %v1915
    %v2052 = vpack.c.b16 %v1924, %v1916
    %v2053 = vpack.c.b16 %v1925, %v1917
    %v2054 = vpack.c.b16 %v1926, %v1918
    %v2055 = vpack.c.b16 %v1927, %v1919
    %2184 = vmatprep.subr.bf16.mxu0 %v1985
    %2185 = vmatpush1.bf16.msra.mxu0 %v1984
    %2186 = vmatprep.subr.bf16.mxu0 %v1977
    %2187 = vmatpush1.bf16.msra.mxu0 %v1976
    %2188 = vmatprep.subr.bf16.mxu0 %v1969
    %2189 = vmatpush1.bf16.msra.mxu0 %v1968
    %2190 = vmatprep.subr.bf16.mxu0 %v1961
    %2191 = vmatpush1.bf16.msra.mxu0 %v1960
    %2192 = vmatprep.subr.bf16.mxu0 %v1953
    %2193 = vmatpush1.bf16.msra.mxu0 %v1952
    %2194 = vmatprep.subr.bf16.mxu0 %v1945
    %2195 = vmatpush1.bf16.msra.mxu0 %v1944
    %2196 = vmatprep.subr.bf16.mxu0 %v1937
    %2197 = vmatpush1.bf16.msra.mxu0 %v1936
    %2198 = vmatprep.subr.bf16.mxu0 %v1929
    %2199 = vmatpush1.bf16.msra.mxu0 %v1928
    %2200 = vmatprep.subr.bf16.mxu0 %v2049
    %2201 = vmatpush2.bf16.msra.mxu0 %v2048
    %2202 = vmatprep.subr.bf16.mxu0 %v2041
    %2203 = vmatpush2.bf16.msra.mxu0 %v2040
    %2204 = vmatprep.subr.bf16.mxu0 %v2033
    %2205 = vmatpush2.bf16.msra.mxu0 %v2032
    %2206 = vmatprep.subr.bf16.mxu0 %v2025
    %2207 = vmatpush2.bf16.msra.mxu0 %v2024
    %2208 = vmatprep.subr.bf16.mxu0 %v2017
    %2209 = vmatpush2.bf16.msra.mxu0 %v2016
    %2210 = vmatprep.subr.bf16.mxu0 %v2009
    %2211 = vmatpush2.bf16.msra.mxu0 %v2008
    %2212 = vmatprep.subr.bf16.mxu0 %v2001
    %2213 = vmatpush2.bf16.msra.mxu0 %v2000
    %2214 = vmatprep.subr.bf16.mxu0 %v1993
    %2215 = vmatpush2.bf16.msra.mxu0 %v1992
    %2216 = vmatprep.mubr.bf16.mxu0 %v1371
    %2217 = vmatmul.mubr.bf16.gmra.mxu0 %v1370
    %v2218 = vpop.f32.mrf.mxu0
    %v2219 = vadd.f32 %v1507, %v2218
    %v2220 = vpop.f32.mrf.mxu0
    %v2221 = vadd.f32 %v1511, %v2220
    %v2222 = vpop.f32.mrf.mxu0
    %v2223 = vadd.f32 %v1507, %v2222
    %v2224 = vpop.f32.mrf.mxu0
    %v2225 = vadd.f32 %v1511, %v2224
    %2226 = vmatprep.mubr.bf16.mxu0 %v1373
    %2227 = vmatmul.mubr.bf16.gmra.mxu0 %v1372
    %v2228 = vpop.f32.mrf.mxu0
    %v2229 = vadd.f32 %v1507, %v2228
    %v2230 = vpop.f32.mrf.mxu0
    %v2231 = vadd.f32 %v1511, %v2230
    %v2232 = vpop.f32.mrf.mxu0
    %v2233 = vadd.f32 %v1507, %v2232
    %v2234 = vpop.f32.mrf.mxu0
    %v2235 = vadd.f32 %v1511, %v2234
    %2236 = vdwg.mxu0
    %2237 = vmatprep.subr.bf16.mxu0 %v1987
    %2238 = vmatpush1.bf16.msra.mxu0 %v1986
    %2239 = vmatprep.subr.bf16.mxu0 %v1979
    %2240 = vmatpush1.bf16.msra.mxu0 %v1978
    %2241 = vmatprep.subr.bf16.mxu0 %v1971
    %2242 = vmatpush1.bf16.msra.mxu0 %v1970
    %2243 = vmatprep.subr.bf16.mxu0 %v1963
    %2244 = vmatpush1.bf16.msra.mxu0 %v1962
    %2245 = vmatprep.subr.bf16.mxu0 %v1955
    %2246 = vmatpush1.bf16.msra.mxu0 %v1954
    %2247 = vmatprep.subr.bf16.mxu0 %v1947
    %2248 = vmatpush1.bf16.msra.mxu0 %v1946
    %2249 = vmatprep.subr.bf16.mxu0 %v1939
    %2250 = vmatpush1.bf16.msra.mxu0 %v1938
    %2251 = vmatprep.subr.bf16.mxu0 %v1931
    %2252 = vmatpush1.bf16.msra.mxu0 %v1930
    %2253 = vmatprep.subr.bf16.mxu0 %v2051
    %2254 = vmatpush2.bf16.msra.mxu0 %v2050
    %2255 = vmatprep.subr.bf16.mxu0 %v2043
    %2256 = vmatpush2.bf16.msra.mxu0 %v2042
    %2257 = vmatprep.subr.bf16.mxu0 %v2035
    %2258 = vmatpush2.bf16.msra.mxu0 %v2034
    %2259 = vmatprep.subr.bf16.mxu0 %v2027
    %2260 = vmatpush2.bf16.msra.mxu0 %v2026
    %2261 = vmatprep.subr.bf16.mxu0 %v2019
    %2262 = vmatpush2.bf16.msra.mxu0 %v2018
    %2263 = vmatprep.subr.bf16.mxu0 %v2011
    %2264 = vmatpush2.bf16.msra.mxu0 %v2010
    %2265 = vmatprep.subr.bf16.mxu0 %v2003
    %2266 = vmatpush2.bf16.msra.mxu0 %v2002
    %2267 = vmatprep.subr.bf16.mxu0 %v1995
    %2268 = vmatpush2.bf16.msra.mxu0 %v1994
    %2269 = vmatprep.mubr.bf16.mxu0 %v1371
    %2270 = vmatmul.mubr.bf16.gmra.mxu0 %v1370
    %v2271 = vpop.f32.mrf.mxu0
    %v2272 = vadd.f32 %v1515, %v2271
    %v2273 = vpop.f32.mrf.mxu0
    %v2274 = vadd.f32 %v1519, %v2273
    %v2275 = vpop.f32.mrf.mxu0
    %v2276 = vadd.f32 %v1515, %v2275
    %v2277 = vpop.f32.mrf.mxu0
    %v2278 = vadd.f32 %v1519, %v2277
    %2279 = vmatprep.mubr.bf16.mxu0 %v1373
    %2280 = vmatmul.mubr.bf16.gmra.mxu0 %v1372
    %v2281 = vpop.f32.mrf.mxu0
    %v2282 = vadd.f32 %v1515, %v2281
    %v2283 = vpop.f32.mrf.mxu0
    %v2284 = vadd.f32 %v1519, %v2283
    %v2285 = vpop.f32.mrf.mxu0
    %v2286 = vadd.f32 %v1515, %v2285
    %v2287 = vpop.f32.mrf.mxu0
    %v2288 = vadd.f32 %v1519, %v2287
    %2289 = vdwg.mxu0
    %2290 = vmatprep.subr.bf16.mxu0 %v1989
    %2291 = vmatpush1.bf16.msra.mxu0 %v1988
    %2292 = vmatprep.subr.bf16.mxu0 %v1981
    %2293 = vmatpush1.bf16.msra.mxu0 %v1980
    %2294 = vmatprep.subr.bf16.mxu0 %v1973
    %2295 = vmatpush1.bf16.msra.mxu0 %v1972
    %2296 = vmatprep.subr.bf16.mxu0 %v1965
    %2297 = vmatpush1.bf16.msra.mxu0 %v1964
    %2298 = vmatprep.subr.bf16.mxu0 %v1957
    %2299 = vmatpush1.bf16.msra.mxu0 %v1956
    %2300 = vmatprep.subr.bf16.mxu0 %v1949
    %2301 = vmatpush1.bf16.msra.mxu0 %v1948
    %2302 = vmatprep.subr.bf16.mxu0 %v1941
    %2303 = vmatpush1.bf16.msra.mxu0 %v1940
    %2304 = vmatprep.subr.bf16.mxu0 %v1933
    %2305 = vmatpush1.bf16.msra.mxu0 %v1932
    %2306 = vmatprep.subr.bf16.mxu0 %v2053
    %2307 = vmatpush2.bf16.msra.mxu0 %v2052
    %2308 = vmatprep.subr.bf16.mxu0 %v2045
    %2309 = vmatpush2.bf16.msra.mxu0 %v2044
    %2310 = vmatprep.subr.bf16.mxu0 %v2037
    %2311 = vmatpush2.bf16.msra.mxu0 %v2036
    %2312 = vmatprep.subr.bf16.mxu0 %v2029
    %2313 = vmatpush2.bf16.msra.mxu0 %v2028
    %2314 = vmatprep.subr.bf16.mxu0 %v2021
    %2315 = vmatpush2.bf16.msra.mxu0 %v2020
    %2316 = vmatprep.subr.bf16.mxu0 %v2013
    %2317 = vmatpush2.bf16.msra.mxu0 %v2012
    %2318 = vmatprep.subr.bf16.mxu0 %v2005
    %2319 = vmatpush2.bf16.msra.mxu0 %v2004
    %2320 = vmatprep.subr.bf16.mxu0 %v1997
    %2321 = vmatpush2.bf16.msra.mxu0 %v1996
    %2322 = vmatprep.mubr.bf16.mxu0 %v1371
    %2323 = vmatmul.mubr.bf16.gmra.mxu0 %v1370
    %v2324 = vpop.f32.mrf.mxu0
    %v2325 = vadd.f32 %v1523, %v2324
    %v2326 = vpop.f32.mrf.mxu0
    %v2327 = vadd.f32 %v1527, %v2326
    %v2328 = vpop.f32.mrf.mxu0
    %v2329 = vadd.f32 %v1523, %v2328
    %v2330 = vpop.f32.mrf.mxu0
    %v2331 = vadd.f32 %v1527, %v2330
    %2332 = vmatprep.mubr.bf16.mxu0 %v1373
    %2333 = vmatmul.mubr.bf16.gmra.mxu0 %v1372
    %v2334 = vpop.f32.mrf.mxu0
    %v2335 = vadd.f32 %v1523, %v2334
    %v2336 = vpop.f32.mrf.mxu0
    %v2337 = vadd.f32 %v1527, %v2336
    %v2338 = vpop.f32.mrf.mxu0
    %v2339 = vadd.f32 %v1523, %v2338
    %v2340 = vpop.f32.mrf.mxu0
    %v2341 = vadd.f32 %v1527, %v2340
    %2342 = vdwg.mxu0
    %2343 = vmatprep.subr.bf16.mxu0 %v1991
    %2344 = vmatpush1.bf16.msra.mxu0 %v1990
    %2345 = vmatprep.subr.bf16.mxu0 %v1983
    %2346 = vmatpush1.bf16.msra.mxu0 %v1982
    %2347 = vmatprep.subr.bf16.mxu0 %v1975
    %2348 = vmatpush1.bf16.msra.mxu0 %v1974
    %2349 = vmatprep.subr.bf16.mxu0 %v1967
    %2350 = vmatpush1.bf16.msra.mxu0 %v1966
    %2351 = vmatprep.subr.bf16.mxu0 %v1959
    %2352 = vmatpush1.bf16.msra.mxu0 %v1958
    %2353 = vmatprep.subr.bf16.mxu0 %v1951
    %2354 = vmatpush1.bf16.msra.mxu0 %v1950
    %2355 = vmatprep.subr.bf16.mxu0 %v1943
    %2356 = vmatpush1.bf16.msra.mxu0 %v1942
    %2357 = vmatprep.subr.bf16.mxu0 %v1935
    %2358 = vmatpush1.bf16.msra.mxu0 %v1934
    %2359 = vmatprep.subr.bf16.mxu0 %v2055
    %2360 = vmatpush2.bf16.msra.mxu0 %v2054
    %2361 = vmatprep.subr.bf16.mxu0 %v2047
    %2362 = vmatpush2.bf16.msra.mxu0 %v2046
    %2363 = vmatprep.subr.bf16.mxu0 %v2039
    %2364 = vmatpush2.bf16.msra.mxu0 %v2038
    %2365 = vmatprep.subr.bf16.mxu0 %v2031
    %2366 = vmatpush2.bf16.msra.mxu0 %v2030
    %2367 = vmatprep.subr.bf16.mxu0 %v2023
    %2368 = vmatpush2.bf16.msra.mxu0 %v2022
    %2369 = vmatprep.subr.bf16.mxu0 %v2015
    %2370 = vmatpush2.bf16.msra.mxu0 %v2014
    %2371 = vmatprep.subr.bf16.mxu0 %v2007
    %2372 = vmatpush2.bf16.msra.mxu0 %v2006
    %2373 = vmatprep.subr.bf16.mxu0 %v1999
    %2374 = vmatpush2.bf16.msra.mxu0 %v1998
    %2375 = vmatprep.mubr.bf16.mxu0 %v1371
    %2376 = vmatmul.mubr.bf16.gmra.mxu0 %v1370
    %v2377 = vpop.f32.mrf.mxu0
    %v2378 = vadd.f32 %v1531, %v2377
    %v2379 = vpop.f32.mrf.mxu0
    %v2380 = vadd.f32 %v1535, %v2379
    %v2381 = vpop.f32.mrf.mxu0
    %v2382 = vadd.f32 %v1531, %v2381
    %v2383 = vpop.f32.mrf.mxu0
    %v2384 = vadd.f32 %v1535, %v2383
    %2385 = vmatprep.mubr.bf16.mxu0 %v1373
    %2386 = vmatmul.mubr.bf16.gmra.mxu0 %v1372
    %v2387 = vpop.f32.mrf.mxu0
    %v2388 = vadd.f32 %v1531, %v2387
    %v2389 = vpop.f32.mrf.mxu0
    %v2390 = vadd.f32 %v1535, %v2389
    %v2391 = vpop.f32.mrf.mxu0
    %v2392 = vadd.f32 %v1531, %v2391
    %v2393 = vpop.f32.mrf.mxu0
    %v2394 = vadd.f32 %v1535, %v2393
    %2395 = vdwg.mxu0
    %2396 = vst [vmem:[#allocation2] sm:$0xff] %v2219
    %2397 = vst [vmem:[#allocation2 + $0x8] sm:$0xff] %v2221
    %2398 = vst [vmem:[#allocation2 + $0x10] sm:$0xff] %v2272
    %2399 = vst [vmem:[#allocation2 + $0x18] sm:$0xff] %v2274
    %2400 = vst [vmem:[#allocation2 + $0x20] sm:$0xff] %v2325
    %2401 = vst [vmem:[#allocation2 + $0x28] sm:$0xff] %v2327
    %2402 = vst [vmem:[#allocation2 + $0x30] sm:$0xff] %v2378
    %2403 = vst [vmem:[#allocation2 + $0x38] sm:$0xff] %v2380
    %2404 = vst [vmem:[#allocation2 + $0x40] sm:$0xff] %v2223
    %2405 = vst [vmem:[#allocation2 + $0x48] sm:$0xff] %v2225
    %2406 = vst [vmem:[#allocation2 + $0x50] sm:$0xff] %v2276
    %2407 = vst [vmem:[#allocation2 + $0x58] sm:$0xff] %v2278
    %2408 = vst [vmem:[#allocation2 + $0x60] sm:$0xff] %v2329
    %2409 = vst [vmem:[#allocation2 + $0x68] sm:$0xff] %v2331
    %2410 = vst [vmem:[#allocation2 + $0x70] sm:$0xff] %v2382
    %2411 = vst [vmem:[#allocation2 + $0x78] sm:$0xff] %v2384
    %2412 = vst [vmem:[#allocation2 + $0x80] sm:$0xff] %v2229
    %2413 = vst [vmem:[#allocation2 + $0x88] sm:$0xff] %v2231
    %2414 = vst [vmem:[#allocation2 + $0x90] sm:$0xff] %v2282
    %2415 = vst [vmem:[#allocation2 + $0x98] sm:$0xff] %v2284
    %2416 = vst [vmem:[#allocation2 + $0xa0] sm:$0xff] %v2335
    %2417 = vst [vmem:[#allocation2 + $0xa8] sm:$0xff] %v2337
    %2418 = vst [vmem:[#allocation2 + $0xb0] sm:$0xff] %v2388
    %2419 = vst [vmem:[#allocation2 + $0xb8] sm:$0xff] %v2390
    %2420 = vst [vmem:[#allocation2 + $0xc0] sm:$0xff] %v2233
    %2421 = vst [vmem:[#allocation2 + $0xc8] sm:$0xff] %v2235
    %2422 = vst [vmem:[#allocation2 + $0xd0] sm:$0xff] %v2286
    %2423 = vst [vmem:[#allocation2 + $0xd8] sm:$0xff] %v2288
    %2424 = vst [vmem:[#allocation2 + $0xe0] sm:$0xff] %v2339
    %2425 = vst [vmem:[#allocation2 + $0xe8] sm:$0xff] %v2341
    %2426 = vst [vmem:[#allocation2 + $0xf0] sm:$0xff] %v2392
    %2427 = vst [vmem:[#allocation2 + $0xf8] sm:$0xff] %v2394
    %2428 = vst [vmem:[#allocation3] sm:$0xff] 0.0
    %2429 = vst [vmem:[#allocation4] sm:$0xff] 0.0
    %2430 = vst [vmem:[#allocation5] sm:$0xff] 0.0
    %2431 = vst [vmem:[#allocation6] sm:$0xff] 0.0
    loop: start=0, step=1, limit=4
    $region125: #{global_module_forward.3} parent=1 // loop_pre_header
      _
    $region126: #{global_module_forward.3} parent=1 // loop_header
      %s2433 = sphi 0, %s2437
      %p2434 = scmp.ge.s32.totalorder %s2433, 4
    $region127: #{global_module_forward.3} parent=1 // loop_header_branch
      %2436 = sbr.rel (%p2434) target = $region131
    $region128: #{global_module_forward.3} parent=1 // loop_body
      %s2438 = smul.u32 %s2433, 8
      %s2439 = sshra.s32 %s2438, 3
      %s2440 = sand.u32 %s2438, 7
      %s2441 = smul.u32 %s2439, 8
      %s2442 = smul.addr %s2441, 8
      %s2443 = scalar_lea.vmem [#allocation2], %s2442
      %v2444 = vld [vmem:[%s2443] sm:$0xff]
      %v2445 = vld [vmem:[%s2443 + $0x8] sm:$0xff]
      %v2446 = vld [vmem:[%s2443 + $0x10] sm:$0xff]
      %v2447 = vld [vmem:[%s2443 + $0x18] sm:$0xff]
      %v2448 = vld [vmem:[#allocation3] sm:$0xff]
      %v2449 = vpack.c.bf16 %v2448, %v2448
      %v2450 = vld [vmem:[#allocation14] sm:$0xff]
      %v2451 = vld [vmem:[#allocation14 + $0x8] sm:$0xff]
      %v2452 = vld [vmem:[#allocation14 + $0x10] sm:$0xff]
      %v2453 = vld [vmem:[#allocation14 + $0x18] sm:$0xff]
      %v2454 = vld [vmem:[#allocation14 + $0x20] sm:$0xff]
      %v2455 = vld [vmem:[#allocation14 + $0x28] sm:$0xff]
      %v2456 = vld [vmem:[#allocation14 + $0x30] sm:$0xff]
      %v2457 = vld [vmem:[#allocation14 + $0x38] sm:$0xff]
      %v2458 = vld [vmem:[#allocation14 + $0x40] sm:$0xff]
      %v2459 = vld [vmem:[#allocation14 + $0x48] sm:$0xff]
      %v2460 = vld [vmem:[#allocation14 + $0x50] sm:$0xff]
      %v2461 = vld [vmem:[#allocation14 + $0x58] sm:$0xff]
      %v2462 = vld [vmem:[#allocation14 + $0x60] sm:$0xff]
      %v2463 = vld [vmem:[#allocation14 + $0x68] sm:$0xff]
      %v2464 = vld [vmem:[#allocation14 + $0x70] sm:$0xff]
      %v2465 = vld [vmem:[#allocation14 + $0x78] sm:$0xff]
      %v2466 = vld [vmem:[#allocation14 + $0x80] sm:$0xff]
      %v2467 = vld [vmem:[#allocation14 + $0x88] sm:$0xff]
      %v2468 = vld [vmem:[#allocation14 + $0x90] sm:$0xff]
      %v2469 = vld [vmem:[#allocation14 + $0x98] sm:$0xff]
      %v2470 = vld [vmem:[#allocation14 + $0xa0] sm:$0xff]
      %v2471 = vld [vmem:[#allocation14 + $0xa8] sm:$0xff]
      %v2472 = vld [vmem:[#allocation14 + $0xb0] sm:$0xff]
      %v2473 = vld [vmem:[#allocation14 + $0xb8] sm:$0xff]
      %v2474 = vld [vmem:[#allocation14 + $0xc0] sm:$0xff]
      %v2475 = vld [vmem:[#allocation14 + $0xc8] sm:$0xff]
      %v2476 = vld [vmem:[#allocation14 + $0xd0] sm:$0xff]
      %v2477 = vld [vmem:[#allocation14 + $0xd8] sm:$0xff]
      %v2478 = vld [vmem:[#allocation14 + $0xe0] sm:$0xff]
      %v2479 = vld [vmem:[#allocation14 + $0xe8] sm:$0xff]
      %v2480 = vld [vmem:[#allocation14 + $0xf0] sm:$0xff]
      %v2481 = vld [vmem:[#allocation14 + $0xf8] sm:$0xff]
      %v2514 = vunpack.c.l.b16 %v2450
      %v2515 = vunpack.c.h.b16 %v2450
      %v2516 = vunpack.c.l.b16 %v2451
      %v2517 = vunpack.c.h.b16 %v2451
      %v2518 = vunpack.c.l.b16 %v2452
      %v2519 = vunpack.c.h.b16 %v2452
      %v2520 = vunpack.c.l.b16 %v2453
      %v2521 = vunpack.c.h.b16 %v2453
      %v2522 = vunpack.c.l.b16 %v2454
      %v2523 = vunpack.c.h.b16 %v2454
      %v2524 = vunpack.c.l.b16 %v2455
      %v2525 = vunpack.c.h.b16 %v2455
      %v2526 = vunpack.c.l.b16 %v2456
      %v2527 = vunpack.c.h.b16 %v2456
      %v2528 = vunpack.c.l.b16 %v2457
      %v2529 = vunpack.c.h.b16 %v2457
      %v2530 = vunpack.c.l.b16 %v2458
      %v2531 = vunpack.c.h.b16 %v2458
      %v2532 = vunpack.c.l.b16 %v2459
      %v2533 = vunpack.c.h.b16 %v2459
      %v2534 = vunpack.c.l.b16 %v2460
      %v2535 = vunpack.c.h.b16 %v2460
      %v2536 = vunpack.c.l.b16 %v2461
      %v2537 = vunpack.c.h.b16 %v2461
      %v2538 = vunpack.c.l.b16 %v2462
      %v2539 = vunpack.c.h.b16 %v2462
      %v2540 = vunpack.c.l.b16 %v2463
      %v2541 = vunpack.c.h.b16 %v2463
      %v2542 = vunpack.c.l.b16 %v2464
      %v2543 = vunpack.c.h.b16 %v2464
      %v2544 = vunpack.c.l.b16 %v2465
      %v2545 = vunpack.c.h.b16 %v2465
      %v2546 = vunpack.c.l.b16 %v2466
      %v2547 = vunpack.c.h.b16 %v2466
      %v2548 = vunpack.c.l.b16 %v2467
      %v2549 = vunpack.c.h.b16 %v2467
      %v2550 = vunpack.c.l.b16 %v2468
      %v2551 = vunpack.c.h.b16 %v2468
      %v2552 = vunpack.c.l.b16 %v2469
      %v2553 = vunpack.c.h.b16 %v2469
      %v2554 = vunpack.c.l.b16 %v2470
      %v2555 = vunpack.c.h.b16 %v2470
      %v2556 = vunpack.c.l.b16 %v2471
      %v2557 = vunpack.c.h.b16 %v2471
      %v2558 = vunpack.c.l.b16 %v2472
      %v2559 = vunpack.c.h.b16 %v2472
      %v2560 = vunpack.c.l.b16 %v2473
      %v2561 = vunpack.c.h.b16 %v2473
      %v2562 = vunpack.c.l.b16 %v2474
      %v2563 = vunpack.c.h.b16 %v2474
      %v2564 = vunpack.c.l.b16 %v2475
      %v2565 = vunpack.c.h.b16 %v2475
      %v2566 = vunpack.c.l.b16 %v2476
      %v2567 = vunpack.c.h.b16 %v2476
      %v2568 = vunpack.c.l.b16 %v2477
      %v2569 = vunpack.c.h.b16 %v2477
      %v2570 = vunpack.c.l.b16 %v2478
      %v2571 = vunpack.c.h.b16 %v2478
      %v2572 = vunpack.c.l.b16 %v2479
      %v2573 = vunpack.c.h.b16 %v2479
      %v2574 = vunpack.c.l.b16 %v2480
      %v2575 = vunpack.c.h.b16 %v2480
      %v2576 = vunpack.c.l.b16 %v2481
      %v2577 = vunpack.c.h.b16 %v2481
      %v2578 = vpack.c.b16 %v2518, %v2514
      %v2579 = vpack.c.b16 %v2519, %v2515
      %v2580 = vpack.c.b16 %v2520, %v2516
      %v2581 = vpack.c.b16 %v2521, %v2517
      %v2582 = vpack.c.b16 %v2526, %v2522
      %v2583 = vpack.c.b16 %v2527, %v2523
      %v2584 = vpack.c.b16 %v2528, %v2524
      %v2585 = vpack.c.b16 %v2529, %v2525
      %v2586 = vpack.c.b16 %v2534, %v2530
      %v2587 = vpack.c.b16 %v2535, %v2531
      %v2588 = vpack.c.b16 %v2536, %v2532
      %v2589 = vpack.c.b16 %v2537, %v2533
      %v2590 = vpack.c.b16 %v2542, %v2538
      %v2591 = vpack.c.b16 %v2543, %v2539
      %v2592 = vpack.c.b16 %v2544, %v2540
      %v2593 = vpack.c.b16 %v2545, %v2541
      %v2594 = vpack.c.b16 %v2550, %v2546
      %v2595 = vpack.c.b16 %v2551, %v2547
      %v2596 = vpack.c.b16 %v2552, %v2548
      %v2597 = vpack.c.b16 %v2553, %v2549
      %v2598 = vpack.c.b16 %v2558, %v2554
      %v2599 = vpack.c.b16 %v2559, %v2555
      %v2600 = vpack.c.b16 %v2560, %v2556
      %v2601 = vpack.c.b16 %v2561, %v2557
      %v2602 = vpack.c.b16 %v2566, %v2562
      %v2603 = vpack.c.b16 %v2567, %v2563
      %v2604 = vpack.c.b16 %v2568, %v2564
      %v2605 = vpack.c.b16 %v2569, %v2565
      %v2606 = vpack.c.b16 %v2574, %v2570
      %v2607 = vpack.c.b16 %v2575, %v2571
      %v2608 = vpack.c.b16 %v2576, %v2572
      %v2609 = vpack.c.b16 %v2577, %v2573
      %2642 = vmatprep.subr.bf16.mxu0 %v2607
      %2643 = vmatpush1.bf16.msra.mxu0 %v2606
      %2644 = vmatprep.subr.bf16.mxu0 %v2603
      %2645 = vmatpush1.bf16.msra.mxu0 %v2602
      %2646 = vmatprep.subr.bf16.mxu0 %v2599
      %2647 = vmatpush1.bf16.msra.mxu0 %v2598
      %2648 = vmatprep.subr.bf16.mxu0 %v2595
      %2649 = vmatpush1.bf16.msra.mxu0 %v2594
      %2650 = vmatprep.subr.bf16.mxu0 %v2591
      %2651 = vmatpush1.bf16.msra.mxu0 %v2590
      %2652 = vmatprep.subr.bf16.mxu0 %v2587
      %2653 = vmatpush1.bf16.msra.mxu0 %v2586
      %2654 = vmatprep.subr.bf16.mxu0 %v2583
      %2655 = vmatpush1.bf16.msra.mxu0 %v2582
      %2656 = vmatprep.subr.bf16.mxu0 %v2579
      %2657 = vmatpush1.bf16.msra.mxu0 %v2578
      %2658 = vmatprep.subr.bf16.mxu0 0
      %2659 = vmatpush2.bf16.msra.mxu0 0
      %2660 = vmatprep.subr.bf16.mxu0 0
      %2661 = vmatpush2.bf16.msra.mxu0 0
      %2662 = vmatprep.subr.bf16.mxu0 0
      %2663 = vmatpush2.bf16.msra.mxu0 0
      %2664 = vmatprep.subr.bf16.mxu0 0
      %2665 = vmatpush2.bf16.msra.mxu0 0
      %2666 = vmatprep.subr.bf16.mxu0 0
      %2667 = vmatpush2.bf16.msra.mxu0 0
      %2668 = vmatprep.subr.bf16.mxu0 0
      %2669 = vmatpush2.bf16.msra.mxu0 0
      %2670 = vmatprep.subr.bf16.mxu0 0
      %2671 = vmatpush2.bf16.msra.mxu0 0
      %2672 = vmatprep.subr.bf16.mxu0 0
      %2673 = vmatpush2.bf16.msra.mxu0 0
      %2674 = vmatprep.mubr.bf16.mxu0 0
      %2675 = vmatmul.mubr.bf16.gmra.mxu0 %v2449
      %v2676 = vpop.f32.mrf.mxu0
      %v2677 = vadd.f32 0.0, %v2676
      %v2678 = vpop.f32.mrf.mxu0
      %v2679 = vadd.f32 0.0, %v2678
      %v2680 = vpop.f32.mrf.mxu0
      %v2681 = vpop.f32.mrf.mxu0
      %2682 = vdwg.mxu0
      %2683 = vmatprep.subr.bf16.mxu0 %v2609
      %2684 = vmatpush1.bf16.msra.mxu0 %v2608
      %2685 = vmatprep.subr.bf16.mxu0 %v2605
      %2686 = vmatpush1.bf16.msra.mxu0 %v2604
      %2687 = vmatprep.subr.bf16.mxu0 %v2601
      %2688 = vmatpush1.bf16.msra.mxu0 %v2600
      %2689 = vmatprep.subr.bf16.mxu0 %v2597
      %2690 = vmatpush1.bf16.msra.mxu0 %v2596
      %2691 = vmatprep.subr.bf16.mxu0 %v2593
      %2692 = vmatpush1.bf16.msra.mxu0 %v2592
      %2693 = vmatprep.subr.bf16.mxu0 %v2589
      %2694 = vmatpush1.bf16.msra.mxu0 %v2588
      %2695 = vmatprep.subr.bf16.mxu0 %v2585
      %2696 = vmatpush1.bf16.msra.mxu0 %v2584
      %2697 = vmatprep.subr.bf16.mxu0 %v2581
      %2698 = vmatpush1.bf16.msra.mxu0 %v2580
      %2699 = vmatprep.subr.bf16.mxu0 0
      %2700 = vmatpush2.bf16.msra.mxu0 0
      %2701 = vmatprep.subr.bf16.mxu0 0
      %2702 = vmatpush2.bf16.msra.mxu0 0
      %2703 = vmatprep.subr.bf16.mxu0 0
      %2704 = vmatpush2.bf16.msra.mxu0 0
      %2705 = vmatprep.subr.bf16.mxu0 0
      %2706 = vmatpush2.bf16.msra.mxu0 0
      %2707 = vmatprep.subr.bf16.mxu0 0
      %2708 = vmatpush2.bf16.msra.mxu0 0
      %2709 = vmatprep.subr.bf16.mxu0 0
      %2710 = vmatpush2.bf16.msra.mxu0 0
      %2711 = vmatprep.subr.bf16.mxu0 0
      %2712 = vmatpush2.bf16.msra.mxu0 0
      %2713 = vmatprep.subr.bf16.mxu0 0
      %2714 = vmatpush2.bf16.msra.mxu0 0
      %2715 = vmatprep.mubr.bf16.mxu0 0
      %2716 = vmatmul.mubr.bf16.gmra.mxu0 %v2449
      %v2717 = vpop.f32.mrf.mxu0
      %v2718 = vadd.f32 0.0, %v2717
      %v2719 = vpop.f32.mrf.mxu0
      %v2720 = vadd.f32 0.0, %v2719
      %v2721 = vpop.f32.mrf.mxu0
      %v2722 = vpop.f32.mrf.mxu0
      %2723 = vdwg.mxu0
      %v2724 = vadd.f32 %v2444, %v2677
      %v2725 = vadd.f32 %v2445, %v2679
      %v2726 = vadd.f32 %v2446, %v2718
      %v2727 = vadd.f32 %v2447, %v2720
      %v2728 = vld [vmem:[#allocation4] sm:$0xff]
      %v2729 = vxor.u32 %v2724, 2147483648
      %v2730 = vmul.f32 %v2729, 1.442695
      %v2731 = vpow.pop %v2730
      %v2732 = vadd.f32 %v2731, 1.0
      %v2733 = vrcp.pop %v2732
      %v2734 = vmul.f32 1.0, %v2733
      %v2735 = vxor.u32 %v2725, 2147483648
      %v2736 = vmul.f32 %v2735, 1.442695
      %v2737 = vpow.pop %v2736
      %v2738 = vadd.f32 %v2737, 1.0
      %v2739 = vrcp.pop %v2738
      %v2740 = vmul.f32 1.0, %v2739
      %v2741 = vtanh.pop %v2726
      %v2742 = vxor.u32 %v2727, 2147483648
      %v2743 = vmul.f32 %v2742, 1.442695
      %v2744 = vpow.pop %v2743
      %v2745 = vadd.f32 %v2744, 1.0
      %v2746 = vrcp.pop %v2745
      %v2747 = vmul.f32 1.0, %v2746
      %v2748 = vmul.f32 %v2740, %v2728
      %v2749 = vmul.f32 %v2734, %v2741
      %v2750 = vadd.f32 %v2748, %v2749
      %v2751 = vtanh.pop %v2750
      %v2752 = vmul.f32 %v2747, %v2751
      %2753 = vst [vmem:[#allocation3] sm:$0xff] %v2752
      %2754 = vst [vmem:[#allocation4] sm:$0xff] %v2750
      %s2755 = smul.u32 %s2439, 2
      %s2756 = smul.addr %s2755, 8
      %s2757 = scalar_lea.vmem %s17, %s2756
      %2758 = vst [vmem:[%s2757] sm:$0xff] %v2752
      %s2759 = ssub.s32 3, %s2433
      %s2760 = smul.u32 %s2759, 8
      %s2761 = sshra.s32 %s2760, 3
      %s2762 = sand.u32 %s2760, 7
      %s2763 = smul.u32 %s2761, 8
      %s2764 = smul.addr %s2763, 8
      %s2765 = scalar_lea.vmem [#allocation2], %s2764
      %v2766 = vld [vmem:[%s2765 + $0x20] sm:$0xff]
      %v2767 = vld [vmem:[%s2765 + $0x28] sm:$0xff]
      %v2768 = vld [vmem:[%s2765 + $0x30] sm:$0xff]
      %v2769 = vld [vmem:[%s2765 + $0x38] sm:$0xff]
      %v2770 = vld [vmem:[#allocation5] sm:$0xff]
      %v2771 = vpack.c.bf16 %v2770, %v2770
      %v2772 = vld [vmem:[#allocation15] sm:$0xff]
      %v2773 = vld [vmem:[#allocation15 + $0x8] sm:$0xff]
      %v2774 = vld [vmem:[#allocation15 + $0x10] sm:$0xff]
      %v2775 = vld [vmem:[#allocation15 + $0x18] sm:$0xff]
      %v2776 = vld [vmem:[#allocation15 + $0x20] sm:$0xff]
      %v2777 = vld [vmem:[#allocation15 + $0x28] sm:$0xff]
      %v2778 = vld [vmem:[#allocation15 + $0x30] sm:$0xff]
      %v2779 = vld [vmem:[#allocation15 + $0x38] sm:$0xff]
      %v2780 = vld [vmem:[#allocation15 + $0x40] sm:$0xff]
      %v2781 = vld [vmem:[#allocation15 + $0x48] sm:$0xff]
      %v2782 = vld [vmem:[#allocation15 + $0x50] sm:$0xff]
      %v2783 = vld [vmem:[#allocation15 + $0x58] sm:$0xff]
      %v2784 = vld [vmem:[#allocation15 + $0x60] sm:$0xff]
      %v2785 = vld [vmem:[#allocation15 + $0x68] sm:$0xff]
      %v2786 = vld [vmem:[#allocation15 + $0x70] sm:$0xff]
      %v2787 = vld [vmem:[#allocation15 + $0x78] sm:$0xff]
      %v2788 = vld [vmem:[#allocation15 + $0x80] sm:$0xff]
      %v2789 = vld [vmem:[#allocation15 + $0x88] sm:$0xff]
      %v2790 = vld [vmem:[#allocation15 + $0x90] sm:$0xff]
      %v2791 = vld [vmem:[#allocation15 + $0x98] sm:$0xff]
      %v2792 = vld [vmem:[#allocation15 + $0xa0] sm:$0xff]
      %v2793 = vld [vmem:[#allocation15 + $0xa8] sm:$0xff]
      %v2794 = vld [vmem:[#allocation15 + $0xb0] sm:$0xff]
      %v2795 = vld [vmem:[#allocation15 + $0xb8] sm:$0xff]
      %v2796 = vld [vmem:[#allocation15 + $0xc0] sm:$0xff]
      %v2797 = vld [vmem:[#allocation15 + $0xc8] sm:$0xff]
      %v2798 = vld [vmem:[#allocation15 + $0xd0] sm:$0xff]
      %v2799 = vld [vmem:[#allocation15 + $0xd8] sm:$0xff]
      %v2800 = vld [vmem:[#allocation15 + $0xe0] sm:$0xff]
      %v2801 = vld [vmem:[#allocation15 + $0xe8] sm:$0xff]
      %v2802 = vld [vmem:[#allocation15 + $0xf0] sm:$0xff]
      %v2803 = vld [vmem:[#allocation15 + $0xf8] sm:$0xff]
      %v2836 = vunpack.c.l.b16 %v2772
      %v2837 = vunpack.c.h.b16 %v2772
      %v2838 = vunpack.c.l.b16 %v2773
      %v2839 = vunpack.c.h.b16 %v2773
      %v2840 = vunpack.c.l.b16 %v2774
      %v2841 = vunpack.c.h.b16 %v2774
      %v2842 = vunpack.c.l.b16 %v2775
      %v2843 = vunpack.c.h.b16 %v2775
      %v2844 = vunpack.c.l.b16 %v2776
      %v2845 = vunpack.c.h.b16 %v2776
      %v2846 = vunpack.c.l.b16 %v2777
      %v2847 = vunpack.c.h.b16 %v2777
      %v2848 = vunpack.c.l.b16 %v2778
      %v2849 = vunpack.c.h.b16 %v2778
      %v2850 = vunpack.c.l.b16 %v2779
      %v2851 = vunpack.c.h.b16 %v2779
      %v2852 = vunpack.c.l.b16 %v2780
      %v2853 = vunpack.c.h.b16 %v2780
      %v2854 = vunpack.c.l.b16 %v2781
      %v2855 = vunpack.c.h.b16 %v2781
      %v2856 = vunpack.c.l.b16 %v2782
      %v2857 = vunpack.c.h.b16 %v2782
      %v2858 = vunpack.c.l.b16 %v2783
      %v2859 = vunpack.c.h.b16 %v2783
      %v2860 = vunpack.c.l.b16 %v2784
      %v2861 = vunpack.c.h.b16 %v2784
      %v2862 = vunpack.c.l.b16 %v2785
      %v2863 = vunpack.c.h.b16 %v2785
      %v2864 = vunpack.c.l.b16 %v2786
      %v2865 = vunpack.c.h.b16 %v2786
      %v2866 = vunpack.c.l.b16 %v2787
      %v2867 = vunpack.c.h.b16 %v2787
      %v2868 = vunpack.c.l.b16 %v2788
      %v2869 = vunpack.c.h.b16 %v2788
      %v2870 = vunpack.c.l.b16 %v2789
      %v2871 = vunpack.c.h.b16 %v2789
      %v2872 = vunpack.c.l.b16 %v2790
      %v2873 = vunpack.c.h.b16 %v2790
      %v2874 = vunpack.c.l.b16 %v2791
      %v2875 = vunpack.c.h.b16 %v2791
      %v2876 = vunpack.c.l.b16 %v2792
      %v2877 = vunpack.c.h.b16 %v2792
      %v2878 = vunpack.c.l.b16 %v2793
      %v2879 = vunpack.c.h.b16 %v2793
      %v2880 = vunpack.c.l.b16 %v2794
      %v2881 = vunpack.c.h.b16 %v2794
      %v2882 = vunpack.c.l.b16 %v2795
      %v2883 = vunpack.c.h.b16 %v2795
      %v2884 = vunpack.c.l.b16 %v2796
      %v2885 = vunpack.c.h.b16 %v2796
      %v2886 = vunpack.c.l.b16 %v2797
      %v2887 = vunpack.c.h.b16 %v2797
      %v2888 = vunpack.c.l.b16 %v2798
      %v2889 = vunpack.c.h.b16 %v2798
      %v2890 = vunpack.c.l.b16 %v2799
      %v2891 = vunpack.c.h.b16 %v2799
      %v2892 = vunpack.c.l.b16 %v2800
      %v2893 = vunpack.c.h.b16 %v2800
      %v2894 = vunpack.c.l.b16 %v2801
      %v2895 = vunpack.c.h.b16 %v2801
      %v2896 = vunpack.c.l.b16 %v2802
      %v2897 = vunpack.c.h.b16 %v2802
      %v2898 = vunpack.c.l.b16 %v2803
      %v2899 = vunpack.c.h.b16 %v2803
      %v2900 = vpack.c.b16 %v2840, %v2836
      %v2901 = vpack.c.b16 %v2841, %v2837
      %v2902 = vpack.c.b16 %v2842, %v2838
      %v2903 = vpack.c.b16 %v2843, %v2839
      %v2904 = vpack.c.b16 %v2848, %v2844
      %v2905 = vpack.c.b16 %v2849, %v2845
      %v2906 = vpack.c.b16 %v2850, %v2846
      %v2907 = vpack.c.b16 %v2851, %v2847
      %v2908 = vpack.c.b16 %v2856, %v2852
      %v2909 = vpack.c.b16 %v2857, %v2853
      %v2910 = vpack.c.b16 %v2858, %v2854
      %v2911 = vpack.c.b16 %v2859, %v2855
      %v2912 = vpack.c.b16 %v2864, %v2860
      %v2913 = vpack.c.b16 %v2865, %v2861
      %v2914 = vpack.c.b16 %v2866, %v2862
      %v2915 = vpack.c.b16 %v2867, %v2863
      %v2916 = vpack.c.b16 %v2872, %v2868
      %v2917 = vpack.c.b16 %v2873, %v2869
      %v2918 = vpack.c.b16 %v2874, %v2870
      %v2919 = vpack.c.b16 %v2875, %v2871
      %v2920 = vpack.c.b16 %v2880, %v2876
      %v2921 = vpack.c.b16 %v2881, %v2877
      %v2922 = vpack.c.b16 %v2882, %v2878
      %v2923 = vpack.c.b16 %v2883, %v2879
      %v2924 = vpack.c.b16 %v2888, %v2884
      %v2925 = vpack.c.b16 %v2889, %v2885
      %v2926 = vpack.c.b16 %v2890, %v2886
      %v2927 = vpack.c.b16 %v2891, %v2887
      %v2928 = vpack.c.b16 %v2896, %v2892
      %v2929 = vpack.c.b16 %v2897, %v2893
      %v2930 = vpack.c.b16 %v2898, %v2894
      %v2931 = vpack.c.b16 %v2899, %v2895
      %2964 = vmatprep.subr.bf16.mxu0 %v2929
      %2965 = vmatpush1.bf16.msra.mxu0 %v2928
      %2966 = vmatprep.subr.bf16.mxu0 %v2925
      %2967 = vmatpush1.bf16.msra.mxu0 %v2924
      %2968 = vmatprep.subr.bf16.mxu0 %v2921
      %2969 = vmatpush1.bf16.msra.mxu0 %v2920
      %2970 = vmatprep.subr.bf16.mxu0 %v2917
      %2971 = vmatpush1.bf16.msra.mxu0 %v2916
      %2972 = vmatprep.subr.bf16.mxu0 %v2913
      %2973 = vmatpush1.bf16.msra.mxu0 %v2912
      %2974 = vmatprep.subr.bf16.mxu0 %v2909
      %2975 = vmatpush1.bf16.msra.mxu0 %v2908
      %2976 = vmatprep.subr.bf16.mxu0 %v2905
      %2977 = vmatpush1.bf16.msra.mxu0 %v2904
      %2978 = vmatprep.subr.bf16.mxu0 %v2901
      %2979 = vmatpush1.bf16.msra.mxu0 %v2900
      %2980 = vmatprep.subr.bf16.mxu0 0
      %2981 = vmatpush2.bf16.msra.mxu0 0
      %2982 = vmatprep.subr.bf16.mxu0 0
      %2983 = vmatpush2.bf16.msra.mxu0 0
      %2984 = vmatprep.subr.bf16.mxu0 0
      %2985 = vmatpush2.bf16.msra.mxu0 0
      %2986 = vmatprep.subr.bf16.mxu0 0
      %2987 = vmatpush2.bf16.msra.mxu0 0
      %2988 = vmatprep.subr.bf16.mxu0 0
      %2989 = vmatpush2.bf16.msra.mxu0 0
      %2990 = vmatprep.subr.bf16.mxu0 0
      %2991 = vmatpush2.bf16.msra.mxu0 0
      %2992 = vmatprep.subr.bf16.mxu0 0
      %2993 = vmatpush2.bf16.msra.mxu0 0
      %2994 = vmatprep.subr.bf16.mxu0 0
      %2995 = vmatpush2.bf16.msra.mxu0 0
      %2996 = vmatprep.mubr.bf16.mxu0 0
      %2997 = vmatmul.mubr.bf16.gmra.mxu0 %v2771
      %v2998 = vpop.f32.mrf.mxu0
      %v2999 = vadd.f32 0.0, %v2998
      %v3000 = vpop.f32.mrf.mxu0
      %v3001 = vadd.f32 0.0, %v3000
      %v3002 = vpop.f32.mrf.mxu0
      %v3003 = vpop.f32.mrf.mxu0
      %3004 = vdwg.mxu0
      %3005 = vmatprep.subr.bf16.mxu0 %v2931
      %3006 = vmatpush1.bf16.msra.mxu0 %v2930
      %3007 = vmatprep.subr.bf16.mxu0 %v2927
      %3008 = vmatpush1.bf16.msra.mxu0 %v2926
      %3009 = vmatprep.subr.bf16.mxu0 %v2923
      %3010 = vmatpush1.bf16.msra.mxu0 %v2922
      %3011 = vmatprep.subr.bf16.mxu0 %v2919
      %3012 = vmatpush1.bf16.msra.mxu0 %v2918
      %3013 = vmatprep.subr.bf16.mxu0 %v2915
      %3014 = vmatpush1.bf16.msra.mxu0 %v2914
      %3015 = vmatprep.subr.bf16.mxu0 %v2911
      %3016 = vmatpush1.bf16.msra.mxu0 %v2910
      %3017 = vmatprep.subr.bf16.mxu0 %v2907
      %3018 = vmatpush1.bf16.msra.mxu0 %v2906
      %3019 = vmatprep.subr.bf16.mxu0 %v2903
      %3020 = vmatpush1.bf16.msra.mxu0 %v2902
      %3021 = vmatprep.subr.bf16.mxu0 0
      %3022 = vmatpush2.bf16.msra.mxu0 0
      %3023 = vmatprep.subr.bf16.mxu0 0
      %3024 = vmatpush2.bf16.msra.mxu0 0
      %3025 = vmatprep.subr.bf16.mxu0 0
      %3026 = vmatpush2.bf16.msra.mxu0 0
      %3027 = vmatprep.subr.bf16.mxu0 0
      %3028 = vmatpush2.bf16.msra.mxu0 0
      %3029 = vmatprep.subr.bf16.mxu0 0
      %3030 = vmatpush2.bf16.msra.mxu0 0
      %3031 = vmatprep.subr.bf16.mxu0 0
      %3032 = vmatpush2.bf16.msra.mxu0 0
      %3033 = vmatprep.subr.bf16.mxu0 0
      %3034 = vmatpush2.bf16.msra.mxu0 0
      %3035 = vmatprep.subr.bf16.mxu0 0
      %3036 = vmatpush2.bf16.msra.mxu0 0
      %3037 = vmatprep.mubr.bf16.mxu0 0
      %3038 = vmatmul.mubr.bf16.gmra.mxu0 %v2771
      %v3039 = vpop.f32.mrf.mxu0
      %v3040 = vadd.f32 0.0, %v3039
      %v3041 = vpop.f32.mrf.mxu0
      %v3042 = vadd.f32 0.0, %v3041
      %v3043 = vpop.f32.mrf.mxu0
      %v3044 = vpop.f32.mrf.mxu0
      %3045 = vdwg.mxu0
      %v3046 = vadd.f32 %v2766, %v2999
      %v3047 = vadd.f32 %v2767, %v3001
      %v3048 = vadd.f32 %v2768, %v3040
      %v3049 = vadd.f32 %v2769, %v3042
      %v3050 = vld [vmem:[#allocation6] sm:$0xff]
      %v3051 = vxor.u32 %v3046, 2147483648
      %v3052 = vmul.f32 %v3051, 1.442695
      %v3053 = vpow.pop %v3052
      %v3054 = vadd.f32 %v3053, 1.0
      %v3055 = vrcp.pop %v3054
      %v3056 = vmul.f32 1.0, %v3055
      %v3057 = vxor.u32 %v3047, 2147483648
      %v3058 = vmul.f32 %v3057, 1.442695
      %v3059 = vpow.pop %v3058
      %v3060 = vadd.f32 %v3059, 1.0
      %v3061 = vrcp.pop %v3060
      %v3062 = vmul.f32 1.0, %v3061
      %v3063 = vtanh.pop %v3048
      %v3064 = vxor.u32 %v3049, 2147483648
      %v3065 = vmul.f32 %v3064, 1.442695
      %v3066 = vpow.pop %v3065
      %v3067 = vadd.f32 %v3066, 1.0
      %v3068 = vrcp.pop %v3067
      %v3069 = vmul.f32 1.0, %v3068
      %v3070 = vmul.f32 %v3062, %v3050
      %v3071 = vmul.f32 %v3056, %v3063
      %v3072 = vadd.f32 %v3070, %v3071
      %v3073 = vtanh.pop %v3072
      %v3074 = vmul.f32 %v3069, %v3073
      %3075 = vst [vmem:[#allocation5] sm:$0xff] %v3074
      %3076 = vst [vmem:[#allocation6] sm:$0xff] %v3072
      %s3077 = smul.u32 %s2761, 2
      %s3078 = smul.addr %s3077, 8
      %s3079 = scalar_lea.vmem %s17, %s3078
      %3080 = vst [vmem:[%s3079 + $0x8] sm:$0xff] %v3074
    $region129: #{global_module_forward.3} parent=1 // loop_footer
      %s2437 = sadd.s32 1, %s2433
    $region130: #{global_module_forward.3} parent=1 // loop_footer_branch
      %2432 = sbr.rel target = $region126
    $region131: #{global_module_forward.3} parent=1 // loop_exit
      _
    %v3081 = vld [vmem:[%s17] sm:$0xff]
    %v3082 = vld [vmem:[%s17 + $0x8] sm:$0xff]
    %v3083 = vld [vmem:[%s17 + $0x10] sm:$0xff]
    %v3084 = vld [vmem:[%s17 + $0x18] sm:$0xff]
    %v3085 = vld [vmem:[%s17 + $0x20] sm:$0xff]
    %v3086 = vld [vmem:[%s17 + $0x28] sm:$0xff]
    %v3087 = vld [vmem:[%s17 + $0x30] sm:$0xff]
    %v3088 = vld [vmem:[%s17 + $0x38] sm:$0xff]
    %v3089 = vpack.c.bf16 %v3083, %v3081
    %v3090 = vpack.c.bf16 %v3084, %v3082
    %v3091 = vpack.c.bf16 %v3087, %v3085
    %v3092 = vpack.c.bf16 %v3088, %v3086
    %v3093 = vld [vmem:[#allocation17] sm:$0xff]
    %v3094 = vld [vmem:[#allocation17 + $0x8] sm:$0xff]
    %v3095 = vld [vmem:[#allocation17 + $0x10] sm:$0xff]
    %v3096 = vld [vmem:[#allocation17 + $0x18] sm:$0xff]
    %v3097 = vld [vmem:[#allocation17 + $0x20] sm:$0xff]
    %v3098 = vld [vmem:[#allocation17 + $0x28] sm:$0xff]
    %v3099 = vld [vmem:[#allocation17 + $0x30] sm:$0xff]
    %v3100 = vld [vmem:[#allocation17 + $0x38] sm:$0xff]
    %v3101 = vld [vmem:[#allocation17 + $0x40] sm:$0xff]
    %v3102 = vld [vmem:[#allocation17 + $0x48] sm:$0xff]
    %v3103 = vld [vmem:[#allocation17 + $0x50] sm:$0xff]
    %v3104 = vld [vmem:[#allocation17 + $0x58] sm:$0xff]
    %v3105 = vld [vmem:[#allocation17 + $0x60] sm:$0xff]
    %v3106 = vld [vmem:[#allocation17 + $0x68] sm:$0xff]
    %v3107 = vld [vmem:[#allocation17 + $0x70] sm:$0xff]
    %v3108 = vld [vmem:[#allocation17 + $0x78] sm:$0xff]
    %v3109 = vld [vmem:[#allocation17 + $0x80] sm:$0xff]
    %v3110 = vld [vmem:[#allocation17 + $0x88] sm:$0xff]
    %v3111 = vld [vmem:[#allocation17 + $0x90] sm:$0xff]
    %v3112 = vld [vmem:[#allocation17 + $0x98] sm:$0xff]
    %v3113 = vld [vmem:[#allocation17 + $0xa0] sm:$0xff]
    %v3114 = vld [vmem:[#allocation17 + $0xa8] sm:$0xff]
    %v3115 = vld [vmem:[#allocation17 + $0xb0] sm:$0xff]
    %v3116 = vld [vmem:[#allocation17 + $0xb8] sm:$0xff]
    %v3117 = vld [vmem:[#allocation17 + $0xc0] sm:$0xff]
    %v3118 = vld [vmem:[#allocation17 + $0xc8] sm:$0xff]
    %v3119 = vld [vmem:[#allocation17 + $0xd0] sm:$0xff]
    %v3120 = vld [vmem:[#allocation17 + $0xd8] sm:$0xff]
    %v3121 = vld [vmem:[#allocation17 + $0xe0] sm:$0xff]
    %v3122 = vld [vmem:[#allocation17 + $0xe8] sm:$0xff]
    %v3123 = vld [vmem:[#allocation17 + $0xf0] sm:$0xff]
    %v3124 = vld [vmem:[#allocation17 + $0xf8] sm:$0xff]
    %v3125 = vld [vmem:[#allocation17 + $0x100] sm:$0xff]
    %v3126 = vld [vmem:[#allocation17 + $0x108] sm:$0xff]
    %v3127 = vld [vmem:[#allocation17 + $0x110] sm:$0xff]
    %v3128 = vld [vmem:[#allocation17 + $0x118] sm:$0xff]
    %v3129 = vld [vmem:[#allocation17 + $0x120] sm:$0xff]
    %v3130 = vld [vmem:[#allocation17 + $0x128] sm:$0xff]
    %v3131 = vld [vmem:[#allocation17 + $0x130] sm:$0xff]
    %v3132 = vld [vmem:[#allocation17 + $0x138] sm:$0xff]
    %v3133 = vld [vmem:[#allocation17 + $0x140] sm:$0xff]
    %v3134 = vld [vmem:[#allocation17 + $0x148] sm:$0xff]
    %v3135 = vld [vmem:[#allocation17 + $0x150] sm:$0xff]
    %v3136 = vld [vmem:[#allocation17 + $0x158] sm:$0xff]
    %v3137 = vld [vmem:[#allocation17 + $0x160] sm:$0xff]
    %v3138 = vld [vmem:[#allocation17 + $0x168] sm:$0xff]
    %v3139 = vld [vmem:[#allocation17 + $0x170] sm:$0xff]
    %v3140 = vld [vmem:[#allocation17 + $0x178] sm:$0xff]
    %v3141 = vld [vmem:[#allocation17 + $0x180] sm:$0xff]
    %v3142 = vld [vmem:[#allocation17 + $0x188] sm:$0xff]
    %v3143 = vld [vmem:[#allocation17 + $0x190] sm:$0xff]
    %v3144 = vld [vmem:[#allocation17 + $0x198] sm:$0xff]
    %v3145 = vld [vmem:[#allocation17 + $0x1a0] sm:$0xff]
    %v3146 = vld [vmem:[#allocation17 + $0x1a8] sm:$0xff]
    %v3147 = vld [vmem:[#allocation17 + $0x1b0] sm:$0xff]
    %v3148 = vld [vmem:[#allocation17 + $0x1b8] sm:$0xff]
    %v3149 = vld [vmem:[#allocation17 + $0x1c0] sm:$0xff]
    %v3150 = vld [vmem:[#allocation17 + $0x1c8] sm:$0xff]
    %v3151 = vld [vmem:[#allocation17 + $0x1d0] sm:$0xff]
    %v3152 = vld [vmem:[#allocation17 + $0x1d8] sm:$0xff]
    %v3153 = vld [vmem:[#allocation17 + $0x1e0] sm:$0xff]
    %v3154 = vld [vmem:[#allocation17 + $0x1e8] sm:$0xff]
    %v3155 = vld [vmem:[#allocation17 + $0x1f0] sm:$0xff]
    %v3156 = vld [vmem:[#allocation17 + $0x1f8] sm:$0xff]
    %v3157 = vld [vmem:[#allocation17 + $0x200] sm:$0xff]
    %v3158 = vld [vmem:[#allocation17 + $0x208] sm:$0xff]
    %v3159 = vld [vmem:[#allocation17 + $0x210] sm:$0xff]
    %v3160 = vld [vmem:[#allocation17 + $0x218] sm:$0xff]
    %v3161 = vld [vmem:[#allocation17 + $0x220] sm:$0xff]
    %v3162 = vld [vmem:[#allocation17 + $0x228] sm:$0xff]
    %v3163 = vld [vmem:[#allocation17 + $0x230] sm:$0xff]
    %v3164 = vld [vmem:[#allocation17 + $0x238] sm:$0xff]
    %v3165 = vld [vmem:[#allocation17 + $0x240] sm:$0xff]
    %v3166 = vld [vmem:[#allocation17 + $0x248] sm:$0xff]
    %v3167 = vld [vmem:[#allocation17 + $0x250] sm:$0xff]
    %v3168 = vld [vmem:[#allocation17 + $0x258] sm:$0xff]
    %v3169 = vld [vmem:[#allocation17 + $0x260] sm:$0xff]
    %v3170 = vld [vmem:[#allocation17 + $0x268] sm:$0xff]
    %v3171 = vld [vmem:[#allocation17 + $0x270] sm:$0xff]
    %v3172 = vld [vmem:[#allocation17 + $0x278] sm:$0xff]
    %v3173 = vld [vmem:[#allocation17 + $0x280] sm:$0xff]
    %v3174 = vld [vmem:[#allocation17 + $0x288] sm:$0xff]
    %v3175 = vld [vmem:[#allocation17 + $0x290] sm:$0xff]
    %v3176 = vld [vmem:[#allocation17 + $0x298] sm:$0xff]
    %v3177 = vld [vmem:[#allocation17 + $0x2a0] sm:$0xff]
    %v3178 = vld [vmem:[#allocation17 + $0x2a8] sm:$0xff]
    %v3179 = vld [vmem:[#allocation17 + $0x2b0] sm:$0xff]
    %v3180 = vld [vmem:[#allocation17 + $0x2b8] sm:$0xff]
    %v3181 = vld [vmem:[#allocation17 + $0x2c0] sm:$0xff]
    %v3182 = vld [vmem:[#allocation17 + $0x2c8] sm:$0xff]
    %v3183 = vld [vmem:[#allocation17 + $0x2d0] sm:$0xff]
    %v3184 = vld [vmem:[#allocation17 + $0x2d8] sm:$0xff]
    %v3185 = vld [vmem:[#allocation17 + $0x2e0] sm:$0xff]
    %v3186 = vld [vmem:[#allocation17 + $0x2e8] sm:$0xff]
    %v3187 = vld [vmem:[#allocation17 + $0x2f0] sm:$0xff]
    %v3188 = vld [vmem:[#allocation17 + $0x2f8] sm:$0xff]
    %v3189 = vld [vmem:[#allocation17 + $0x300] sm:$0xff]
    %v3190 = vld [vmem:[#allocation17 + $0x308] sm:$0xff]
    %v3191 = vld [vmem:[#allocation17 + $0x310] sm:$0xff]
    %v3192 = vld [vmem:[#allocation17 + $0x318] sm:$0xff]
    %v3193 = vld [vmem:[#allocation17 + $0x320] sm:$0xff]
    %v3194 = vld [vmem:[#allocation17 + $0x328] sm:$0xff]
    %v3195 = vld [vmem:[#allocation17 + $0x330] sm:$0xff]
    %v3196 = vld [vmem:[#allocation17 + $0x338] sm:$0xff]
    %v3197 = vld [vmem:[#allocation17 + $0x340] sm:$0xff]
    %v3198 = vld [vmem:[#allocation17 + $0x348] sm:$0xff]
    %v3199 = vld [vmem:[#allocation17 + $0x350] sm:$0xff]
    %v3200 = vld [vmem:[#allocation17 + $0x358] sm:$0xff]
    %v3201 = vld [vmem:[#allocation17 + $0x360] sm:$0xff]
    %v3202 = vld [vmem:[#allocation17 + $0x368] sm:$0xff]
    %v3203 = vld [vmem:[#allocation17 + $0x370] sm:$0xff]
    %v3204 = vld [vmem:[#allocation17 + $0x378] sm:$0xff]
    %v3205 = vld [vmem:[#allocation17 + $0x380] sm:$0xff]
    %v3206 = vld [vmem:[#allocation17 + $0x388] sm:$0xff]
    %v3207 = vld [vmem:[#allocation17 + $0x390] sm:$0xff]
    %v3208 = vld [vmem:[#allocation17 + $0x398] sm:$0xff]
    %v3209 = vld [vmem:[#allocation17 + $0x3a0] sm:$0xff]
    %v3210 = vld [vmem:[#allocation17 + $0x3a8] sm:$0xff]
    %v3211 = vld [vmem:[#allocation17 + $0x3b0] sm:$0xff]
    %v3212 = vld [vmem:[#allocation17 + $0x3b8] sm:$0xff]
    %v3213 = vld [vmem:[#allocation17 + $0x3c0] sm:$0xff]
    %v3214 = vld [vmem:[#allocation17 + $0x3c8] sm:$0xff]
    %v3215 = vld [vmem:[#allocation17 + $0x3d0] sm:$0xff]
    %v3216 = vld [vmem:[#allocation17 + $0x3d8] sm:$0xff]
    %v3217 = vld [vmem:[#allocation17 + $0x3e0] sm:$0xff]
    %v3218 = vld [vmem:[#allocation17 + $0x3e8] sm:$0xff]
    %v3219 = vld [vmem:[#allocation17 + $0x3f0] sm:$0xff]
    %v3220 = vld [vmem:[#allocation17 + $0x3f8] sm:$0xff]
    %v3221 = vld [vmem:[#allocation18] sm:$0xff]
    %v3223 = vlaneseq
    %v3224 = vshrl.u32 %v3223, 7
    %v3225 = vsub.s32 0, %v3224
    %v3226 = vrot.slane %v3221, %v3225
    %v3227 = vlaneseq
    %v3228 = vshrl.u32 %v3227, 7
    %v3229 = vsub.s32 1, %v3228
    %v3230 = vrot.slane %v3221, %v3229
    %v3231 = vlaneseq
    %v3232 = vshrl.u32 %v3231, 7
    %v3233 = vsub.s32 2, %v3232
    %v3234 = vrot.slane %v3221, %v3233
    %v3235 = vlaneseq
    %v3236 = vshrl.u32 %v3235, 7
    %v3237 = vsub.s32 3, %v3236
    %v3238 = vrot.slane %v3221, %v3237
    %v3239 = vlaneseq
    %v3240 = vshrl.u32 %v3239, 7
    %v3241 = vsub.s32 4, %v3240
    %v3242 = vrot.slane %v3221, %v3241
    %v3243 = vlaneseq
    %v3244 = vshrl.u32 %v3243, 7
    %v3245 = vsub.s32 5, %v3244
    %v3246 = vrot.slane %v3221, %v3245
    %v3247 = vlaneseq
    %v3248 = vshrl.u32 %v3247, 7
    %v3249 = vsub.s32 6, %v3248
    %v3250 = vrot.slane %v3221, %v3249
    %v3251 = vlaneseq
    %v3252 = vshrl.u32 %v3251, 7
    %v3253 = vsub.s32 7, %v3252
    %v3254 = vrot.slane %v3221, %v3253
    %v3391 = vunpack.c.l.b16 %v3093
    %v3392 = vunpack.c.h.b16 %v3093
    %v3393 = vunpack.c.l.b16 %v3094
    %v3394 = vunpack.c.h.b16 %v3094
    %v3395 = vunpack.c.l.b16 %v3095
    %v3396 = vunpack.c.h.b16 %v3095
    %v3397 = vunpack.c.l.b16 %v3096
    %v3398 = vunpack.c.h.b16 %v3096
    %v3399 = vunpack.c.l.b16 %v3097
    %v3400 = vunpack.c.h.b16 %v3097
    %v3401 = vunpack.c.l.b16 %v3098
    %v3402 = vunpack.c.h.b16 %v3098
    %v3403 = vunpack.c.l.b16 %v3099
    %v3404 = vunpack.c.h.b16 %v3099
    %v3405 = vunpack.c.l.b16 %v3100
    %v3406 = vunpack.c.h.b16 %v3100
    %v3407 = vunpack.c.l.b16 %v3101
    %v3408 = vunpack.c.h.b16 %v3101
    %v3409 = vunpack.c.l.b16 %v3102
    %v3410 = vunpack.c.h.b16 %v3102
    %v3411 = vunpack.c.l.b16 %v3103
    %v3412 = vunpack.c.h.b16 %v3103
    %v3413 = vunpack.c.l.b16 %v3104
    %v3414 = vunpack.c.h.b16 %v3104
    %v3415 = vunpack.c.l.b16 %v3105
    %v3416 = vunpack.c.h.b16 %v3105
    %v3417 = vunpack.c.l.b16 %v3106
    %v3418 = vunpack.c.h.b16 %v3106
    %v3419 = vunpack.c.l.b16 %v3107
    %v3420 = vunpack.c.h.b16 %v3107
    %v3421 = vunpack.c.l.b16 %v3108
    %v3422 = vunpack.c.h.b16 %v3108
    %v3423 = vunpack.c.l.b16 %v3109
    %v3424 = vunpack.c.h.b16 %v3109
    %v3425 = vunpack.c.l.b16 %v3110
    %v3426 = vunpack.c.h.b16 %v3110
    %v3427 = vunpack.c.l.b16 %v3111
    %v3428 = vunpack.c.h.b16 %v3111
    %v3429 = vunpack.c.l.b16 %v3112
    %v3430 = vunpack.c.h.b16 %v3112
    %v3431 = vunpack.c.l.b16 %v3113
    %v3432 = vunpack.c.h.b16 %v3113
    %v3433 = vunpack.c.l.b16 %v3114
    %v3434 = vunpack.c.h.b16 %v3114
    %v3435 = vunpack.c.l.b16 %v3115
    %v3436 = vunpack.c.h.b16 %v3115
    %v3437 = vunpack.c.l.b16 %v3116
    %v3438 = vunpack.c.h.b16 %v3116
    %v3439 = vunpack.c.l.b16 %v3117
    %v3440 = vunpack.c.h.b16 %v3117
    %v3441 = vunpack.c.l.b16 %v3118
    %v3442 = vunpack.c.h.b16 %v3118
    %v3443 = vunpack.c.l.b16 %v3119
    %v3444 = vunpack.c.h.b16 %v3119
    %v3445 = vunpack.c.l.b16 %v3120
    %v3446 = vunpack.c.h.b16 %v3120
    %v3447 = vunpack.c.l.b16 %v3121
    %v3448 = vunpack.c.h.b16 %v3121
    %v3449 = vunpack.c.l.b16 %v3122
    %v3450 = vunpack.c.h.b16 %v3122
    %v3451 = vunpack.c.l.b16 %v3123
    %v3452 = vunpack.c.h.b16 %v3123
    %v3453 = vunpack.c.l.b16 %v3124
    %v3454 = vunpack.c.h.b16 %v3124
    %v3455 = vunpack.c.l.b16 %v3125
    %v3456 = vunpack.c.h.b16 %v3125
    %v3457 = vunpack.c.l.b16 %v3126
    %v3458 = vunpack.c.h.b16 %v3126
    %v3459 = vunpack.c.l.b16 %v3127
    %v3460 = vunpack.c.h.b16 %v3127
    %v3461 = vunpack.c.l.b16 %v3128
    %v3462 = vunpack.c.h.b16 %v3128
    %v3463 = vunpack.c.l.b16 %v3129
    %v3464 = vunpack.c.h.b16 %v3129
    %v3465 = vunpack.c.l.b16 %v3130
    %v3466 = vunpack.c.h.b16 %v3130
    %v3467 = vunpack.c.l.b16 %v3131
    %v3468 = vunpack.c.h.b16 %v3131
    %v3469 = vunpack.c.l.b16 %v3132
    %v3470 = vunpack.c.h.b16 %v3132
    %v3471 = vunpack.c.l.b16 %v3133
    %v3472 = vunpack.c.h.b16 %v3133
    %v3473 = vunpack.c.l.b16 %v3134
    %v3474 = vunpack.c.h.b16 %v3134
    %v3475 = vunpack.c.l.b16 %v3135
    %v3476 = vunpack.c.h.b16 %v3135
    %v3477 = vunpack.c.l.b16 %v3136
    %v3478 = vunpack.c.h.b16 %v3136
    %v3479 = vunpack.c.l.b16 %v3137
    %v3480 = vunpack.c.h.b16 %v3137
    %v3481 = vunpack.c.l.b16 %v3138
    %v3482 = vunpack.c.h.b16 %v3138
    %v3483 = vunpack.c.l.b16 %v3139
    %v3484 = vunpack.c.h.b16 %v3139
    %v3485 = vunpack.c.l.b16 %v3140
    %v3486 = vunpack.c.h.b16 %v3140
    %v3487 = vunpack.c.l.b16 %v3141
    %v3488 = vunpack.c.h.b16 %v3141
    %v3489 = vunpack.c.l.b16 %v3142
    %v3490 = vunpack.c.h.b16 %v3142
    %v3491 = vunpack.c.l.b16 %v3143
    %v3492 = vunpack.c.h.b16 %v3143
    %v3493 = vunpack.c.l.b16 %v3144
    %v3494 = vunpack.c.h.b16 %v3144
    %v3495 = vunpack.c.l.b16 %v3145
    %v3496 = vunpack.c.h.b16 %v3145
    %v3497 = vunpack.c.l.b16 %v3146
    %v3498 = vunpack.c.h.b16 %v3146
    %v3499 = vunpack.c.l.b16 %v3147
    %v3500 = vunpack.c.h.b16 %v3147
    %v3501 = vunpack.c.l.b16 %v3148
    %v3502 = vunpack.c.h.b16 %v3148
    %v3503 = vunpack.c.l.b16 %v3149
    %v3504 = vunpack.c.h.b16 %v3149
    %v3505 = vunpack.c.l.b16 %v3150
    %v3506 = vunpack.c.h.b16 %v3150
    %v3507 = vunpack.c.l.b16 %v3151
    %v3508 = vunpack.c.h.b16 %v3151
    %v3509 = vunpack.c.l.b16 %v3152
    %v3510 = vunpack.c.h.b16 %v3152
    %v3511 = vunpack.c.l.b16 %v3153
    %v3512 = vunpack.c.h.b16 %v3153
    %v3513 = vunpack.c.l.b16 %v3154
    %v3514 = vunpack.c.h.b16 %v3154
    %v3515 = vunpack.c.l.b16 %v3155
    %v3516 = vunpack.c.h.b16 %v3155
    %v3517 = vunpack.c.l.b16 %v3156
    %v3518 = vunpack.c.h.b16 %v3156
    %v3519 = vunpack.c.l.b16 %v3157
    %v3520 = vunpack.c.h.b16 %v3157
    %v3521 = vunpack.c.l.b16 %v3158
    %v3522 = vunpack.c.h.b16 %v3158
    %v3523 = vunpack.c.l.b16 %v3159
    %v3524 = vunpack.c.h.b16 %v3159
    %v3525 = vunpack.c.l.b16 %v3160
    %v3526 = vunpack.c.h.b16 %v3160
    %v3527 = vunpack.c.l.b16 %v3161
    %v3528 = vunpack.c.h.b16 %v3161
    %v3529 = vunpack.c.l.b16 %v3162
    %v3530 = vunpack.c.h.b16 %v3162
    %v3531 = vunpack.c.l.b16 %v3163
    %v3532 = vunpack.c.h.b16 %v3163
    %v3533 = vunpack.c.l.b16 %v3164
    %v3534 = vunpack.c.h.b16 %v3164
    %v3535 = vunpack.c.l.b16 %v3165
    %v3536 = vunpack.c.h.b16 %v3165
    %v3537 = vunpack.c.l.b16 %v3166
    %v3538 = vunpack.c.h.b16 %v3166
    %v3539 = vunpack.c.l.b16 %v3167
    %v3540 = vunpack.c.h.b16 %v3167
    %v3541 = vunpack.c.l.b16 %v3168
    %v3542 = vunpack.c.h.b16 %v3168
    %v3543 = vunpack.c.l.b16 %v3169
    %v3544 = vunpack.c.h.b16 %v3169
    %v3545 = vunpack.c.l.b16 %v3170
    %v3546 = vunpack.c.h.b16 %v3170
    %v3547 = vunpack.c.l.b16 %v3171
    %v3548 = vunpack.c.h.b16 %v3171
    %v3549 = vunpack.c.l.b16 %v3172
    %v3550 = vunpack.c.h.b16 %v3172
    %v3551 = vunpack.c.l.b16 %v3173
    %v3552 = vunpack.c.h.b16 %v3173
    %v3553 = vunpack.c.l.b16 %v3174
    %v3554 = vunpack.c.h.b16 %v3174
    %v3555 = vunpack.c.l.b16 %v3175
    %v3556 = vunpack.c.h.b16 %v3175
    %v3557 = vunpack.c.l.b16 %v3176
    %v3558 = vunpack.c.h.b16 %v3176
    %v3559 = vunpack.c.l.b16 %v3177
    %v3560 = vunpack.c.h.b16 %v3177
    %v3561 = vunpack.c.l.b16 %v3178
    %v3562 = vunpack.c.h.b16 %v3178
    %v3563 = vunpack.c.l.b16 %v3179
    %v3564 = vunpack.c.h.b16 %v3179
    %v3565 = vunpack.c.l.b16 %v3180
    %v3566 = vunpack.c.h.b16 %v3180
    %v3567 = vunpack.c.l.b16 %v3181
    %v3568 = vunpack.c.h.b16 %v3181
    %v3569 = vunpack.c.l.b16 %v3182
    %v3570 = vunpack.c.h.b16 %v3182
    %v3571 = vunpack.c.l.b16 %v3183
    %v3572 = vunpack.c.h.b16 %v3183
    %v3573 = vunpack.c.l.b16 %v3184
    %v3574 = vunpack.c.h.b16 %v3184
    %v3575 = vunpack.c.l.b16 %v3185
    %v3576 = vunpack.c.h.b16 %v3185
    %v3577 = vunpack.c.l.b16 %v3186
    %v3578 = vunpack.c.h.b16 %v3186
    %v3579 = vunpack.c.l.b16 %v3187
    %v3580 = vunpack.c.h.b16 %v3187
    %v3581 = vunpack.c.l.b16 %v3188
    %v3582 = vunpack.c.h.b16 %v3188
    %v3583 = vunpack.c.l.b16 %v3189
    %v3584 = vunpack.c.h.b16 %v3189
    %v3585 = vunpack.c.l.b16 %v3190
    %v3586 = vunpack.c.h.b16 %v3190
    %v3587 = vunpack.c.l.b16 %v3191
    %v3588 = vunpack.c.h.b16 %v3191
    %v3589 = vunpack.c.l.b16 %v3192
    %v3590 = vunpack.c.h.b16 %v3192
    %v3591 = vunpack.c.l.b16 %v3193
    %v3592 = vunpack.c.h.b16 %v3193
    %v3593 = vunpack.c.l.b16 %v3194
    %v3594 = vunpack.c.h.b16 %v3194
    %v3595 = vunpack.c.l.b16 %v3195
    %v3596 = vunpack.c.h.b16 %v3195
    %v3597 = vunpack.c.l.b16 %v3196
    %v3598 = vunpack.c.h.b16 %v3196
    %v3599 = vunpack.c.l.b16 %v3197
    %v3600 = vunpack.c.h.b16 %v3197
    %v3601 = vunpack.c.l.b16 %v3198
    %v3602 = vunpack.c.h.b16 %v3198
    %v3603 = vunpack.c.l.b16 %v3199
    %v3604 = vunpack.c.h.b16 %v3199
    %v3605 = vunpack.c.l.b16 %v3200
    %v3606 = vunpack.c.h.b16 %v3200
    %v3607 = vunpack.c.l.b16 %v3201
    %v3608 = vunpack.c.h.b16 %v3201
    %v3609 = vunpack.c.l.b16 %v3202
    %v3610 = vunpack.c.h.b16 %v3202
    %v3611 = vunpack.c.l.b16 %v3203
    %v3612 = vunpack.c.h.b16 %v3203
    %v3613 = vunpack.c.l.b16 %v3204
    %v3614 = vunpack.c.h.b16 %v3204
    %v3615 = vunpack.c.l.b16 %v3205
    %v3616 = vunpack.c.h.b16 %v3205
    %v3617 = vunpack.c.l.b16 %v3206
    %v3618 = vunpack.c.h.b16 %v3206
    %v3619 = vunpack.c.l.b16 %v3207
    %v3620 = vunpack.c.h.b16 %v3207
    %v3621 = vunpack.c.l.b16 %v3208
    %v3622 = vunpack.c.h.b16 %v3208
    %v3623 = vunpack.c.l.b16 %v3209
    %v3624 = vunpack.c.h.b16 %v3209
    %v3625 = vunpack.c.l.b16 %v3210
    %v3626 = vunpack.c.h.b16 %v3210
    %v3627 = vunpack.c.l.b16 %v3211
    %v3628 = vunpack.c.h.b16 %v3211
    %v3629 = vunpack.c.l.b16 %v3212
    %v3630 = vunpack.c.h.b16 %v3212
    %v3631 = vunpack.c.l.b16 %v3213
    %v3632 = vunpack.c.h.b16 %v3213
    %v3633 = vunpack.c.l.b16 %v3214
    %v3634 = vunpack.c.h.b16 %v3214
    %v3635 = vunpack.c.l.b16 %v3215
    %v3636 = vunpack.c.h.b16 %v3215
    %v3637 = vunpack.c.l.b16 %v3216
    %v3638 = vunpack.c.h.b16 %v3216
    %v3639 = vunpack.c.l.b16 %v3217
    %v3640 = vunpack.c.h.b16 %v3217
    %v3641 = vunpack.c.l.b16 %v3218
    %v3642 = vunpack.c.h.b16 %v3218
    %v3643 = vunpack.c.l.b16 %v3219
    %v3644 = vunpack.c.h.b16 %v3219
    %v3645 = vunpack.c.l.b16 %v3220
    %v3646 = vunpack.c.h.b16 %v3220
    %v3647 = vpack.c.b16 %v3399, %v3391
    %v3648 = vpack.c.b16 %v3400, %v3392
    %v3649 = vpack.c.b16 %v3401, %v3393
    %v3650 = vpack.c.b16 %v3402, %v3394
    %v3651 = vpack.c.b16 %v3403, %v3395
    %v3652 = vpack.c.b16 %v3404, %v3396
    %v3653 = vpack.c.b16 %v3405, %v3397
    %v3654 = vpack.c.b16 %v3406, %v3398
    %v3655 = vpack.c.b16 %v3415, %v3407
    %v3656 = vpack.c.b16 %v3416, %v3408
    %v3657 = vpack.c.b16 %v3417, %v3409
    %v3658 = vpack.c.b16 %v3418, %v3410
    %v3659 = vpack.c.b16 %v3419, %v3411
    %v3660 = vpack.c.b16 %v3420, %v3412
    %v3661 = vpack.c.b16 %v3421, %v3413
    %v3662 = vpack.c.b16 %v3422, %v3414
    %v3663 = vpack.c.b16 %v3431, %v3423
    %v3664 = vpack.c.b16 %v3432, %v3424
    %v3665 = vpack.c.b16 %v3433, %v3425
    %v3666 = vpack.c.b16 %v3434, %v3426
    %v3667 = vpack.c.b16 %v3435, %v3427
    %v3668 = vpack.c.b16 %v3436, %v3428
    %v3669 = vpack.c.b16 %v3437, %v3429
    %v3670 = vpack.c.b16 %v3438, %v3430
    %v3671 = vpack.c.b16 %v3447, %v3439
    %v3672 = vpack.c.b16 %v3448, %v3440
    %v3673 = vpack.c.b16 %v3449, %v3441
    %v3674 = vpack.c.b16 %v3450, %v3442
    %v3675 = vpack.c.b16 %v3451, %v3443
    %v3676 = vpack.c.b16 %v3452, %v3444
    %v3677 = vpack.c.b16 %v3453, %v3445
    %v3678 = vpack.c.b16 %v3454, %v3446
    %v3679 = vpack.c.b16 %v3463, %v3455
    %v3680 = vpack.c.b16 %v3464, %v3456
    %v3681 = vpack.c.b16 %v3465, %v3457
    %v3682 = vpack.c.b16 %v3466, %v3458
    %v3683 = vpack.c.b16 %v3467, %v3459
    %v3684 = vpack.c.b16 %v3468, %v3460
    %v3685 = vpack.c.b16 %v3469, %v3461
    %v3686 = vpack.c.b16 %v3470, %v3462
    %v3687 = vpack.c.b16 %v3479, %v3471
    %v3688 = vpack.c.b16 %v3480, %v3472
    %v3689 = vpack.c.b16 %v3481, %v3473
    %v3690 = vpack.c.b16 %v3482, %v3474
    %v3691 = vpack.c.b16 %v3483, %v3475
    %v3692 = vpack.c.b16 %v3484, %v3476
    %v3693 = vpack.c.b16 %v3485, %v3477
    %v3694 = vpack.c.b16 %v3486, %v3478
    %v3695 = vpack.c.b16 %v3495, %v3487
    %v3696 = vpack.c.b16 %v3496, %v3488
    %v3697 = vpack.c.b16 %v3497, %v3489
    %v3698 = vpack.c.b16 %v3498, %v3490
    %v3699 = vpack.c.b16 %v3499, %v3491
    %v3700 = vpack.c.b16 %v3500, %v3492
    %v3701 = vpack.c.b16 %v3501, %v3493
    %v3702 = vpack.c.b16 %v3502, %v3494
    %v3703 = vpack.c.b16 %v3511, %v3503
    %v3704 = vpack.c.b16 %v3512, %v3504
    %v3705 = vpack.c.b16 %v3513, %v3505
    %v3706 = vpack.c.b16 %v3514, %v3506
    %v3707 = vpack.c.b16 %v3515, %v3507
    %v3708 = vpack.c.b16 %v3516, %v3508
    %v3709 = vpack.c.b16 %v3517, %v3509
    %v3710 = vpack.c.b16 %v3518, %v3510
    %v3711 = vpack.c.b16 %v3527, %v3519
    %v3712 = vpack.c.b16 %v3528, %v3520
    %v3713 = vpack.c.b16 %v3529, %v3521
    %v3714 = vpack.c.b16 %v3530, %v3522
    %v3715 = vpack.c.b16 %v3531, %v3523
    %v3716 = vpack.c.b16 %v3532, %v3524
    %v3717 = vpack.c.b16 %v3533, %v3525
    %v3718 = vpack.c.b16 %v3534, %v3526
    %v3719 = vpack.c.b16 %v3543, %v3535
    %v3720 = vpack.c.b16 %v3544, %v3536
    %v3721 = vpack.c.b16 %v3545, %v3537
    %v3722 = vpack.c.b16 %v3546, %v3538
    %v3723 = vpack.c.b16 %v3547, %v3539
    %v3724 = vpack.c.b16 %v3548, %v3540
    %v3725 = vpack.c.b16 %v3549, %v3541
    %v3726 = vpack.c.b16 %v3550, %v3542
    %v3727 = vpack.c.b16 %v3559, %v3551
    %v3728 = vpack.c.b16 %v3560, %v3552
    %v3729 = vpack.c.b16 %v3561, %v3553
    %v3730 = vpack.c.b16 %v3562, %v3554
    %v3731 = vpack.c.b16 %v3563, %v3555
    %v3732 = vpack.c.b16 %v3564, %v3556
    %v3733 = vpack.c.b16 %v3565, %v3557
    %v3734 = vpack.c.b16 %v3566, %v3558
    %v3735 = vpack.c.b16 %v3575, %v3567
    %v3736 = vpack.c.b16 %v3576, %v3568
    %v3737 = vpack.c.b16 %v3577, %v3569
    %v3738 = vpack.c.b16 %v3578, %v3570
    %v3739 = vpack.c.b16 %v3579, %v3571
    %v3740 = vpack.c.b16 %v3580, %v3572
    %v3741 = vpack.c.b16 %v3581, %v3573
    %v3742 = vpack.c.b16 %v3582, %v3574
    %v3743 = vpack.c.b16 %v3591, %v3583
    %v3744 = vpack.c.b16 %v3592, %v3584
    %v3745 = vpack.c.b16 %v3593, %v3585
    %v3746 = vpack.c.b16 %v3594, %v3586
    %v3747 = vpack.c.b16 %v3595, %v3587
    %v3748 = vpack.c.b16 %v3596, %v3588
    %v3749 = vpack.c.b16 %v3597, %v3589
    %v3750 = vpack.c.b16 %v3598, %v3590
    %v3751 = vpack.c.b16 %v3607, %v3599
    %v3752 = vpack.c.b16 %v3608, %v3600
    %v3753 = vpack.c.b16 %v3609, %v3601
    %v3754 = vpack.c.b16 %v3610, %v3602
    %v3755 = vpack.c.b16 %v3611, %v3603
    %v3756 = vpack.c.b16 %v3612, %v3604
    %v3757 = vpack.c.b16 %v3613, %v3605
    %v3758 = vpack.c.b16 %v3614, %v3606
    %v3759 = vpack.c.b16 %v3623, %v3615
    %v3760 = vpack.c.b16 %v3624, %v3616
    %v3761 = vpack.c.b16 %v3625, %v3617
    %v3762 = vpack.c.b16 %v3626, %v3618
    %v3763 = vpack.c.b16 %v3627, %v3619
    %v3764 = vpack.c.b16 %v3628, %v3620
    %v3765 = vpack.c.b16 %v3629, %v3621
    %v3766 = vpack.c.b16 %v3630, %v3622
    %v3767 = vpack.c.b16 %v3639, %v3631
    %v3768 = vpack.c.b16 %v3640, %v3632
    %v3769 = vpack.c.b16 %v3641, %v3633
    %v3770 = vpack.c.b16 %v3642, %v3634
    %v3771 = vpack.c.b16 %v3643, %v3635
    %v3772 = vpack.c.b16 %v3644, %v3636
    %v3773 = vpack.c.b16 %v3645, %v3637
    %v3774 = vpack.c.b16 %v3646, %v3638
    %3903 = vmatprep.subr.bf16.mxu0 %v3704
    %3904 = vmatpush1.bf16.msra.mxu0 %v3703
    %3905 = vmatprep.subr.bf16.mxu0 %v3696
    %3906 = vmatpush1.bf16.msra.mxu0 %v3695
    %3907 = vmatprep.subr.bf16.mxu0 %v3688
    %3908 = vmatpush1.bf16.msra.mxu0 %v3687
    %3909 = vmatprep.subr.bf16.mxu0 %v3680
    %3910 = vmatpush1.bf16.msra.mxu0 %v3679
    %3911 = vmatprep.subr.bf16.mxu0 %v3672
    %3912 = vmatpush1.bf16.msra.mxu0 %v3671
    %3913 = vmatprep.subr.bf16.mxu0 %v3664
    %3914 = vmatpush1.bf16.msra.mxu0 %v3663
    %3915 = vmatprep.subr.bf16.mxu0 %v3656
    %3916 = vmatpush1.bf16.msra.mxu0 %v3655
    %3917 = vmatprep.subr.bf16.mxu0 %v3648
    %3918 = vmatpush1.bf16.msra.mxu0 %v3647
    %3919 = vmatprep.subr.bf16.mxu0 %v3768
    %3920 = vmatpush2.bf16.msra.mxu0 %v3767
    %3921 = vmatprep.subr.bf16.mxu0 %v3760
    %3922 = vmatpush2.bf16.msra.mxu0 %v3759
    %3923 = vmatprep.subr.bf16.mxu0 %v3752
    %3924 = vmatpush2.bf16.msra.mxu0 %v3751
    %3925 = vmatprep.subr.bf16.mxu0 %v3744
    %3926 = vmatpush2.bf16.msra.mxu0 %v3743
    %3927 = vmatprep.subr.bf16.mxu0 %v3736
    %3928 = vmatpush2.bf16.msra.mxu0 %v3735
    %3929 = vmatprep.subr.bf16.mxu0 %v3728
    %3930 = vmatpush2.bf16.msra.mxu0 %v3727
    %3931 = vmatprep.subr.bf16.mxu0 %v3720
    %3932 = vmatpush2.bf16.msra.mxu0 %v3719
    %3933 = vmatprep.subr.bf16.mxu0 %v3712
    %3934 = vmatpush2.bf16.msra.mxu0 %v3711
    %3935 = vmatprep.mubr.bf16.mxu0 %v3090
    %3936 = vmatmul.mubr.bf16.gmra.mxu0 %v3089
    %v3937 = vpop.f32.mrf.mxu0
    %v3938 = vadd.f32 %v3226, %v3937
    %v3939 = vpop.f32.mrf.mxu0
    %v3940 = vadd.f32 %v3230, %v3939
    %v3941 = vpop.f32.mrf.mxu0
    %v3942 = vadd.f32 %v3226, %v3941
    %v3943 = vpop.f32.mrf.mxu0
    %v3944 = vadd.f32 %v3230, %v3943
    %3945 = vmatprep.mubr.bf16.mxu0 %v3092
    %3946 = vmatmul.mubr.bf16.gmra.mxu0 %v3091
    %v3947 = vpop.f32.mrf.mxu0
    %v3948 = vadd.f32 %v3226, %v3947
    %v3949 = vpop.f32.mrf.mxu0
    %v3950 = vadd.f32 %v3230, %v3949
    %v3951 = vpop.f32.mrf.mxu0
    %v3952 = vadd.f32 %v3226, %v3951
    %v3953 = vpop.f32.mrf.mxu0
    %v3954 = vadd.f32 %v3230, %v3953
    %3955 = vdwg.mxu0
    %3956 = vmatprep.subr.bf16.mxu0 %v3706
    %3957 = vmatpush1.bf16.msra.mxu0 %v3705
    %3958 = vmatprep.subr.bf16.mxu0 %v3698
    %3959 = vmatpush1.bf16.msra.mxu0 %v3697
    %3960 = vmatprep.subr.bf16.mxu0 %v3690
    %3961 = vmatpush1.bf16.msra.mxu0 %v3689
    %3962 = vmatprep.subr.bf16.mxu0 %v3682
    %3963 = vmatpush1.bf16.msra.mxu0 %v3681
    %3964 = vmatprep.subr.bf16.mxu0 %v3674
    %3965 = vmatpush1.bf16.msra.mxu0 %v3673
    %3966 = vmatprep.subr.bf16.mxu0 %v3666
    %3967 = vmatpush1.bf16.msra.mxu0 %v3665
    %3968 = vmatprep.subr.bf16.mxu0 %v3658
    %3969 = vmatpush1.bf16.msra.mxu0 %v3657
    %3970 = vmatprep.subr.bf16.mxu0 %v3650
    %3971 = vmatpush1.bf16.msra.mxu0 %v3649
    %3972 = vmatprep.subr.bf16.mxu0 %v3770
    %3973 = vmatpush2.bf16.msra.mxu0 %v3769
    %3974 = vmatprep.subr.bf16.mxu0 %v3762
    %3975 = vmatpush2.bf16.msra.mxu0 %v3761
    %3976 = vmatprep.subr.bf16.mxu0 %v3754
    %3977 = vmatpush2.bf16.msra.mxu0 %v3753
    %3978 = vmatprep.subr.bf16.mxu0 %v3746
    %3979 = vmatpush2.bf16.msra.mxu0 %v3745
    %3980 = vmatprep.subr.bf16.mxu0 %v3738
    %3981 = vmatpush2.bf16.msra.mxu0 %v3737
    %3982 = vmatprep.subr.bf16.mxu0 %v3730
    %3983 = vmatpush2.bf16.msra.mxu0 %v3729
    %3984 = vmatprep.subr.bf16.mxu0 %v3722
    %3985 = vmatpush2.bf16.msra.mxu0 %v3721
    %3986 = vmatprep.subr.bf16.mxu0 %v3714
    %3987 = vmatpush2.bf16.msra.mxu0 %v3713
    %3988 = vmatprep.mubr.bf16.mxu0 %v3090
    %3989 = vmatmul.mubr.bf16.gmra.mxu0 %v3089
    %v3990 = vpop.f32.mrf.mxu0
    %v3991 = vadd.f32 %v3234, %v3990
    %v3992 = vpop.f32.mrf.mxu0
    %v3993 = vadd.f32 %v3238, %v3992
    %v3994 = vpop.f32.mrf.mxu0
    %v3995 = vadd.f32 %v3234, %v3994
    %v3996 = vpop.f32.mrf.mxu0
    %v3997 = vadd.f32 %v3238, %v3996
    %3998 = vmatprep.mubr.bf16.mxu0 %v3092
    %3999 = vmatmul.mubr.bf16.gmra.mxu0 %v3091
    %v4000 = vpop.f32.mrf.mxu0
    %v4001 = vadd.f32 %v3234, %v4000
    %v4002 = vpop.f32.mrf.mxu0
    %v4003 = vadd.f32 %v3238, %v4002
    %v4004 = vpop.f32.mrf.mxu0
    %v4005 = vadd.f32 %v3234, %v4004
    %v4006 = vpop.f32.mrf.mxu0
    %v4007 = vadd.f32 %v3238, %v4006
    %4008 = vdwg.mxu0
    %4009 = vmatprep.subr.bf16.mxu0 %v3708
    %4010 = vmatpush1.bf16.msra.mxu0 %v3707
    %4011 = vmatprep.subr.bf16.mxu0 %v3700
    %4012 = vmatpush1.bf16.msra.mxu0 %v3699
    %4013 = vmatprep.subr.bf16.mxu0 %v3692
    %4014 = vmatpush1.bf16.msra.mxu0 %v3691
    %4015 = vmatprep.subr.bf16.mxu0 %v3684
    %4016 = vmatpush1.bf16.msra.mxu0 %v3683
    %4017 = vmatprep.subr.bf16.mxu0 %v3676
    %4018 = vmatpush1.bf16.msra.mxu0 %v3675
    %4019 = vmatprep.subr.bf16.mxu0 %v3668
    %4020 = vmatpush1.bf16.msra.mxu0 %v3667
    %4021 = vmatprep.subr.bf16.mxu0 %v3660
    %4022 = vmatpush1.bf16.msra.mxu0 %v3659
    %4023 = vmatprep.subr.bf16.mxu0 %v3652
    %4024 = vmatpush1.bf16.msra.mxu0 %v3651
    %4025 = vmatprep.subr.bf16.mxu0 %v3772
    %4026 = vmatpush2.bf16.msra.mxu0 %v3771
    %4027 = vmatprep.subr.bf16.mxu0 %v3764
    %4028 = vmatpush2.bf16.msra.mxu0 %v3763
    %4029 = vmatprep.subr.bf16.mxu0 %v3756
    %4030 = vmatpush2.bf16.msra.mxu0 %v3755
    %4031 = vmatprep.subr.bf16.mxu0 %v3748
    %4032 = vmatpush2.bf16.msra.mxu0 %v3747
    %4033 = vmatprep.subr.bf16.mxu0 %v3740
    %4034 = vmatpush2.bf16.msra.mxu0 %v3739
    %4035 = vmatprep.subr.bf16.mxu0 %v3732
    %4036 = vmatpush2.bf16.msra.mxu0 %v3731
    %4037 = vmatprep.subr.bf16.mxu0 %v3724
    %4038 = vmatpush2.bf16.msra.mxu0 %v3723
    %4039 = vmatprep.subr.bf16.mxu0 %v3716
    %4040 = vmatpush2.bf16.msra.mxu0 %v3715
    %4041 = vmatprep.mubr.bf16.mxu0 %v3090
    %4042 = vmatmul.mubr.bf16.gmra.mxu0 %v3089
    %v4043 = vpop.f32.mrf.mxu0
    %v4044 = vadd.f32 %v3242, %v4043
    %v4045 = vpop.f32.mrf.mxu0
    %v4046 = vadd.f32 %v3246, %v4045
    %v4047 = vpop.f32.mrf.mxu0
    %v4048 = vadd.f32 %v3242, %v4047
    %v4049 = vpop.f32.mrf.mxu0
    %v4050 = vadd.f32 %v3246, %v4049
    %4051 = vmatprep.mubr.bf16.mxu0 %v3092
    %4052 = vmatmul.mubr.bf16.gmra.mxu0 %v3091
    %v4053 = vpop.f32.mrf.mxu0
    %v4054 = vadd.f32 %v3242, %v4053
    %v4055 = vpop.f32.mrf.mxu0
    %v4056 = vadd.f32 %v3246, %v4055
    %v4057 = vpop.f32.mrf.mxu0
    %v4058 = vadd.f32 %v3242, %v4057
    %v4059 = vpop.f32.mrf.mxu0
    %v4060 = vadd.f32 %v3246, %v4059
    %4061 = vdwg.mxu0
    %4062 = vmatprep.subr.bf16.mxu0 %v3710
    %4063 = vmatpush1.bf16.msra.mxu0 %v3709
    %4064 = vmatprep.subr.bf16.mxu0 %v3702
    %4065 = vmatpush1.bf16.msra.mxu0 %v3701
    %4066 = vmatprep.subr.bf16.mxu0 %v3694
    %4067 = vmatpush1.bf16.msra.mxu0 %v3693
    %4068 = vmatprep.subr.bf16.mxu0 %v3686
    %4069 = vmatpush1.bf16.msra.mxu0 %v3685
    %4070 = vmatprep.subr.bf16.mxu0 %v3678
    %4071 = vmatpush1.bf16.msra.mxu0 %v3677
    %4072 = vmatprep.subr.bf16.mxu0 %v3670
    %4073 = vmatpush1.bf16.msra.mxu0 %v3669
    %4074 = vmatprep.subr.bf16.mxu0 %v3662
    %4075 = vmatpush1.bf16.msra.mxu0 %v3661
    %4076 = vmatprep.subr.bf16.mxu0 %v3654
    %4077 = vmatpush1.bf16.msra.mxu0 %v3653
    %4078 = vmatprep.subr.bf16.mxu0 %v3774
    %4079 = vmatpush2.bf16.msra.mxu0 %v3773
    %4080 = vmatprep.subr.bf16.mxu0 %v3766
    %4081 = vmatpush2.bf16.msra.mxu0 %v3765
    %4082 = vmatprep.subr.bf16.mxu0 %v3758
    %4083 = vmatpush2.bf16.msra.mxu0 %v3757
    %4084 = vmatprep.subr.bf16.mxu0 %v3750
    %4085 = vmatpush2.bf16.msra.mxu0 %v3749
    %4086 = vmatprep.subr.bf16.mxu0 %v3742
    %4087 = vmatpush2.bf16.msra.mxu0 %v3741
    %4088 = vmatprep.subr.bf16.mxu0 %v3734
    %4089 = vmatpush2.bf16.msra.mxu0 %v3733
    %4090 = vmatprep.subr.bf16.mxu0 %v3726
    %4091 = vmatpush2.bf16.msra.mxu0 %v3725
    %4092 = vmatprep.subr.bf16.mxu0 %v3718
    %4093 = vmatpush2.bf16.msra.mxu0 %v3717
    %4094 = vmatprep.mubr.bf16.mxu0 %v3090
    %4095 = vmatmul.mubr.bf16.gmra.mxu0 %v3089
    %v4096 = vpop.f32.mrf.mxu0
    %v4097 = vadd.f32 %v3250, %v4096
    %v4098 = vpop.f32.mrf.mxu0
    %v4099 = vadd.f32 %v3254, %v4098
    %v4100 = vpop.f32.mrf.mxu0
    %v4101 = vadd.f32 %v3250, %v4100
    %v4102 = vpop.f32.mrf.mxu0
    %v4103 = vadd.f32 %v3254, %v4102
    %4104 = vmatprep.mubr.bf16.mxu0 %v3092
    %4105 = vmatmul.mubr.bf16.gmra.mxu0 %v3091
    %v4106 = vpop.f32.mrf.mxu0
    %v4107 = vadd.f32 %v3250, %v4106
    %v4108 = vpop.f32.mrf.mxu0
    %v4109 = vadd.f32 %v3254, %v4108
    %v4110 = vpop.f32.mrf.mxu0
    %v4111 = vadd.f32 %v3250, %v4110
    %v4112 = vpop.f32.mrf.mxu0
    %v4113 = vadd.f32 %v3254, %v4112
    %4114 = vdwg.mxu0
    %4115 = vst [vmem:[#allocation2] sm:$0xff] %v3938
    %4116 = vst [vmem:[#allocation2 + $0x8] sm:$0xff] %v3940
    %4117 = vst [vmem:[#allocation2 + $0x10] sm:$0xff] %v3991
    %4118 = vst [vmem:[#allocation2 + $0x18] sm:$0xff] %v3993
    %4119 = vst [vmem:[#allocation2 + $0x20] sm:$0xff] %v4044
    %4120 = vst [vmem:[#allocation2 + $0x28] sm:$0xff] %v4046
    %4121 = vst [vmem:[#allocation2 + $0x30] sm:$0xff] %v4097
    %4122 = vst [vmem:[#allocation2 + $0x38] sm:$0xff] %v4099
    %4123 = vst [vmem:[#allocation2 + $0x40] sm:$0xff] %v3942
    %4124 = vst [vmem:[#allocation2 + $0x48] sm:$0xff] %v3944
    %4125 = vst [vmem:[#allocation2 + $0x50] sm:$0xff] %v3995
    %4126 = vst [vmem:[#allocation2 + $0x58] sm:$0xff] %v3997
    %4127 = vst [vmem:[#allocation2 + $0x60] sm:$0xff] %v4048
    %4128 = vst [vmem:[#allocation2 + $0x68] sm:$0xff] %v4050
    %4129 = vst [vmem:[#allocation2 + $0x70] sm:$0xff] %v4101
    %4130 = vst [vmem:[#allocation2 + $0x78] sm:$0xff] %v4103
    %4131 = vst [vmem:[#allocation2 + $0x80] sm:$0xff] %v3948
    %4132 = vst [vmem:[#allocation2 + $0x88] sm:$0xff] %v3950
    %4133 = vst [vmem:[#allocation2 + $0x90] sm:$0xff] %v4001
    %4134 = vst [vmem:[#allocation2 + $0x98] sm:$0xff] %v4003
    %4135 = vst [vmem:[#allocation2 + $0xa0] sm:$0xff] %v4054
    %4136 = vst [vmem:[#allocation2 + $0xa8] sm:$0xff] %v4056
    %4137 = vst [vmem:[#allocation2 + $0xb0] sm:$0xff] %v4107
    %4138 = vst [vmem:[#allocation2 + $0xb8] sm:$0xff] %v4109
    %4139 = vst [vmem:[#allocation2 + $0xc0] sm:$0xff] %v3952
    %4140 = vst [vmem:[#allocation2 + $0xc8] sm:$0xff] %v3954
    %4141 = vst [vmem:[#allocation2 + $0xd0] sm:$0xff] %v4005
    %4142 = vst [vmem:[#allocation2 + $0xd8] sm:$0xff] %v4007
    %4143 = vst [vmem:[#allocation2 + $0xe0] sm:$0xff] %v4058
    %4144 = vst [vmem:[#allocation2 + $0xe8] sm:$0xff] %v4060
    %4145 = vst [vmem:[#allocation2 + $0xf0] sm:$0xff] %v4111
    %4146 = vst [vmem:[#allocation2 + $0xf8] sm:$0xff] %v4113
    %4147 = vst [vmem:[#allocation3] sm:$0xff] 0.0
    %4148 = vst [vmem:[#allocation4] sm:$0xff] 0.0
    %4149 = vst [vmem:[#allocation5] sm:$0xff] 0.0
    %4150 = vst [vmem:[#allocation6] sm:$0xff] 0.0
    loop: start=0, step=1, limit=4
    $region132: #{global_module_forward.3} parent=1 // loop_pre_header
      _
    $region133: #{global_module_forward.3} parent=1 // loop_header
      %s4152 = sphi 0, %s4156
      %p4153 = scmp.ge.s32.totalorder %s4152, 4
    $region134: #{global_module_forward.3} parent=1 // loop_header_branch
      %4155 = sbr.rel (%p4153) target = $region138
    $region135: #{global_module_forward.3} parent=1 // loop_body
      %s4157 = smul.u32 %s4152, 8
      %s4158 = sshra.s32 %s4157, 3
      %s4159 = sand.u32 %s4157, 7
      %s4160 = smul.u32 %s4158, 8
      %s4161 = smul.addr %s4160, 8
      %s4162 = scalar_lea.vmem [#allocation2], %s4161
      %v4163 = vld [vmem:[%s4162] sm:$0xff]
      %v4164 = vld [vmem:[%s4162 + $0x8] sm:$0xff]
      %v4165 = vld [vmem:[%s4162 + $0x10] sm:$0xff]
      %v4166 = vld [vmem:[%s4162 + $0x18] sm:$0xff]
      %v4167 = vld [vmem:[#allocation3] sm:$0xff]
      %v4168 = vpack.c.bf16 %v4167, %v4167
      %v4169 = vld [vmem:[#allocation20] sm:$0xff]
      %v4170 = vld [vmem:[#allocation20 + $0x8] sm:$0xff]
      %v4171 = vld [vmem:[#allocation20 + $0x10] sm:$0xff]
      %v4172 = vld [vmem:[#allocation20 + $0x18] sm:$0xff]
      %v4173 = vld [vmem:[#allocation20 + $0x20] sm:$0xff]
      %v4174 = vld [vmem:[#allocation20 + $0x28] sm:$0xff]
      %v4175 = vld [vmem:[#allocation20 + $0x30] sm:$0xff]
      %v4176 = vld [vmem:[#allocation20 + $0x38] sm:$0xff]
      %v4177 = vld [vmem:[#allocation20 + $0x40] sm:$0xff]
      %v4178 = vld [vmem:[#allocation20 + $0x48] sm:$0xff]
      %v4179 = vld [vmem:[#allocation20 + $0x50] sm:$0xff]
      %v4180 = vld [vmem:[#allocation20 + $0x58] sm:$0xff]
      %v4181 = vld [vmem:[#allocation20 + $0x60] sm:$0xff]
      %v4182 = vld [vmem:[#allocation20 + $0x68] sm:$0xff]
      %v4183 = vld [vmem:[#allocation20 + $0x70] sm:$0xff]
      %v4184 = vld [vmem:[#allocation20 + $0x78] sm:$0xff]
      %v4185 = vld [vmem:[#allocation20 + $0x80] sm:$0xff]
      %v4186 = vld [vmem:[#allocation20 + $0x88] sm:$0xff]
      %v4187 = vld [vmem:[#allocation20 + $0x90] sm:$0xff]
      %v4188 = vld [vmem:[#allocation20 + $0x98] sm:$0xff]
      %v4189 = vld [vmem:[#allocation20 + $0xa0] sm:$0xff]
      %v4190 = vld [vmem:[#allocation20 + $0xa8] sm:$0xff]
      %v4191 = vld [vmem:[#allocation20 + $0xb0] sm:$0xff]
      %v4192 = vld [vmem:[#allocation20 + $0xb8] sm:$0xff]
      %v4193 = vld [vmem:[#allocation20 + $0xc0] sm:$0xff]
      %v4194 = vld [vmem:[#allocation20 + $0xc8] sm:$0xff]
      %v4195 = vld [vmem:[#allocation20 + $0xd0] sm:$0xff]
      %v4196 = vld [vmem:[#allocation20 + $0xd8] sm:$0xff]
      %v4197 = vld [vmem:[#allocation20 + $0xe0] sm:$0xff]
      %v4198 = vld [vmem:[#allocation20 + $0xe8] sm:$0xff]
      %v4199 = vld [vmem:[#allocation20 + $0xf0] sm:$0xff]
      %v4200 = vld [vmem:[#allocation20 + $0xf8] sm:$0xff]
      %v4233 = vunpack.c.l.b16 %v4169
      %v4234 = vunpack.c.h.b16 %v4169
      %v4235 = vunpack.c.l.b16 %v4170
      %v4236 = vunpack.c.h.b16 %v4170
      %v4237 = vunpack.c.l.b16 %v4171
      %v4238 = vunpack.c.h.b16 %v4171
      %v4239 = vunpack.c.l.b16 %v4172
      %v4240 = vunpack.c.h.b16 %v4172
      %v4241 = vunpack.c.l.b16 %v4173
      %v4242 = vunpack.c.h.b16 %v4173
      %v4243 = vunpack.c.l.b16 %v4174
      %v4244 = vunpack.c.h.b16 %v4174
      %v4245 = vunpack.c.l.b16 %v4175
      %v4246 = vunpack.c.h.b16 %v4175
      %v4247 = vunpack.c.l.b16 %v4176
      %v4248 = vunpack.c.h.b16 %v4176
      %v4249 = vunpack.c.l.b16 %v4177
      %v4250 = vunpack.c.h.b16 %v4177
      %v4251 = vunpack.c.l.b16 %v4178
      %v4252 = vunpack.c.h.b16 %v4178
      %v4253 = vunpack.c.l.b16 %v4179
      %v4254 = vunpack.c.h.b16 %v4179
      %v4255 = vunpack.c.l.b16 %v4180
      %v4256 = vunpack.c.h.b16 %v4180
      %v4257 = vunpack.c.l.b16 %v4181
      %v4258 = vunpack.c.h.b16 %v4181
      %v4259 = vunpack.c.l.b16 %v4182
      %v4260 = vunpack.c.h.b16 %v4182
      %v4261 = vunpack.c.l.b16 %v4183
      %v4262 = vunpack.c.h.b16 %v4183
      %v4263 = vunpack.c.l.b16 %v4184
      %v4264 = vunpack.c.h.b16 %v4184
      %v4265 = vunpack.c.l.b16 %v4185
      %v4266 = vunpack.c.h.b16 %v4185
      %v4267 = vunpack.c.l.b16 %v4186
      %v4268 = vunpack.c.h.b16 %v4186
      %v4269 = vunpack.c.l.b16 %v4187
      %v4270 = vunpack.c.h.b16 %v4187
      %v4271 = vunpack.c.l.b16 %v4188
      %v4272 = vunpack.c.h.b16 %v4188
      %v4273 = vunpack.c.l.b16 %v4189
      %v4274 = vunpack.c.h.b16 %v4189
      %v4275 = vunpack.c.l.b16 %v4190
      %v4276 = vunpack.c.h.b16 %v4190
      %v4277 = vunpack.c.l.b16 %v4191
      %v4278 = vunpack.c.h.b16 %v4191
      %v4279 = vunpack.c.l.b16 %v4192
      %v4280 = vunpack.c.h.b16 %v4192
      %v4281 = vunpack.c.l.b16 %v4193
      %v4282 = vunpack.c.h.b16 %v4193
      %v4283 = vunpack.c.l.b16 %v4194
      %v4284 = vunpack.c.h.b16 %v4194
      %v4285 = vunpack.c.l.b16 %v4195
      %v4286 = vunpack.c.h.b16 %v4195
      %v4287 = vunpack.c.l.b16 %v4196
      %v4288 = vunpack.c.h.b16 %v4196
      %v4289 = vunpack.c.l.b16 %v4197
      %v4290 = vunpack.c.h.b16 %v4197
      %v4291 = vunpack.c.l.b16 %v4198
      %v4292 = vunpack.c.h.b16 %v4198
      %v4293 = vunpack.c.l.b16 %v4199
      %v4294 = vunpack.c.h.b16 %v4199
      %v4295 = vunpack.c.l.b16 %v4200
      %v4296 = vunpack.c.h.b16 %v4200
      %v4297 = vpack.c.b16 %v4237, %v4233
      %v4298 = vpack.c.b16 %v4238, %v4234
      %v4299 = vpack.c.b16 %v4239, %v4235
      %v4300 = vpack.c.b16 %v4240, %v4236
      %v4301 = vpack.c.b16 %v4245, %v4241
      %v4302 = vpack.c.b16 %v4246, %v4242
      %v4303 = vpack.c.b16 %v4247, %v4243
      %v4304 = vpack.c.b16 %v4248, %v4244
      %v4305 = vpack.c.b16 %v4253, %v4249
      %v4306 = vpack.c.b16 %v4254, %v4250
      %v4307 = vpack.c.b16 %v4255, %v4251
      %v4308 = vpack.c.b16 %v4256, %v4252
      %v4309 = vpack.c.b16 %v4261, %v4257
      %v4310 = vpack.c.b16 %v4262, %v4258
      %v4311 = vpack.c.b16 %v4263, %v4259
      %v4312 = vpack.c.b16 %v4264, %v4260
      %v4313 = vpack.c.b16 %v4269, %v4265
      %v4314 = vpack.c.b16 %v4270, %v4266
      %v4315 = vpack.c.b16 %v4271, %v4267
      %v4316 = vpack.c.b16 %v4272, %v4268
      %v4317 = vpack.c.b16 %v4277, %v4273
      %v4318 = vpack.c.b16 %v4278, %v4274
      %v4319 = vpack.c.b16 %v4279, %v4275
      %v4320 = vpack.c.b16 %v4280, %v4276
      %v4321 = vpack.c.b16 %v4285, %v4281
      %v4322 = vpack.c.b16 %v4286, %v4282
      %v4323 = vpack.c.b16 %v4287, %v4283
      %v4324 = vpack.c.b16 %v4288, %v4284
      %v4325 = vpack.c.b16 %v4293, %v4289
      %v4326 = vpack.c.b16 %v4294, %v4290
      %v4327 = vpack.c.b16 %v4295, %v4291
      %v4328 = vpack.c.b16 %v4296, %v4292
      %4361 = vmatprep.subr.bf16.mxu0 %v4326
      %4362 = vmatpush1.bf16.msra.mxu0 %v4325
      %4363 = vmatprep.subr.bf16.mxu0 %v4322
      %4364 = vmatpush1.bf16.msra.mxu0 %v4321
      %4365 = vmatprep.subr.bf16.mxu0 %v4318
      %4366 = vmatpush1.bf16.msra.mxu0 %v4317
      %4367 = vmatprep.subr.bf16.mxu0 %v4314
      %4368 = vmatpush1.bf16.msra.mxu0 %v4313
      %4369 = vmatprep.subr.bf16.mxu0 %v4310
      %4370 = vmatpush1.bf16.msra.mxu0 %v4309
      %4371 = vmatprep.subr.bf16.mxu0 %v4306
      %4372 = vmatpush1.bf16.msra.mxu0 %v4305
      %4373 = vmatprep.subr.bf16.mxu0 %v4302
      %4374 = vmatpush1.bf16.msra.mxu0 %v4301
      %4375 = vmatprep.subr.bf16.mxu0 %v4298
      %4376 = vmatpush1.bf16.msra.mxu0 %v4297
      %4377 = vmatprep.subr.bf16.mxu0 0
      %4378 = vmatpush2.bf16.msra.mxu0 0
      %4379 = vmatprep.subr.bf16.mxu0 0
      %4380 = vmatpush2.bf16.msra.mxu0 0
      %4381 = vmatprep.subr.bf16.mxu0 0
      %4382 = vmatpush2.bf16.msra.mxu0 0
      %4383 = vmatprep.subr.bf16.mxu0 0
      %4384 = vmatpush2.bf16.msra.mxu0 0
      %4385 = vmatprep.subr.bf16.mxu0 0
      %4386 = vmatpush2.bf16.msra.mxu0 0
      %4387 = vmatprep.subr.bf16.mxu0 0
      %4388 = vmatpush2.bf16.msra.mxu0 0
      %4389 = vmatprep.subr.bf16.mxu0 0
      %4390 = vmatpush2.bf16.msra.mxu0 0
      %4391 = vmatprep.subr.bf16.mxu0 0
      %4392 = vmatpush2.bf16.msra.mxu0 0
      %4393 = vmatprep.mubr.bf16.mxu0 0
      %4394 = vmatmul.mubr.bf16.gmra.mxu0 %v4168
      %v4395 = vpop.f32.mrf.mxu0
      %v4396 = vadd.f32 0.0, %v4395
      %v4397 = vpop.f32.mrf.mxu0
      %v4398 = vadd.f32 0.0, %v4397
      %v4399 = vpop.f32.mrf.mxu0
      %v4400 = vpop.f32.mrf.mxu0
      %4401 = vdwg.mxu0
      %4402 = vmatprep.subr.bf16.mxu0 %v4328
      %4403 = vmatpush1.bf16.msra.mxu0 %v4327
      %4404 = vmatprep.subr.bf16.mxu0 %v4324
      %4405 = vmatpush1.bf16.msra.mxu0 %v4323
      %4406 = vmatprep.subr.bf16.mxu0 %v4320
      %4407 = vmatpush1.bf16.msra.mxu0 %v4319
      %4408 = vmatprep.subr.bf16.mxu0 %v4316
      %4409 = vmatpush1.bf16.msra.mxu0 %v4315
      %4410 = vmatprep.subr.bf16.mxu0 %v4312
      %4411 = vmatpush1.bf16.msra.mxu0 %v4311
      %4412 = vmatprep.subr.bf16.mxu0 %v4308
      %4413 = vmatpush1.bf16.msra.mxu0 %v4307
      %4414 = vmatprep.subr.bf16.mxu0 %v4304
      %4415 = vmatpush1.bf16.msra.mxu0 %v4303
      %4416 = vmatprep.subr.bf16.mxu0 %v4300
      %4417 = vmatpush1.bf16.msra.mxu0 %v4299
      %4418 = vmatprep.subr.bf16.mxu0 0
      %4419 = vmatpush2.bf16.msra.mxu0 0
      %4420 = vmatprep.subr.bf16.mxu0 0
      %4421 = vmatpush2.bf16.msra.mxu0 0
      %4422 = vmatprep.subr.bf16.mxu0 0
      %4423 = vmatpush2.bf16.msra.mxu0 0
      %4424 = vmatprep.subr.bf16.mxu0 0
      %4425 = vmatpush2.bf16.msra.mxu0 0
      %4426 = vmatprep.subr.bf16.mxu0 0
      %4427 = vmatpush2.bf16.msra.mxu0 0
      %4428 = vmatprep.subr.bf16.mxu0 0
      %4429 = vmatpush2.bf16.msra.mxu0 0
      %4430 = vmatprep.subr.bf16.mxu0 0
      %4431 = vmatpush2.bf16.msra.mxu0 0
      %4432 = vmatprep.subr.bf16.mxu0 0
      %4433 = vmatpush2.bf16.msra.mxu0 0
      %4434 = vmatprep.mubr.bf16.mxu0 0
      %4435 = vmatmul.mubr.bf16.gmra.mxu0 %v4168
      %v4436 = vpop.f32.mrf.mxu0
      %v4437 = vadd.f32 0.0, %v4436
      %v4438 = vpop.f32.mrf.mxu0
      %v4439 = vadd.f32 0.0, %v4438
      %v4440 = vpop.f32.mrf.mxu0
      %v4441 = vpop.f32.mrf.mxu0
      %4442 = vdwg.mxu0
      %v4443 = vadd.f32 %v4163, %v4396
      %v4444 = vadd.f32 %v4164, %v4398
      %v4445 = vadd.f32 %v4165, %v4437
      %v4446 = vadd.f32 %v4166, %v4439
      %v4447 = vld [vmem:[#allocation4] sm:$0xff]
      %v4448 = vxor.u32 %v4443, 2147483648
      %v4449 = vmul.f32 %v4448, 1.442695
      %v4450 = vpow.pop %v4449
      %v4451 = vadd.f32 %v4450, 1.0
      %v4452 = vrcp.pop %v4451
      %v4453 = vmul.f32 1.0, %v4452
      %v4454 = vxor.u32 %v4444, 2147483648
      %v4455 = vmul.f32 %v4454, 1.442695
      %v4456 = vpow.pop %v4455
      %v4457 = vadd.f32 %v4456, 1.0
      %v4458 = vrcp.pop %v4457
      %v4459 = vmul.f32 1.0, %v4458
      %v4460 = vtanh.pop %v4445
      %v4461 = vxor.u32 %v4446, 2147483648
      %v4462 = vmul.f32 %v4461, 1.442695
      %v4463 = vpow.pop %v4462
      %v4464 = vadd.f32 %v4463, 1.0
      %v4465 = vrcp.pop %v4464
      %v4466 = vmul.f32 1.0, %v4465
      %v4467 = vmul.f32 %v4459, %v4447
      %v4468 = vmul.f32 %v4453, %v4460
      %v4469 = vadd.f32 %v4467, %v4468
      %v4470 = vtanh.pop %v4469
      %v4471 = vmul.f32 %v4466, %v4470
      %4472 = vst [vmem:[#allocation3] sm:$0xff] %v4471
      %4473 = vst [vmem:[#allocation4] sm:$0xff] %v4469
      %s4474 = smul.u32 %s4158, 2
      %s4475 = smul.addr %s4474, 8
      %s4476 = scalar_lea.vmem %s17, %s4475
      %4477 = vst [vmem:[%s4476] sm:$0xff] %v4471
      %s4478 = ssub.s32 3, %s4152
      %s4479 = smul.u32 %s4478, 8
      %s4480 = sshra.s32 %s4479, 3
      %s4481 = sand.u32 %s4479, 7
      %s4482 = smul.u32 %s4480, 8
      %s4483 = smul.addr %s4482, 8
      %s4484 = scalar_lea.vmem [#allocation2], %s4483
      %v4485 = vld [vmem:[%s4484 + $0x20] sm:$0xff]
      %v4486 = vld [vmem:[%s4484 + $0x28] sm:$0xff]
      %v4487 = vld [vmem:[%s4484 + $0x30] sm:$0xff]
      %v4488 = vld [vmem:[%s4484 + $0x38] sm:$0xff]
      %v4489 = vld [vmem:[#allocation5] sm:$0xff]
      %v4490 = vpack.c.bf16 %v4489, %v4489
      %v4491 = vld [vmem:[#allocation21] sm:$0xff]
      %v4492 = vld [vmem:[#allocation21 + $0x8] sm:$0xff]
      %v4493 = vld [vmem:[#allocation21 + $0x10] sm:$0xff]
      %v4494 = vld [vmem:[#allocation21 + $0x18] sm:$0xff]
      %v4495 = vld [vmem:[#allocation21 + $0x20] sm:$0xff]
      %v4496 = vld [vmem:[#allocation21 + $0x28] sm:$0xff]
      %v4497 = vld [vmem:[#allocation21 + $0x30] sm:$0xff]
      %v4498 = vld [vmem:[#allocation21 + $0x38] sm:$0xff]
      %v4499 = vld [vmem:[#allocation21 + $0x40] sm:$0xff]
      %v4500 = vld [vmem:[#allocation21 + $0x48] sm:$0xff]
      %v4501 = vld [vmem:[#allocation21 + $0x50] sm:$0xff]
      %v4502 = vld [vmem:[#allocation21 + $0x58] sm:$0xff]
      %v4503 = vld [vmem:[#allocation21 + $0x60] sm:$0xff]
      %v4504 = vld [vmem:[#allocation21 + $0x68] sm:$0xff]
      %v4505 = vld [vmem:[#allocation21 + $0x70] sm:$0xff]
      %v4506 = vld [vmem:[#allocation21 + $0x78] sm:$0xff]
      %v4507 = vld [vmem:[#allocation21 + $0x80] sm:$0xff]
      %v4508 = vld [vmem:[#allocation21 + $0x88] sm:$0xff]
      %v4509 = vld [vmem:[#allocation21 + $0x90] sm:$0xff]
      %v4510 = vld [vmem:[#allocation21 + $0x98] sm:$0xff]
      %v4511 = vld [vmem:[#allocation21 + $0xa0] sm:$0xff]
      %v4512 = vld [vmem:[#allocation21 + $0xa8] sm:$0xff]
      %v4513 = vld [vmem:[#allocation21 + $0xb0] sm:$0xff]
      %v4514 = vld [vmem:[#allocation21 + $0xb8] sm:$0xff]
      %v4515 = vld [vmem:[#allocation21 + $0xc0] sm:$0xff]
      %v4516 = vld [vmem:[#allocation21 + $0xc8] sm:$0xff]
      %v4517 = vld [vmem:[#allocation21 + $0xd0] sm:$0xff]
      %v4518 = vld [vmem:[#allocation21 + $0xd8] sm:$0xff]
      %v4519 = vld [vmem:[#allocation21 + $0xe0] sm:$0xff]
      %v4520 = vld [vmem:[#allocation21 + $0xe8] sm:$0xff]
      %v4521 = vld [vmem:[#allocation21 + $0xf0] sm:$0xff]
      %v4522 = vld [vmem:[#allocation21 + $0xf8] sm:$0xff]
      %v4555 = vunpack.c.l.b16 %v4491
      %v4556 = vunpack.c.h.b16 %v4491
      %v4557 = vunpack.c.l.b16 %v4492
      %v4558 = vunpack.c.h.b16 %v4492
      %v4559 = vunpack.c.l.b16 %v4493
      %v4560 = vunpack.c.h.b16 %v4493
      %v4561 = vunpack.c.l.b16 %v4494
      %v4562 = vunpack.c.h.b16 %v4494
      %v4563 = vunpack.c.l.b16 %v4495
      %v4564 = vunpack.c.h.b16 %v4495
      %v4565 = vunpack.c.l.b16 %v4496
      %v4566 = vunpack.c.h.b16 %v4496
      %v4567 = vunpack.c.l.b16 %v4497
      %v4568 = vunpack.c.h.b16 %v4497
      %v4569 = vunpack.c.l.b16 %v4498
      %v4570 = vunpack.c.h.b16 %v4498
      %v4571 = vunpack.c.l.b16 %v4499
      %v4572 = vunpack.c.h.b16 %v4499
      %v4573 = vunpack.c.l.b16 %v4500
      %v4574 = vunpack.c.h.b16 %v4500
      %v4575 = vunpack.c.l.b16 %v4501
      %v4576 = vunpack.c.h.b16 %v4501
      %v4577 = vunpack.c.l.b16 %v4502
      %v4578 = vunpack.c.h.b16 %v4502
      %v4579 = vunpack.c.l.b16 %v4503
      %v4580 = vunpack.c.h.b16 %v4503
      %v4581 = vunpack.c.l.b16 %v4504
      %v4582 = vunpack.c.h.b16 %v4504
      %v4583 = vunpack.c.l.b16 %v4505
      %v4584 = vunpack.c.h.b16 %v4505
      %v4585 = vunpack.c.l.b16 %v4506
      %v4586 = vunpack.c.h.b16 %v4506
      %v4587 = vunpack.c.l.b16 %v4507
      %v4588 = vunpack.c.h.b16 %v4507
      %v4589 = vunpack.c.l.b16 %v4508
      %v4590 = vunpack.c.h.b16 %v4508
      %v4591 = vunpack.c.l.b16 %v4509
      %v4592 = vunpack.c.h.b16 %v4509
      %v4593 = vunpack.c.l.b16 %v4510
      %v4594 = vunpack.c.h.b16 %v4510
      %v4595 = vunpack.c.l.b16 %v4511
      %v4596 = vunpack.c.h.b16 %v4511
      %v4597 = vunpack.c.l.b16 %v4512
      %v4598 = vunpack.c.h.b16 %v4512
      %v4599 = vunpack.c.l.b16 %v4513
      %v4600 = vunpack.c.h.b16 %v4513
      %v4601 = vunpack.c.l.b16 %v4514
      %v4602 = vunpack.c.h.b16 %v4514
      %v4603 = vunpack.c.l.b16 %v4515
      %v4604 = vunpack.c.h.b16 %v4515
      %v4605 = vunpack.c.l.b16 %v4516
      %v4606 = vunpack.c.h.b16 %v4516
      %v4607 = vunpack.c.l.b16 %v4517
      %v4608 = vunpack.c.h.b16 %v4517
      %v4609 = vunpack.c.l.b16 %v4518
      %v4610 = vunpack.c.h.b16 %v4518
      %v4611 = vunpack.c.l.b16 %v4519
      %v4612 = vunpack.c.h.b16 %v4519
      %v4613 = vunpack.c.l.b16 %v4520
      %v4614 = vunpack.c.h.b16 %v4520
      %v4615 = vunpack.c.l.b16 %v4521
      %v4616 = vunpack.c.h.b16 %v4521
      %v4617 = vunpack.c.l.b16 %v4522
      %v4618 = vunpack.c.h.b16 %v4522
      %v4619 = vpack.c.b16 %v4559, %v4555
      %v4620 = vpack.c.b16 %v4560, %v4556
      %v4621 = vpack.c.b16 %v4561, %v4557
      %v4622 = vpack.c.b16 %v4562, %v4558
      %v4623 = vpack.c.b16 %v4567, %v4563
      %v4624 = vpack.c.b16 %v4568, %v4564
      %v4625 = vpack.c.b16 %v4569, %v4565
      %v4626 = vpack.c.b16 %v4570, %v4566
      %v4627 = vpack.c.b16 %v4575, %v4571
      %v4628 = vpack.c.b16 %v4576, %v4572
      %v4629 = vpack.c.b16 %v4577, %v4573
      %v4630 = vpack.c.b16 %v4578, %v4574
      %v4631 = vpack.c.b16 %v4583, %v4579
      %v4632 = vpack.c.b16 %v4584, %v4580
      %v4633 = vpack.c.b16 %v4585, %v4581
      %v4634 = vpack.c.b16 %v4586, %v4582
      %v4635 = vpack.c.b16 %v4591, %v4587
      %v4636 = vpack.c.b16 %v4592, %v4588
      %v4637 = vpack.c.b16 %v4593, %v4589
      %v4638 = vpack.c.b16 %v4594, %v4590
      %v4639 = vpack.c.b16 %v4599, %v4595
      %v4640 = vpack.c.b16 %v4600, %v4596
      %v4641 = vpack.c.b16 %v4601, %v4597
      %v4642 = vpack.c.b16 %v4602, %v4598
      %v4643 = vpack.c.b16 %v4607, %v4603
      %v4644 = vpack.c.b16 %v4608, %v4604
      %v4645 = vpack.c.b16 %v4609, %v4605
      %v4646 = vpack.c.b16 %v4610, %v4606
      %v4647 = vpack.c.b16 %v4615, %v4611
      %v4648 = vpack.c.b16 %v4616, %v4612
      %v4649 = vpack.c.b16 %v4617, %v4613
      %v4650 = vpack.c.b16 %v4618, %v4614
      %4683 = vmatprep.subr.bf16.mxu0 %v4648
      %4684 = vmatpush1.bf16.msra.mxu0 %v4647
      %4685 = vmatprep.subr.bf16.mxu0 %v4644
      %4686 = vmatpush1.bf16.msra.mxu0 %v4643
      %4687 = vmatprep.subr.bf16.mxu0 %v4640
      %4688 = vmatpush1.bf16.msra.mxu0 %v4639
      %4689 = vmatprep.subr.bf16.mxu0 %v4636
      %4690 = vmatpush1.bf16.msra.mxu0 %v4635
      %4691 = vmatprep.subr.bf16.mxu0 %v4632
      %4692 = vmatpush1.bf16.msra.mxu0 %v4631
      %4693 = vmatprep.subr.bf16.mxu0 %v4628
      %4694 = vmatpush1.bf16.msra.mxu0 %v4627
      %4695 = vmatprep.subr.bf16.mxu0 %v4624
      %4696 = vmatpush1.bf16.msra.mxu0 %v4623
      %4697 = vmatprep.subr.bf16.mxu0 %v4620
      %4698 = vmatpush1.bf16.msra.mxu0 %v4619
      %4699 = vmatprep.subr.bf16.mxu0 0
      %4700 = vmatpush2.bf16.msra.mxu0 0
      %4701 = vmatprep.subr.bf16.mxu0 0
      %4702 = vmatpush2.bf16.msra.mxu0 0
      %4703 = vmatprep.subr.bf16.mxu0 0
      %4704 = vmatpush2.bf16.msra.mxu0 0
      %4705 = vmatprep.subr.bf16.mxu0 0
      %4706 = vmatpush2.bf16.msra.mxu0 0
      %4707 = vmatprep.subr.bf16.mxu0 0
      %4708 = vmatpush2.bf16.msra.mxu0 0
      %4709 = vmatprep.subr.bf16.mxu0 0
      %4710 = vmatpush2.bf16.msra.mxu0 0
      %4711 = vmatprep.subr.bf16.mxu0 0
      %4712 = vmatpush2.bf16.msra.mxu0 0
      %4713 = vmatprep.subr.bf16.mxu0 0
      %4714 = vmatpush2.bf16.msra.mxu0 0
      %4715 = vmatprep.mubr.bf16.mxu0 0
      %4716 = vmatmul.mubr.bf16.gmra.mxu0 %v4490
      %v4717 = vpop.f32.mrf.mxu0
      %v4718 = vadd.f32 0.0, %v4717
      %v4719 = vpop.f32.mrf.mxu0
      %v4720 = vadd.f32 0.0, %v4719
      %v4721 = vpop.f32.mrf.mxu0
      %v4722 = vpop.f32.mrf.mxu0
      %4723 = vdwg.mxu0
      %4724 = vmatprep.subr.bf16.mxu0 %v4650
      %4725 = vmatpush1.bf16.msra.mxu0 %v4649
      %4726 = vmatprep.subr.bf16.mxu0 %v4646
      %4727 = vmatpush1.bf16.msra.mxu0 %v4645
      %4728 = vmatprep.subr.bf16.mxu0 %v4642
      %4729 = vmatpush1.bf16.msra.mxu0 %v4641
      %4730 = vmatprep.subr.bf16.mxu0 %v4638
      %4731 = vmatpush1.bf16.msra.mxu0 %v4637
      %4732 = vmatprep.subr.bf16.mxu0 %v4634
      %4733 = vmatpush1.bf16.msra.mxu0 %v4633
      %4734 = vmatprep.subr.bf16.mxu0 %v4630
      %4735 = vmatpush1.bf16.msra.mxu0 %v4629
      %4736 = vmatprep.subr.bf16.mxu0 %v4626
      %4737 = vmatpush1.bf16.msra.mxu0 %v4625
      %4738 = vmatprep.subr.bf16.mxu0 %v4622
      %4739 = vmatpush1.bf16.msra.mxu0 %v4621
      %4740 = vmatprep.subr.bf16.mxu0 0
      %4741 = vmatpush2.bf16.msra.mxu0 0
      %4742 = vmatprep.subr.bf16.mxu0 0
      %4743 = vmatpush2.bf16.msra.mxu0 0
      %4744 = vmatprep.subr.bf16.mxu0 0
      %4745 = vmatpush2.bf16.msra.mxu0 0
      %4746 = vmatprep.subr.bf16.mxu0 0
      %4747 = vmatpush2.bf16.msra.mxu0 0
      %4748 = vmatprep.subr.bf16.mxu0 0
      %4749 = vmatpush2.bf16.msra.mxu0 0
      %4750 = vmatprep.subr.bf16.mxu0 0
      %4751 = vmatpush2.bf16.msra.mxu0 0
      %4752 = vmatprep.subr.bf16.mxu0 0
      %4753 = vmatpush2.bf16.msra.mxu0 0
      %4754 = vmatprep.subr.bf16.mxu0 0
      %4755 = vmatpush2.bf16.msra.mxu0 0
      %4756 = vmatprep.mubr.bf16.mxu0 0
      %4757 = vmatmul.mubr.bf16.gmra.mxu0 %v4490
      %v4758 = vpop.f32.mrf.mxu0
      %v4759 = vadd.f32 0.0, %v4758
      %v4760 = vpop.f32.mrf.mxu0
      %v4761 = vadd.f32 0.0, %v4760
      %v4762 = vpop.f32.mrf.mxu0
      %v4763 = vpop.f32.mrf.mxu0
      %4764 = vdwg.mxu0
      %v4765 = vadd.f32 %v4485, %v4718
      %v4766 = vadd.f32 %v4486, %v4720
      %v4767 = vadd.f32 %v4487, %v4759
      %v4768 = vadd.f32 %v4488, %v4761
      %v4769 = vld [vmem:[#allocation6] sm:$0xff]
      %v4770 = vxor.u32 %v4765, 2147483648
      %v4771 = vmul.f32 %v4770, 1.442695
      %v4772 = vpow.pop %v4771
      %v4773 = vadd.f32 %v4772, 1.0
      %v4774 = vrcp.pop %v4773
      %v4775 = vmul.f32 1.0, %v4774
      %v4776 = vxor.u32 %v4766, 2147483648
      %v4777 = vmul.f32 %v4776, 1.442695
      %v4778 = vpow.pop %v4777
      %v4779 = vadd.f32 %v4778, 1.0
      %v4780 = vrcp.pop %v4779
      %v4781 = vmul.f32 1.0, %v4780
      %v4782 = vtanh.pop %v4767
      %v4783 = vxor.u32 %v4768, 2147483648
      %v4784 = vmul.f32 %v4783, 1.442695
      %v4785 = vpow.pop %v4784
      %v4786 = vadd.f32 %v4785, 1.0
      %v4787 = vrcp.pop %v4786
      %v4788 = vmul.f32 1.0, %v4787
      %v4789 = vmul.f32 %v4781, %v4769
      %v4790 = vmul.f32 %v4775, %v4782
      %v4791 = vadd.f32 %v4789, %v4790
      %v4792 = vtanh.pop %v4791
      %v4793 = vmul.f32 %v4788, %v4792
      %4794 = vst [vmem:[#allocation5] sm:$0xff] %v4793
      %4795 = vst [vmem:[#allocation6] sm:$0xff] %v4791
      %s4796 = smul.u32 %s4480, 2
      %s4797 = smul.addr %s4796, 8
      %s4798 = scalar_lea.vmem %s17, %s4797
      %4799 = vst [vmem:[%s4798 + $0x8] sm:$0xff] %v4793
    $region136: #{global_module_forward.3} parent=1 // loop_footer
      %s4156 = sadd.s32 1, %s4152
    $region137: #{global_module_forward.3} parent=1 // loop_footer_branch
      %4151 = sbr.rel target = $region133
    $region138: #{global_module_forward.3} parent=1 // loop_exit
      _
    %v4800 = vld [vmem:[%s17] sm:$0xff]
    %v4801 = vld [vmem:[%s17 + $0x8] sm:$0xff]
    %v4802 = vld [vmem:[%s17 + $0x10] sm:$0xff]
    %v4803 = vld [vmem:[%s17 + $0x18] sm:$0xff]
    %v4804 = vld [vmem:[%s17 + $0x20] sm:$0xff]
    %v4805 = vld [vmem:[%s17 + $0x28] sm:$0xff]
    %v4806 = vld [vmem:[%s17 + $0x30] sm:$0xff]
    %v4807 = vld [vmem:[%s17 + $0x38] sm:$0xff]
    %v4808 = vpack.c.bf16 %v4802, %v4800
    %v4809 = vpack.c.bf16 %v4803, %v4801
    %v4810 = vpack.c.bf16 %v4806, %v4804
    %v4811 = vpack.c.bf16 %v4807, %v4805
    %v4812 = vld [vmem:[#allocation23] sm:$0xf]
    %v4813 = vld [vmem:[#allocation23 + $0x4] sm:$0xf]
    %v4814 = vld [vmem:[#allocation23 + $0x8] sm:$0xf]
    %v4815 = vld [vmem:[#allocation23 + $0xc] sm:$0xf]
    %v4816 = vld [vmem:[#allocation23 + $0x10] sm:$0xf]
    %v4817 = vld [vmem:[#allocation23 + $0x14] sm:$0xf]
    %v4818 = vld [vmem:[#allocation23 + $0x18] sm:$0xf]
    %v4819 = vld [vmem:[#allocation23 + $0x1c] sm:$0xf]
    %v4820 = vld [vmem:[#allocation23 + $0x20] sm:$0xf]
    %v4821 = vld [vmem:[#allocation23 + $0x24] sm:$0xf]
    %v4822 = vld [vmem:[#allocation23 + $0x28] sm:$0xf]
    %v4823 = vld [vmem:[#allocation23 + $0x2c] sm:$0xf]
    %v4824 = vld [vmem:[#allocation23 + $0x30] sm:$0xf]
    %v4825 = vld [vmem:[#allocation23 + $0x34] sm:$0xf]
    %v4826 = vld [vmem:[#allocation23 + $0x38] sm:$0xf]
    %v4827 = vld [vmem:[#allocation23 + $0x3c] sm:$0xf]
    %v4828 = vld [vmem:[#allocation23 + $0x40] sm:$0xf]
    %v4829 = vld [vmem:[#allocation23 + $0x44] sm:$0xf]
    %v4830 = vld [vmem:[#allocation23 + $0x48] sm:$0xf]
    %v4831 = vld [vmem:[#allocation23 + $0x4c] sm:$0xf]
    %v4832 = vld [vmem:[#allocation23 + $0x50] sm:$0xf]
    %v4833 = vld [vmem:[#allocation23 + $0x54] sm:$0xf]
    %v4834 = vld [vmem:[#allocation23 + $0x58] sm:$0xf]
    %v4835 = vld [vmem:[#allocation23 + $0x5c] sm:$0xf]
    %v4836 = vld [vmem:[#allocation23 + $0x60] sm:$0xf]
    %v4837 = vld [vmem:[#allocation23 + $0x64] sm:$0xf]
    %v4838 = vld [vmem:[#allocation23 + $0x68] sm:$0xf]
    %v4839 = vld [vmem:[#allocation23 + $0x6c] sm:$0xf]
    %v4840 = vld [vmem:[#allocation23 + $0x70] sm:$0xf]
    %v4841 = vld [vmem:[#allocation23 + $0x74] sm:$0xf]
    %v4842 = vld [vmem:[#allocation23 + $0x78] sm:$0xf]
    %v4843 = vld [vmem:[#allocation23 + $0x7c] sm:$0xf]
    %v4844 = vld [vmem:[%s14] sm:$0x1]
    %v4846 = vlaneseq
    %v4847 = vshrl.u32 %v4846, 7
    %v4848 = vsub.s32 0, %v4847
    %v4849 = vrot.slane %v4844, %v4848
    %v4883 = vunpack.c.l.b16 %v4812
    %v4884 = vunpack.c.l.b16 %v4813
    %v4885 = vunpack.c.l.b16 %v4814
    %v4886 = vunpack.c.l.b16 %v4815
    %v4887 = vunpack.c.l.b16 %v4816
    %v4888 = vunpack.c.l.b16 %v4817
    %v4889 = vunpack.c.l.b16 %v4818
    %v4890 = vunpack.c.l.b16 %v4819
    %v4891 = vunpack.c.l.b16 %v4820
    %v4892 = vunpack.c.l.b16 %v4821
    %v4893 = vunpack.c.l.b16 %v4822
    %v4894 = vunpack.c.l.b16 %v4823
    %v4895 = vunpack.c.l.b16 %v4824
    %v4896 = vunpack.c.l.b16 %v4825
    %v4897 = vunpack.c.l.b16 %v4826
    %v4898 = vunpack.c.l.b16 %v4827
    %v4899 = vunpack.c.l.b16 %v4828
    %v4900 = vunpack.c.l.b16 %v4829
    %v4901 = vunpack.c.l.b16 %v4830
    %v4902 = vunpack.c.l.b16 %v4831
    %v4903 = vunpack.c.l.b16 %v4832
    %v4904 = vunpack.c.l.b16 %v4833
    %v4905 = vunpack.c.l.b16 %v4834
    %v4906 = vunpack.c.l.b16 %v4835
    %v4907 = vunpack.c.l.b16 %v4836
    %v4908 = vunpack.c.l.b16 %v4837
    %v4909 = vunpack.c.l.b16 %v4838
    %v4910 = vunpack.c.l.b16 %v4839
    %v4911 = vunpack.c.l.b16 %v4840
    %v4912 = vunpack.c.l.b16 %v4841
    %v4913 = vunpack.c.l.b16 %v4842
    %v4914 = vunpack.c.l.b16 %v4843
    %v4915 = vpack.c.b16 %v4884, %v4883
    %v4916 = vpack.c.b16 %v4886, %v4885
    %v4917 = vpack.c.b16 %v4888, %v4887
    %v4918 = vpack.c.b16 %v4890, %v4889
    %v4919 = vpack.c.b16 %v4892, %v4891
    %v4920 = vpack.c.b16 %v4894, %v4893
    %v4921 = vpack.c.b16 %v4896, %v4895
    %v4922 = vpack.c.b16 %v4898, %v4897
    %v4923 = vpack.c.b16 %v4900, %v4899
    %v4924 = vpack.c.b16 %v4902, %v4901
    %v4925 = vpack.c.b16 %v4904, %v4903
    %v4926 = vpack.c.b16 %v4906, %v4905
    %v4927 = vpack.c.b16 %v4908, %v4907
    %v4928 = vpack.c.b16 %v4910, %v4909
    %v4929 = vpack.c.b16 %v4912, %v4911
    %v4930 = vpack.c.b16 %v4914, %v4913
    %4947 = vmatprep.subr.bf16.mxu0 0
    %4948 = vmatpush1.bf16.msra.mxu0 %v4922
    %4949 = vmatprep.subr.bf16.mxu0 0
    %4950 = vmatpush1.bf16.msra.mxu0 %v4921
    %4951 = vmatprep.subr.bf16.mxu0 0
    %4952 = vmatpush1.bf16.msra.mxu0 %v4920
    %4953 = vmatprep.subr.bf16.mxu0 0
    %4954 = vmatpush1.bf16.msra.mxu0 %v4919
    %4955 = vmatprep.subr.bf16.mxu0 0
    %4956 = vmatpush1.bf16.msra.mxu0 %v4918
    %4957 = vmatprep.subr.bf16.mxu0 0
    %4958 = vmatpush1.bf16.msra.mxu0 %v4917
    %4959 = vmatprep.subr.bf16.mxu0 0
    %4960 = vmatpush1.bf16.msra.mxu0 %v4916
    %4961 = vmatprep.subr.bf16.mxu0 0
    %4962 = vmatpush1.bf16.msra.mxu0 %v4915
    %4963 = vmatprep.subr.bf16.mxu0 0
    %4964 = vmatpush2.bf16.msra.mxu0 %v4930
    %4965 = vmatprep.subr.bf16.mxu0 0
    %4966 = vmatpush2.bf16.msra.mxu0 %v4929
    %4967 = vmatprep.subr.bf16.mxu0 0
    %4968 = vmatpush2.bf16.msra.mxu0 %v4928
    %4969 = vmatprep.subr.bf16.mxu0 0
    %4970 = vmatpush2.bf16.msra.mxu0 %v4927
    %4971 = vmatprep.subr.bf16.mxu0 0
    %4972 = vmatpush2.bf16.msra.mxu0 %v4926
    %4973 = vmatprep.subr.bf16.mxu0 0
    %4974 = vmatpush2.bf16.msra.mxu0 %v4925
    %4975 = vmatprep.subr.bf16.mxu0 0
    %4976 = vmatpush2.bf16.msra.mxu0 %v4924
    %4977 = vmatprep.subr.bf16.mxu0 0
    %4978 = vmatpush2.bf16.msra.mxu0 %v4923
    %4979 = vmatprep.mubr.bf16.mxu0 %v4809
    %4980 = vmatmul.mubr.bf16.gmra.mxu0 %v4808
    %v4981 = vpop.f32.mrf.mxu0
    %v4982 = vadd.f32 %v4849, %v4981
    %v4983 = vpop.f32.mrf.mxu0
    %v4984 = vpop.f32.mrf.mxu0
    %v4985 = vadd.f32 %v4849, %v4984
    %v4986 = vpop.f32.mrf.mxu0
    %4987 = vmatprep.mubr.bf16.mxu0 %v4811
    %4988 = vmatmul.mubr.bf16.gmra.mxu0 %v4810
    %v4989 = vpop.f32.mrf.mxu0
    %v4990 = vadd.f32 %v4849, %v4989
    %v4991 = vpop.f32.mrf.mxu0
    %v4992 = vpop.f32.mrf.mxu0
    %v4993 = vadd.f32 %v4849, %v4992
    %v4994 = vpop.f32.mrf.mxu0
    %4995 = vdwg.mxu0
    %v4996 = vmax.f32 %v4982, 0.0
    %v4997 = vmax.f32 %v4985, 0.0
    %v4998 = vmax.f32 %v4990, 0.0
    %v4999 = vmax.f32 %v4993, 0.0
    %v5000 = vpack.c.bf16 %v4997, %v4996
    %v5001 = vpack.c.bf16 %v4999, %v4998
    %v5002 = vld [vmem:[#allocation24] sm:$0xf]
    %v5003 = vld [vmem:[#allocation24 + $0x4] sm:$0xf]
    %v5004 = vld [vmem:[#allocation24 + $0x8] sm:$0xf]
    %v5005 = vld [vmem:[#allocation24 + $0xc] sm:$0xf]
    %v5006 = vld [vmem:[#allocation24 + $0x10] sm:$0xf]
    %v5007 = vld [vmem:[#allocation24 + $0x14] sm:$0xf]
    %v5008 = vld [vmem:[#allocation24 + $0x18] sm:$0xf]
    %v5009 = vld [vmem:[#allocation24 + $0x1c] sm:$0xf]
    %v5010 = vld [vmem:[#allocation24 + $0x20] sm:$0xf]
    %v5011 = vld [vmem:[#allocation24 + $0x24] sm:$0xf]
    %v5012 = vld [vmem:[#allocation24 + $0x28] sm:$0xf]
    %v5013 = vld [vmem:[#allocation24 + $0x2c] sm:$0xf]
    %v5014 = vld [vmem:[#allocation24 + $0x30] sm:$0xf]
    %v5015 = vld [vmem:[#allocation24 + $0x34] sm:$0xf]
    %v5016 = vld [vmem:[#allocation24 + $0x38] sm:$0xf]
    %v5017 = vld [vmem:[#allocation24 + $0x3c] sm:$0xf]
    %v5018 = vld [vmem:[%s16] sm:$0x1]
    %v5020 = vlaneseq
    %v5021 = vshrl.u32 %v5020, 7
    %v5022 = vsub.s32 0, %v5021
    %v5023 = vrot.slane %v5018, %v5022
    %v5041 = vunpack.c.l.b16 %v5002
    %v5042 = vunpack.c.l.b16 %v5003
    %v5043 = vunpack.c.l.b16 %v5004
    %v5044 = vunpack.c.l.b16 %v5005
    %v5045 = vunpack.c.l.b16 %v5006
    %v5046 = vunpack.c.l.b16 %v5007
    %v5047 = vunpack.c.l.b16 %v5008
    %v5048 = vunpack.c.l.b16 %v5009
    %v5049 = vunpack.c.l.b16 %v5010
    %v5050 = vunpack.c.l.b16 %v5011
    %v5051 = vunpack.c.l.b16 %v5012
    %v5052 = vunpack.c.l.b16 %v5013
    %v5053 = vunpack.c.l.b16 %v5014
    %v5054 = vunpack.c.l.b16 %v5015
    %v5055 = vunpack.c.l.b16 %v5016
    %v5056 = vunpack.c.l.b16 %v5017
    %v5057 = vpack.c.b16 %v5042, %v5041
    %v5058 = vpack.c.b16 %v5044, %v5043
    %v5059 = vpack.c.b16 %v5046, %v5045
    %v5060 = vpack.c.b16 %v5048, %v5047
    %v5061 = vpack.c.b16 %v5050, %v5049
    %v5062 = vpack.c.b16 %v5052, %v5051
    %v5063 = vpack.c.b16 %v5054, %v5053
    %v5064 = vpack.c.b16 %v5056, %v5055
    %5073 = vmatprep.subr.bf16.mxu0 0
    %5074 = vmatpush1.bf16.msra.mxu0 %v5064
    %5075 = vmatprep.subr.bf16.mxu0 0
    %5076 = vmatpush1.bf16.msra.mxu0 %v5063
    %5077 = vmatprep.subr.bf16.mxu0 0
    %5078 = vmatpush1.bf16.msra.mxu0 %v5062
    %5079 = vmatprep.subr.bf16.mxu0 0
    %5080 = vmatpush1.bf16.msra.mxu0 %v5061
    %5081 = vmatprep.subr.bf16.mxu0 0
    %5082 = vmatpush1.bf16.msra.mxu0 %v5060
    %5083 = vmatprep.subr.bf16.mxu0 0
    %5084 = vmatpush1.bf16.msra.mxu0 %v5059
    %5085 = vmatprep.subr.bf16.mxu0 0
    %5086 = vmatpush1.bf16.msra.mxu0 %v5058
    %5087 = vmatprep.subr.bf16.mxu0 0
    %5088 = vmatpush1.bf16.msra.mxu0 %v5057
    %5089 = vmatprep.subr.bf16.mxu0 0
    %5090 = vmatpush2.bf16.msra.mxu0 0
    %5091 = vmatprep.subr.bf16.mxu0 0
    %5092 = vmatpush2.bf16.msra.mxu0 0
    %5093 = vmatprep.subr.bf16.mxu0 0
    %5094 = vmatpush2.bf16.msra.mxu0 0
    %5095 = vmatprep.subr.bf16.mxu0 0
    %5096 = vmatpush2.bf16.msra.mxu0 0
    %5097 = vmatprep.subr.bf16.mxu0 0
    %5098 = vmatpush2.bf16.msra.mxu0 0
    %5099 = vmatprep.subr.bf16.mxu0 0
    %5100 = vmatpush2.bf16.msra.mxu0 0
    %5101 = vmatprep.subr.bf16.mxu0 0
    %5102 = vmatpush2.bf16.msra.mxu0 0
    %5103 = vmatprep.subr.bf16.mxu0 0
    %5104 = vmatpush2.bf16.msra.mxu0 0
    %5105 = vmatprep.mubr.bf16.mxu0 0
    %5106 = vmatmul.mubr.bf16.gmra.mxu0 %v5000
    %v5107 = vpop.f32.mrf.mxu0
    %v5108 = vadd.f32 %v5023, %v5107
    %v5109 = vpop.f32.mrf.mxu0
    %v5110 = vpop.f32.mrf.mxu0
    %v5111 = vadd.f32 %v5023, %v5110
    %v5112 = vpop.f32.mrf.mxu0
    %5113 = vmatprep.mubr.bf16.mxu0 0
    %5114 = vmatmul.mubr.bf16.gmra.mxu0 %v5001
    %v5115 = vpop.f32.mrf.mxu0
    %v5116 = vadd.f32 %v5023, %v5115
    %v5117 = vpop.f32.mrf.mxu0
    %v5118 = vpop.f32.mrf.mxu0
    %v5119 = vadd.f32 %v5023, %v5118
    %v5120 = vpop.f32.mrf.mxu0
    %5121 = vdwg.mxu0
    %5122 = vst [vmem:[%s18] sm:$0xff] %v5108
    %5123 = vst [vmem:[%s18 + $0x8] sm:$0xff] %v5111
    %5124 = vst [vmem:[%s18 + $0x10] sm:$0xff] %v5116
    %5125 = vst [vmem:[%s18 + $0x18] sm:$0xff] %v5119
    // Predicated region
    $region139: #{global_module_forward.3} parent=1 // pred_check
      _
    $region140: #{global_module_forward.3} parent=1 // pred_check_branch
      %5127 = sbr.rel (0) target = $region142
    $region141: #{global_module_forward.3} parent=1 // pred_region
      _
    $region142: #{global_module_forward.3} parent=1 // pred_fallthru
      _
    // Predicated region
    $region143: #{global_module_forward.3} parent=1 // pred_check
      _
    $region144: #{global_module_forward.3} parent=1 // pred_check_branch
      %5129 = sbr.rel (0) target = $region146
    $region145: #{global_module_forward.3} parent=1 // pred_region
      _
    $region146: #{global_module_forward.3} parent=1 // pred_fallthru
      _
    // Predicated region
    $region147: #{global_module_forward.3} parent=1 // pred_check
      _
    $region148: #{global_module_forward.3} parent=1 // pred_check_branch
      %5131 = sbr.rel (0) target = $region150
    $region149: #{global_module_forward.3} parent=1 // pred_region
      _
    $region150: #{global_module_forward.3} parent=1 // pred_fallthru
      _
    // Predicated region
    $region151: #{global_module_forward.3} parent=1 // pred_check
      _
    $region152: #{global_module_forward.3} parent=1 // pred_check_branch
      %5133 = sbr.rel (0) target = $region154
    $region153: #{global_module_forward.3} parent=1 // pred_region
      _
    $region154: #{global_module_forward.3} parent=1 // pred_fallthru
      _
    %5134 = vsyncpa [#allocation8], 1
    %5135 = vsyncpa [#allocation10], 1
    %5136 = vsyncpa [#allocation13], 1
    %5137 = vsyncpa [#allocation16], 1
    %5138 = vsyncpa [#allocation19], 1
    %5139 = vsyncpa [#allocation22], 1
    %5140 = vsyncpa [#allocation25], 1

</llo_original>
